<compile_context>
chip_gen: v6e
topology: v6e:2x2x1
jax: 0.10.0
libtpu: 0.0.40
codegen_flags: <defaults>
</compile_context>

<pallas_src>
import jax
import jax.numpy as jnp
import numpy as np
from jax.experimental import pallas as pl
from jax.experimental.pallas import tpu as pltpu


LANE = 128  # lane-dense padding for the narrow (2- and polarities-wide) heads


# ---------------------------------------------------------------------------
# Fused kernel: elementwise + Linear(2D->D) + classifier + LSTM + dense
# ---------------------------------------------------------------------------
def _fused_lca_lstm_kernel(
    # scalar prefetch (SMEM)
    maxlen_ref,
    # inputs
    xg_ref, lce_ref, yl_ref, mask_ref, xlen_ref,
    wx_ref, wy_ref, blin_ref, wc_ref, bc_ref,
    wih_ref, whh_ref, blstm_ref, wd_ref, bd_ref,
    # outputs
    logits_ref, out_ref,
    # scratch
    h_sc, c_sc,
):
    step = pl.program_id(0)
    B, T, D = xg_ref.shape
    n = B * T

    @pl.when(step == 0)
    def _():
        h_sc[...] = jnp.zeros_like(h_sc)
        c_sc[...] = jnp.zeros_like(c_sc)

    # ---- fused elementwise + Linear(2D->D) + classifier over the T-block ----
    # Products stay in bf16 (inputs are bf16; the products feed bf16 MXU
    # operands anyway).  No concat: two K=D dots against the weight halves.
    x = (xg_ref[...] * lce_ref[...]).reshape(n, D)            # (n, D) bf16
    y = (yl_ref[...] * mask_ref[...]).reshape(n, D)           # (n, D) bf16

    xlin = (jnp.dot(x, wx_ref[...], preferred_element_type=jnp.float32)
            + jnp.dot(y, wy_ref[...], preferred_element_type=jnp.float32)
            + blin_ref[...])                                  # (n, D) f32
    xlin_bf = xlin.astype(jnp.bfloat16)

    logits = (jnp.dot(xlin_bf, wc_ref[...],
                      preferred_element_type=jnp.float32)
              + bc_ref[...])                                  # (n, 128) f32
    logits_ref[...] = logits.reshape(B, T, LANE).astype(logits_ref.dtype)

    t0 = step * T

    # ---- T-step LSTM recurrence (skipped entirely past the longest seq) ----
    @pl.when(t0 < maxlen_ref[0])
    def _():
        # Hoisted input-to-hidden matmul + bias: one (n, D) x (D, 4D) matmul
        # per block instead of T tiny matmuls on the serial critical path.
        gates_x = (jnp.dot(xlin_bf, wih_ref[...],
                           preferred_element_type=jnp.float32)
                   + blstm_ref[...]).reshape(B, T, 4 * D)     # (B, T, 4D) f32

        steps_left = xlen_ref[...] - t0                       # (B, 1) int32
        h = h_sc[...]
        c = c_sc[...]
        for j in range(T):            # static unroll: h/c stay in vregs
            # Recurrent matmul is the only MXU work per step now.
            gates = gates_x[:, j, :] + jnp.dot(
                h.astype(jnp.bfloat16), whh_ref[...],
                preferred_element_type=jnp.float32)           # (B, 4D) f32
            i_g = jax.nn.sigmoid(gates[:, 0 * D:1 * D])
            f_g = jax.nn.sigmoid(gates[:, 1 * D:2 * D])
            g_g = jnp.tanh(gates[:, 2 * D:3 * D])
            o_g = jax.nn.sigmoid(gates[:, 3 * D:4 * D])
            c_new = f_g * c + i_g * g_g
            h_new = o_g * jnp.tanh(c_new)
            valid = steps_left > j                            # (B, 1) freeze
            h = jnp.where(valid, h_new, h)
            c = jnp.where(valid, c_new, c)
        h_sc[...] = h
        c_sc[...] = c

    @pl.when(step == pl.num_programs(0) - 1)
    def _():
        out_ref[...] = (jnp.dot(h_sc[...].astype(jnp.bfloat16), wd_ref[...],
                                preferred_element_type=jnp.float32)
                        + bd_ref[...])                        # (B, 128) f32


# ---------------------------------------------------------------------------
# LCA_LSTM forward (glue + fused kernel)
# ---------------------------------------------------------------------------
def _vmem_budget_bytes(B, T, D):
    """Rough buffer inventory -> vmem limit (with headroom)."""
    act = 4 * 2 * B * T * D * 2                    # 4 bf16 streams, 2 buffers
    logits = 2 * B * T * LANE * 2                  # bf16 logits out, 2 buffers
    weights = (2 * D * D + 2 * D * 4 * D + 2 * D * LANE) * 2   # bf16, 1 buffer
    biases = (D + 4 * D + 2 * LANE) * 4
    scratch = 2 * B * D * 4 + B * LANE * 4 + B * 4
    est = act + logits + weights + biases + scratch
    # Generous floor; cap well under v7x's 64 MiB physical VMEM.
    return min(48 * 1024 * 1024, max(32 * 1024 * 1024, 2 * est))


def lca_lstm_forward(params, inputs, opt, *, time_block=32):
    tg, tl, lca_ids, mask = inputs
    B, L = tg.shape
    D = opt["embed_dim"]
    P = opt["polarities_dim"]

    # Embedding gathers (plain JAX), bf16 activations to halve HBM traffic.
    embed_bf = params["embed"].astype(jnp.bfloat16)
    xg = jnp.take(embed_bf, tg, axis=0)                      # (B, L, D)
    yl = jnp.take(embed_bf, tl, axis=0)                      # (B, L, D)
    if opt["lca"] and "lca" in opt["model_name"]:
        lce = jnp.take(params["lc_embed"].astype(jnp.bfloat16), lca_ids, axis=0)
    else:
        lce = jnp.ones_like(xg)
    # NOTE: mask multiplied in bf16 (exact for 0/1 masks).
    mask_bf = mask.astype(jnp.bfloat16)

    x_len = jnp.sum(tg != 0, axis=-1).astype(jnp.int32)      # (B,)
    max_len = jnp.max(x_len).reshape(1)                      # scalar prefetch

    # Weight prep: split / stacked / lane-padded, bf16 MXU operands, f32 bias.
    w_x = params["w_lin_t"][:D, :].astype(jnp.bfloat16)      # (D, D)
    w_y = params["w_lin_t"][D:, :].astype(jnp.bfloat16)      # (D, D)
    b_lin = params["b_lin"]                                  # (1, D) f32
    wc_pad = jnp.pad(params["wc_t"], ((0, 0), (0, LANE - 2))).astype(jnp.bfloat16)
    bc_pad = jnp.pad(params["b_cls"], ((0, 0), (0, LANE - 2)))
    w_ih = params["w_ih_t"].astype(jnp.bfloat16)             # (D, 4D), i,f,g,o
    w_hh = params["w_hh_t"].astype(jnp.bfloat16)             # (D, 4D)
    b_lstm = params["b_lstm"]                                # (1, 4D) f32
    wd_pad = jnp.pad(params["wd_t"], ((0, 0), (0, LANE - P))).astype(jnp.bfloat16)
    bd_pad = jnp.pad(params["b_dense"], ((0, 0), (0, LANE - P)))

    # Pad the time axis to a multiple of the per-grid-step block.
    T = time_block
    Lp = ((L + T - 1) // T) * T
    if Lp != L:
        pad = ((0, 0), (0, Lp - L), (0, 0))
        xg = jnp.pad(xg, pad)
        yl = jnp.pad(yl, pad)
        lce = jnp.pad(lce, pad)
        mask_bf = jnp.pad(mask_bf, pad)

    xlen2 = x_len.reshape(B, 1)

    act_spec = pl.BlockSpec((B, T, D), lambda s, ml: (0, s, 0))

    def pinned(shape):
        # Time-invariant operand: constant block index, single-buffered.
        return pl.BlockSpec(shape, lambda s, ml: (0, 0),
                            pipeline_mode=pl.Buffered(1))

    logits_pad, out_pad = pl.pallas_call(
        _fused_lca_lstm_kernel,
        out_shape=(
            jax.ShapeDtypeStruct((B, Lp, LANE), jnp.bfloat16),  # lca logits
            jax.ShapeDtypeStruct((B, LANE), jnp.float32),       # dense(h_n)
        ),
        grid_spec=pltpu.PrefetchScalarGridSpec(
            num_scalar_prefetch=1,
            grid=(Lp // T,),
            in_specs=[
                act_spec, act_spec, act_spec, act_spec,          # xg, lce, yl, mask
                pinned((B, 1)),                                  # x_len
                pinned((D, D)), pinned((D, D)), pinned((1, D)),  # Linear(2D->D)
                pinned((D, LANE)), pinned((1, LANE)),            # classifier
                pinned((D, 4 * D)), pinned((D, 4 * D)),          # LSTM W_ih, W_hh
                pinned((1, 4 * D)),                              # LSTM bias
                pinned((D, LANE)), pinned((1, LANE)),            # dense head
            ],
            out_specs=(
                pl.BlockSpec((B, T, LANE), lambda s, ml: (0, s, 0)),
                pl.BlockSpec((B, LANE), lambda s, ml: (0, 0)),
            ),
            scratch_shapes=[pltpu.VMEM((B, D), jnp.float32),     # h
                            pltpu.VMEM((B, D), jnp.float32)],    # c
        ),
        compiler_params=pltpu.CompilerParams(
            dimension_semantics=("arbitrary",),   # recurrence => sequential
            vmem_limit_bytes=_vmem_budget_bytes(B, T, D),
        ),
    )(max_len, xg, lce, yl, mask_bf, xlen2,
      w_x, w_y, b_lin, wc_pad, bc_pad, w_ih, w_hh, b_lstm, wd_pad, bd_pad)

    out = out_pad[:, :P]
    lca_logits = logits_pad[:, :L, :2].astype(jnp.float32).reshape(-1, 2)
    lca_ids_flat = lca_ids.reshape(-1)
    if opt["lcp"]:
        return out, lca_logits, lca_ids_flat
    return out


# ---------------------------------------------------------------------------
# Pure-JAX f32 reference (module semantics) for the correctness check
# ---------------------------------------------------------------------------
def reference_forward(params, inputs, opt):
    tg, tl, lca_ids, mask = inputs
    D = opt["embed_dim"]
    x = params["embed"][tg]
    y = params["embed"][tl]
    if opt["lca"] and "lca" in opt["model_name"]:
        x = x * params["lc_embed"][lca_ids]
    y = y * mask
    xlin = jnp.concatenate([x, y], axis=-1) @ params["w_lin_t"] + params["b_lin"][0]
    logits = xlin @ params["wc_t"] + params["b_cls"][0]
    x_len = jnp.sum(tg != 0, axis=-1)
    B, L, _ = xlin.shape
    h = jnp.zeros((B, D), jnp.float32)
    c = jnp.zeros((B, D), jnp.float32)
    for t in range(L):
        g = (xlin[:, t] @ params["w_ih_t"] + h @ params["w_hh_t"]
             + params["b_lstm"][0])
        i_g = jax.nn.sigmoid(g[:, 0 * D:1 * D])
        f_g = jax.nn.sigmoid(g[:, 1 * D:2 * D])
        g_g = jnp.tanh(g[:, 2 * D:3 * D])
        o_g = jax.nn.sigmoid(g[:, 3 * D:4 * D])
        c_new = f_g * c + i_g * g_g
        h_new = o_g * jnp.tanh(c_new)
        valid = (t < x_len)[:, None]
        h = jnp.where(valid, h_new, h)
        c = jnp.where(valid, c_new, c)
    out = h @ params["wd_t"] + params["b_dense"][0]
    return out, logits.reshape(-1, 2), lca_ids.reshape(-1)


# ---------------------------------------------------------------------------
if __name__ == "__main__":
    B, L, D, P, V = 4, 72, 32, 3, 50
    opt = dict(lca=True, lcp=True, model_name="lca_lstm",
               embed_dim=D, polarities_dim=P)

    key = jax.random.PRNGKey(0)
    ks = jax.random.split(key, 16)

    def bf16_exact(a):
        # Round params to bf16-representable values so the kernel's bf16 weight
        # casts are lossless and the f32 reference remains a tight oracle.
        return a.astype(jnp.bfloat16).astype(jnp.float32)

    params = {
        "embed":    bf16_exact(jax.random.normal(ks[0], (V, D)) * 0.5),
        "lc_embed": bf16_exact(jax.random.normal(ks[1], (2, D)) * 0.5),
        # Linear(2D -> D): weight stored transposed (2D, D); x-rows then y-rows.
        "w_lin_t":  bf16_exact(jax.random.normal(ks[2], (2 * D, D)) * 0.1),
        "b_lin":    bf16_exact(jax.random.normal(ks[3], (1, D)) * 0.1),
        # classifier(D -> 2)
        "wc_t":     bf16_exact(jax.random.normal(ks[4], (D, 2)) * 0.1),
        "b_cls":    bf16_exact(jax.random.normal(ks[5], (1, 2)) * 0.1),
        # LSTM gate weights stacked along the output axis, gate order (i,f,g,o)
        "w_ih_t":   bf16_exact(jax.random.normal(ks[6], (D, 4 * D)) * 0.1),
        "w_hh_t":   bf16_exact(jax.random.normal(ks[7], (D, 4 * D)) * 0.1),
        "b_lstm":   bf16_exact(jax.random.normal(ks[8], (1, 4 * D)) * 0.1),
        # dense(D -> polarities)
        "wd_t":     bf16_exact(jax.random.normal(ks[9], (D, P)) * 0.1),
        "b_dense":  bf16_exact(jax.random.normal(ks[10], (1, P)) * 0.1),
    }

    # Deterministic synthetic inputs with ragged valid lengths (padding id 0).
    lens = jnp.array([40, 33, 17, 5], jnp.int32)
    pos = jnp.arange(L)[None, :]
    tg = jax.random.randint(ks[11], (B, L), 1, V)
    tg = jnp.where(pos < lens[:, None], tg, 0)
    tl = jax.random.randint(ks[12], (B, L), 1, V)
    tl = jnp.where(pos < lens[:, None], tl, 0)
    lca_ids = jax.random.randint(ks[13], (B, L), 0, 2)
    mask_matrix = (jax.random.uniform(ks[14], (B, L, D)) > 0.3).astype(jnp.float32)

    inputs = (tg, tl, lca_ids, mask_matrix)

    out, lca_logits, lca_ids_flat = lca_lstm_forward(params, inputs, opt)
    out = jax.block_until_ready(out)

    ref_out, ref_logits, ref_ids = reference_forward(params, inputs, opt)
    np.testing.assert_allclose(np.asarray(out), np.asarray(ref_out),
                               rtol=2e-2, atol=2e-2)
    np.testing.assert_allclose(np.asarray(lca_logits), np.asarray(ref_logits),
                               rtol=2e-2, atol=2e-2)
    np.testing.assert_array_equal(np.asarray(lca_ids_flat), np.asarray(ref_ids))

    print("KERNEL_OK")
</pallas_src>

<mosaic_0001>
module attributes {stable_mosaic.version = 11 : i64} {
  func.func @_fused_lca_lstm_kernel(%arg0: i32, %arg1: memref<1xi32, #tpu.memory_space<smem>>, %arg2: memref<4x32x32xbf16, #tpu.memory_space<vmem>>, %arg3: memref<4x32x32xbf16, #tpu.memory_space<vmem>>, %arg4: memref<4x32x32xbf16, #tpu.memory_space<vmem>>, %arg5: memref<4x32x32xbf16, #tpu.memory_space<vmem>>, %arg6: memref<4x1xi32, #tpu.memory_space<vmem>>, %arg7: memref<32x32xbf16, #tpu.memory_space<vmem>>, %arg8: memref<32x32xbf16, #tpu.memory_space<vmem>>, %arg9: memref<1x32xf32, #tpu.memory_space<vmem>>, %arg10: memref<32x128xbf16, #tpu.memory_space<vmem>>, %arg11: memref<1x128xf32, #tpu.memory_space<vmem>>, %arg12: memref<32x128xbf16, #tpu.memory_space<vmem>>, %arg13: memref<32x128xbf16, #tpu.memory_space<vmem>>, %arg14: memref<1x128xf32, #tpu.memory_space<vmem>>, %arg15: memref<32x128xbf16, #tpu.memory_space<vmem>>, %arg16: memref<1x128xf32, #tpu.memory_space<vmem>>, %arg17: memref<4x32x128xbf16, #tpu.memory_space<vmem>>, %arg18: memref<4x128xf32, #tpu.memory_space<vmem>>, %arg19: memref<4x32xf32, #tpu.memory_space<vmem>>, %arg20: memref<4x32xf32, #tpu.memory_space<vmem>>) attributes {dimension_semantics = [#tpu.dimension_semantics<arbitrary>], iteration_bounds = array<i64: 3>, scalar_prefetch = 1 : i64, scratch_operands = 2 : i64, tpu.core_type = #tpu.core_type<tc>, window_params = [{transform_indices = @transform_0, window_bounds = array<i64: 4, 32, 32>}, {transform_indices = @transform_1, window_bounds = array<i64: 4, 32, 32>}, {transform_indices = @transform_2, window_bounds = array<i64: 4, 32, 32>}, {transform_indices = @transform_3, window_bounds = array<i64: 4, 32, 32>}, {pipeline_mode = #tpu.pipeline_mode<synchronous>, transform_indices = @transform_4, window_bounds = array<i64: 4, 1>}, {pipeline_mode = #tpu.pipeline_mode<synchronous>, transform_indices = @transform_5, window_bounds = array<i64: 32, 32>}, {pipeline_mode = #tpu.pipeline_mode<synchronous>, transform_indices = @transform_6, window_bounds = array<i64: 32, 32>}, {pipeline_mode = #tpu.pipeline_mode<synchronous>, transform_indices = @transform_7, window_bounds = array<i64: 1, 32>}, {pipeline_mode = #tpu.pipeline_mode<synchronous>, transform_indices = @transform_8, window_bounds = array<i64: 32, 128>}, {pipeline_mode = #tpu.pipeline_mode<synchronous>, transform_indices = @transform_9, window_bounds = array<i64: 1, 128>}, {pipeline_mode = #tpu.pipeline_mode<synchronous>, transform_indices = @transform_10, window_bounds = array<i64: 32, 128>}, {pipeline_mode = #tpu.pipeline_mode<synchronous>, transform_indices = @transform_11, window_bounds = array<i64: 32, 128>}, {pipeline_mode = #tpu.pipeline_mode<synchronous>, transform_indices = @transform_12, window_bounds = array<i64: 1, 128>}, {pipeline_mode = #tpu.pipeline_mode<synchronous>, transform_indices = @transform_13, window_bounds = array<i64: 32, 128>}, {pipeline_mode = #tpu.pipeline_mode<synchronous>, transform_indices = @transform_14, window_bounds = array<i64: 1, 128>}, {transform_indices = @transform_15, window_bounds = array<i64: 4, 32, 128>}, {pipeline_mode = #tpu.pipeline_mode<synchronous>, transform_indices = @transform_16, window_bounds = array<i64: 4, 128>}]} {
    %c0_i32 = arith.constant 0 : i32
    %0 = arith.cmpi eq, %arg0, %c0_i32 : i32
    %1 = arith.extui %0 : i1 to i32
    %c0_i32_0 = arith.constant 0 : i32
    %2 = arith.cmpi ne, %1, %c0_i32_0 : i32
    scf.if %2 {
      %cst_30 = arith.constant 0.000000e+00 : f32
      %36 = vector.broadcast %cst_30 : f32 to vector<4x32xf32>
      %c0_31 = arith.constant 0 : index
      %c0_32 = arith.constant 0 : index
      %37 = vector.load %arg19[%c0_31, %c0_32] : memref<4x32xf32, #tpu.memory_space<vmem>>, vector<4x32xf32>
      tpu.vector_store %arg19[%c0_31, %c0_32], %36 {strides = array<i32>} : memref<4x32xf32, #tpu.memory_space<vmem>>, vector<4x32xf32>,
      %cst_33 = arith.constant 0.000000e+00 : f32
      %38 = vector.broadcast %cst_33 : f32 to vector<4x32xf32>
      %c0_34 = arith.constant 0 : index
      %c0_35 = arith.constant 0 : index
      %39 = vector.load %arg20[%c0_34, %c0_35] : memref<4x32xf32, #tpu.memory_space<vmem>>, vector<4x32xf32>
      tpu.vector_store %arg20[%c0_34, %c0_35], %38 {strides = array<i32>} : memref<4x32xf32, #tpu.memory_space<vmem>>, vector<4x32xf32>,
    } else {
    }
    %c0 = arith.constant 0 : index
    %c0_1 = arith.constant 0 : index
    %c0_2 = arith.constant 0 : index
    %3 = vector.load %arg2[%c0, %c0_1, %c0_2] : memref<4x32x32xbf16, #tpu.memory_space<vmem>>, vector<4x32x32xbf16>
    %c0_3 = arith.constant 0 : index
    %c0_4 = arith.constant 0 : index
    %c0_5 = arith.constant 0 : index
    %4 = vector.load %arg3[%c0_3, %c0_4, %c0_5] : memref<4x32x32xbf16, #tpu.memory_space<vmem>>, vector<4x32x32xbf16>
    %5 = arith.mulf %3, %4 : vector<4x32x32xbf16>
    %6 = vector.shape_cast %5 : vector<4x32x32xbf16> to vector<128x32xbf16>
    %c0_6 = arith.constant 0 : index
    %c0_7 = arith.constant 0 : index
    %c0_8 = arith.constant 0 : index
    %7 = vector.load %arg4[%c0_6, %c0_7, %c0_8] : memref<4x32x32xbf16, #tpu.memory_space<vmem>>, vector<4x32x32xbf16>
    %c0_9 = arith.constant 0 : index
    %c0_10 = arith.constant 0 : index
    %c0_11 = arith.constant 0 : index
    %8 = vector.load %arg5[%c0_9, %c0_10, %c0_11] : memref<4x32x32xbf16, #tpu.memory_space<vmem>>, vector<4x32x32xbf16>
    %9 = arith.mulf %7, %8 : vector<4x32x32xbf16>
    %10 = vector.shape_cast %9 : vector<4x32x32xbf16> to vector<128x32xbf16>
    %c0_12 = arith.constant 0 : index
    %c0_13 = arith.constant 0 : index
    %11 = vector.load %arg7[%c0_12, %c0_13] : memref<32x32xbf16, #tpu.memory_space<vmem>>, vector<32x32xbf16>
    %cst = arith.constant dense<0.000000e+00> : vector<128x32xf32>
    %12 = tpu.matmul %6, %11, %cst {dimension_numbers = #tpu.dot_dimension_numbers<[1], [0], [0], [1], [0, 0, 1, 1], [], []>} : vector<128x32xbf16>, vector<32x32xbf16>, vector<128x32xf32> -> vector<128x32xf32>
    %c0_14 = arith.constant 0 : index
    %c0_15 = arith.constant 0 : index
    %13 = vector.load %arg8[%c0_14, %c0_15] : memref<32x32xbf16, #tpu.memory_space<vmem>>, vector<32x32xbf16>
    %cst_16 = arith.constant dense<0.000000e+00> : vector<128x32xf32>
    %14 = tpu.matmul %10, %13, %cst_16 {dimension_numbers = #tpu.dot_dimension_numbers<[1], [0], [0], [1], [0, 0, 1, 1], [], []>} : vector<128x32xbf16>, vector<32x32xbf16>, vector<128x32xf32> -> vector<128x32xf32>
    %15 = arith.addf %12, %14 : vector<128x32xf32>
    %c0_17 = arith.constant 0 : index
    %c0_18 = arith.constant 0 : index
    %16 = vector.load %arg9[%c0_17, %c0_18] : memref<1x32xf32, #tpu.memory_space<vmem>>, vector<1x32xf32>
    %17 = vector.broadcast %16 : vector<1x32xf32> to vector<128x32xf32>
    %18 = arith.addf %15, %17 : vector<128x32xf32>
    %19 = arith.truncf %18 : vector<128x32xf32> to vector<128x32xbf16>
    %c0_19 = arith.constant 0 : index
    %c0_20 = arith.constant 0 : index
    %20 = vector.load %arg10[%c0_19, %c0_20] : memref<32x128xbf16, #tpu.memory_space<vmem>>, vector<32x128xbf16>
    %cst_21 = arith.constant dense<0.000000e+00> : vector<128x128xf32>
    %21 = tpu.matmul %19, %20, %cst_21 {dimension_numbers = #tpu.dot_dimension_numbers<[1], [0], [0], [1], [0, 0, 1, 1], [], []>} : vector<128x32xbf16>, vector<32x128xbf16>, vector<128x128xf32> -> vector<128x128xf32>
    %c0_22 = arith.constant 0 : index
    %c0_23 = arith.constant 0 : index
    %22 = vector.load %arg11[%c0_22, %c0_23] : memref<1x128xf32, #tpu.memory_space<vmem>>, vector<1x128xf32>
    %23 = vector.broadcast %22 : vector<1x128xf32> to vector<128x128xf32>
    %24 = arith.addf %21, %23 : vector<128x128xf32>
    %25 = vector.shape_cast %24 : vector<128x128xf32> to vector<4x32x128xf32>
    %26 = arith.truncf %25 : vector<4x32x128xf32> to vector<4x32x128xbf16>
    %c0_24 = arith.constant 0 : index
    %c0_25 = arith.constant 0 : index
    %c0_26 = arith.constant 0 : index
    %27 = vector.load %arg17[%c0_24, %c0_25, %c0_26] : memref<4x32x128xbf16, #tpu.memory_space<vmem>>, vector<4x32x128xbf16>
    tpu.vector_store %arg17[%c0_24, %c0_25, %c0_26], %26 {strides = array<i32>} : memref<4x32x128xbf16, #tpu.memory_space<vmem>>, vector<4x32x128xbf16>,
    %c32_i32 = arith.constant 32 : i32
    %28 = arith.muli %arg0, %c32_i32 : i32
    %c0_27 = arith.constant 0 : index
    %29 = memref.load %arg1[%c0_27] : memref<1xi32, #tpu.memory_space<smem>>
    %30 = arith.cmpi slt, %28, %29 : i32
    %31 = arith.extui %30 : i1 to i32
    %c0_i32_28 = arith.constant 0 : i32
    %32 = arith.cmpi ne, %31, %c0_i32_28 : i32
    scf.if %32 {
      %c0_30 = arith.constant 0 : index
      %c0_31 = arith.constant 0 : index
      %36 = vector.load %arg12[%c0_30, %c0_31] : memref<32x128xbf16, #tpu.memory_space<vmem>>, vector<32x128xbf16>
      %cst_32 = arith.constant dense<0.000000e+00> : vector<128x128xf32>
      %37 = tpu.matmul %19, %36, %cst_32 {dimension_numbers = #tpu.dot_dimension_numbers<[1], [0], [0], [1], [0, 0, 1, 1], [], []>} : vector<128x32xbf16>, vector<32x128xbf16>, vector<128x128xf32> -> vector<128x128xf32>
      %c0_33 = arith.constant 0 : index
      %c0_34 = arith.constant 0 : index
      %38 = vector.load %arg14[%c0_33, %c0_34] : memref<1x128xf32, #tpu.memory_space<vmem>>, vector<1x128xf32>
      %39 = vector.broadcast %38 : vector<1x128xf32> to vector<128x128xf32>
      %40 = arith.addf %37, %39 : vector<128x128xf32>
      %41 = vector.shape_cast %40 : vector<128x128xf32> to vector<4x32x128xf32>
      %c0_35 = arith.constant 0 : index
      %c0_36 = arith.constant 0 : index
      %42 = vector.load %arg6[%c0_35, %c0_36] : memref<4x1xi32, #tpu.memory_space<vmem>>, vector<4x1xi32>
      %43 = vector.broadcast %28 : i32 to vector<4x1xi32>
      %44 = arith.subi %42, %43 : vector<4x1xi32>
      %c0_37 = arith.constant 0 : index
      %c0_38 = arith.constant 0 : index
      %45 = vector.load %arg19[%c0_37, %c0_38] : memref<4x32xf32, #tpu.memory_space<vmem>>, vector<4x32xf32>
      %c0_39 = arith.constant 0 : index
      %c0_40 = arith.constant 0 : index
      %46 = vector.load %arg20[%c0_39, %c0_40] : memref<4x32xf32, #tpu.memory_space<vmem>>, vector<4x32xf32>
      %47 = vector.extract_strided_slice %41 {offsets = [0, 0, 0], sizes = [4, 1, 128], strides = [1, 1, 1]} : vector<4x32x128xf32> to vector<4x1x128xf32>
      %48 = vector.shape_cast %47 : vector<4x1x128xf32> to vector<4x128xf32>
      %49 = arith.truncf %45 : vector<4x32xf32> to vector<4x32xbf16>
      %c0_41 = arith.constant 0 : index
      %c0_42 = arith.constant 0 : index
      %50 = vector.load %arg13[%c0_41, %c0_42] : memref<32x128xbf16, #tpu.memory_space<vmem>>, vector<32x128xbf16>
      %cst_43 = arith.constant dense<0.000000e+00> : vector<4x128xf32>
      %51 = tpu.matmul %49, %50, %cst_43 {dimension_numbers = #tpu.dot_dimension_numbers<[1], [0], [0], [1], [0, 0, 1, 1], [], []>} : vector<4x32xbf16>, vector<32x128xbf16>, vector<4x128xf32> -> vector<4x128xf32>
      %52 = arith.addf %48, %51 : vector<4x128xf32>
      %53 = vector.extract_strided_slice %52 {offsets = [0, 0], sizes = [4, 32], strides = [1, 1]} : vector<4x128xf32> to vector<4x32xf32>
      %54 = arith.negf %53 : vector<4x32xf32>
      %55 = math.exp %54 : vector<4x32xf32>
      %cst_44 = arith.constant 1.000000e+00 : f32
      %56 = vector.broadcast %cst_44 : f32 to vector<4x32xf32>
      %57 = arith.addf %56, %55 : vector<4x32xf32>
      %58 = arith.divf %56, %57 : vector<4x32xf32>
      %59 = vector.extract_strided_slice %52 {offsets = [0, 32], sizes = [4, 32], strides = [1, 1]} : vector<4x128xf32> to vector<4x32xf32>
      %60 = arith.negf %59 : vector<4x32xf32>
      %61 = math.exp %60 : vector<4x32xf32>
      %cst_45 = arith.constant 1.000000e+00 : f32
      %62 = vector.broadcast %cst_45 : f32 to vector<4x32xf32>
      %63 = arith.addf %62, %61 : vector<4x32xf32>
      %64 = arith.divf %62, %63 : vector<4x32xf32>
      %65 = vector.extract_strided_slice %52 {offsets = [0, 64], sizes = [4, 32], strides = [1, 1]} : vector<4x128xf32> to vector<4x32xf32>
      %66 = math.tanh %65 : vector<4x32xf32>
      %67 = vector.extract_strided_slice %52 {offsets = [0, 96], sizes = [4, 32], strides = [1, 1]} : vector<4x128xf32> to vector<4x32xf32>
      %68 = arith.negf %67 : vector<4x32xf32>
      %69 = math.exp %68 : vector<4x32xf32>
      %cst_46 = arith.constant 1.000000e+00 : f32
      %70 = vector.broadcast %cst_46 : f32 to vector<4x32xf32>
      %71 = arith.addf %70, %69 : vector<4x32xf32>
      %72 = arith.divf %70, %71 : vector<4x32xf32>
      %73 = arith.mulf %64, %46 : vector<4x32xf32>
      %74 = arith.mulf %58, %66 : vector<4x32xf32>
      %75 = arith.addf %73, %74 : vector<4x32xf32>
      %76 = math.tanh %75 : vector<4x32xf32>
      %77 = arith.mulf %72, %76 : vector<4x32xf32>
      %c0_i32_47 = arith.constant 0 : i32
      %78 = vector.broadcast %c0_i32_47 : i32 to vector<4x1xi32>
      %79 = arith.cmpi sgt, %44, %78 : vector<4x1xi32>
      %80 = vector.shape_cast %79 : vector<4x1xi1> to vector<4x1xi1>
      %81 = vector.broadcast %80 : vector<4x1xi1> to vector<4x32xi1>
      %82 = arith.select %81, %77, %45 : vector<4x32xi1>, vector<4x32xf32>
      %83 = vector.shape_cast %79 : vector<4x1xi1> to vector<4x1xi1>
      %84 = vector.broadcast %83 : vector<4x1xi1> to vector<4x32xi1>
      %85 = arith.select %84, %75, %46 : vector<4x32xi1>, vector<4x32xf32>
      %86 = vector.extract_strided_slice %41 {offsets = [0, 1, 0], sizes = [4, 1, 128], strides = [1, 1, 1]} : vector<4x32x128xf32> to vector<4x1x128xf32>
      %87 = vector.shape_cast %86 : vector<4x1x128xf32> to vector<4x128xf32>
      %88 = arith.truncf %82 : vector<4x32xf32> to vector<4x32xbf16>
      %c0_48 = arith.constant 0 : index
      %c0_49 = arith.constant 0 : index
      %89 = vector.load %arg13[%c0_48, %c0_49] : memref<32x128xbf16, #tpu.memory_space<vmem>>, vector<32x128xbf16>
      %cst_50 = arith.constant dense<0.000000e+00> : vector<4x128xf32>
      %90 = tpu.matmul %88, %89, %cst_50 {dimension_numbers = #tpu.dot_dimension_numbers<[1], [0], [0], [1], [0, 0, 1, 1], [], []>} : vector<4x32xbf16>, vector<32x128xbf16>, vector<4x128xf32> -> vector<4x128xf32>
      %91 = arith.addf %87, %90 : vector<4x128xf32>
      %92 = vector.extract_strided_slice %91 {offsets = [0, 0], sizes = [4, 32], strides = [1, 1]} : vector<4x128xf32> to vector<4x32xf32>
      %93 = arith.negf %92 : vector<4x32xf32>
      %94 = math.exp %93 : vector<4x32xf32>
      %cst_51 = arith.constant 1.000000e+00 : f32
      %95 = vector.broadcast %cst_51 : f32 to vector<4x32xf32>
      %96 = arith.addf %95, %94 : vector<4x32xf32>
      %97 = arith.divf %95, %96 : vector<4x32xf32>
      %98 = vector.extract_strided_slice %91 {offsets = [0, 32], sizes = [4, 32], strides = [1, 1]} : vector<4x128xf32> to vector<4x32xf32>
      %99 = arith.negf %98 : vector<4x32xf32>
      %100 = math.exp %99 : vector<4x32xf32>
      %cst_52 = arith.constant 1.000000e+00 : f32
      %101 = vector.broadcast %cst_52 : f32 to vector<4x32xf32>
      %102 = arith.addf %101, %100 : vector<4x32xf32>
      %103 = arith.divf %101, %102 : vector<4x32xf32>
      %104 = vector.extract_strided_slice %91 {offsets = [0, 64], sizes = [4, 32], strides = [1, 1]} : vector<4x128xf32> to vector<4x32xf32>
      %105 = math.tanh %104 : vector<4x32xf32>
      %106 = vector.extract_strided_slice %91 {offsets = [0, 96], sizes = [4, 32], strides = [1, 1]} : vector<4x128xf32> to vector<4x32xf32>
      %107 = arith.negf %106 : vector<4x32xf32>
      %108 = math.exp %107 : vector<4x32xf32>
      %cst_53 = arith.constant 1.000000e+00 : f32
      %109 = vector.broadcast %cst_53 : f32 to vector<4x32xf32>
      %110 = arith.addf %109, %108 : vector<4x32xf32>
      %111 = arith.divf %109, %110 : vector<4x32xf32>
      %112 = arith.mulf %103, %85 : vector<4x32xf32>
      %113 = arith.mulf %97, %105 : vector<4x32xf32>
      %114 = arith.addf %112, %113 : vector<4x32xf32>
      %115 = math.tanh %114 : vector<4x32xf32>
      %116 = arith.mulf %111, %115 : vector<4x32xf32>
      %c1_i32 = arith.constant 1 : i32
      %117 = vector.broadcast %c1_i32 : i32 to vector<4x1xi32>
      %118 = arith.cmpi sgt, %44, %117 : vector<4x1xi32>
      %119 = vector.shape_cast %118 : vector<4x1xi1> to vector<4x1xi1>
      %120 = vector.broadcast %119 : vector<4x1xi1> to vector<4x32xi1>
      %121 = arith.select %120, %116, %82 : vector<4x32xi1>, vector<4x32xf32>
      %122 = vector.shape_cast %118 : vector<4x1xi1> to vector<4x1xi1>
      %123 = vector.broadcast %122 : vector<4x1xi1> to vector<4x32xi1>
      %124 = arith.select %123, %114, %85 : vector<4x32xi1>, vector<4x32xf32>
      %125 = vector.extract_strided_slice %41 {offsets = [0, 2, 0], sizes = [4, 1, 128], strides = [1, 1, 1]} : vector<4x32x128xf32> to vector<4x1x128xf32>
      %126 = vector.shape_cast %125 : vector<4x1x128xf32> to vector<4x128xf32>
      %127 = arith.truncf %121 : vector<4x32xf32> to vector<4x32xbf16>
      %c0_54 = arith.constant 0 : index
      %c0_55 = arith.constant 0 : index
      %128 = vector.load %arg13[%c0_54, %c0_55] : memref<32x128xbf16, #tpu.memory_space<vmem>>, vector<32x128xbf16>
      %cst_56 = arith.constant dense<0.000000e+00> : vector<4x128xf32>
      %129 = tpu.matmul %127, %128, %cst_56 {dimension_numbers = #tpu.dot_dimension_numbers<[1], [0], [0], [1], [0, 0, 1, 1], [], []>} : vector<4x32xbf16>, vector<32x128xbf16>, vector<4x128xf32> -> vector<4x128xf32>
      %130 = arith.addf %126, %129 : vector<4x128xf32>
      %131 = vector.extract_strided_slice %130 {offsets = [0, 0], sizes = [4, 32], strides = [1, 1]} : vector<4x128xf32> to vector<4x32xf32>
      %132 = arith.negf %131 : vector<4x32xf32>
      %133 = math.exp %132 : vector<4x32xf32>
      %cst_57 = arith.constant 1.000000e+00 : f32
      %134 = vector.broadcast %cst_57 : f32 to vector<4x32xf32>
      %135 = arith.addf %134, %133 : vector<4x32xf32>
      %136 = arith.divf %134, %135 : vector<4x32xf32>
      %137 = vector.extract_strided_slice %130 {offsets = [0, 32], sizes = [4, 32], strides = [1, 1]} : vector<4x128xf32> to vector<4x32xf32>
      %138 = arith.negf %137 : vector<4x32xf32>
      %139 = math.exp %138 : vector<4x32xf32>
      %cst_58 = arith.constant 1.000000e+00 : f32
      %140 = vector.broadcast %cst_58 : f32 to vector<4x32xf32>
      %141 = arith.addf %140, %139 : vector<4x32xf32>
      %142 = arith.divf %140, %141 : vector<4x32xf32>
      %143 = vector.extract_strided_slice %130 {offsets = [0, 64], sizes = [4, 32], strides = [1, 1]} : vector<4x128xf32> to vector<4x32xf32>
      %144 = math.tanh %143 : vector<4x32xf32>
      %145 = vector.extract_strided_slice %130 {offsets = [0, 96], sizes = [4, 32], strides = [1, 1]} : vector<4x128xf32> to vector<4x32xf32>
      %146 = arith.negf %145 : vector<4x32xf32>
      %147 = math.exp %146 : vector<4x32xf32>
      %cst_59 = arith.constant 1.000000e+00 : f32
      %148 = vector.broadcast %cst_59 : f32 to vector<4x32xf32>
      %149 = arith.addf %148, %147 : vector<4x32xf32>
      %150 = arith.divf %148, %149 : vector<4x32xf32>
      %151 = arith.mulf %142, %124 : vector<4x32xf32>
      %152 = arith.mulf %136, %144 : vector<4x32xf32>
      %153 = arith.addf %151, %152 : vector<4x32xf32>
      %154 = math.tanh %153 : vector<4x32xf32>
      %155 = arith.mulf %150, %154 : vector<4x32xf32>
      %c2_i32_60 = arith.constant 2 : i32
      %156 = vector.broadcast %c2_i32_60 : i32 to vector<4x1xi32>
      %157 = arith.cmpi sgt, %44, %156 : vector<4x1xi32>
      %158 = vector.shape_cast %157 : vector<4x1xi1> to vector<4x1xi1>
      %159 = vector.broadcast %158 : vector<4x1xi1> to vector<4x32xi1>
      %160 = arith.select %159, %155, %121 : vector<4x32xi1>, vector<4x32xf32>
      %161 = vector.shape_cast %157 : vector<4x1xi1> to vector<4x1xi1>
      %162 = vector.broadcast %161 : vector<4x1xi1> to vector<4x32xi1>
      %163 = arith.select %162, %153, %124 : vector<4x32xi1>, vector<4x32xf32>
      %164 = vector.extract_strided_slice %41 {offsets = [0, 3, 0], sizes = [4, 1, 128], strides = [1, 1, 1]} : vector<4x32x128xf32> to vector<4x1x128xf32>
      %165 = vector.shape_cast %164 : vector<4x1x128xf32> to vector<4x128xf32>
      %166 = arith.truncf %160 : vector<4x32xf32> to vector<4x32xbf16>
      %c0_61 = arith.constant 0 : index
      %c0_62 = arith.constant 0 : index
      %167 = vector.load %arg13[%c0_61, %c0_62] : memref<32x128xbf16, #tpu.memory_space<vmem>>, vector<32x128xbf16>
      %cst_63 = arith.constant dense<0.000000e+00> : vector<4x128xf32>
      %168 = tpu.matmul %166, %167, %cst_63 {dimension_numbers = #tpu.dot_dimension_numbers<[1], [0], [0], [1], [0, 0, 1, 1], [], []>} : vector<4x32xbf16>, vector<32x128xbf16>, vector<4x128xf32> -> vector<4x128xf32>
      %169 = arith.addf %165, %168 : vector<4x128xf32>
      %170 = vector.extract_strided_slice %169 {offsets = [0, 0], sizes = [4, 32], strides = [1, 1]} : vector<4x128xf32> to vector<4x32xf32>
      %171 = arith.negf %170 : vector<4x32xf32>
      %172 = math.exp %171 : vector<4x32xf32>
      %cst_64 = arith.constant 1.000000e+00 : f32
      %173 = vector.broadcast %cst_64 : f32 to vector<4x32xf32>
      %174 = arith.addf %173, %172 : vector<4x32xf32>
      %175 = arith.divf %173, %174 : vector<4x32xf32>
      %176 = vector.extract_strided_slice %169 {offsets = [0, 32], sizes = [4, 32], strides = [1, 1]} : vector<4x128xf32> to vector<4x32xf32>
      %177 = arith.negf %176 : vector<4x32xf32>
      %178 = math.exp %177 : vector<4x32xf32>
      %cst_65 = arith.constant 1.000000e+00 : f32
      %179 = vector.broadcast %cst_65 : f32 to vector<4x32xf32>
      %180 = arith.addf %179, %178 : vector<4x32xf32>
      %181 = arith.divf %179, %180 : vector<4x32xf32>
      %182 = vector.extract_strided_slice %169 {offsets = [0, 64], sizes = [4, 32], strides = [1, 1]} : vector<4x128xf32> to vector<4x32xf32>
      %183 = math.tanh %182 : vector<4x32xf32>
      %184 = vector.extract_strided_slice %169 {offsets = [0, 96], sizes = [4, 32], strides = [1, 1]} : vector<4x128xf32> to vector<4x32xf32>
      %185 = arith.negf %184 : vector<4x32xf32>
      %186 = math.exp %185 : vector<4x32xf32>
      %cst_66 = arith.constant 1.000000e+00 : f32
      %187 = vector.broadcast %cst_66 : f32 to vector<4x32xf32>
      %188 = arith.addf %187, %186 : vector<4x32xf32>
      %189 = arith.divf %187, %188 : vector<4x32xf32>
      %190 = arith.mulf %181, %163 : vector<4x32xf32>
      %191 = arith.mulf %175, %183 : vector<4x32xf32>
      %192 = arith.addf %190, %191 : vector<4x32xf32>
      %193 = math.tanh %192 : vector<4x32xf32>
      %194 = arith.mulf %189, %193 : vector<4x32xf32>
      %c3_i32 = arith.constant 3 : i32
      %195 = vector.broadcast %c3_i32 : i32 to vector<4x1xi32>
      %196 = arith.cmpi sgt, %44, %195 : vector<4x1xi32>
      %197 = vector.shape_cast %196 : vector<4x1xi1> to vector<4x1xi1>
      %198 = vector.broadcast %197 : vector<4x1xi1> to vector<4x32xi1>
      %199 = arith.select %198, %194, %160 : vector<4x32xi1>, vector<4x32xf32>
      %200 = vector.shape_cast %196 : vector<4x1xi1> to vector<4x1xi1>
      %201 = vector.broadcast %200 : vector<4x1xi1> to vector<4x32xi1>
      %202 = arith.select %201, %192, %163 : vector<4x32xi1>, vector<4x32xf32>
      %203 = vector.extract_strided_slice %41 {offsets = [0, 4, 0], sizes = [4, 1, 128], strides = [1, 1, 1]} : vector<4x32x128xf32> to vector<4x1x128xf32>
      %204 = vector.shape_cast %203 : vector<4x1x128xf32> to vector<4x128xf32>
      %205 = arith.truncf %199 : vector<4x32xf32> to vector<4x32xbf16>
      %c0_67 = arith.constant 0 : index
      %c0_68 = arith.constant 0 : index
      %206 = vector.load %arg13[%c0_67, %c0_68] : memref<32x128xbf16, #tpu.memory_space<vmem>>, vector<32x128xbf16>
      %cst_69 = arith.constant dense<0.000000e+00> : vector<4x128xf32>
      %207 = tpu.matmul %205, %206, %cst_69 {dimension_numbers = #tpu.dot_dimension_numbers<[1], [0], [0], [1], [0, 0, 1, 1], [], []>} : vector<4x32xbf16>, vector<32x128xbf16>, vector<4x128xf32> -> vector<4x128xf32>
      %208 = arith.addf %204, %207 : vector<4x128xf32>
      %209 = vector.extract_strided_slice %208 {offsets = [0, 0], sizes = [4, 32], strides = [1, 1]} : vector<4x128xf32> to vector<4x32xf32>
      %210 = arith.negf %209 : vector<4x32xf32>
      %211 = math.exp %210 : vector<4x32xf32>
      %cst_70 = arith.constant 1.000000e+00 : f32
      %212 = vector.broadcast %cst_70 : f32 to vector<4x32xf32>
      %213 = arith.addf %212, %211 : vector<4x32xf32>
      %214 = arith.divf %212, %213 : vector<4x32xf32>
      %215 = vector.extract_strided_slice %208 {offsets = [0, 32], sizes = [4, 32], strides = [1, 1]} : vector<4x128xf32> to vector<4x32xf32>
      %216 = arith.negf %215 : vector<4x32xf32>
      %217 = math.exp %216 : vector<4x32xf32>
      %cst_71 = arith.constant 1.000000e+00 : f32
      %218 = vector.broadcast %cst_71 : f32 to vector<4x32xf32>
      %219 = arith.addf %218, %217 : vector<4x32xf32>
      %220 = arith.divf %218, %219 : vector<4x32xf32>
      %221 = vector.extract_strided_slice %208 {offsets = [0, 64], sizes = [4, 32], strides = [1, 1]} : vector<4x128xf32> to vector<4x32xf32>
      %222 = math.tanh %221 : vector<4x32xf32>
      %223 = vector.extract_strided_slice %208 {offsets = [0, 96], sizes = [4, 32], strides = [1, 1]} : vector<4x128xf32> to vector<4x32xf32>
      %224 = arith.negf %223 : vector<4x32xf32>
      %225 = math.exp %224 : vector<4x32xf32>
      %cst_72 = arith.constant 1.000000e+00 : f32
      %226 = vector.broadcast %cst_72 : f32 to vector<4x32xf32>
      %227 = arith.addf %226, %225 : vector<4x32xf32>
      %228 = arith.divf %226, %227 : vector<4x32xf32>
      %229 = arith.mulf %220, %202 : vector<4x32xf32>
      %230 = arith.mulf %214, %222 : vector<4x32xf32>
      %231 = arith.addf %229, %230 : vector<4x32xf32>
      %232 = math.tanh %231 : vector<4x32xf32>
      %233 = arith.mulf %228, %232 : vector<4x32xf32>
      %c4_i32 = arith.constant 4 : i32
      %234 = vector.broadcast %c4_i32 : i32 to vector<4x1xi32>
      %235 = arith.cmpi sgt, %44, %234 : vector<4x1xi32>
      %236 = vector.shape_cast %235 : vector<4x1xi1> to vector<4x1xi1>
      %237 = vector.broadcast %236 : vector<4x1xi1> to vector<4x32xi1>
      %238 = arith.select %237, %233, %199 : vector<4x32xi1>, vector<4x32xf32>
      %239 = vector.shape_cast %235 : vector<4x1xi1> to vector<4x1xi1>
      %240 = vector.broadcast %239 : vector<4x1xi1> to vector<4x32xi1>
      %241 = arith.select %240, %231, %202 : vector<4x32xi1>, vector<4x32xf32>
      %242 = vector.extract_strided_slice %41 {offsets = [0, 5, 0], sizes = [4, 1, 128], strides = [1, 1, 1]} : vector<4x32x128xf32> to vector<4x1x128xf32>
      %243 = vector.shape_cast %242 : vector<4x1x128xf32> to vector<4x128xf32>
      %244 = arith.truncf %238 : vector<4x32xf32> to vector<4x32xbf16>
      %c0_73 = arith.constant 0 : index
      %c0_74 = arith.constant 0 : index
      %245 = vector.load %arg13[%c0_73, %c0_74] : memref<32x128xbf16, #tpu.memory_space<vmem>>, vector<32x128xbf16>
      %cst_75 = arith.constant dense<0.000000e+00> : vector<4x128xf32>
      %246 = tpu.matmul %244, %245, %cst_75 {dimension_numbers = #tpu.dot_dimension_numbers<[1], [0], [0], [1], [0, 0, 1, 1], [], []>} : vector<4x32xbf16>, vector<32x128xbf16>, vector<4x128xf32> -> vector<4x128xf32>
      %247 = arith.addf %243, %246 : vector<4x128xf32>
      %248 = vector.extract_strided_slice %247 {offsets = [0, 0], sizes = [4, 32], strides = [1, 1]} : vector<4x128xf32> to vector<4x32xf32>
      %249 = arith.negf %248 : vector<4x32xf32>
      %250 = math.exp %249 : vector<4x32xf32>
      %cst_76 = arith.constant 1.000000e+00 : f32
      %251 = vector.broadcast %cst_76 : f32 to vector<4x32xf32>
      %252 = arith.addf %251, %250 : vector<4x32xf32>
      %253 = arith.divf %251, %252 : vector<4x32xf32>
      %254 = vector.extract_strided_slice %247 {offsets = [0, 32], sizes = [4, 32], strides = [1, 1]} : vector<4x128xf32> to vector<4x32xf32>
      %255 = arith.negf %254 : vector<4x32xf32>
      %256 = math.exp %255 : vector<4x32xf32>
      %cst_77 = arith.constant 1.000000e+00 : f32
      %257 = vector.broadcast %cst_77 : f32 to vector<4x32xf32>
      %258 = arith.addf %257, %256 : vector<4x32xf32>
      %259 = arith.divf %257, %258 : vector<4x32xf32>
      %260 = vector.extract_strided_slice %247 {offsets = [0, 64], sizes = [4, 32], strides = [1, 1]} : vector<4x128xf32> to vector<4x32xf32>
      %261 = math.tanh %260 : vector<4x32xf32>
      %262 = vector.extract_strided_slice %247 {offsets = [0, 96], sizes = [4, 32], strides = [1, 1]} : vector<4x128xf32> to vector<4x32xf32>
      %263 = arith.negf %262 : vector<4x32xf32>
      %264 = math.exp %263 : vector<4x32xf32>
      %cst_78 = arith.constant 1.000000e+00 : f32
      %265 = vector.broadcast %cst_78 : f32 to vector<4x32xf32>
      %266 = arith.addf %265, %264 : vector<4x32xf32>
      %267 = arith.divf %265, %266 : vector<4x32xf32>
      %268 = arith.mulf %259, %241 : vector<4x32xf32>
      %269 = arith.mulf %253, %261 : vector<4x32xf32>
      %270 = arith.addf %268, %269 : vector<4x32xf32>
      %271 = math.tanh %270 : vector<4x32xf32>
      %272 = arith.mulf %267, %271 : vector<4x32xf32>
      %c5_i32 = arith.constant 5 : i32
      %273 = vector.broadcast %c5_i32 : i32 to vector<4x1xi32>
      %274 = arith.cmpi sgt, %44, %273 : vector<4x1xi32>
      %275 = vector.shape_cast %274 : vector<4x1xi1> to vector<4x1xi1>
      %276 = vector.broadcast %275 : vector<4x1xi1> to vector<4x32xi1>
      %277 = arith.select %276, %272, %238 : vector<4x32xi1>, vector<4x32xf32>
      %278 = vector.shape_cast %274 : vector<4x1xi1> to vector<4x1xi1>
      %279 = vector.broadcast %278 : vector<4x1xi1> to vector<4x32xi1>
      %280 = arith.select %279, %270, %241 : vector<4x32xi1>, vector<4x32xf32>
      %281 = vector.extract_strided_slice %41 {offsets = [0, 6, 0], sizes = [4, 1, 128], strides = [1, 1, 1]} : vector<4x32x128xf32> to vector<4x1x128xf32>
      %282 = vector.shape_cast %281 : vector<4x1x128xf32> to vector<4x128xf32>
      %283 = arith.truncf %277 : vector<4x32xf32> to vector<4x32xbf16>
      %c0_79 = arith.constant 0 : index
      %c0_80 = arith.constant 0 : index
      %284 = vector.load %arg13[%c0_79, %c0_80] : memref<32x128xbf16, #tpu.memory_space<vmem>>, vector<32x128xbf16>
      %cst_81 = arith.constant dense<0.000000e+00> : vector<4x128xf32>
      %285 = tpu.matmul %283, %284, %cst_81 {dimension_numbers = #tpu.dot_dimension_numbers<[1], [0], [0], [1], [0, 0, 1, 1], [], []>} : vector<4x32xbf16>, vector<32x128xbf16>, vector<4x128xf32> -> vector<4x128xf32>
      %286 = arith.addf %282, %285 : vector<4x128xf32>
      %287 = vector.extract_strided_slice %286 {offsets = [0, 0], sizes = [4, 32], strides = [1, 1]} : vector<4x128xf32> to vector<4x32xf32>
      %288 = arith.negf %287 : vector<4x32xf32>
      %289 = math.exp %288 : vector<4x32xf32>
      %cst_82 = arith.constant 1.000000e+00 : f32
      %290 = vector.broadcast %cst_82 : f32 to vector<4x32xf32>
      %291 = arith.addf %290, %289 : vector<4x32xf32>
      %292 = arith.divf %290, %291 : vector<4x32xf32>
      %293 = vector.extract_strided_slice %286 {offsets = [0, 32], sizes = [4, 32], strides = [1, 1]} : vector<4x128xf32> to vector<4x32xf32>
      %294 = arith.negf %293 : vector<4x32xf32>
      %295 = math.exp %294 : vector<4x32xf32>
      %cst_83 = arith.constant 1.000000e+00 : f32
      %296 = vector.broadcast %cst_83 : f32 to vector<4x32xf32>
      %297 = arith.addf %296, %295 : vector<4x32xf32>
      %298 = arith.divf %296, %297 : vector<4x32xf32>
      %299 = vector.extract_strided_slice %286 {offsets = [0, 64], sizes = [4, 32], strides = [1, 1]} : vector<4x128xf32> to vector<4x32xf32>
      %300 = math.tanh %299 : vector<4x32xf32>
      %301 = vector.extract_strided_slice %286 {offsets = [0, 96], sizes = [4, 32], strides = [1, 1]} : vector<4x128xf32> to vector<4x32xf32>
      %302 = arith.negf %301 : vector<4x32xf32>
      %303 = math.exp %302 : vector<4x32xf32>
      %cst_84 = arith.constant 1.000000e+00 : f32
      %304 = vector.broadcast %cst_84 : f32 to vector<4x32xf32>
      %305 = arith.addf %304, %303 : vector<4x32xf32>
      %306 = arith.divf %304, %305 : vector<4x32xf32>
      %307 = arith.mulf %298, %280 : vector<4x32xf32>
      %308 = arith.mulf %292, %300 : vector<4x32xf32>
      %309 = arith.addf %307, %308 : vector<4x32xf32>
      %310 = math.tanh %309 : vector<4x32xf32>
      %311 = arith.mulf %306, %310 : vector<4x32xf32>
      %c6_i32 = arith.constant 6 : i32
      %312 = vector.broadcast %c6_i32 : i32 to vector<4x1xi32>
      %313 = arith.cmpi sgt, %44, %312 : vector<4x1xi32>
      %314 = vector.shape_cast %313 : vector<4x1xi1> to vector<4x1xi1>
      %315 = vector.broadcast %314 : vector<4x1xi1> to vector<4x32xi1>
      %316 = arith.select %315, %311, %277 : vector<4x32xi1>, vector<4x32xf32>
      %317 = vector.shape_cast %313 : vector<4x1xi1> to vector<4x1xi1>
      %318 = vector.broadcast %317 : vector<4x1xi1> to vector<4x32xi1>
      %319 = arith.select %318, %309, %280 : vector<4x32xi1>, vector<4x32xf32>
      %320 = vector.extract_strided_slice %41 {offsets = [0, 7, 0], sizes = [4, 1, 128], strides = [1, 1, 1]} : vector<4x32x128xf32> to vector<4x1x128xf32>
      %321 = vector.shape_cast %320 : vector<4x1x128xf32> to vector<4x128xf32>
      %322 = arith.truncf %316 : vector<4x32xf32> to vector<4x32xbf16>
      %c0_85 = arith.constant 0 : index
      %c0_86 = arith.constant 0 : index
      %323 = vector.load %arg13[%c0_85, %c0_86] : memref<32x128xbf16, #tpu.memory_space<vmem>>, vector<32x128xbf16>
      %cst_87 = arith.constant dense<0.000000e+00> : vector<4x128xf32>
      %324 = tpu.matmul %322, %323, %cst_87 {dimension_numbers = #tpu.dot_dimension_numbers<[1], [0], [0], [1], [0, 0, 1, 1], [], []>} : vector<4x32xbf16>, vector<32x128xbf16>, vector<4x128xf32> -> vector<4x128xf32>
      %325 = arith.addf %321, %324 : vector<4x128xf32>
      %326 = vector.extract_strided_slice %325 {offsets = [0, 0], sizes = [4, 32], strides = [1, 1]} : vector<4x128xf32> to vector<4x32xf32>
      %327 = arith.negf %326 : vector<4x32xf32>
      %328 = math.exp %327 : vector<4x32xf32>
      %cst_88 = arith.constant 1.000000e+00 : f32
      %329 = vector.broadcast %cst_88 : f32 to vector<4x32xf32>
      %330 = arith.addf %329, %328 : vector<4x32xf32>
      %331 = arith.divf %329, %330 : vector<4x32xf32>
      %332 = vector.extract_strided_slice %325 {offsets = [0, 32], sizes = [4, 32], strides = [1, 1]} : vector<4x128xf32> to vector<4x32xf32>
      %333 = arith.negf %332 : vector<4x32xf32>
      %334 = math.exp %333 : vector<4x32xf32>
      %cst_89 = arith.constant 1.000000e+00 : f32
      %335 = vector.broadcast %cst_89 : f32 to vector<4x32xf32>
      %336 = arith.addf %335, %334 : vector<4x32xf32>
      %337 = arith.divf %335, %336 : vector<4x32xf32>
      %338 = vector.extract_strided_slice %325 {offsets = [0, 64], sizes = [4, 32], strides = [1, 1]} : vector<4x128xf32> to vector<4x32xf32>
      %339 = math.tanh %338 : vector<4x32xf32>
      %340 = vector.extract_strided_slice %325 {offsets = [0, 96], sizes = [4, 32], strides = [1, 1]} : vector<4x128xf32> to vector<4x32xf32>
      %341 = arith.negf %340 : vector<4x32xf32>
      %342 = math.exp %341 : vector<4x32xf32>
      %cst_90 = arith.constant 1.000000e+00 : f32
      %343 = vector.broadcast %cst_90 : f32 to vector<4x32xf32>
      %344 = arith.addf %343, %342 : vector<4x32xf32>
      %345 = arith.divf %343, %344 : vector<4x32xf32>
      %346 = arith.mulf %337, %319 : vector<4x32xf32>
      %347 = arith.mulf %331, %339 : vector<4x32xf32>
      %348 = arith.addf %346, %347 : vector<4x32xf32>
      %349 = math.tanh %348 : vector<4x32xf32>
      %350 = arith.mulf %345, %349 : vector<4x32xf32>
      %c7_i32 = arith.constant 7 : i32
      %351 = vector.broadcast %c7_i32 : i32 to vector<4x1xi32>
      %352 = arith.cmpi sgt, %44, %351 : vector<4x1xi32>
      %353 = vector.shape_cast %352 : vector<4x1xi1> to vector<4x1xi1>
      %354 = vector.broadcast %353 : vector<4x1xi1> to vector<4x32xi1>
      %355 = arith.select %354, %350, %316 : vector<4x32xi1>, vector<4x32xf32>
      %356 = vector.shape_cast %352 : vector<4x1xi1> to vector<4x1xi1>
      %357 = vector.broadcast %356 : vector<4x1xi1> to vector<4x32xi1>
      %358 = arith.select %357, %348, %319 : vector<4x32xi1>, vector<4x32xf32>
      %359 = vector.extract_strided_slice %41 {offsets = [0, 8, 0], sizes = [4, 1, 128], strides = [1, 1, 1]} : vector<4x32x128xf32> to vector<4x1x128xf32>
      %360 = vector.shape_cast %359 : vector<4x1x128xf32> to vector<4x128xf32>
      %361 = arith.truncf %355 : vector<4x32xf32> to vector<4x32xbf16>
      %c0_91 = arith.constant 0 : index
      %c0_92 = arith.constant 0 : index
      %362 = vector.load %arg13[%c0_91, %c0_92] : memref<32x128xbf16, #tpu.memory_space<vmem>>, vector<32x128xbf16>
      %cst_93 = arith.constant dense<0.000000e+00> : vector<4x128xf32>
      %363 = tpu.matmul %361, %362, %cst_93 {dimension_numbers = #tpu.dot_dimension_numbers<[1], [0], [0], [1], [0, 0, 1, 1], [], []>} : vector<4x32xbf16>, vector<32x128xbf16>, vector<4x128xf32> -> vector<4x128xf32>
      %364 = arith.addf %360, %363 : vector<4x128xf32>
      %365 = vector.extract_strided_slice %364 {offsets = [0, 0], sizes = [4, 32], strides = [1, 1]} : vector<4x128xf32> to vector<4x32xf32>
      %366 = arith.negf %365 : vector<4x32xf32>
      %367 = math.exp %366 : vector<4x32xf32>
      %cst_94 = arith.constant 1.000000e+00 : f32
      %368 = vector.broadcast %cst_94 : f32 to vector<4x32xf32>
      %369 = arith.addf %368, %367 : vector<4x32xf32>
      %370 = arith.divf %368, %369 : vector<4x32xf32>
      %371 = vector.extract_strided_slice %364 {offsets = [0, 32], sizes = [4, 32], strides = [1, 1]} : vector<4x128xf32> to vector<4x32xf32>
      %372 = arith.negf %371 : vector<4x32xf32>
      %373 = math.exp %372 : vector<4x32xf32>
      %cst_95 = arith.constant 1.000000e+00 : f32
      %374 = vector.broadcast %cst_95 : f32 to vector<4x32xf32>
      %375 = arith.addf %374, %373 : vector<4x32xf32>
      %376 = arith.divf %374, %375 : vector<4x32xf32>
      %377 = vector.extract_strided_slice %364 {offsets = [0, 64], sizes = [4, 32], strides = [1, 1]} : vector<4x128xf32> to vector<4x32xf32>
      %378 = math.tanh %377 : vector<4x32xf32>
      %379 = vector.extract_strided_slice %364 {offsets = [0, 96], sizes = [4, 32], strides = [1, 1]} : vector<4x128xf32> to vector<4x32xf32>
      %380 = arith.negf %379 : vector<4x32xf32>
      %381 = math.exp %380 : vector<4x32xf32>
      %cst_96 = arith.constant 1.000000e+00 : f32
      %382 = vector.broadcast %cst_96 : f32 to vector<4x32xf32>
      %383 = arith.addf %382, %381 : vector<4x32xf32>
      %384 = arith.divf %382, %383 : vector<4x32xf32>
      %385 = arith.mulf %376, %358 : vector<4x32xf32>
      %386 = arith.mulf %370, %378 : vector<4x32xf32>
      %387 = arith.addf %385, %386 : vector<4x32xf32>
      %388 = math.tanh %387 : vector<4x32xf32>
      %389 = arith.mulf %384, %388 : vector<4x32xf32>
      %c8_i32 = arith.constant 8 : i32
      %390 = vector.broadcast %c8_i32 : i32 to vector<4x1xi32>
      %391 = arith.cmpi sgt, %44, %390 : vector<4x1xi32>
      %392 = vector.shape_cast %391 : vector<4x1xi1> to vector<4x1xi1>
      %393 = vector.broadcast %392 : vector<4x1xi1> to vector<4x32xi1>
      %394 = arith.select %393, %389, %355 : vector<4x32xi1>, vector<4x32xf32>
      %395 = vector.shape_cast %391 : vector<4x1xi1> to vector<4x1xi1>
      %396 = vector.broadcast %395 : vector<4x1xi1> to vector<4x32xi1>
      %397 = arith.select %396, %387, %358 : vector<4x32xi1>, vector<4x32xf32>
      %398 = vector.extract_strided_slice %41 {offsets = [0, 9, 0], sizes = [4, 1, 128], strides = [1, 1, 1]} : vector<4x32x128xf32> to vector<4x1x128xf32>
      %399 = vector.shape_cast %398 : vector<4x1x128xf32> to vector<4x128xf32>
      %400 = arith.truncf %394 : vector<4x32xf32> to vector<4x32xbf16>
      %c0_97 = arith.constant 0 : index
      %c0_98 = arith.constant 0 : index
      %401 = vector.load %arg13[%c0_97, %c0_98] : memref<32x128xbf16, #tpu.memory_space<vmem>>, vector<32x128xbf16>
      %cst_99 = arith.constant dense<0.000000e+00> : vector<4x128xf32>
      %402 = tpu.matmul %400, %401, %cst_99 {dimension_numbers = #tpu.dot_dimension_numbers<[1], [0], [0], [1], [0, 0, 1, 1], [], []>} : vector<4x32xbf16>, vector<32x128xbf16>, vector<4x128xf32> -> vector<4x128xf32>
      %403 = arith.addf %399, %402 : vector<4x128xf32>
      %404 = vector.extract_strided_slice %403 {offsets = [0, 0], sizes = [4, 32], strides = [1, 1]} : vector<4x128xf32> to vector<4x32xf32>
      %405 = arith.negf %404 : vector<4x32xf32>
      %406 = math.exp %405 : vector<4x32xf32>
      %cst_100 = arith.constant 1.000000e+00 : f32
      %407 = vector.broadcast %cst_100 : f32 to vector<4x32xf32>
      %408 = arith.addf %407, %406 : vector<4x32xf32>
      %409 = arith.divf %407, %408 : vector<4x32xf32>
      %410 = vector.extract_strided_slice %403 {offsets = [0, 32], sizes = [4, 32], strides = [1, 1]} : vector<4x128xf32> to vector<4x32xf32>
      %411 = arith.negf %410 : vector<4x32xf32>
      %412 = math.exp %411 : vector<4x32xf32>
      %cst_101 = arith.constant 1.000000e+00 : f32
      %413 = vector.broadcast %cst_101 : f32 to vector<4x32xf32>
      %414 = arith.addf %413, %412 : vector<4x32xf32>
      %415 = arith.divf %413, %414 : vector<4x32xf32>
      %416 = vector.extract_strided_slice %403 {offsets = [0, 64], sizes = [4, 32], strides = [1, 1]} : vector<4x128xf32> to vector<4x32xf32>
      %417 = math.tanh %416 : vector<4x32xf32>
      %418 = vector.extract_strided_slice %403 {offsets = [0, 96], sizes = [4, 32], strides = [1, 1]} : vector<4x128xf32> to vector<4x32xf32>
      %419 = arith.negf %418 : vector<4x32xf32>
      %420 = math.exp %419 : vector<4x32xf32>
      %cst_102 = arith.constant 1.000000e+00 : f32
      %421 = vector.broadcast %cst_102 : f32 to vector<4x32xf32>
      %422 = arith.addf %421, %420 : vector<4x32xf32>
      %423 = arith.divf %421, %422 : vector<4x32xf32>
      %424 = arith.mulf %415, %397 : vector<4x32xf32>
      %425 = arith.mulf %409, %417 : vector<4x32xf32>
      %426 = arith.addf %424, %425 : vector<4x32xf32>
      %427 = math.tanh %426 : vector<4x32xf32>
      %428 = arith.mulf %423, %427 : vector<4x32xf32>
      %c9_i32 = arith.constant 9 : i32
      %429 = vector.broadcast %c9_i32 : i32 to vector<4x1xi32>
      %430 = arith.cmpi sgt, %44, %429 : vector<4x1xi32>
      %431 = vector.shape_cast %430 : vector<4x1xi1> to vector<4x1xi1>
      %432 = vector.broadcast %431 : vector<4x1xi1> to vector<4x32xi1>
      %433 = arith.select %432, %428, %394 : vector<4x32xi1>, vector<4x32xf32>
      %434 = vector.shape_cast %430 : vector<4x1xi1> to vector<4x1xi1>
      %435 = vector.broadcast %434 : vector<4x1xi1> to vector<4x32xi1>
      %436 = arith.select %435, %426, %397 : vector<4x32xi1>, vector<4x32xf32>
      %437 = vector.extract_strided_slice %41 {offsets = [0, 10, 0], sizes = [4, 1, 128], strides = [1, 1, 1]} : vector<4x32x128xf32> to vector<4x1x128xf32>
      %438 = vector.shape_cast %437 : vector<4x1x128xf32> to vector<4x128xf32>
      %439 = arith.truncf %433 : vector<4x32xf32> to vector<4x32xbf16>
      %c0_103 = arith.constant 0 : index
      %c0_104 = arith.constant 0 : index
      %440 = vector.load %arg13[%c0_103, %c0_104] : memref<32x128xbf16, #tpu.memory_space<vmem>>, vector<32x128xbf16>
      %cst_105 = arith.constant dense<0.000000e+00> : vector<4x128xf32>
      %441 = tpu.matmul %439, %440, %cst_105 {dimension_numbers = #tpu.dot_dimension_numbers<[1], [0], [0], [1], [0, 0, 1, 1], [], []>} : vector<4x32xbf16>, vector<32x128xbf16>, vector<4x128xf32> -> vector<4x128xf32>
      %442 = arith.addf %438, %441 : vector<4x128xf32>
      %443 = vector.extract_strided_slice %442 {offsets = [0, 0], sizes = [4, 32], strides = [1, 1]} : vector<4x128xf32> to vector<4x32xf32>
      %444 = arith.negf %443 : vector<4x32xf32>
      %445 = math.exp %444 : vector<4x32xf32>
      %cst_106 = arith.constant 1.000000e+00 : f32
      %446 = vector.broadcast %cst_106 : f32 to vector<4x32xf32>
      %447 = arith.addf %446, %445 : vector<4x32xf32>
      %448 = arith.divf %446, %447 : vector<4x32xf32>
      %449 = vector.extract_strided_slice %442 {offsets = [0, 32], sizes = [4, 32], strides = [1, 1]} : vector<4x128xf32> to vector<4x32xf32>
      %450 = arith.negf %449 : vector<4x32xf32>
      %451 = math.exp %450 : vector<4x32xf32>
      %cst_107 = arith.constant 1.000000e+00 : f32
      %452 = vector.broadcast %cst_107 : f32 to vector<4x32xf32>
      %453 = arith.addf %452, %451 : vector<4x32xf32>
      %454 = arith.divf %452, %453 : vector<4x32xf32>
      %455 = vector.extract_strided_slice %442 {offsets = [0, 64], sizes = [4, 32], strides = [1, 1]} : vector<4x128xf32> to vector<4x32xf32>
      %456 = math.tanh %455 : vector<4x32xf32>
      %457 = vector.extract_strided_slice %442 {offsets = [0, 96], sizes = [4, 32], strides = [1, 1]} : vector<4x128xf32> to vector<4x32xf32>
      %458 = arith.negf %457 : vector<4x32xf32>
      %459 = math.exp %458 : vector<4x32xf32>
      %cst_108 = arith.constant 1.000000e+00 : f32
      %460 = vector.broadcast %cst_108 : f32 to vector<4x32xf32>
      %461 = arith.addf %460, %459 : vector<4x32xf32>
      %462 = arith.divf %460, %461 : vector<4x32xf32>
      %463 = arith.mulf %454, %436 : vector<4x32xf32>
      %464 = arith.mulf %448, %456 : vector<4x32xf32>
      %465 = arith.addf %463, %464 : vector<4x32xf32>
      %466 = math.tanh %465 : vector<4x32xf32>
      %467 = arith.mulf %462, %466 : vector<4x32xf32>
      %c10_i32 = arith.constant 10 : i32
      %468 = vector.broadcast %c10_i32 : i32 to vector<4x1xi32>
      %469 = arith.cmpi sgt, %44, %468 : vector<4x1xi32>
      %470 = vector.shape_cast %469 : vector<4x1xi1> to vector<4x1xi1>
      %471 = vector.broadcast %470 : vector<4x1xi1> to vector<4x32xi1>
      %472 = arith.select %471, %467, %433 : vector<4x32xi1>, vector<4x32xf32>
      %473 = vector.shape_cast %469 : vector<4x1xi1> to vector<4x1xi1>
      %474 = vector.broadcast %473 : vector<4x1xi1> to vector<4x32xi1>
      %475 = arith.select %474, %465, %436 : vector<4x32xi1>, vector<4x32xf32>
      %476 = vector.extract_strided_slice %41 {offsets = [0, 11, 0], sizes = [4, 1, 128], strides = [1, 1, 1]} : vector<4x32x128xf32> to vector<4x1x128xf32>
      %477 = vector.shape_cast %476 : vector<4x1x128xf32> to vector<4x128xf32>
      %478 = arith.truncf %472 : vector<4x32xf32> to vector<4x32xbf16>
      %c0_109 = arith.constant 0 : index
      %c0_110 = arith.constant 0 : index
      %479 = vector.load %arg13[%c0_109, %c0_110] : memref<32x128xbf16, #tpu.memory_space<vmem>>, vector<32x128xbf16>
      %cst_111 = arith.constant dense<0.000000e+00> : vector<4x128xf32>
      %480 = tpu.matmul %478, %479, %cst_111 {dimension_numbers = #tpu.dot_dimension_numbers<[1], [0], [0], [1], [0, 0, 1, 1], [], []>} : vector<4x32xbf16>, vector<32x128xbf16>, vector<4x128xf32> -> vector<4x128xf32>
      %481 = arith.addf %477, %480 : vector<4x128xf32>
      %482 = vector.extract_strided_slice %481 {offsets = [0, 0], sizes = [4, 32], strides = [1, 1]} : vector<4x128xf32> to vector<4x32xf32>
      %483 = arith.negf %482 : vector<4x32xf32>
      %484 = math.exp %483 : vector<4x32xf32>
      %cst_112 = arith.constant 1.000000e+00 : f32
      %485 = vector.broadcast %cst_112 : f32 to vector<4x32xf32>
      %486 = arith.addf %485, %484 : vector<4x32xf32>
      %487 = arith.divf %485, %486 : vector<4x32xf32>
      %488 = vector.extract_strided_slice %481 {offsets = [0, 32], sizes = [4, 32], strides = [1, 1]} : vector<4x128xf32> to vector<4x32xf32>
      %489 = arith.negf %488 : vector<4x32xf32>
      %490 = math.exp %489 : vector<4x32xf32>
      %cst_113 = arith.constant 1.000000e+00 : f32
      %491 = vector.broadcast %cst_113 : f32 to vector<4x32xf32>
      %492 = arith.addf %491, %490 : vector<4x32xf32>
      %493 = arith.divf %491, %492 : vector<4x32xf32>
      %494 = vector.extract_strided_slice %481 {offsets = [0, 64], sizes = [4, 32], strides = [1, 1]} : vector<4x128xf32> to vector<4x32xf32>
      %495 = math.tanh %494 : vector<4x32xf32>
      %496 = vector.extract_strided_slice %481 {offsets = [0, 96], sizes = [4, 32], strides = [1, 1]} : vector<4x128xf32> to vector<4x32xf32>
      %497 = arith.negf %496 : vector<4x32xf32>
      %498 = math.exp %497 : vector<4x32xf32>
      %cst_114 = arith.constant 1.000000e+00 : f32
      %499 = vector.broadcast %cst_114 : f32 to vector<4x32xf32>
      %500 = arith.addf %499, %498 : vector<4x32xf32>
      %501 = arith.divf %499, %500 : vector<4x32xf32>
      %502 = arith.mulf %493, %475 : vector<4x32xf32>
      %503 = arith.mulf %487, %495 : vector<4x32xf32>
      %504 = arith.addf %502, %503 : vector<4x32xf32>
      %505 = math.tanh %504 : vector<4x32xf32>
      %506 = arith.mulf %501, %505 : vector<4x32xf32>
      %c11_i32 = arith.constant 11 : i32
      %507 = vector.broadcast %c11_i32 : i32 to vector<4x1xi32>
      %508 = arith.cmpi sgt, %44, %507 : vector<4x1xi32>
      %509 = vector.shape_cast %508 : vector<4x1xi1> to vector<4x1xi1>
      %510 = vector.broadcast %509 : vector<4x1xi1> to vector<4x32xi1>
      %511 = arith.select %510, %506, %472 : vector<4x32xi1>, vector<4x32xf32>
      %512 = vector.shape_cast %508 : vector<4x1xi1> to vector<4x1xi1>
      %513 = vector.broadcast %512 : vector<4x1xi1> to vector<4x32xi1>
      %514 = arith.select %513, %504, %475 : vector<4x32xi1>, vector<4x32xf32>
      %515 = vector.extract_strided_slice %41 {offsets = [0, 12, 0], sizes = [4, 1, 128], strides = [1, 1, 1]} : vector<4x32x128xf32> to vector<4x1x128xf32>
      %516 = vector.shape_cast %515 : vector<4x1x128xf32> to vector<4x128xf32>
      %517 = arith.truncf %511 : vector<4x32xf32> to vector<4x32xbf16>
      %c0_115 = arith.constant 0 : index
      %c0_116 = arith.constant 0 : index
      %518 = vector.load %arg13[%c0_115, %c0_116] : memref<32x128xbf16, #tpu.memory_space<vmem>>, vector<32x128xbf16>
      %cst_117 = arith.constant dense<0.000000e+00> : vector<4x128xf32>
      %519 = tpu.matmul %517, %518, %cst_117 {dimension_numbers = #tpu.dot_dimension_numbers<[1], [0], [0], [1], [0, 0, 1, 1], [], []>} : vector<4x32xbf16>, vector<32x128xbf16>, vector<4x128xf32> -> vector<4x128xf32>
      %520 = arith.addf %516, %519 : vector<4x128xf32>
      %521 = vector.extract_strided_slice %520 {offsets = [0, 0], sizes = [4, 32], strides = [1, 1]} : vector<4x128xf32> to vector<4x32xf32>
      %522 = arith.negf %521 : vector<4x32xf32>
      %523 = math.exp %522 : vector<4x32xf32>
      %cst_118 = arith.constant 1.000000e+00 : f32
      %524 = vector.broadcast %cst_118 : f32 to vector<4x32xf32>
      %525 = arith.addf %524, %523 : vector<4x32xf32>
      %526 = arith.divf %524, %525 : vector<4x32xf32>
      %527 = vector.extract_strided_slice %520 {offsets = [0, 32], sizes = [4, 32], strides = [1, 1]} : vector<4x128xf32> to vector<4x32xf32>
      %528 = arith.negf %527 : vector<4x32xf32>
      %529 = math.exp %528 : vector<4x32xf32>
      %cst_119 = arith.constant 1.000000e+00 : f32
      %530 = vector.broadcast %cst_119 : f32 to vector<4x32xf32>
      %531 = arith.addf %530, %529 : vector<4x32xf32>
      %532 = arith.divf %530, %531 : vector<4x32xf32>
      %533 = vector.extract_strided_slice %520 {offsets = [0, 64], sizes = [4, 32], strides = [1, 1]} : vector<4x128xf32> to vector<4x32xf32>
      %534 = math.tanh %533 : vector<4x32xf32>
      %535 = vector.extract_strided_slice %520 {offsets = [0, 96], sizes = [4, 32], strides = [1, 1]} : vector<4x128xf32> to vector<4x32xf32>
      %536 = arith.negf %535 : vector<4x32xf32>
      %537 = math.exp %536 : vector<4x32xf32>
      %cst_120 = arith.constant 1.000000e+00 : f32
      %538 = vector.broadcast %cst_120 : f32 to vector<4x32xf32>
      %539 = arith.addf %538, %537 : vector<4x32xf32>
      %540 = arith.divf %538, %539 : vector<4x32xf32>
      %541 = arith.mulf %532, %514 : vector<4x32xf32>
      %542 = arith.mulf %526, %534 : vector<4x32xf32>
      %543 = arith.addf %541, %542 : vector<4x32xf32>
      %544 = math.tanh %543 : vector<4x32xf32>
      %545 = arith.mulf %540, %544 : vector<4x32xf32>
      %c12_i32 = arith.constant 12 : i32
      %546 = vector.broadcast %c12_i32 : i32 to vector<4x1xi32>
      %547 = arith.cmpi sgt, %44, %546 : vector<4x1xi32>
      %548 = vector.shape_cast %547 : vector<4x1xi1> to vector<4x1xi1>
      %549 = vector.broadcast %548 : vector<4x1xi1> to vector<4x32xi1>
      %550 = arith.select %549, %545, %511 : vector<4x32xi1>, vector<4x32xf32>
      %551 = vector.shape_cast %547 : vector<4x1xi1> to vector<4x1xi1>
      %552 = vector.broadcast %551 : vector<4x1xi1> to vector<4x32xi1>
      %553 = arith.select %552, %543, %514 : vector<4x32xi1>, vector<4x32xf32>
      %554 = vector.extract_strided_slice %41 {offsets = [0, 13, 0], sizes = [4, 1, 128], strides = [1, 1, 1]} : vector<4x32x128xf32> to vector<4x1x128xf32>
      %555 = vector.shape_cast %554 : vector<4x1x128xf32> to vector<4x128xf32>
      %556 = arith.truncf %550 : vector<4x32xf32> to vector<4x32xbf16>
      %c0_121 = arith.constant 0 : index
      %c0_122 = arith.constant 0 : index
      %557 = vector.load %arg13[%c0_121, %c0_122] : memref<32x128xbf16, #tpu.memory_space<vmem>>, vector<32x128xbf16>
      %cst_123 = arith.constant dense<0.000000e+00> : vector<4x128xf32>
      %558 = tpu.matmul %556, %557, %cst_123 {dimension_numbers = #tpu.dot_dimension_numbers<[1], [0], [0], [1], [0, 0, 1, 1], [], []>} : vector<4x32xbf16>, vector<32x128xbf16>, vector<4x128xf32> -> vector<4x128xf32>
      %559 = arith.addf %555, %558 : vector<4x128xf32>
      %560 = vector.extract_strided_slice %559 {offsets = [0, 0], sizes = [4, 32], strides = [1, 1]} : vector<4x128xf32> to vector<4x32xf32>
      %561 = arith.negf %560 : vector<4x32xf32>
      %562 = math.exp %561 : vector<4x32xf32>
      %cst_124 = arith.constant 1.000000e+00 : f32
      %563 = vector.broadcast %cst_124 : f32 to vector<4x32xf32>
      %564 = arith.addf %563, %562 : vector<4x32xf32>
      %565 = arith.divf %563, %564 : vector<4x32xf32>
      %566 = vector.extract_strided_slice %559 {offsets = [0, 32], sizes = [4, 32], strides = [1, 1]} : vector<4x128xf32> to vector<4x32xf32>
      %567 = arith.negf %566 : vector<4x32xf32>
      %568 = math.exp %567 : vector<4x32xf32>
      %cst_125 = arith.constant 1.000000e+00 : f32
      %569 = vector.broadcast %cst_125 : f32 to vector<4x32xf32>
      %570 = arith.addf %569, %568 : vector<4x32xf32>
      %571 = arith.divf %569, %570 : vector<4x32xf32>
      %572 = vector.extract_strided_slice %559 {offsets = [0, 64], sizes = [4, 32], strides = [1, 1]} : vector<4x128xf32> to vector<4x32xf32>
      %573 = math.tanh %572 : vector<4x32xf32>
      %574 = vector.extract_strided_slice %559 {offsets = [0, 96], sizes = [4, 32], strides = [1, 1]} : vector<4x128xf32> to vector<4x32xf32>
      %575 = arith.negf %574 : vector<4x32xf32>
      %576 = math.exp %575 : vector<4x32xf32>
      %cst_126 = arith.constant 1.000000e+00 : f32
      %577 = vector.broadcast %cst_126 : f32 to vector<4x32xf32>
      %578 = arith.addf %577, %576 : vector<4x32xf32>
      %579 = arith.divf %577, %578 : vector<4x32xf32>
      %580 = arith.mulf %571, %553 : vector<4x32xf32>
      %581 = arith.mulf %565, %573 : vector<4x32xf32>
      %582 = arith.addf %580, %581 : vector<4x32xf32>
      %583 = math.tanh %582 : vector<4x32xf32>
      %584 = arith.mulf %579, %583 : vector<4x32xf32>
      %c13_i32 = arith.constant 13 : i32
      %585 = vector.broadcast %c13_i32 : i32 to vector<4x1xi32>
      %586 = arith.cmpi sgt, %44, %585 : vector<4x1xi32>
      %587 = vector.shape_cast %586 : vector<4x1xi1> to vector<4x1xi1>
      %588 = vector.broadcast %587 : vector<4x1xi1> to vector<4x32xi1>
      %589 = arith.select %588, %584, %550 : vector<4x32xi1>, vector<4x32xf32>
      %590 = vector.shape_cast %586 : vector<4x1xi1> to vector<4x1xi1>
      %591 = vector.broadcast %590 : vector<4x1xi1> to vector<4x32xi1>
      %592 = arith.select %591, %582, %553 : vector<4x32xi1>, vector<4x32xf32>
      %593 = vector.extract_strided_slice %41 {offsets = [0, 14, 0], sizes = [4, 1, 128], strides = [1, 1, 1]} : vector<4x32x128xf32> to vector<4x1x128xf32>
      %594 = vector.shape_cast %593 : vector<4x1x128xf32> to vector<4x128xf32>
      %595 = arith.truncf %589 : vector<4x32xf32> to vector<4x32xbf16>
      %c0_127 = arith.constant 0 : index
      %c0_128 = arith.constant 0 : index
      %596 = vector.load %arg13[%c0_127, %c0_128] : memref<32x128xbf16, #tpu.memory_space<vmem>>, vector<32x128xbf16>
      %cst_129 = arith.constant dense<0.000000e+00> : vector<4x128xf32>
      %597 = tpu.matmul %595, %596, %cst_129 {dimension_numbers = #tpu.dot_dimension_numbers<[1], [0], [0], [1], [0, 0, 1, 1], [], []>} : vector<4x32xbf16>, vector<32x128xbf16>, vector<4x128xf32> -> vector<4x128xf32>
      %598 = arith.addf %594, %597 : vector<4x128xf32>
      %599 = vector.extract_strided_slice %598 {offsets = [0, 0], sizes = [4, 32], strides = [1, 1]} : vector<4x128xf32> to vector<4x32xf32>
      %600 = arith.negf %599 : vector<4x32xf32>
      %601 = math.exp %600 : vector<4x32xf32>
      %cst_130 = arith.constant 1.000000e+00 : f32
      %602 = vector.broadcast %cst_130 : f32 to vector<4x32xf32>
      %603 = arith.addf %602, %601 : vector<4x32xf32>
      %604 = arith.divf %602, %603 : vector<4x32xf32>
      %605 = vector.extract_strided_slice %598 {offsets = [0, 32], sizes = [4, 32], strides = [1, 1]} : vector<4x128xf32> to vector<4x32xf32>
      %606 = arith.negf %605 : vector<4x32xf32>
      %607 = math.exp %606 : vector<4x32xf32>
      %cst_131 = arith.constant 1.000000e+00 : f32
      %608 = vector.broadcast %cst_131 : f32 to vector<4x32xf32>
      %609 = arith.addf %608, %607 : vector<4x32xf32>
      %610 = arith.divf %608, %609 : vector<4x32xf32>
      %611 = vector.extract_strided_slice %598 {offsets = [0, 64], sizes = [4, 32], strides = [1, 1]} : vector<4x128xf32> to vector<4x32xf32>
      %612 = math.tanh %611 : vector<4x32xf32>
      %613 = vector.extract_strided_slice %598 {offsets = [0, 96], sizes = [4, 32], strides = [1, 1]} : vector<4x128xf32> to vector<4x32xf32>
      %614 = arith.negf %613 : vector<4x32xf32>
      %615 = math.exp %614 : vector<4x32xf32>
      %cst_132 = arith.constant 1.000000e+00 : f32
      %616 = vector.broadcast %cst_132 : f32 to vector<4x32xf32>
      %617 = arith.addf %616, %615 : vector<4x32xf32>
      %618 = arith.divf %616, %617 : vector<4x32xf32>
      %619 = arith.mulf %610, %592 : vector<4x32xf32>
      %620 = arith.mulf %604, %612 : vector<4x32xf32>
      %621 = arith.addf %619, %620 : vector<4x32xf32>
      %622 = math.tanh %621 : vector<4x32xf32>
      %623 = arith.mulf %618, %622 : vector<4x32xf32>
      %c14_i32 = arith.constant 14 : i32
      %624 = vector.broadcast %c14_i32 : i32 to vector<4x1xi32>
      %625 = arith.cmpi sgt, %44, %624 : vector<4x1xi32>
      %626 = vector.shape_cast %625 : vector<4x1xi1> to vector<4x1xi1>
      %627 = vector.broadcast %626 : vector<4x1xi1> to vector<4x32xi1>
      %628 = arith.select %627, %623, %589 : vector<4x32xi1>, vector<4x32xf32>
      %629 = vector.shape_cast %625 : vector<4x1xi1> to vector<4x1xi1>
      %630 = vector.broadcast %629 : vector<4x1xi1> to vector<4x32xi1>
      %631 = arith.select %630, %621, %592 : vector<4x32xi1>, vector<4x32xf32>
      %632 = vector.extract_strided_slice %41 {offsets = [0, 15, 0], sizes = [4, 1, 128], strides = [1, 1, 1]} : vector<4x32x128xf32> to vector<4x1x128xf32>
      %633 = vector.shape_cast %632 : vector<4x1x128xf32> to vector<4x128xf32>
      %634 = arith.truncf %628 : vector<4x32xf32> to vector<4x32xbf16>
      %c0_133 = arith.constant 0 : index
      %c0_134 = arith.constant 0 : index
      %635 = vector.load %arg13[%c0_133, %c0_134] : memref<32x128xbf16, #tpu.memory_space<vmem>>, vector<32x128xbf16>
      %cst_135 = arith.constant dense<0.000000e+00> : vector<4x128xf32>
      %636 = tpu.matmul %634, %635, %cst_135 {dimension_numbers = #tpu.dot_dimension_numbers<[1], [0], [0], [1], [0, 0, 1, 1], [], []>} : vector<4x32xbf16>, vector<32x128xbf16>, vector<4x128xf32> -> vector<4x128xf32>
      %637 = arith.addf %633, %636 : vector<4x128xf32>
      %638 = vector.extract_strided_slice %637 {offsets = [0, 0], sizes = [4, 32], strides = [1, 1]} : vector<4x128xf32> to vector<4x32xf32>
      %639 = arith.negf %638 : vector<4x32xf32>
      %640 = math.exp %639 : vector<4x32xf32>
      %cst_136 = arith.constant 1.000000e+00 : f32
      %641 = vector.broadcast %cst_136 : f32 to vector<4x32xf32>
      %642 = arith.addf %641, %640 : vector<4x32xf32>
      %643 = arith.divf %641, %642 : vector<4x32xf32>
      %644 = vector.extract_strided_slice %637 {offsets = [0, 32], sizes = [4, 32], strides = [1, 1]} : vector<4x128xf32> to vector<4x32xf32>
      %645 = arith.negf %644 : vector<4x32xf32>
      %646 = math.exp %645 : vector<4x32xf32>
      %cst_137 = arith.constant 1.000000e+00 : f32
      %647 = vector.broadcast %cst_137 : f32 to vector<4x32xf32>
      %648 = arith.addf %647, %646 : vector<4x32xf32>
      %649 = arith.divf %647, %648 : vector<4x32xf32>
      %650 = vector.extract_strided_slice %637 {offsets = [0, 64], sizes = [4, 32], strides = [1, 1]} : vector<4x128xf32> to vector<4x32xf32>
      %651 = math.tanh %650 : vector<4x32xf32>
      %652 = vector.extract_strided_slice %637 {offsets = [0, 96], sizes = [4, 32], strides = [1, 1]} : vector<4x128xf32> to vector<4x32xf32>
      %653 = arith.negf %652 : vector<4x32xf32>
      %654 = math.exp %653 : vector<4x32xf32>
      %cst_138 = arith.constant 1.000000e+00 : f32
      %655 = vector.broadcast %cst_138 : f32 to vector<4x32xf32>
      %656 = arith.addf %655, %654 : vector<4x32xf32>
      %657 = arith.divf %655, %656 : vector<4x32xf32>
      %658 = arith.mulf %649, %631 : vector<4x32xf32>
      %659 = arith.mulf %643, %651 : vector<4x32xf32>
      %660 = arith.addf %658, %659 : vector<4x32xf32>
      %661 = math.tanh %660 : vector<4x32xf32>
      %662 = arith.mulf %657, %661 : vector<4x32xf32>
      %c15_i32 = arith.constant 15 : i32
      %663 = vector.broadcast %c15_i32 : i32 to vector<4x1xi32>
      %664 = arith.cmpi sgt, %44, %663 : vector<4x1xi32>
      %665 = vector.shape_cast %664 : vector<4x1xi1> to vector<4x1xi1>
      %666 = vector.broadcast %665 : vector<4x1xi1> to vector<4x32xi1>
      %667 = arith.select %666, %662, %628 : vector<4x32xi1>, vector<4x32xf32>
      %668 = vector.shape_cast %664 : vector<4x1xi1> to vector<4x1xi1>
      %669 = vector.broadcast %668 : vector<4x1xi1> to vector<4x32xi1>
      %670 = arith.select %669, %660, %631 : vector<4x32xi1>, vector<4x32xf32>
      %671 = vector.extract_strided_slice %41 {offsets = [0, 16, 0], sizes = [4, 1, 128], strides = [1, 1, 1]} : vector<4x32x128xf32> to vector<4x1x128xf32>
      %672 = vector.shape_cast %671 : vector<4x1x128xf32> to vector<4x128xf32>
      %673 = arith.truncf %667 : vector<4x32xf32> to vector<4x32xbf16>
      %c0_139 = arith.constant 0 : index
      %c0_140 = arith.constant 0 : index
      %674 = vector.load %arg13[%c0_139, %c0_140] : memref<32x128xbf16, #tpu.memory_space<vmem>>, vector<32x128xbf16>
      %cst_141 = arith.constant dense<0.000000e+00> : vector<4x128xf32>
      %675 = tpu.matmul %673, %674, %cst_141 {dimension_numbers = #tpu.dot_dimension_numbers<[1], [0], [0], [1], [0, 0, 1, 1], [], []>} : vector<4x32xbf16>, vector<32x128xbf16>, vector<4x128xf32> -> vector<4x128xf32>
      %676 = arith.addf %672, %675 : vector<4x128xf32>
      %677 = vector.extract_strided_slice %676 {offsets = [0, 0], sizes = [4, 32], strides = [1, 1]} : vector<4x128xf32> to vector<4x32xf32>
      %678 = arith.negf %677 : vector<4x32xf32>
      %679 = math.exp %678 : vector<4x32xf32>
      %cst_142 = arith.constant 1.000000e+00 : f32
      %680 = vector.broadcast %cst_142 : f32 to vector<4x32xf32>
      %681 = arith.addf %680, %679 : vector<4x32xf32>
      %682 = arith.divf %680, %681 : vector<4x32xf32>
      %683 = vector.extract_strided_slice %676 {offsets = [0, 32], sizes = [4, 32], strides = [1, 1]} : vector<4x128xf32> to vector<4x32xf32>
      %684 = arith.negf %683 : vector<4x32xf32>
      %685 = math.exp %684 : vector<4x32xf32>
      %cst_143 = arith.constant 1.000000e+00 : f32
      %686 = vector.broadcast %cst_143 : f32 to vector<4x32xf32>
      %687 = arith.addf %686, %685 : vector<4x32xf32>
      %688 = arith.divf %686, %687 : vector<4x32xf32>
      %689 = vector.extract_strided_slice %676 {offsets = [0, 64], sizes = [4, 32], strides = [1, 1]} : vector<4x128xf32> to vector<4x32xf32>
      %690 = math.tanh %689 : vector<4x32xf32>
      %691 = vector.extract_strided_slice %676 {offsets = [0, 96], sizes = [4, 32], strides = [1, 1]} : vector<4x128xf32> to vector<4x32xf32>
      %692 = arith.negf %691 : vector<4x32xf32>
      %693 = math.exp %692 : vector<4x32xf32>
      %cst_144 = arith.constant 1.000000e+00 : f32
      %694 = vector.broadcast %cst_144 : f32 to vector<4x32xf32>
      %695 = arith.addf %694, %693 : vector<4x32xf32>
      %696 = arith.divf %694, %695 : vector<4x32xf32>
      %697 = arith.mulf %688, %670 : vector<4x32xf32>
      %698 = arith.mulf %682, %690 : vector<4x32xf32>
      %699 = arith.addf %697, %698 : vector<4x32xf32>
      %700 = math.tanh %699 : vector<4x32xf32>
      %701 = arith.mulf %696, %700 : vector<4x32xf32>
      %c16_i32 = arith.constant 16 : i32
      %702 = vector.broadcast %c16_i32 : i32 to vector<4x1xi32>
      %703 = arith.cmpi sgt, %44, %702 : vector<4x1xi32>
      %704 = vector.shape_cast %703 : vector<4x1xi1> to vector<4x1xi1>
      %705 = vector.broadcast %704 : vector<4x1xi1> to vector<4x32xi1>
      %706 = arith.select %705, %701, %667 : vector<4x32xi1>, vector<4x32xf32>
      %707 = vector.shape_cast %703 : vector<4x1xi1> to vector<4x1xi1>
      %708 = vector.broadcast %707 : vector<4x1xi1> to vector<4x32xi1>
      %709 = arith.select %708, %699, %670 : vector<4x32xi1>, vector<4x32xf32>
      %710 = vector.extract_strided_slice %41 {offsets = [0, 17, 0], sizes = [4, 1, 128], strides = [1, 1, 1]} : vector<4x32x128xf32> to vector<4x1x128xf32>
      %711 = vector.shape_cast %710 : vector<4x1x128xf32> to vector<4x128xf32>
      %712 = arith.truncf %706 : vector<4x32xf32> to vector<4x32xbf16>
      %c0_145 = arith.constant 0 : index
      %c0_146 = arith.constant 0 : index
      %713 = vector.load %arg13[%c0_145, %c0_146] : memref<32x128xbf16, #tpu.memory_space<vmem>>, vector<32x128xbf16>
      %cst_147 = arith.constant dense<0.000000e+00> : vector<4x128xf32>
      %714 = tpu.matmul %712, %713, %cst_147 {dimension_numbers = #tpu.dot_dimension_numbers<[1], [0], [0], [1], [0, 0, 1, 1], [], []>} : vector<4x32xbf16>, vector<32x128xbf16>, vector<4x128xf32> -> vector<4x128xf32>
      %715 = arith.addf %711, %714 : vector<4x128xf32>
      %716 = vector.extract_strided_slice %715 {offsets = [0, 0], sizes = [4, 32], strides = [1, 1]} : vector<4x128xf32> to vector<4x32xf32>
      %717 = arith.negf %716 : vector<4x32xf32>
      %718 = math.exp %717 : vector<4x32xf32>
      %cst_148 = arith.constant 1.000000e+00 : f32
      %719 = vector.broadcast %cst_148 : f32 to vector<4x32xf32>
      %720 = arith.addf %719, %718 : vector<4x32xf32>
      %721 = arith.divf %719, %720 : vector<4x32xf32>
      %722 = vector.extract_strided_slice %715 {offsets = [0, 32], sizes = [4, 32], strides = [1, 1]} : vector<4x128xf32> to vector<4x32xf32>
      %723 = arith.negf %722 : vector<4x32xf32>
      %724 = math.exp %723 : vector<4x32xf32>
      %cst_149 = arith.constant 1.000000e+00 : f32
      %725 = vector.broadcast %cst_149 : f32 to vector<4x32xf32>
      %726 = arith.addf %725, %724 : vector<4x32xf32>
      %727 = arith.divf %725, %726 : vector<4x32xf32>
      %728 = vector.extract_strided_slice %715 {offsets = [0, 64], sizes = [4, 32], strides = [1, 1]} : vector<4x128xf32> to vector<4x32xf32>
      %729 = math.tanh %728 : vector<4x32xf32>
      %730 = vector.extract_strided_slice %715 {offsets = [0, 96], sizes = [4, 32], strides = [1, 1]} : vector<4x128xf32> to vector<4x32xf32>
      %731 = arith.negf %730 : vector<4x32xf32>
      %732 = math.exp %731 : vector<4x32xf32>
      %cst_150 = arith.constant 1.000000e+00 : f32
      %733 = vector.broadcast %cst_150 : f32 to vector<4x32xf32>
      %734 = arith.addf %733, %732 : vector<4x32xf32>
      %735 = arith.divf %733, %734 : vector<4x32xf32>
      %736 = arith.mulf %727, %709 : vector<4x32xf32>
      %737 = arith.mulf %721, %729 : vector<4x32xf32>
      %738 = arith.addf %736, %737 : vector<4x32xf32>
      %739 = math.tanh %738 : vector<4x32xf32>
      %740 = arith.mulf %735, %739 : vector<4x32xf32>
      %c17_i32 = arith.constant 17 : i32
      %741 = vector.broadcast %c17_i32 : i32 to vector<4x1xi32>
      %742 = arith.cmpi sgt, %44, %741 : vector<4x1xi32>
      %743 = vector.shape_cast %742 : vector<4x1xi1> to vector<4x1xi1>
      %744 = vector.broadcast %743 : vector<4x1xi1> to vector<4x32xi1>
      %745 = arith.select %744, %740, %706 : vector<4x32xi1>, vector<4x32xf32>
      %746 = vector.shape_cast %742 : vector<4x1xi1> to vector<4x1xi1>
      %747 = vector.broadcast %746 : vector<4x1xi1> to vector<4x32xi1>
      %748 = arith.select %747, %738, %709 : vector<4x32xi1>, vector<4x32xf32>
      %749 = vector.extract_strided_slice %41 {offsets = [0, 18, 0], sizes = [4, 1, 128], strides = [1, 1, 1]} : vector<4x32x128xf32> to vector<4x1x128xf32>
      %750 = vector.shape_cast %749 : vector<4x1x128xf32> to vector<4x128xf32>
      %751 = arith.truncf %745 : vector<4x32xf32> to vector<4x32xbf16>
      %c0_151 = arith.constant 0 : index
      %c0_152 = arith.constant 0 : index
      %752 = vector.load %arg13[%c0_151, %c0_152] : memref<32x128xbf16, #tpu.memory_space<vmem>>, vector<32x128xbf16>
      %cst_153 = arith.constant dense<0.000000e+00> : vector<4x128xf32>
      %753 = tpu.matmul %751, %752, %cst_153 {dimension_numbers = #tpu.dot_dimension_numbers<[1], [0], [0], [1], [0, 0, 1, 1], [], []>} : vector<4x32xbf16>, vector<32x128xbf16>, vector<4x128xf32> -> vector<4x128xf32>
      %754 = arith.addf %750, %753 : vector<4x128xf32>
      %755 = vector.extract_strided_slice %754 {offsets = [0, 0], sizes = [4, 32], strides = [1, 1]} : vector<4x128xf32> to vector<4x32xf32>
      %756 = arith.negf %755 : vector<4x32xf32>
      %757 = math.exp %756 : vector<4x32xf32>
      %cst_154 = arith.constant 1.000000e+00 : f32
      %758 = vector.broadcast %cst_154 : f32 to vector<4x32xf32>
      %759 = arith.addf %758, %757 : vector<4x32xf32>
      %760 = arith.divf %758, %759 : vector<4x32xf32>
      %761 = vector.extract_strided_slice %754 {offsets = [0, 32], sizes = [4, 32], strides = [1, 1]} : vector<4x128xf32> to vector<4x32xf32>
      %762 = arith.negf %761 : vector<4x32xf32>
      %763 = math.exp %762 : vector<4x32xf32>
      %cst_155 = arith.constant 1.000000e+00 : f32
      %764 = vector.broadcast %cst_155 : f32 to vector<4x32xf32>
      %765 = arith.addf %764, %763 : vector<4x32xf32>
      %766 = arith.divf %764, %765 : vector<4x32xf32>
      %767 = vector.extract_strided_slice %754 {offsets = [0, 64], sizes = [4, 32], strides = [1, 1]} : vector<4x128xf32> to vector<4x32xf32>
      %768 = math.tanh %767 : vector<4x32xf32>
      %769 = vector.extract_strided_slice %754 {offsets = [0, 96], sizes = [4, 32], strides = [1, 1]} : vector<4x128xf32> to vector<4x32xf32>
      %770 = arith.negf %769 : vector<4x32xf32>
      %771 = math.exp %770 : vector<4x32xf32>
      %cst_156 = arith.constant 1.000000e+00 : f32
      %772 = vector.broadcast %cst_156 : f32 to vector<4x32xf32>
      %773 = arith.addf %772, %771 : vector<4x32xf32>
      %774 = arith.divf %772, %773 : vector<4x32xf32>
      %775 = arith.mulf %766, %748 : vector<4x32xf32>
      %776 = arith.mulf %760, %768 : vector<4x32xf32>
      %777 = arith.addf %775, %776 : vector<4x32xf32>
      %778 = math.tanh %777 : vector<4x32xf32>
      %779 = arith.mulf %774, %778 : vector<4x32xf32>
      %c18_i32 = arith.constant 18 : i32
      %780 = vector.broadcast %c18_i32 : i32 to vector<4x1xi32>
      %781 = arith.cmpi sgt, %44, %780 : vector<4x1xi32>
      %782 = vector.shape_cast %781 : vector<4x1xi1> to vector<4x1xi1>
      %783 = vector.broadcast %782 : vector<4x1xi1> to vector<4x32xi1>
      %784 = arith.select %783, %779, %745 : vector<4x32xi1>, vector<4x32xf32>
      %785 = vector.shape_cast %781 : vector<4x1xi1> to vector<4x1xi1>
      %786 = vector.broadcast %785 : vector<4x1xi1> to vector<4x32xi1>
      %787 = arith.select %786, %777, %748 : vector<4x32xi1>, vector<4x32xf32>
      %788 = vector.extract_strided_slice %41 {offsets = [0, 19, 0], sizes = [4, 1, 128], strides = [1, 1, 1]} : vector<4x32x128xf32> to vector<4x1x128xf32>
      %789 = vector.shape_cast %788 : vector<4x1x128xf32> to vector<4x128xf32>
      %790 = arith.truncf %784 : vector<4x32xf32> to vector<4x32xbf16>
      %c0_157 = arith.constant 0 : index
      %c0_158 = arith.constant 0 : index
      %791 = vector.load %arg13[%c0_157, %c0_158] : memref<32x128xbf16, #tpu.memory_space<vmem>>, vector<32x128xbf16>
      %cst_159 = arith.constant dense<0.000000e+00> : vector<4x128xf32>
      %792 = tpu.matmul %790, %791, %cst_159 {dimension_numbers = #tpu.dot_dimension_numbers<[1], [0], [0], [1], [0, 0, 1, 1], [], []>} : vector<4x32xbf16>, vector<32x128xbf16>, vector<4x128xf32> -> vector<4x128xf32>
      %793 = arith.addf %789, %792 : vector<4x128xf32>
      %794 = vector.extract_strided_slice %793 {offsets = [0, 0], sizes = [4, 32], strides = [1, 1]} : vector<4x128xf32> to vector<4x32xf32>
      %795 = arith.negf %794 : vector<4x32xf32>
      %796 = math.exp %795 : vector<4x32xf32>
      %cst_160 = arith.constant 1.000000e+00 : f32
      %797 = vector.broadcast %cst_160 : f32 to vector<4x32xf32>
      %798 = arith.addf %797, %796 : vector<4x32xf32>
      %799 = arith.divf %797, %798 : vector<4x32xf32>
      %800 = vector.extract_strided_slice %793 {offsets = [0, 32], sizes = [4, 32], strides = [1, 1]} : vector<4x128xf32> to vector<4x32xf32>
      %801 = arith.negf %800 : vector<4x32xf32>
      %802 = math.exp %801 : vector<4x32xf32>
      %cst_161 = arith.constant 1.000000e+00 : f32
      %803 = vector.broadcast %cst_161 : f32 to vector<4x32xf32>
      %804 = arith.addf %803, %802 : vector<4x32xf32>
      %805 = arith.divf %803, %804 : vector<4x32xf32>
      %806 = vector.extract_strided_slice %793 {offsets = [0, 64], sizes = [4, 32], strides = [1, 1]} : vector<4x128xf32> to vector<4x32xf32>
      %807 = math.tanh %806 : vector<4x32xf32>
      %808 = vector.extract_strided_slice %793 {offsets = [0, 96], sizes = [4, 32], strides = [1, 1]} : vector<4x128xf32> to vector<4x32xf32>
      %809 = arith.negf %808 : vector<4x32xf32>
      %810 = math.exp %809 : vector<4x32xf32>
      %cst_162 = arith.constant 1.000000e+00 : f32
      %811 = vector.broadcast %cst_162 : f32 to vector<4x32xf32>
      %812 = arith.addf %811, %810 : vector<4x32xf32>
      %813 = arith.divf %811, %812 : vector<4x32xf32>
      %814 = arith.mulf %805, %787 : vector<4x32xf32>
      %815 = arith.mulf %799, %807 : vector<4x32xf32>
      %816 = arith.addf %814, %815 : vector<4x32xf32>
      %817 = math.tanh %816 : vector<4x32xf32>
      %818 = arith.mulf %813, %817 : vector<4x32xf32>
      %c19_i32 = arith.constant 19 : i32
      %819 = vector.broadcast %c19_i32 : i32 to vector<4x1xi32>
      %820 = arith.cmpi sgt, %44, %819 : vector<4x1xi32>
      %821 = vector.shape_cast %820 : vector<4x1xi1> to vector<4x1xi1>
      %822 = vector.broadcast %821 : vector<4x1xi1> to vector<4x32xi1>
      %823 = arith.select %822, %818, %784 : vector<4x32xi1>, vector<4x32xf32>
      %824 = vector.shape_cast %820 : vector<4x1xi1> to vector<4x1xi1>
      %825 = vector.broadcast %824 : vector<4x1xi1> to vector<4x32xi1>
      %826 = arith.select %825, %816, %787 : vector<4x32xi1>, vector<4x32xf32>
      %827 = vector.extract_strided_slice %41 {offsets = [0, 20, 0], sizes = [4, 1, 128], strides = [1, 1, 1]} : vector<4x32x128xf32> to vector<4x1x128xf32>
      %828 = vector.shape_cast %827 : vector<4x1x128xf32> to vector<4x128xf32>
      %829 = arith.truncf %823 : vector<4x32xf32> to vector<4x32xbf16>
      %c0_163 = arith.constant 0 : index
      %c0_164 = arith.constant 0 : index
      %830 = vector.load %arg13[%c0_163, %c0_164] : memref<32x128xbf16, #tpu.memory_space<vmem>>, vector<32x128xbf16>
      %cst_165 = arith.constant dense<0.000000e+00> : vector<4x128xf32>
      %831 = tpu.matmul %829, %830, %cst_165 {dimension_numbers = #tpu.dot_dimension_numbers<[1], [0], [0], [1], [0, 0, 1, 1], [], []>} : vector<4x32xbf16>, vector<32x128xbf16>, vector<4x128xf32> -> vector<4x128xf32>
      %832 = arith.addf %828, %831 : vector<4x128xf32>
      %833 = vector.extract_strided_slice %832 {offsets = [0, 0], sizes = [4, 32], strides = [1, 1]} : vector<4x128xf32> to vector<4x32xf32>
      %834 = arith.negf %833 : vector<4x32xf32>
      %835 = math.exp %834 : vector<4x32xf32>
      %cst_166 = arith.constant 1.000000e+00 : f32
      %836 = vector.broadcast %cst_166 : f32 to vector<4x32xf32>
      %837 = arith.addf %836, %835 : vector<4x32xf32>
      %838 = arith.divf %836, %837 : vector<4x32xf32>
      %839 = vector.extract_strided_slice %832 {offsets = [0, 32], sizes = [4, 32], strides = [1, 1]} : vector<4x128xf32> to vector<4x32xf32>
      %840 = arith.negf %839 : vector<4x32xf32>
      %841 = math.exp %840 : vector<4x32xf32>
      %cst_167 = arith.constant 1.000000e+00 : f32
      %842 = vector.broadcast %cst_167 : f32 to vector<4x32xf32>
      %843 = arith.addf %842, %841 : vector<4x32xf32>
      %844 = arith.divf %842, %843 : vector<4x32xf32>
      %845 = vector.extract_strided_slice %832 {offsets = [0, 64], sizes = [4, 32], strides = [1, 1]} : vector<4x128xf32> to vector<4x32xf32>
      %846 = math.tanh %845 : vector<4x32xf32>
      %847 = vector.extract_strided_slice %832 {offsets = [0, 96], sizes = [4, 32], strides = [1, 1]} : vector<4x128xf32> to vector<4x32xf32>
      %848 = arith.negf %847 : vector<4x32xf32>
      %849 = math.exp %848 : vector<4x32xf32>
      %cst_168 = arith.constant 1.000000e+00 : f32
      %850 = vector.broadcast %cst_168 : f32 to vector<4x32xf32>
      %851 = arith.addf %850, %849 : vector<4x32xf32>
      %852 = arith.divf %850, %851 : vector<4x32xf32>
      %853 = arith.mulf %844, %826 : vector<4x32xf32>
      %854 = arith.mulf %838, %846 : vector<4x32xf32>
      %855 = arith.addf %853, %854 : vector<4x32xf32>
      %856 = math.tanh %855 : vector<4x32xf32>
      %857 = arith.mulf %852, %856 : vector<4x32xf32>
      %c20_i32 = arith.constant 20 : i32
      %858 = vector.broadcast %c20_i32 : i32 to vector<4x1xi32>
      %859 = arith.cmpi sgt, %44, %858 : vector<4x1xi32>
      %860 = vector.shape_cast %859 : vector<4x1xi1> to vector<4x1xi1>
      %861 = vector.broadcast %860 : vector<4x1xi1> to vector<4x32xi1>
      %862 = arith.select %861, %857, %823 : vector<4x32xi1>, vector<4x32xf32>
      %863 = vector.shape_cast %859 : vector<4x1xi1> to vector<4x1xi1>
      %864 = vector.broadcast %863 : vector<4x1xi1> to vector<4x32xi1>
      %865 = arith.select %864, %855, %826 : vector<4x32xi1>, vector<4x32xf32>
      %866 = vector.extract_strided_slice %41 {offsets = [0, 21, 0], sizes = [4, 1, 128], strides = [1, 1, 1]} : vector<4x32x128xf32> to vector<4x1x128xf32>
      %867 = vector.shape_cast %866 : vector<4x1x128xf32> to vector<4x128xf32>
      %868 = arith.truncf %862 : vector<4x32xf32> to vector<4x32xbf16>
      %c0_169 = arith.constant 0 : index
      %c0_170 = arith.constant 0 : index
      %869 = vector.load %arg13[%c0_169, %c0_170] : memref<32x128xbf16, #tpu.memory_space<vmem>>, vector<32x128xbf16>
      %cst_171 = arith.constant dense<0.000000e+00> : vector<4x128xf32>
      %870 = tpu.matmul %868, %869, %cst_171 {dimension_numbers = #tpu.dot_dimension_numbers<[1], [0], [0], [1], [0, 0, 1, 1], [], []>} : vector<4x32xbf16>, vector<32x128xbf16>, vector<4x128xf32> -> vector<4x128xf32>
      %871 = arith.addf %867, %870 : vector<4x128xf32>
      %872 = vector.extract_strided_slice %871 {offsets = [0, 0], sizes = [4, 32], strides = [1, 1]} : vector<4x128xf32> to vector<4x32xf32>
      %873 = arith.negf %872 : vector<4x32xf32>
      %874 = math.exp %873 : vector<4x32xf32>
      %cst_172 = arith.constant 1.000000e+00 : f32
      %875 = vector.broadcast %cst_172 : f32 to vector<4x32xf32>
      %876 = arith.addf %875, %874 : vector<4x32xf32>
      %877 = arith.divf %875, %876 : vector<4x32xf32>
      %878 = vector.extract_strided_slice %871 {offsets = [0, 32], sizes = [4, 32], strides = [1, 1]} : vector<4x128xf32> to vector<4x32xf32>
      %879 = arith.negf %878 : vector<4x32xf32>
      %880 = math.exp %879 : vector<4x32xf32>
      %cst_173 = arith.constant 1.000000e+00 : f32
      %881 = vector.broadcast %cst_173 : f32 to vector<4x32xf32>
      %882 = arith.addf %881, %880 : vector<4x32xf32>
      %883 = arith.divf %881, %882 : vector<4x32xf32>
      %884 = vector.extract_strided_slice %871 {offsets = [0, 64], sizes = [4, 32], strides = [1, 1]} : vector<4x128xf32> to vector<4x32xf32>
      %885 = math.tanh %884 : vector<4x32xf32>
      %886 = vector.extract_strided_slice %871 {offsets = [0, 96], sizes = [4, 32], strides = [1, 1]} : vector<4x128xf32> to vector<4x32xf32>
      %887 = arith.negf %886 : vector<4x32xf32>
      %888 = math.exp %887 : vector<4x32xf32>
      %cst_174 = arith.constant 1.000000e+00 : f32
      %889 = vector.broadcast %cst_174 : f32 to vector<4x32xf32>
      %890 = arith.addf %889, %888 : vector<4x32xf32>
      %891 = arith.divf %889, %890 : vector<4x32xf32>
      %892 = arith.mulf %883, %865 : vector<4x32xf32>
      %893 = arith.mulf %877, %885 : vector<4x32xf32>
      %894 = arith.addf %892, %893 : vector<4x32xf32>
      %895 = math.tanh %894 : vector<4x32xf32>
      %896 = arith.mulf %891, %895 : vector<4x32xf32>
      %c21_i32 = arith.constant 21 : i32
      %897 = vector.broadcast %c21_i32 : i32 to vector<4x1xi32>
      %898 = arith.cmpi sgt, %44, %897 : vector<4x1xi32>
      %899 = vector.shape_cast %898 : vector<4x1xi1> to vector<4x1xi1>
      %900 = vector.broadcast %899 : vector<4x1xi1> to vector<4x32xi1>
      %901 = arith.select %900, %896, %862 : vector<4x32xi1>, vector<4x32xf32>
      %902 = vector.shape_cast %898 : vector<4x1xi1> to vector<4x1xi1>
      %903 = vector.broadcast %902 : vector<4x1xi1> to vector<4x32xi1>
      %904 = arith.select %903, %894, %865 : vector<4x32xi1>, vector<4x32xf32>
      %905 = vector.extract_strided_slice %41 {offsets = [0, 22, 0], sizes = [4, 1, 128], strides = [1, 1, 1]} : vector<4x32x128xf32> to vector<4x1x128xf32>
      %906 = vector.shape_cast %905 : vector<4x1x128xf32> to vector<4x128xf32>
      %907 = arith.truncf %901 : vector<4x32xf32> to vector<4x32xbf16>
      %c0_175 = arith.constant 0 : index
      %c0_176 = arith.constant 0 : index
      %908 = vector.load %arg13[%c0_175, %c0_176] : memref<32x128xbf16, #tpu.memory_space<vmem>>, vector<32x128xbf16>
      %cst_177 = arith.constant dense<0.000000e+00> : vector<4x128xf32>
      %909 = tpu.matmul %907, %908, %cst_177 {dimension_numbers = #tpu.dot_dimension_numbers<[1], [0], [0], [1], [0, 0, 1, 1], [], []>} : vector<4x32xbf16>, vector<32x128xbf16>, vector<4x128xf32> -> vector<4x128xf32>
      %910 = arith.addf %906, %909 : vector<4x128xf32>
      %911 = vector.extract_strided_slice %910 {offsets = [0, 0], sizes = [4, 32], strides = [1, 1]} : vector<4x128xf32> to vector<4x32xf32>
      %912 = arith.negf %911 : vector<4x32xf32>
      %913 = math.exp %912 : vector<4x32xf32>
      %cst_178 = arith.constant 1.000000e+00 : f32
      %914 = vector.broadcast %cst_178 : f32 to vector<4x32xf32>
      %915 = arith.addf %914, %913 : vector<4x32xf32>
      %916 = arith.divf %914, %915 : vector<4x32xf32>
      %917 = vector.extract_strided_slice %910 {offsets = [0, 32], sizes = [4, 32], strides = [1, 1]} : vector<4x128xf32> to vector<4x32xf32>
      %918 = arith.negf %917 : vector<4x32xf32>
      %919 = math.exp %918 : vector<4x32xf32>
      %cst_179 = arith.constant 1.000000e+00 : f32
      %920 = vector.broadcast %cst_179 : f32 to vector<4x32xf32>
      %921 = arith.addf %920, %919 : vector<4x32xf32>
      %922 = arith.divf %920, %921 : vector<4x32xf32>
      %923 = vector.extract_strided_slice %910 {offsets = [0, 64], sizes = [4, 32], strides = [1, 1]} : vector<4x128xf32> to vector<4x32xf32>
      %924 = math.tanh %923 : vector<4x32xf32>
      %925 = vector.extract_strided_slice %910 {offsets = [0, 96], sizes = [4, 32], strides = [1, 1]} : vector<4x128xf32> to vector<4x32xf32>
      %926 = arith.negf %925 : vector<4x32xf32>
      %927 = math.exp %926 : vector<4x32xf32>
      %cst_180 = arith.constant 1.000000e+00 : f32
      %928 = vector.broadcast %cst_180 : f32 to vector<4x32xf32>
      %929 = arith.addf %928, %927 : vector<4x32xf32>
      %930 = arith.divf %928, %929 : vector<4x32xf32>
      %931 = arith.mulf %922, %904 : vector<4x32xf32>
      %932 = arith.mulf %916, %924 : vector<4x32xf32>
      %933 = arith.addf %931, %932 : vector<4x32xf32>
      %934 = math.tanh %933 : vector<4x32xf32>
      %935 = arith.mulf %930, %934 : vector<4x32xf32>
      %c22_i32 = arith.constant 22 : i32
      %936 = vector.broadcast %c22_i32 : i32 to vector<4x1xi32>
      %937 = arith.cmpi sgt, %44, %936 : vector<4x1xi32>
      %938 = vector.shape_cast %937 : vector<4x1xi1> to vector<4x1xi1>
      %939 = vector.broadcast %938 : vector<4x1xi1> to vector<4x32xi1>
      %940 = arith.select %939, %935, %901 : vector<4x32xi1>, vector<4x32xf32>
      %941 = vector.shape_cast %937 : vector<4x1xi1> to vector<4x1xi1>
      %942 = vector.broadcast %941 : vector<4x1xi1> to vector<4x32xi1>
      %943 = arith.select %942, %933, %904 : vector<4x32xi1>, vector<4x32xf32>
      %944 = vector.extract_strided_slice %41 {offsets = [0, 23, 0], sizes = [4, 1, 128], strides = [1, 1, 1]} : vector<4x32x128xf32> to vector<4x1x128xf32>
      %945 = vector.shape_cast %944 : vector<4x1x128xf32> to vector<4x128xf32>
      %946 = arith.truncf %940 : vector<4x32xf32> to vector<4x32xbf16>
      %c0_181 = arith.constant 0 : index
      %c0_182 = arith.constant 0 : index
      %947 = vector.load %arg13[%c0_181, %c0_182] : memref<32x128xbf16, #tpu.memory_space<vmem>>, vector<32x128xbf16>
      %cst_183 = arith.constant dense<0.000000e+00> : vector<4x128xf32>
      %948 = tpu.matmul %946, %947, %cst_183 {dimension_numbers = #tpu.dot_dimension_numbers<[1], [0], [0], [1], [0, 0, 1, 1], [], []>} : vector<4x32xbf16>, vector<32x128xbf16>, vector<4x128xf32> -> vector<4x128xf32>
      %949 = arith.addf %945, %948 : vector<4x128xf32>
      %950 = vector.extract_strided_slice %949 {offsets = [0, 0], sizes = [4, 32], strides = [1, 1]} : vector<4x128xf32> to vector<4x32xf32>
      %951 = arith.negf %950 : vector<4x32xf32>
      %952 = math.exp %951 : vector<4x32xf32>
      %cst_184 = arith.constant 1.000000e+00 : f32
      %953 = vector.broadcast %cst_184 : f32 to vector<4x32xf32>
      %954 = arith.addf %953, %952 : vector<4x32xf32>
      %955 = arith.divf %953, %954 : vector<4x32xf32>
      %956 = vector.extract_strided_slice %949 {offsets = [0, 32], sizes = [4, 32], strides = [1, 1]} : vector<4x128xf32> to vector<4x32xf32>
      %957 = arith.negf %956 : vector<4x32xf32>
      %958 = math.exp %957 : vector<4x32xf32>
      %cst_185 = arith.constant 1.000000e+00 : f32
      %959 = vector.broadcast %cst_185 : f32 to vector<4x32xf32>
      %960 = arith.addf %959, %958 : vector<4x32xf32>
      %961 = arith.divf %959, %960 : vector<4x32xf32>
      %962 = vector.extract_strided_slice %949 {offsets = [0, 64], sizes = [4, 32], strides = [1, 1]} : vector<4x128xf32> to vector<4x32xf32>
      %963 = math.tanh %962 : vector<4x32xf32>
      %964 = vector.extract_strided_slice %949 {offsets = [0, 96], sizes = [4, 32], strides = [1, 1]} : vector<4x128xf32> to vector<4x32xf32>
      %965 = arith.negf %964 : vector<4x32xf32>
      %966 = math.exp %965 : vector<4x32xf32>
      %cst_186 = arith.constant 1.000000e+00 : f32
      %967 = vector.broadcast %cst_186 : f32 to vector<4x32xf32>
      %968 = arith.addf %967, %966 : vector<4x32xf32>
      %969 = arith.divf %967, %968 : vector<4x32xf32>
      %970 = arith.mulf %961, %943 : vector<4x32xf32>
      %971 = arith.mulf %955, %963 : vector<4x32xf32>
      %972 = arith.addf %970, %971 : vector<4x32xf32>
      %973 = math.tanh %972 : vector<4x32xf32>
      %974 = arith.mulf %969, %973 : vector<4x32xf32>
      %c23_i32 = arith.constant 23 : i32
      %975 = vector.broadcast %c23_i32 : i32 to vector<4x1xi32>
      %976 = arith.cmpi sgt, %44, %975 : vector<4x1xi32>
      %977 = vector.shape_cast %976 : vector<4x1xi1> to vector<4x1xi1>
      %978 = vector.broadcast %977 : vector<4x1xi1> to vector<4x32xi1>
      %979 = arith.select %978, %974, %940 : vector<4x32xi1>, vector<4x32xf32>
      %980 = vector.shape_cast %976 : vector<4x1xi1> to vector<4x1xi1>
      %981 = vector.broadcast %980 : vector<4x1xi1> to vector<4x32xi1>
      %982 = arith.select %981, %972, %943 : vector<4x32xi1>, vector<4x32xf32>
      %983 = vector.extract_strided_slice %41 {offsets = [0, 24, 0], sizes = [4, 1, 128], strides = [1, 1, 1]} : vector<4x32x128xf32> to vector<4x1x128xf32>
      %984 = vector.shape_cast %983 : vector<4x1x128xf32> to vector<4x128xf32>
      %985 = arith.truncf %979 : vector<4x32xf32> to vector<4x32xbf16>
      %c0_187 = arith.constant 0 : index
      %c0_188 = arith.constant 0 : index
      %986 = vector.load %arg13[%c0_187, %c0_188] : memref<32x128xbf16, #tpu.memory_space<vmem>>, vector<32x128xbf16>
      %cst_189 = arith.constant dense<0.000000e+00> : vector<4x128xf32>
      %987 = tpu.matmul %985, %986, %cst_189 {dimension_numbers = #tpu.dot_dimension_numbers<[1], [0], [0], [1], [0, 0, 1, 1], [], []>} : vector<4x32xbf16>, vector<32x128xbf16>, vector<4x128xf32> -> vector<4x128xf32>
      %988 = arith.addf %984, %987 : vector<4x128xf32>
      %989 = vector.extract_strided_slice %988 {offsets = [0, 0], sizes = [4, 32], strides = [1, 1]} : vector<4x128xf32> to vector<4x32xf32>
      %990 = arith.negf %989 : vector<4x32xf32>
      %991 = math.exp %990 : vector<4x32xf32>
      %cst_190 = arith.constant 1.000000e+00 : f32
      %992 = vector.broadcast %cst_190 : f32 to vector<4x32xf32>
      %993 = arith.addf %992, %991 : vector<4x32xf32>
      %994 = arith.divf %992, %993 : vector<4x32xf32>
      %995 = vector.extract_strided_slice %988 {offsets = [0, 32], sizes = [4, 32], strides = [1, 1]} : vector<4x128xf32> to vector<4x32xf32>
      %996 = arith.negf %995 : vector<4x32xf32>
      %997 = math.exp %996 : vector<4x32xf32>
      %cst_191 = arith.constant 1.000000e+00 : f32
      %998 = vector.broadcast %cst_191 : f32 to vector<4x32xf32>
      %999 = arith.addf %998, %997 : vector<4x32xf32>
      %1000 = arith.divf %998, %999 : vector<4x32xf32>
      %1001 = vector.extract_strided_slice %988 {offsets = [0, 64], sizes = [4, 32], strides = [1, 1]} : vector<4x128xf32> to vector<4x32xf32>
      %1002 = math.tanh %1001 : vector<4x32xf32>
      %1003 = vector.extract_strided_slice %988 {offsets = [0, 96], sizes = [4, 32], strides = [1, 1]} : vector<4x128xf32> to vector<4x32xf32>
      %1004 = arith.negf %1003 : vector<4x32xf32>
      %1005 = math.exp %1004 : vector<4x32xf32>
      %cst_192 = arith.constant 1.000000e+00 : f32
      %1006 = vector.broadcast %cst_192 : f32 to vector<4x32xf32>
      %1007 = arith.addf %1006, %1005 : vector<4x32xf32>
      %1008 = arith.divf %1006, %1007 : vector<4x32xf32>
      %1009 = arith.mulf %1000, %982 : vector<4x32xf32>
      %1010 = arith.mulf %994, %1002 : vector<4x32xf32>
      %1011 = arith.addf %1009, %1010 : vector<4x32xf32>
      %1012 = math.tanh %1011 : vector<4x32xf32>
      %1013 = arith.mulf %1008, %1012 : vector<4x32xf32>
      %c24_i32 = arith.constant 24 : i32
      %1014 = vector.broadcast %c24_i32 : i32 to vector<4x1xi32>
      %1015 = arith.cmpi sgt, %44, %1014 : vector<4x1xi32>
      %1016 = vector.shape_cast %1015 : vector<4x1xi1> to vector<4x1xi1>
      %1017 = vector.broadcast %1016 : vector<4x1xi1> to vector<4x32xi1>
      %1018 = arith.select %1017, %1013, %979 : vector<4x32xi1>, vector<4x32xf32>
      %1019 = vector.shape_cast %1015 : vector<4x1xi1> to vector<4x1xi1>
      %1020 = vector.broadcast %1019 : vector<4x1xi1> to vector<4x32xi1>
      %1021 = arith.select %1020, %1011, %982 : vector<4x32xi1>, vector<4x32xf32>
      %1022 = vector.extract_strided_slice %41 {offsets = [0, 25, 0], sizes = [4, 1, 128], strides = [1, 1, 1]} : vector<4x32x128xf32> to vector<4x1x128xf32>
      %1023 = vector.shape_cast %1022 : vector<4x1x128xf32> to vector<4x128xf32>
      %1024 = arith.truncf %1018 : vector<4x32xf32> to vector<4x32xbf16>
      %c0_193 = arith.constant 0 : index
      %c0_194 = arith.constant 0 : index
      %1025 = vector.load %arg13[%c0_193, %c0_194] : memref<32x128xbf16, #tpu.memory_space<vmem>>, vector<32x128xbf16>
      %cst_195 = arith.constant dense<0.000000e+00> : vector<4x128xf32>
      %1026 = tpu.matmul %1024, %1025, %cst_195 {dimension_numbers = #tpu.dot_dimension_numbers<[1], [0], [0], [1], [0, 0, 1, 1], [], []>} : vector<4x32xbf16>, vector<32x128xbf16>, vector<4x128xf32> -> vector<4x128xf32>
      %1027 = arith.addf %1023, %1026 : vector<4x128xf32>
      %1028 = vector.extract_strided_slice %1027 {offsets = [0, 0], sizes = [4, 32], strides = [1, 1]} : vector<4x128xf32> to vector<4x32xf32>
      %1029 = arith.negf %1028 : vector<4x32xf32>
      %1030 = math.exp %1029 : vector<4x32xf32>
      %cst_196 = arith.constant 1.000000e+00 : f32
      %1031 = vector.broadcast %cst_196 : f32 to vector<4x32xf32>
      %1032 = arith.addf %1031, %1030 : vector<4x32xf32>
      %1033 = arith.divf %1031, %1032 : vector<4x32xf32>
      %1034 = vector.extract_strided_slice %1027 {offsets = [0, 32], sizes = [4, 32], strides = [1, 1]} : vector<4x128xf32> to vector<4x32xf32>
      %1035 = arith.negf %1034 : vector<4x32xf32>
      %1036 = math.exp %1035 : vector<4x32xf32>
      %cst_197 = arith.constant 1.000000e+00 : f32
      %1037 = vector.broadcast %cst_197 : f32 to vector<4x32xf32>
      %1038 = arith.addf %1037, %1036 : vector<4x32xf32>
      %1039 = arith.divf %1037, %1038 : vector<4x32xf32>
      %1040 = vector.extract_strided_slice %1027 {offsets = [0, 64], sizes = [4, 32], strides = [1, 1]} : vector<4x128xf32> to vector<4x32xf32>
      %1041 = math.tanh %1040 : vector<4x32xf32>
      %1042 = vector.extract_strided_slice %1027 {offsets = [0, 96], sizes = [4, 32], strides = [1, 1]} : vector<4x128xf32> to vector<4x32xf32>
      %1043 = arith.negf %1042 : vector<4x32xf32>
      %1044 = math.exp %1043 : vector<4x32xf32>
      %cst_198 = arith.constant 1.000000e+00 : f32
      %1045 = vector.broadcast %cst_198 : f32 to vector<4x32xf32>
      %1046 = arith.addf %1045, %1044 : vector<4x32xf32>
      %1047 = arith.divf %1045, %1046 : vector<4x32xf32>
      %1048 = arith.mulf %1039, %1021 : vector<4x32xf32>
      %1049 = arith.mulf %1033, %1041 : vector<4x32xf32>
      %1050 = arith.addf %1048, %1049 : vector<4x32xf32>
      %1051 = math.tanh %1050 : vector<4x32xf32>
      %1052 = arith.mulf %1047, %1051 : vector<4x32xf32>
      %c25_i32 = arith.constant 25 : i32
      %1053 = vector.broadcast %c25_i32 : i32 to vector<4x1xi32>
      %1054 = arith.cmpi sgt, %44, %1053 : vector<4x1xi32>
      %1055 = vector.shape_cast %1054 : vector<4x1xi1> to vector<4x1xi1>
      %1056 = vector.broadcast %1055 : vector<4x1xi1> to vector<4x32xi1>
      %1057 = arith.select %1056, %1052, %1018 : vector<4x32xi1>, vector<4x32xf32>
      %1058 = vector.shape_cast %1054 : vector<4x1xi1> to vector<4x1xi1>
      %1059 = vector.broadcast %1058 : vector<4x1xi1> to vector<4x32xi1>
      %1060 = arith.select %1059, %1050, %1021 : vector<4x32xi1>, vector<4x32xf32>
      %1061 = vector.extract_strided_slice %41 {offsets = [0, 26, 0], sizes = [4, 1, 128], strides = [1, 1, 1]} : vector<4x32x128xf32> to vector<4x1x128xf32>
      %1062 = vector.shape_cast %1061 : vector<4x1x128xf32> to vector<4x128xf32>
      %1063 = arith.truncf %1057 : vector<4x32xf32> to vector<4x32xbf16>
      %c0_199 = arith.constant 0 : index
      %c0_200 = arith.constant 0 : index
      %1064 = vector.load %arg13[%c0_199, %c0_200] : memref<32x128xbf16, #tpu.memory_space<vmem>>, vector<32x128xbf16>
      %cst_201 = arith.constant dense<0.000000e+00> : vector<4x128xf32>
      %1065 = tpu.matmul %1063, %1064, %cst_201 {dimension_numbers = #tpu.dot_dimension_numbers<[1], [0], [0], [1], [0, 0, 1, 1], [], []>} : vector<4x32xbf16>, vector<32x128xbf16>, vector<4x128xf32> -> vector<4x128xf32>
      %1066 = arith.addf %1062, %1065 : vector<4x128xf32>
      %1067 = vector.extract_strided_slice %1066 {offsets = [0, 0], sizes = [4, 32], strides = [1, 1]} : vector<4x128xf32> to vector<4x32xf32>
      %1068 = arith.negf %1067 : vector<4x32xf32>
      %1069 = math.exp %1068 : vector<4x32xf32>
      %cst_202 = arith.constant 1.000000e+00 : f32
      %1070 = vector.broadcast %cst_202 : f32 to vector<4x32xf32>
      %1071 = arith.addf %1070, %1069 : vector<4x32xf32>
      %1072 = arith.divf %1070, %1071 : vector<4x32xf32>
      %1073 = vector.extract_strided_slice %1066 {offsets = [0, 32], sizes = [4, 32], strides = [1, 1]} : vector<4x128xf32> to vector<4x32xf32>
      %1074 = arith.negf %1073 : vector<4x32xf32>
      %1075 = math.exp %1074 : vector<4x32xf32>
      %cst_203 = arith.constant 1.000000e+00 : f32
      %1076 = vector.broadcast %cst_203 : f32 to vector<4x32xf32>
      %1077 = arith.addf %1076, %1075 : vector<4x32xf32>
      %1078 = arith.divf %1076, %1077 : vector<4x32xf32>
      %1079 = vector.extract_strided_slice %1066 {offsets = [0, 64], sizes = [4, 32], strides = [1, 1]} : vector<4x128xf32> to vector<4x32xf32>
      %1080 = math.tanh %1079 : vector<4x32xf32>
      %1081 = vector.extract_strided_slice %1066 {offsets = [0, 96], sizes = [4, 32], strides = [1, 1]} : vector<4x128xf32> to vector<4x32xf32>
      %1082 = arith.negf %1081 : vector<4x32xf32>
      %1083 = math.exp %1082 : vector<4x32xf32>
      %cst_204 = arith.constant 1.000000e+00 : f32
      %1084 = vector.broadcast %cst_204 : f32 to vector<4x32xf32>
      %1085 = arith.addf %1084, %1083 : vector<4x32xf32>
      %1086 = arith.divf %1084, %1085 : vector<4x32xf32>
      %1087 = arith.mulf %1078, %1060 : vector<4x32xf32>
      %1088 = arith.mulf %1072, %1080 : vector<4x32xf32>
      %1089 = arith.addf %1087, %1088 : vector<4x32xf32>
      %1090 = math.tanh %1089 : vector<4x32xf32>
      %1091 = arith.mulf %1086, %1090 : vector<4x32xf32>
      %c26_i32 = arith.constant 26 : i32
      %1092 = vector.broadcast %c26_i32 : i32 to vector<4x1xi32>
      %1093 = arith.cmpi sgt, %44, %1092 : vector<4x1xi32>
      %1094 = vector.shape_cast %1093 : vector<4x1xi1> to vector<4x1xi1>
      %1095 = vector.broadcast %1094 : vector<4x1xi1> to vector<4x32xi1>
      %1096 = arith.select %1095, %1091, %1057 : vector<4x32xi1>, vector<4x32xf32>
      %1097 = vector.shape_cast %1093 : vector<4x1xi1> to vector<4x1xi1>
      %1098 = vector.broadcast %1097 : vector<4x1xi1> to vector<4x32xi1>
      %1099 = arith.select %1098, %1089, %1060 : vector<4x32xi1>, vector<4x32xf32>
      %1100 = vector.extract_strided_slice %41 {offsets = [0, 27, 0], sizes = [4, 1, 128], strides = [1, 1, 1]} : vector<4x32x128xf32> to vector<4x1x128xf32>
      %1101 = vector.shape_cast %1100 : vector<4x1x128xf32> to vector<4x128xf32>
      %1102 = arith.truncf %1096 : vector<4x32xf32> to vector<4x32xbf16>
      %c0_205 = arith.constant 0 : index
      %c0_206 = arith.constant 0 : index
      %1103 = vector.load %arg13[%c0_205, %c0_206] : memref<32x128xbf16, #tpu.memory_space<vmem>>, vector<32x128xbf16>
      %cst_207 = arith.constant dense<0.000000e+00> : vector<4x128xf32>
      %1104 = tpu.matmul %1102, %1103, %cst_207 {dimension_numbers = #tpu.dot_dimension_numbers<[1], [0], [0], [1], [0, 0, 1, 1], [], []>} : vector<4x32xbf16>, vector<32x128xbf16>, vector<4x128xf32> -> vector<4x128xf32>
      %1105 = arith.addf %1101, %1104 : vector<4x128xf32>
      %1106 = vector.extract_strided_slice %1105 {offsets = [0, 0], sizes = [4, 32], strides = [1, 1]} : vector<4x128xf32> to vector<4x32xf32>
      %1107 = arith.negf %1106 : vector<4x32xf32>
      %1108 = math.exp %1107 : vector<4x32xf32>
      %cst_208 = arith.constant 1.000000e+00 : f32
      %1109 = vector.broadcast %cst_208 : f32 to vector<4x32xf32>
      %1110 = arith.addf %1109, %1108 : vector<4x32xf32>
      %1111 = arith.divf %1109, %1110 : vector<4x32xf32>
      %1112 = vector.extract_strided_slice %1105 {offsets = [0, 32], sizes = [4, 32], strides = [1, 1]} : vector<4x128xf32> to vector<4x32xf32>
      %1113 = arith.negf %1112 : vector<4x32xf32>
      %1114 = math.exp %1113 : vector<4x32xf32>
      %cst_209 = arith.constant 1.000000e+00 : f32
      %1115 = vector.broadcast %cst_209 : f32 to vector<4x32xf32>
      %1116 = arith.addf %1115, %1114 : vector<4x32xf32>
      %1117 = arith.divf %1115, %1116 : vector<4x32xf32>
      %1118 = vector.extract_strided_slice %1105 {offsets = [0, 64], sizes = [4, 32], strides = [1, 1]} : vector<4x128xf32> to vector<4x32xf32>
      %1119 = math.tanh %1118 : vector<4x32xf32>
      %1120 = vector.extract_strided_slice %1105 {offsets = [0, 96], sizes = [4, 32], strides = [1, 1]} : vector<4x128xf32> to vector<4x32xf32>
      %1121 = arith.negf %1120 : vector<4x32xf32>
      %1122 = math.exp %1121 : vector<4x32xf32>
      %cst_210 = arith.constant 1.000000e+00 : f32
      %1123 = vector.broadcast %cst_210 : f32 to vector<4x32xf32>
      %1124 = arith.addf %1123, %1122 : vector<4x32xf32>
      %1125 = arith.divf %1123, %1124 : vector<4x32xf32>
      %1126 = arith.mulf %1117, %1099 : vector<4x32xf32>
      %1127 = arith.mulf %1111, %1119 : vector<4x32xf32>
      %1128 = arith.addf %1126, %1127 : vector<4x32xf32>
      %1129 = math.tanh %1128 : vector<4x32xf32>
      %1130 = arith.mulf %1125, %1129 : vector<4x32xf32>
      %c27_i32 = arith.constant 27 : i32
      %1131 = vector.broadcast %c27_i32 : i32 to vector<4x1xi32>
      %1132 = arith.cmpi sgt, %44, %1131 : vector<4x1xi32>
      %1133 = vector.shape_cast %1132 : vector<4x1xi1> to vector<4x1xi1>
      %1134 = vector.broadcast %1133 : vector<4x1xi1> to vector<4x32xi1>
      %1135 = arith.select %1134, %1130, %1096 : vector<4x32xi1>, vector<4x32xf32>
      %1136 = vector.shape_cast %1132 : vector<4x1xi1> to vector<4x1xi1>
      %1137 = vector.broadcast %1136 : vector<4x1xi1> to vector<4x32xi1>
      %1138 = arith.select %1137, %1128, %1099 : vector<4x32xi1>, vector<4x32xf32>
      %1139 = vector.extract_strided_slice %41 {offsets = [0, 28, 0], sizes = [4, 1, 128], strides = [1, 1, 1]} : vector<4x32x128xf32> to vector<4x1x128xf32>
      %1140 = vector.shape_cast %1139 : vector<4x1x128xf32> to vector<4x128xf32>
      %1141 = arith.truncf %1135 : vector<4x32xf32> to vector<4x32xbf16>
      %c0_211 = arith.constant 0 : index
      %c0_212 = arith.constant 0 : index
      %1142 = vector.load %arg13[%c0_211, %c0_212] : memref<32x128xbf16, #tpu.memory_space<vmem>>, vector<32x128xbf16>
      %cst_213 = arith.constant dense<0.000000e+00> : vector<4x128xf32>
      %1143 = tpu.matmul %1141, %1142, %cst_213 {dimension_numbers = #tpu.dot_dimension_numbers<[1], [0], [0], [1], [0, 0, 1, 1], [], []>} : vector<4x32xbf16>, vector<32x128xbf16>, vector<4x128xf32> -> vector<4x128xf32>
      %1144 = arith.addf %1140, %1143 : vector<4x128xf32>
      %1145 = vector.extract_strided_slice %1144 {offsets = [0, 0], sizes = [4, 32], strides = [1, 1]} : vector<4x128xf32> to vector<4x32xf32>
      %1146 = arith.negf %1145 : vector<4x32xf32>
      %1147 = math.exp %1146 : vector<4x32xf32>
      %cst_214 = arith.constant 1.000000e+00 : f32
      %1148 = vector.broadcast %cst_214 : f32 to vector<4x32xf32>
      %1149 = arith.addf %1148, %1147 : vector<4x32xf32>
      %1150 = arith.divf %1148, %1149 : vector<4x32xf32>
      %1151 = vector.extract_strided_slice %1144 {offsets = [0, 32], sizes = [4, 32], strides = [1, 1]} : vector<4x128xf32> to vector<4x32xf32>
      %1152 = arith.negf %1151 : vector<4x32xf32>
      %1153 = math.exp %1152 : vector<4x32xf32>
      %cst_215 = arith.constant 1.000000e+00 : f32
      %1154 = vector.broadcast %cst_215 : f32 to vector<4x32xf32>
      %1155 = arith.addf %1154, %1153 : vector<4x32xf32>
      %1156 = arith.divf %1154, %1155 : vector<4x32xf32>
      %1157 = vector.extract_strided_slice %1144 {offsets = [0, 64], sizes = [4, 32], strides = [1, 1]} : vector<4x128xf32> to vector<4x32xf32>
      %1158 = math.tanh %1157 : vector<4x32xf32>
      %1159 = vector.extract_strided_slice %1144 {offsets = [0, 96], sizes = [4, 32], strides = [1, 1]} : vector<4x128xf32> to vector<4x32xf32>
      %1160 = arith.negf %1159 : vector<4x32xf32>
      %1161 = math.exp %1160 : vector<4x32xf32>
      %cst_216 = arith.constant 1.000000e+00 : f32
      %1162 = vector.broadcast %cst_216 : f32 to vector<4x32xf32>
      %1163 = arith.addf %1162, %1161 : vector<4x32xf32>
      %1164 = arith.divf %1162, %1163 : vector<4x32xf32>
      %1165 = arith.mulf %1156, %1138 : vector<4x32xf32>
      %1166 = arith.mulf %1150, %1158 : vector<4x32xf32>
      %1167 = arith.addf %1165, %1166 : vector<4x32xf32>
      %1168 = math.tanh %1167 : vector<4x32xf32>
      %1169 = arith.mulf %1164, %1168 : vector<4x32xf32>
      %c28_i32 = arith.constant 28 : i32
      %1170 = vector.broadcast %c28_i32 : i32 to vector<4x1xi32>
      %1171 = arith.cmpi sgt, %44, %1170 : vector<4x1xi32>
      %1172 = vector.shape_cast %1171 : vector<4x1xi1> to vector<4x1xi1>
      %1173 = vector.broadcast %1172 : vector<4x1xi1> to vector<4x32xi1>
      %1174 = arith.select %1173, %1169, %1135 : vector<4x32xi1>, vector<4x32xf32>
      %1175 = vector.shape_cast %1171 : vector<4x1xi1> to vector<4x1xi1>
      %1176 = vector.broadcast %1175 : vector<4x1xi1> to vector<4x32xi1>
      %1177 = arith.select %1176, %1167, %1138 : vector<4x32xi1>, vector<4x32xf32>
      %1178 = vector.extract_strided_slice %41 {offsets = [0, 29, 0], sizes = [4, 1, 128], strides = [1, 1, 1]} : vector<4x32x128xf32> to vector<4x1x128xf32>
      %1179 = vector.shape_cast %1178 : vector<4x1x128xf32> to vector<4x128xf32>
      %1180 = arith.truncf %1174 : vector<4x32xf32> to vector<4x32xbf16>
      %c0_217 = arith.constant 0 : index
      %c0_218 = arith.constant 0 : index
      %1181 = vector.load %arg13[%c0_217, %c0_218] : memref<32x128xbf16, #tpu.memory_space<vmem>>, vector<32x128xbf16>
      %cst_219 = arith.constant dense<0.000000e+00> : vector<4x128xf32>
      %1182 = tpu.matmul %1180, %1181, %cst_219 {dimension_numbers = #tpu.dot_dimension_numbers<[1], [0], [0], [1], [0, 0, 1, 1], [], []>} : vector<4x32xbf16>, vector<32x128xbf16>, vector<4x128xf32> -> vector<4x128xf32>
      %1183 = arith.addf %1179, %1182 : vector<4x128xf32>
      %1184 = vector.extract_strided_slice %1183 {offsets = [0, 0], sizes = [4, 32], strides = [1, 1]} : vector<4x128xf32> to vector<4x32xf32>
      %1185 = arith.negf %1184 : vector<4x32xf32>
      %1186 = math.exp %1185 : vector<4x32xf32>
      %cst_220 = arith.constant 1.000000e+00 : f32
      %1187 = vector.broadcast %cst_220 : f32 to vector<4x32xf32>
      %1188 = arith.addf %1187, %1186 : vector<4x32xf32>
      %1189 = arith.divf %1187, %1188 : vector<4x32xf32>
      %1190 = vector.extract_strided_slice %1183 {offsets = [0, 32], sizes = [4, 32], strides = [1, 1]} : vector<4x128xf32> to vector<4x32xf32>
      %1191 = arith.negf %1190 : vector<4x32xf32>
      %1192 = math.exp %1191 : vector<4x32xf32>
      %cst_221 = arith.constant 1.000000e+00 : f32
      %1193 = vector.broadcast %cst_221 : f32 to vector<4x32xf32>
      %1194 = arith.addf %1193, %1192 : vector<4x32xf32>
      %1195 = arith.divf %1193, %1194 : vector<4x32xf32>
      %1196 = vector.extract_strided_slice %1183 {offsets = [0, 64], sizes = [4, 32], strides = [1, 1]} : vector<4x128xf32> to vector<4x32xf32>
      %1197 = math.tanh %1196 : vector<4x32xf32>
      %1198 = vector.extract_strided_slice %1183 {offsets = [0, 96], sizes = [4, 32], strides = [1, 1]} : vector<4x128xf32> to vector<4x32xf32>
      %1199 = arith.negf %1198 : vector<4x32xf32>
      %1200 = math.exp %1199 : vector<4x32xf32>
      %cst_222 = arith.constant 1.000000e+00 : f32
      %1201 = vector.broadcast %cst_222 : f32 to vector<4x32xf32>
      %1202 = arith.addf %1201, %1200 : vector<4x32xf32>
      %1203 = arith.divf %1201, %1202 : vector<4x32xf32>
      %1204 = arith.mulf %1195, %1177 : vector<4x32xf32>
      %1205 = arith.mulf %1189, %1197 : vector<4x32xf32>
      %1206 = arith.addf %1204, %1205 : vector<4x32xf32>
      %1207 = math.tanh %1206 : vector<4x32xf32>
      %1208 = arith.mulf %1203, %1207 : vector<4x32xf32>
      %c29_i32 = arith.constant 29 : i32
      %1209 = vector.broadcast %c29_i32 : i32 to vector<4x1xi32>
      %1210 = arith.cmpi sgt, %44, %1209 : vector<4x1xi32>
      %1211 = vector.shape_cast %1210 : vector<4x1xi1> to vector<4x1xi1>
      %1212 = vector.broadcast %1211 : vector<4x1xi1> to vector<4x32xi1>
      %1213 = arith.select %1212, %1208, %1174 : vector<4x32xi1>, vector<4x32xf32>
      %1214 = vector.shape_cast %1210 : vector<4x1xi1> to vector<4x1xi1>
      %1215 = vector.broadcast %1214 : vector<4x1xi1> to vector<4x32xi1>
      %1216 = arith.select %1215, %1206, %1177 : vector<4x32xi1>, vector<4x32xf32>
      %1217 = vector.extract_strided_slice %41 {offsets = [0, 30, 0], sizes = [4, 1, 128], strides = [1, 1, 1]} : vector<4x32x128xf32> to vector<4x1x128xf32>
      %1218 = vector.shape_cast %1217 : vector<4x1x128xf32> to vector<4x128xf32>
      %1219 = arith.truncf %1213 : vector<4x32xf32> to vector<4x32xbf16>
      %c0_223 = arith.constant 0 : index
      %c0_224 = arith.constant 0 : index
      %1220 = vector.load %arg13[%c0_223, %c0_224] : memref<32x128xbf16, #tpu.memory_space<vmem>>, vector<32x128xbf16>
      %cst_225 = arith.constant dense<0.000000e+00> : vector<4x128xf32>
      %1221 = tpu.matmul %1219, %1220, %cst_225 {dimension_numbers = #tpu.dot_dimension_numbers<[1], [0], [0], [1], [0, 0, 1, 1], [], []>} : vector<4x32xbf16>, vector<32x128xbf16>, vector<4x128xf32> -> vector<4x128xf32>
      %1222 = arith.addf %1218, %1221 : vector<4x128xf32>
      %1223 = vector.extract_strided_slice %1222 {offsets = [0, 0], sizes = [4, 32], strides = [1, 1]} : vector<4x128xf32> to vector<4x32xf32>
      %1224 = arith.negf %1223 : vector<4x32xf32>
      %1225 = math.exp %1224 : vector<4x32xf32>
      %cst_226 = arith.constant 1.000000e+00 : f32
      %1226 = vector.broadcast %cst_226 : f32 to vector<4x32xf32>
      %1227 = arith.addf %1226, %1225 : vector<4x32xf32>
      %1228 = arith.divf %1226, %1227 : vector<4x32xf32>
      %1229 = vector.extract_strided_slice %1222 {offsets = [0, 32], sizes = [4, 32], strides = [1, 1]} : vector<4x128xf32> to vector<4x32xf32>
      %1230 = arith.negf %1229 : vector<4x32xf32>
      %1231 = math.exp %1230 : vector<4x32xf32>
      %cst_227 = arith.constant 1.000000e+00 : f32
      %1232 = vector.broadcast %cst_227 : f32 to vector<4x32xf32>
      %1233 = arith.addf %1232, %1231 : vector<4x32xf32>
      %1234 = arith.divf %1232, %1233 : vector<4x32xf32>
      %1235 = vector.extract_strided_slice %1222 {offsets = [0, 64], sizes = [4, 32], strides = [1, 1]} : vector<4x128xf32> to vector<4x32xf32>
      %1236 = math.tanh %1235 : vector<4x32xf32>
      %1237 = vector.extract_strided_slice %1222 {offsets = [0, 96], sizes = [4, 32], strides = [1, 1]} : vector<4x128xf32> to vector<4x32xf32>
      %1238 = arith.negf %1237 : vector<4x32xf32>
      %1239 = math.exp %1238 : vector<4x32xf32>
      %cst_228 = arith.constant 1.000000e+00 : f32
      %1240 = vector.broadcast %cst_228 : f32 to vector<4x32xf32>
      %1241 = arith.addf %1240, %1239 : vector<4x32xf32>
      %1242 = arith.divf %1240, %1241 : vector<4x32xf32>
      %1243 = arith.mulf %1234, %1216 : vector<4x32xf32>
      %1244 = arith.mulf %1228, %1236 : vector<4x32xf32>
      %1245 = arith.addf %1243, %1244 : vector<4x32xf32>
      %1246 = math.tanh %1245 : vector<4x32xf32>
      %1247 = arith.mulf %1242, %1246 : vector<4x32xf32>
      %c30_i32 = arith.constant 30 : i32
      %1248 = vector.broadcast %c30_i32 : i32 to vector<4x1xi32>
      %1249 = arith.cmpi sgt, %44, %1248 : vector<4x1xi32>
      %1250 = vector.shape_cast %1249 : vector<4x1xi1> to vector<4x1xi1>
      %1251 = vector.broadcast %1250 : vector<4x1xi1> to vector<4x32xi1>
      %1252 = arith.select %1251, %1247, %1213 : vector<4x32xi1>, vector<4x32xf32>
      %1253 = vector.shape_cast %1249 : vector<4x1xi1> to vector<4x1xi1>
      %1254 = vector.broadcast %1253 : vector<4x1xi1> to vector<4x32xi1>
      %1255 = arith.select %1254, %1245, %1216 : vector<4x32xi1>, vector<4x32xf32>
      %1256 = vector.extract_strided_slice %41 {offsets = [0, 31, 0], sizes = [4, 1, 128], strides = [1, 1, 1]} : vector<4x32x128xf32> to vector<4x1x128xf32>
      %1257 = vector.shape_cast %1256 : vector<4x1x128xf32> to vector<4x128xf32>
      %1258 = arith.truncf %1252 : vector<4x32xf32> to vector<4x32xbf16>
      %c0_229 = arith.constant 0 : index
      %c0_230 = arith.constant 0 : index
      %1259 = vector.load %arg13[%c0_229, %c0_230] : memref<32x128xbf16, #tpu.memory_space<vmem>>, vector<32x128xbf16>
      %cst_231 = arith.constant dense<0.000000e+00> : vector<4x128xf32>
      %1260 = tpu.matmul %1258, %1259, %cst_231 {dimension_numbers = #tpu.dot_dimension_numbers<[1], [0], [0], [1], [0, 0, 1, 1], [], []>} : vector<4x32xbf16>, vector<32x128xbf16>, vector<4x128xf32> -> vector<4x128xf32>
      %1261 = arith.addf %1257, %1260 : vector<4x128xf32>
      %1262 = vector.extract_strided_slice %1261 {offsets = [0, 0], sizes = [4, 32], strides = [1, 1]} : vector<4x128xf32> to vector<4x32xf32>
      %1263 = arith.negf %1262 : vector<4x32xf32>
      %1264 = math.exp %1263 : vector<4x32xf32>
      %cst_232 = arith.constant 1.000000e+00 : f32
      %1265 = vector.broadcast %cst_232 : f32 to vector<4x32xf32>
      %1266 = arith.addf %1265, %1264 : vector<4x32xf32>
      %1267 = arith.divf %1265, %1266 : vector<4x32xf32>
      %1268 = vector.extract_strided_slice %1261 {offsets = [0, 32], sizes = [4, 32], strides = [1, 1]} : vector<4x128xf32> to vector<4x32xf32>
      %1269 = arith.negf %1268 : vector<4x32xf32>
      %1270 = math.exp %1269 : vector<4x32xf32>
      %cst_233 = arith.constant 1.000000e+00 : f32
      %1271 = vector.broadcast %cst_233 : f32 to vector<4x32xf32>
      %1272 = arith.addf %1271, %1270 : vector<4x32xf32>
      %1273 = arith.divf %1271, %1272 : vector<4x32xf32>
      %1274 = vector.extract_strided_slice %1261 {offsets = [0, 64], sizes = [4, 32], strides = [1, 1]} : vector<4x128xf32> to vector<4x32xf32>
      %1275 = math.tanh %1274 : vector<4x32xf32>
      %1276 = vector.extract_strided_slice %1261 {offsets = [0, 96], sizes = [4, 32], strides = [1, 1]} : vector<4x128xf32> to vector<4x32xf32>
      %1277 = arith.negf %1276 : vector<4x32xf32>
      %1278 = math.exp %1277 : vector<4x32xf32>
      %cst_234 = arith.constant 1.000000e+00 : f32
      %1279 = vector.broadcast %cst_234 : f32 to vector<4x32xf32>
      %1280 = arith.addf %1279, %1278 : vector<4x32xf32>
      %1281 = arith.divf %1279, %1280 : vector<4x32xf32>
      %1282 = arith.mulf %1273, %1255 : vector<4x32xf32>
      %1283 = arith.mulf %1267, %1275 : vector<4x32xf32>
      %1284 = arith.addf %1282, %1283 : vector<4x32xf32>
      %1285 = math.tanh %1284 : vector<4x32xf32>
      %1286 = arith.mulf %1281, %1285 : vector<4x32xf32>
      %c31_i32 = arith.constant 31 : i32
      %1287 = vector.broadcast %c31_i32 : i32 to vector<4x1xi32>
      %1288 = arith.cmpi sgt, %44, %1287 : vector<4x1xi32>
      %1289 = vector.shape_cast %1288 : vector<4x1xi1> to vector<4x1xi1>
      %1290 = vector.broadcast %1289 : vector<4x1xi1> to vector<4x32xi1>
      %1291 = arith.select %1290, %1286, %1252 : vector<4x32xi1>, vector<4x32xf32>
      %1292 = vector.shape_cast %1288 : vector<4x1xi1> to vector<4x1xi1>
      %1293 = vector.broadcast %1292 : vector<4x1xi1> to vector<4x32xi1>
      %1294 = arith.select %1293, %1284, %1255 : vector<4x32xi1>, vector<4x32xf32>
      %c0_235 = arith.constant 0 : index
      %c0_236 = arith.constant 0 : index
      %1295 = vector.load %arg19[%c0_235, %c0_236] : memref<4x32xf32, #tpu.memory_space<vmem>>, vector<4x32xf32>
      tpu.vector_store %arg19[%c0_235, %c0_236], %1291 {strides = array<i32>} : memref<4x32xf32, #tpu.memory_space<vmem>>, vector<4x32xf32>,
      %c0_237 = arith.constant 0 : index
      %c0_238 = arith.constant 0 : index
      %1296 = vector.load %arg20[%c0_237, %c0_238] : memref<4x32xf32, #tpu.memory_space<vmem>>, vector<4x32xf32>
      tpu.vector_store %arg20[%c0_237, %c0_238], %1294 {strides = array<i32>} : memref<4x32xf32, #tpu.memory_space<vmem>>, vector<4x32xf32>,
    } else {
    }
    %c2_i32 = arith.constant 2 : i32
    %33 = arith.cmpi eq, %arg0, %c2_i32 : i32
    %34 = arith.extui %33 : i1 to i32
    %c0_i32_29 = arith.constant 0 : i32
    %35 = arith.cmpi ne, %34, %c0_i32_29 : i32
    scf.if %35 {
      %c0_30 = arith.constant 0 : index
      %c0_31 = arith.constant 0 : index
      %36 = vector.load %arg19[%c0_30, %c0_31] : memref<4x32xf32, #tpu.memory_space<vmem>>, vector<4x32xf32>
      %37 = arith.truncf %36 : vector<4x32xf32> to vector<4x32xbf16>
      %c0_32 = arith.constant 0 : index
      %c0_33 = arith.constant 0 : index
      %38 = vector.load %arg15[%c0_32, %c0_33] : memref<32x128xbf16, #tpu.memory_space<vmem>>, vector<32x128xbf16>
      %cst_34 = arith.constant dense<0.000000e+00> : vector<4x128xf32>
      %39 = tpu.matmul %37, %38, %cst_34 {dimension_numbers = #tpu.dot_dimension_numbers<[1], [0], [0], [1], [0, 0, 1, 1], [], []>} : vector<4x32xbf16>, vector<32x128xbf16>, vector<4x128xf32> -> vector<4x128xf32>
      %c0_35 = arith.constant 0 : index
      %c0_36 = arith.constant 0 : index
      %40 = vector.load %arg16[%c0_35, %c0_36] : memref<1x128xf32, #tpu.memory_space<vmem>>, vector<1x128xf32>
      %41 = vector.broadcast %40 : vector<1x128xf32> to vector<4x128xf32>
      %42 = arith.addf %39, %41 : vector<4x128xf32>
      %c0_37 = arith.constant 0 : index
      %c0_38 = arith.constant 0 : index
      %43 = vector.load %arg18[%c0_37, %c0_38] : memref<4x128xf32, #tpu.memory_space<vmem>>, vector<4x128xf32>
      tpu.vector_store %arg18[%c0_37, %c0_38], %42 {strides = array<i32>} : memref<4x128xf32, #tpu.memory_space<vmem>>, vector<4x128xf32>,
    } else {
    }
    return
  }
  func.func @transform_0(%arg0: i32, %arg1: memref<1xi32, #tpu.memory_space<smem>>) -> (i32, i32, i32) {
    %c0_i32 = arith.constant 0 : i32
    %c0_i32_0 = arith.constant 0 : i32
    %c0_i32_1 = arith.constant 0 : i32
    return %c0_i32, %arg0, %c0_i32_0 : i32, i32, i32
  }
  func.func @transform_1(%arg0: i32, %arg1: memref<1xi32, #tpu.memory_space<smem>>) -> (i32, i32, i32) {
    %c0_i32 = arith.constant 0 : i32
    %c0_i32_0 = arith.constant 0 : i32
    %c0_i32_1 = arith.constant 0 : i32
    return %c0_i32, %arg0, %c0_i32_0 : i32, i32, i32
  }
  func.func @transform_2(%arg0: i32, %arg1: memref<1xi32, #tpu.memory_space<smem>>) -> (i32, i32, i32) {
    %c0_i32 = arith.constant 0 : i32
    %c0_i32_0 = arith.constant 0 : i32
    %c0_i32_1 = arith.constant 0 : i32
    return %c0_i32, %arg0, %c0_i32_0 : i32, i32, i32
  }
  func.func @transform_3(%arg0: i32, %arg1: memref<1xi32, #tpu.memory_space<smem>>) -> (i32, i32, i32) {
    %c0_i32 = arith.constant 0 : i32
    %c0_i32_0 = arith.constant 0 : i32
    %c0_i32_1 = arith.constant 0 : i32
    return %c0_i32, %arg0, %c0_i32_0 : i32, i32, i32
  }
  func.func @transform_4(%arg0: i32, %arg1: memref<1xi32, #tpu.memory_space<smem>>) -> (i32, i32) {
    %c0_i32 = arith.constant 0 : i32
    %c0_i32_0 = arith.constant 0 : i32
    %c0_i32_1 = arith.constant 0 : i32
    return %c0_i32, %c0_i32_0 : i32, i32
  }
  func.func @transform_5(%arg0: i32, %arg1: memref<1xi32, #tpu.memory_space<smem>>) -> (i32, i32) {
    %c0_i32 = arith.constant 0 : i32
    %c0_i32_0 = arith.constant 0 : i32
    %c0_i32_1 = arith.constant 0 : i32
    return %c0_i32, %c0_i32_0 : i32, i32
  }
  func.func @transform_6(%arg0: i32, %arg1: memref<1xi32, #tpu.memory_space<smem>>) -> (i32, i32) {
    %c0_i32 = arith.constant 0 : i32
    %c0_i32_0 = arith.constant 0 : i32
    %c0_i32_1 = arith.constant 0 : i32
    return %c0_i32, %c0_i32_0 : i32, i32
  }
  func.func @transform_7(%arg0: i32, %arg1: memref<1xi32, #tpu.memory_space<smem>>) -> (i32, i32) {
    %c0_i32 = arith.constant 0 : i32
    %c0_i32_0 = arith.constant 0 : i32
    %c0_i32_1 = arith.constant 0 : i32
    return %c0_i32, %c0_i32_0 : i32, i32
  }
  func.func @transform_8(%arg0: i32, %arg1: memref<1xi32, #tpu.memory_space<smem>>) -> (i32, i32) {
    %c0_i32 = arith.constant 0 : i32
    %c0_i32_0 = arith.constant 0 : i32
    %c0_i32_1 = arith.constant 0 : i32
    return %c0_i32, %c0_i32_0 : i32, i32
  }
  func.func @transform_9(%arg0: i32, %arg1: memref<1xi32, #tpu.memory_space<smem>>) -> (i32, i32) {
    %c0_i32 = arith.constant 0 : i32
    %c0_i32_0 = arith.constant 0 : i32
    %c0_i32_1 = arith.constant 0 : i32
    return %c0_i32, %c0_i32_0 : i32, i32
  }
  func.func @transform_10(%arg0: i32, %arg1: memref<1xi32, #tpu.memory_space<smem>>) -> (i32, i32) {
    %c0_i32 = arith.constant 0 : i32
    %c0_i32_0 = arith.constant 0 : i32
    %c0_i32_1 = arith.constant 0 : i32
    return %c0_i32, %c0_i32_0 : i32, i32
  }
  func.func @transform_11(%arg0: i32, %arg1: memref<1xi32, #tpu.memory_space<smem>>) -> (i32, i32) {
    %c0_i32 = arith.constant 0 : i32
    %c0_i32_0 = arith.constant 0 : i32
    %c0_i32_1 = arith.constant 0 : i32
    return %c0_i32, %c0_i32_0 : i32, i32
  }
  func.func @transform_12(%arg0: i32, %arg1: memref<1xi32, #tpu.memory_space<smem>>) -> (i32, i32) {
    %c0_i32 = arith.constant 0 : i32
    %c0_i32_0 = arith.constant 0 : i32
    %c0_i32_1 = arith.constant 0 : i32
    return %c0_i32, %c0_i32_0 : i32, i32
  }
  func.func @transform_13(%arg0: i32, %arg1: memref<1xi32, #tpu.memory_space<smem>>) -> (i32, i32) {
    %c0_i32 = arith.constant 0 : i32
    %c0_i32_0 = arith.constant 0 : i32
    %c0_i32_1 = arith.constant 0 : i32
    return %c0_i32, %c0_i32_0 : i32, i32
  }
  func.func @transform_14(%arg0: i32, %arg1: memref<1xi32, #tpu.memory_space<smem>>) -> (i32, i32) {
    %c0_i32 = arith.constant 0 : i32
    %c0_i32_0 = arith.constant 0 : i32
    %c0_i32_1 = arith.constant 0 : i32
    return %c0_i32, %c0_i32_0 : i32, i32
  }
  func.func @transform_15(%arg0: i32, %arg1: memref<1xi32, #tpu.memory_space<smem>>) -> (i32, i32, i32) {
    %c0_i32 = arith.constant 0 : i32
    %c0_i32_0 = arith.constant 0 : i32
    %c0_i32_1 = arith.constant 0 : i32
    return %c0_i32, %arg0, %c0_i32_0 : i32, i32, i32
  }
  func.func @transform_16(%arg0: i32, %arg1: memref<1xi32, #tpu.memory_space<smem>>) -> (i32, i32) {
    %c0_i32 = arith.constant 0 : i32
    %c0_i32_0 = arith.constant 0 : i32
    %c0_i32_1 = arith.constant 0 : i32
    return %c0_i32, %c0_i32_0 : i32, i32
  }
}

</mosaic_0001>

<llo_original>
// kernel: tpu_custom_call.1
$region0: #{tpu_custom_call.1}
  #allocation0 [shape = 'u32[]', space=smem, size = 0x4, offset = 0x4, fixed_abs, tag = 'smem constant byte address 0x4 - core index']
  #allocation1 [shape = 'u32[144,128]{1,0:T(1,128)}', space=vmem, size = 0x12000, scoped, tag = 'internal scratch']
  #allocation2 [shape = 'f32[4,32]{1,0:T(4,128)}', space=vmem, size = 0x800, scoped, tag = 'scratch operand']
  #allocation3 [shape = 'f32[4,32]{1,0:T(4,128)}', space=vmem, size = 0x800, scoped, tag = 'scratch operand']
  #allocation4 [shape = 's32[1]{0}', space=sflag, size = 0x4, scoped, tag = 'scoped memory for tpu_custom_call.1']
  #allocation5 [shape = 's32[1]{0:T(128)S(6)}', space=smem, size = 0x200, scoped, tag = 'prefetched SMEM operand 0']
  #allocation14 [shape = 's32[]', space=sflag, size = 0x4, offset = 0, fixed_abs, tag = 'sflag constant byte address 0x0 - dummy sync flag']
  %s0 = inlined_call_operand.<no memory space> [shape: s32[1], index: 0, kind: input, shape index: {}]
  %s1 = inlined_call_operand.vmem [shape: bf16[4,96,32], index: 1, kind: input, shape index: {}]
  %s2 = inlined_call_operand.vmem [shape: bf16[4,96,32], index: 2, kind: input, shape index: {}]
  %s3 = inlined_call_operand.vmem [shape: bf16[4,96,32], index: 3, kind: input, shape index: {}]
  %s4 = inlined_call_operand.vmem [shape: bf16[4,96,32], index: 4, kind: input, shape index: {}]
  %s5 = inlined_call_operand.vmem [shape: s32[4,1], index: 5, kind: input, shape index: {}]
  %s6 = inlined_call_operand.vmem [shape: bf16[32,32], index: 6, kind: input, shape index: {}]
  %s7 = inlined_call_operand.vmem [shape: bf16[32,32], index: 7, kind: input, shape index: {}]
  %s8 = inlined_call_operand.vmem [shape: f32[1,32], index: 8, kind: input, shape index: {}]
  %s9 = inlined_call_operand.vmem [shape: bf16[32,128], index: 9, kind: input, shape index: {}]
  %s10 = inlined_call_operand.vmem [shape: f32[1,128], index: 10, kind: input, shape index: {}]
  %s11 = inlined_call_operand.vmem [shape: bf16[32,128], index: 11, kind: input, shape index: {}]
  %s12 = inlined_call_operand.vmem [shape: bf16[32,128], index: 12, kind: input, shape index: {}]
  %s13 = inlined_call_operand.vmem [shape: f32[1,128], index: 13, kind: input, shape index: {}]
  %s14 = inlined_call_operand.vmem [shape: bf16[32,128], index: 14, kind: input, shape index: {}]
  %s15 = inlined_call_operand.vmem [shape: f32[1,128], index: 15, kind: input, shape index: {}]
  %s16 = inlined_call_operand.hbm [shape: bf16[4,96,128], index: 16, kind: output, shape index: {0}]
  %s17 = inlined_call_operand.hbm [shape: f32[4,128], index: 17, kind: output, shape index: {1}]
  %18 = xla_tuple %s16, %s17
  %s19 = sld [smem:[#allocation0]]
  $region277: #{tpu_custom_call.1} parent=0
    _
  %s21 = ssub.s32 1, %s19
  %s22 = scalar_select 0, %s21, %s19
  %23 = sst [smem:[#allocation5]] %s0
  $region1: #{tpu_custom_call.1} parent=0
    #allocation6 [shape = 'u8[65536]{0}', space=vmem, size = 0x10000, scoped, tag = 'input window, operand 1']
    #allocation7 [shape = 'u8[65536]{0}', space=vmem, size = 0x10000, scoped, tag = 'input window, operand 2']
    #allocation8 [shape = 'u8[65536]{0}', space=vmem, size = 0x10000, scoped, tag = 'input window, operand 3']
    #allocation9 [shape = 'u8[65536]{0}', space=vmem, size = 0x10000, scoped, tag = 'input window, operand 4']
    #allocation10 [shape = 'u8[65536]{0}', space=vmem, size = 0x10000, scoped, tag = 'output window, operand 0']
    #allocation11 [shape = 's32[2]{0}', space=sflag, size = 0x8, scoped, tag = 'scoped memory for tpu_custom_call.1']
    #allocation12 [shape = 'u8[2048]{0}', space=vmem, size = 0x800, scoped, tag = 'output window, operand 1, single buffered']
    #allocation13 [shape = 's32[1]{0}', space=sflag, size = 0x4, scoped, tag = 'scoped memory for tpu_custom_call.1']
    %24 = vsyncpa [#allocation11], 0
    %s25 = scalar_lea.sflag [#allocation11], 1
    %26 = vsyncpa %s25, 0
    %27 = vsyncpa [#allocation13], 0
    loop: start=0, step=1, limit=5
    $region2: #{tpu_custom_call.1} parent=1 // loop_pre_header
      _
    $region3: #{tpu_custom_call.1} parent=1 // loop_header
      %s29 = sphi 0, %s33
      %p30 = scmp.ge.s32.totalorder %s29, 5
      %s39 = sphi 0, %s41
      %s42 = sphi 0, %s39
      %s43 = sphi 0, %s42
      %s59 = sphi 0, %s43
      %s65 = sphi 0, %s67
      %s68 = sphi 0, %s65
      %s69 = sphi 0, %s68
      %s85 = sphi 0, %s69
      %s91 = sphi 0, %s93
      %s94 = sphi 0, %s91
      %s95 = sphi 0, %s94
      %s111 = sphi 0, %s95
      %s117 = sphi 0, %s119
      %s120 = sphi 0, %s117
      %s121 = sphi 0, %s120
      %s137 = sphi 0, %s121
      %s141 = sphi 0, %s141
      %s143 = sphi 0, %s141
      %s144 = sphi 0, %s143
      %s158 = sphi 0, %s144
      %s162 = sphi 0, %s162
      %s164 = sphi 0, %s162
      %s165 = sphi 0, %s164
      %s179 = sphi 0, %s165
      %s183 = sphi 0, %s183
      %s185 = sphi 0, %s183
      %s186 = sphi 0, %s185
      %s200 = sphi 0, %s186
      %s204 = sphi 0, %s204
      %s206 = sphi 0, %s204
      %s207 = sphi 0, %s206
      %s221 = sphi 0, %s207
      %s225 = sphi 0, %s225
      %s227 = sphi 0, %s225
      %s228 = sphi 0, %s227
      %s242 = sphi 0, %s228
      %s246 = sphi 0, %s246
      %s248 = sphi 0, %s246
      %s249 = sphi 0, %s248
      %s263 = sphi 0, %s249
      %s267 = sphi 0, %s267
      %s269 = sphi 0, %s267
      %s270 = sphi 0, %s269
      %s284 = sphi 0, %s270
      %s288 = sphi 0, %s288
      %s290 = sphi 0, %s288
      %s291 = sphi 0, %s290
      %s305 = sphi 0, %s291
      %s309 = sphi 0, %s309
      %s311 = sphi 0, %s309
      %s312 = sphi 0, %s311
      %s326 = sphi 0, %s312
      %s330 = sphi 0, %s330
      %s332 = sphi 0, %s330
      %s333 = sphi 0, %s332
      %s347 = sphi 0, %s333
      %s351 = sphi 0, %s351
      %s353 = sphi 0, %s351
      %s354 = sphi 0, %s353
      %s368 = sphi 0, %s354
      %s374 = sphi 0, %s376
      %s377 = sphi 0, %s374
      %s378 = sphi 0, %s377
      %s394 = sphi 0, %s378
      %s398 = sphi 0, %s398
      %s400 = sphi 0, %s398
      %s401 = sphi 0, %s400
      %s415 = sphi 0, %s401
    $region4: #{tpu_custom_call.1} parent=1 // loop_header_branch
      %32 = sbr.rel (%p30) target = $region8
    $region5: #{tpu_custom_call.1} parent=1 // loop_body
      %s34 = ssub.s32 %s29, 1
      %s35 = ssub.s32 %s29, 2
      %s36 = sadd.s32 %s29, 1
      %s37 = ssub.s32 %s29, %s36
      %p38 = scmp.eq.s32.totalorder %s37, 0
      %s40 = sadd.s32 %s39, 1
      %s41 = scalar_select %p38, %s39, %s40
      %p44 = pneg %p38
      %p45 = scmp.eq.s32.totalorder %s29, 2
      %p46 = por %p44, %p45
      %p47 = scmp.ne.s32.totalorder %s39, %s42
      %p48 = scmp.eq.s32.totalorder %s29, 0
      %p49 = por %p47, %p48
      %p50 = scmp.ne.s32.totalorder %s39, %s42
      %p51 = scmp.eq.s32.totalorder %s34, 2
      %p52 = por %p50, %p51
      %p53 = scmp.ne.s32.totalorder %s42, %s43
      %p54 = scmp.eq.s32.totalorder %s34, 0
      %p55 = por %p53, %p54
      %p56 = scmp.ne.s32.totalorder %s42, %s43
      %p57 = scmp.eq.s32.totalorder %s35, 2
      %p58 = por %p56, %p57
      %p60 = scmp.ne.s32.totalorder %s43, %s59
      %p61 = scmp.eq.s32.totalorder %s35, 0
      %p62 = por %p60, %p61
      %s63 = ssub.s32 %s29, %s36
      %p64 = scmp.eq.s32.totalorder %s63, 0
      %s66 = sadd.s32 %s65, 1
      %s67 = scalar_select %p64, %s65, %s66
      %p70 = pneg %p64
      %p71 = scmp.eq.s32.totalorder %s29, 2
      %p72 = por %p70, %p71
      %p73 = scmp.ne.s32.totalorder %s65, %s68
      %p74 = scmp.eq.s32.totalorder %s29, 0
      %p75 = por %p73, %p74
      %p76 = scmp.ne.s32.totalorder %s65, %s68
      %p77 = scmp.eq.s32.totalorder %s34, 2
      %p78 = por %p76, %p77
      %p79 = scmp.ne.s32.totalorder %s68, %s69
      %p80 = scmp.eq.s32.totalorder %s34, 0
      %p81 = por %p79, %p80
      %p82 = scmp.ne.s32.totalorder %s68, %s69
      %p83 = scmp.eq.s32.totalorder %s35, 2
      %p84 = por %p82, %p83
      %p86 = scmp.ne.s32.totalorder %s69, %s85
      %p87 = scmp.eq.s32.totalorder %s35, 0
      %p88 = por %p86, %p87
      %s89 = ssub.s32 %s29, %s36
      %p90 = scmp.eq.s32.totalorder %s89, 0
      %s92 = sadd.s32 %s91, 1
      %s93 = scalar_select %p90, %s91, %s92
      %p96 = pneg %p90
      %p97 = scmp.eq.s32.totalorder %s29, 2
      %p98 = por %p96, %p97
      %p99 = scmp.ne.s32.totalorder %s91, %s94
      %p100 = scmp.eq.s32.totalorder %s29, 0
      %p101 = por %p99, %p100
      %p102 = scmp.ne.s32.totalorder %s91, %s94
      %p103 = scmp.eq.s32.totalorder %s34, 2
      %p104 = por %p102, %p103
      %p105 = scmp.ne.s32.totalorder %s94, %s95
      %p106 = scmp.eq.s32.totalorder %s34, 0
      %p107 = por %p105, %p106
      %p108 = scmp.ne.s32.totalorder %s94, %s95
      %p109 = scmp.eq.s32.totalorder %s35, 2
      %p110 = por %p108, %p109
      %p112 = scmp.ne.s32.totalorder %s95, %s111
      %p113 = scmp.eq.s32.totalorder %s35, 0
      %p114 = por %p112, %p113
      %s115 = ssub.s32 %s29, %s36
      %p116 = scmp.eq.s32.totalorder %s115, 0
      %s118 = sadd.s32 %s117, 1
      %s119 = scalar_select %p116, %s117, %s118
      %p122 = pneg %p116
      %p123 = scmp.eq.s32.totalorder %s29, 2
      %p124 = por %p122, %p123
      %p125 = scmp.ne.s32.totalorder %s117, %s120
      %p126 = scmp.eq.s32.totalorder %s29, 0
      %p127 = por %p125, %p126
      %p128 = scmp.ne.s32.totalorder %s117, %s120
      %p129 = scmp.eq.s32.totalorder %s34, 2
      %p130 = por %p128, %p129
      %p131 = scmp.ne.s32.totalorder %s120, %s121
      %p132 = scmp.eq.s32.totalorder %s34, 0
      %p133 = por %p131, %p132
      %p134 = scmp.ne.s32.totalorder %s120, %s121
      %p135 = scmp.eq.s32.totalorder %s35, 2
      %p136 = por %p134, %p135
      %p138 = scmp.ne.s32.totalorder %s121, %s137
      %p139 = scmp.eq.s32.totalorder %s35, 0
      %p140 = por %p138, %p139
      %s142 = sadd.s32 %s141, 1
      %p145 = scmp.eq.s32.totalorder %s29, 2
      %p146 = scmp.ne.s32.totalorder %s141, %s143
      %p147 = scmp.eq.s32.totalorder %s29, 0
      %p148 = por %p146, %p147
      %p149 = scmp.ne.s32.totalorder %s141, %s143
      %p150 = scmp.eq.s32.totalorder %s34, 2
      %p151 = por %p149, %p150
      %p152 = scmp.ne.s32.totalorder %s143, %s144
      %p153 = scmp.eq.s32.totalorder %s34, 0
      %p154 = por %p152, %p153
      %p155 = scmp.ne.s32.totalorder %s143, %s144
      %p156 = scmp.eq.s32.totalorder %s35, 2
      %p157 = por %p155, %p156
      %p159 = scmp.ne.s32.totalorder %s144, %s158
      %p160 = scmp.eq.s32.totalorder %s35, 0
      %p161 = por %p159, %p160
      %s163 = sadd.s32 %s162, 1
      %p166 = scmp.eq.s32.totalorder %s29, 2
      %p167 = scmp.ne.s32.totalorder %s162, %s164
      %p168 = scmp.eq.s32.totalorder %s29, 0
      %p169 = por %p167, %p168
      %p170 = scmp.ne.s32.totalorder %s162, %s164
      %p171 = scmp.eq.s32.totalorder %s34, 2
      %p172 = por %p170, %p171
      %p173 = scmp.ne.s32.totalorder %s164, %s165
      %p174 = scmp.eq.s32.totalorder %s34, 0
      %p175 = por %p173, %p174
      %p176 = scmp.ne.s32.totalorder %s164, %s165
      %p177 = scmp.eq.s32.totalorder %s35, 2
      %p178 = por %p176, %p177
      %p180 = scmp.ne.s32.totalorder %s165, %s179
      %p181 = scmp.eq.s32.totalorder %s35, 0
      %p182 = por %p180, %p181
      %s184 = sadd.s32 %s183, 1
      %p187 = scmp.eq.s32.totalorder %s29, 2
      %p188 = scmp.ne.s32.totalorder %s183, %s185
      %p189 = scmp.eq.s32.totalorder %s29, 0
      %p190 = por %p188, %p189
      %p191 = scmp.ne.s32.totalorder %s183, %s185
      %p192 = scmp.eq.s32.totalorder %s34, 2
      %p193 = por %p191, %p192
      %p194 = scmp.ne.s32.totalorder %s185, %s186
      %p195 = scmp.eq.s32.totalorder %s34, 0
      %p196 = por %p194, %p195
      %p197 = scmp.ne.s32.totalorder %s185, %s186
      %p198 = scmp.eq.s32.totalorder %s35, 2
      %p199 = por %p197, %p198
      %p201 = scmp.ne.s32.totalorder %s186, %s200
      %p202 = scmp.eq.s32.totalorder %s35, 0
      %p203 = por %p201, %p202
      %s205 = sadd.s32 %s204, 1
      %p208 = scmp.eq.s32.totalorder %s29, 2
      %p209 = scmp.ne.s32.totalorder %s204, %s206
      %p210 = scmp.eq.s32.totalorder %s29, 0
      %p211 = por %p209, %p210
      %p212 = scmp.ne.s32.totalorder %s204, %s206
      %p213 = scmp.eq.s32.totalorder %s34, 2
      %p214 = por %p212, %p213
      %p215 = scmp.ne.s32.totalorder %s206, %s207
      %p216 = scmp.eq.s32.totalorder %s34, 0
      %p217 = por %p215, %p216
      %p218 = scmp.ne.s32.totalorder %s206, %s207
      %p219 = scmp.eq.s32.totalorder %s35, 2
      %p220 = por %p218, %p219
      %p222 = scmp.ne.s32.totalorder %s207, %s221
      %p223 = scmp.eq.s32.totalorder %s35, 0
      %p224 = por %p222, %p223
      %s226 = sadd.s32 %s225, 1
      %p229 = scmp.eq.s32.totalorder %s29, 2
      %p230 = scmp.ne.s32.totalorder %s225, %s227
      %p231 = scmp.eq.s32.totalorder %s29, 0
      %p232 = por %p230, %p231
      %p233 = scmp.ne.s32.totalorder %s225, %s227
      %p234 = scmp.eq.s32.totalorder %s34, 2
      %p235 = por %p233, %p234
      %p236 = scmp.ne.s32.totalorder %s227, %s228
      %p237 = scmp.eq.s32.totalorder %s34, 0
      %p238 = por %p236, %p237
      %p239 = scmp.ne.s32.totalorder %s227, %s228
      %p240 = scmp.eq.s32.totalorder %s35, 2
      %p241 = por %p239, %p240
      %p243 = scmp.ne.s32.totalorder %s228, %s242
      %p244 = scmp.eq.s32.totalorder %s35, 0
      %p245 = por %p243, %p244
      %s247 = sadd.s32 %s246, 1
      %p250 = scmp.eq.s32.totalorder %s29, 2
      %p251 = scmp.ne.s32.totalorder %s246, %s248
      %p252 = scmp.eq.s32.totalorder %s29, 0
      %p253 = por %p251, %p252
      %p254 = scmp.ne.s32.totalorder %s246, %s248
      %p255 = scmp.eq.s32.totalorder %s34, 2
      %p256 = por %p254, %p255
      %p257 = scmp.ne.s32.totalorder %s248, %s249
      %p258 = scmp.eq.s32.totalorder %s34, 0
      %p259 = por %p257, %p258
      %p260 = scmp.ne.s32.totalorder %s248, %s249
      %p261 = scmp.eq.s32.totalorder %s35, 2
      %p262 = por %p260, %p261
      %p264 = scmp.ne.s32.totalorder %s249, %s263
      %p265 = scmp.eq.s32.totalorder %s35, 0
      %p266 = por %p264, %p265
      %s268 = sadd.s32 %s267, 1
      %p271 = scmp.eq.s32.totalorder %s29, 2
      %p272 = scmp.ne.s32.totalorder %s267, %s269
      %p273 = scmp.eq.s32.totalorder %s29, 0
      %p274 = por %p272, %p273
      %p275 = scmp.ne.s32.totalorder %s267, %s269
      %p276 = scmp.eq.s32.totalorder %s34, 2
      %p277 = por %p275, %p276
      %p278 = scmp.ne.s32.totalorder %s269, %s270
      %p279 = scmp.eq.s32.totalorder %s34, 0
      %p280 = por %p278, %p279
      %p281 = scmp.ne.s32.totalorder %s269, %s270
      %p282 = scmp.eq.s32.totalorder %s35, 2
      %p283 = por %p281, %p282
      %p285 = scmp.ne.s32.totalorder %s270, %s284
      %p286 = scmp.eq.s32.totalorder %s35, 0
      %p287 = por %p285, %p286
      %s289 = sadd.s32 %s288, 1
      %p292 = scmp.eq.s32.totalorder %s29, 2
      %p293 = scmp.ne.s32.totalorder %s288, %s290
      %p294 = scmp.eq.s32.totalorder %s29, 0
      %p295 = por %p293, %p294
      %p296 = scmp.ne.s32.totalorder %s288, %s290
      %p297 = scmp.eq.s32.totalorder %s34, 2
      %p298 = por %p296, %p297
      %p299 = scmp.ne.s32.totalorder %s290, %s291
      %p300 = scmp.eq.s32.totalorder %s34, 0
      %p301 = por %p299, %p300
      %p302 = scmp.ne.s32.totalorder %s290, %s291
      %p303 = scmp.eq.s32.totalorder %s35, 2
      %p304 = por %p302, %p303
      %p306 = scmp.ne.s32.totalorder %s291, %s305
      %p307 = scmp.eq.s32.totalorder %s35, 0
      %p308 = por %p306, %p307
      %s310 = sadd.s32 %s309, 1
      %p313 = scmp.eq.s32.totalorder %s29, 2
      %p314 = scmp.ne.s32.totalorder %s309, %s311
      %p315 = scmp.eq.s32.totalorder %s29, 0
      %p316 = por %p314, %p315
      %p317 = scmp.ne.s32.totalorder %s309, %s311
      %p318 = scmp.eq.s32.totalorder %s34, 2
      %p319 = por %p317, %p318
      %p320 = scmp.ne.s32.totalorder %s311, %s312
      %p321 = scmp.eq.s32.totalorder %s34, 0
      %p322 = por %p320, %p321
      %p323 = scmp.ne.s32.totalorder %s311, %s312
      %p324 = scmp.eq.s32.totalorder %s35, 2
      %p325 = por %p323, %p324
      %p327 = scmp.ne.s32.totalorder %s312, %s326
      %p328 = scmp.eq.s32.totalorder %s35, 0
      %p329 = por %p327, %p328
      %s331 = sadd.s32 %s330, 1
      %p334 = scmp.eq.s32.totalorder %s29, 2
      %p335 = scmp.ne.s32.totalorder %s330, %s332
      %p336 = scmp.eq.s32.totalorder %s29, 0
      %p337 = por %p335, %p336
      %p338 = scmp.ne.s32.totalorder %s330, %s332
      %p339 = scmp.eq.s32.totalorder %s34, 2
      %p340 = por %p338, %p339
      %p341 = scmp.ne.s32.totalorder %s332, %s333
      %p342 = scmp.eq.s32.totalorder %s34, 0
      %p343 = por %p341, %p342
      %p344 = scmp.ne.s32.totalorder %s332, %s333
      %p345 = scmp.eq.s32.totalorder %s35, 2
      %p346 = por %p344, %p345
      %p348 = scmp.ne.s32.totalorder %s333, %s347
      %p349 = scmp.eq.s32.totalorder %s35, 0
      %p350 = por %p348, %p349
      %s352 = sadd.s32 %s351, 1
      %p355 = scmp.eq.s32.totalorder %s29, 2
      %p356 = scmp.ne.s32.totalorder %s351, %s353
      %p357 = scmp.eq.s32.totalorder %s29, 0
      %p358 = por %p356, %p357
      %p359 = scmp.ne.s32.totalorder %s351, %s353
      %p360 = scmp.eq.s32.totalorder %s34, 2
      %p361 = por %p359, %p360
      %p362 = scmp.ne.s32.totalorder %s353, %s354
      %p363 = scmp.eq.s32.totalorder %s34, 0
      %p364 = por %p362, %p363
      %p365 = scmp.ne.s32.totalorder %s353, %s354
      %p366 = scmp.eq.s32.totalorder %s35, 2
      %p367 = por %p365, %p366
      %p369 = scmp.ne.s32.totalorder %s354, %s368
      %p370 = scmp.eq.s32.totalorder %s35, 0
      %p371 = por %p369, %p370
      %s372 = ssub.s32 %s29, %s36
      %p373 = scmp.eq.s32.totalorder %s372, 0
      %s375 = sadd.s32 %s374, 1
      %s376 = scalar_select %p373, %s374, %s375
      %p379 = pneg %p373
      %p380 = scmp.eq.s32.totalorder %s29, 2
      %p381 = por %p379, %p380
      %p382 = scmp.ne.s32.totalorder %s374, %s377
      %p383 = scmp.eq.s32.totalorder %s29, 0
      %p384 = por %p382, %p383
      %p385 = scmp.ne.s32.totalorder %s374, %s377
      %p386 = scmp.eq.s32.totalorder %s34, 2
      %p387 = por %p385, %p386
      %p388 = scmp.ne.s32.totalorder %s377, %s378
      %p389 = scmp.eq.s32.totalorder %s34, 0
      %p390 = por %p388, %p389
      %p391 = scmp.ne.s32.totalorder %s377, %s378
      %p392 = scmp.eq.s32.totalorder %s35, 2
      %p393 = por %p391, %p392
      %p395 = scmp.ne.s32.totalorder %s378, %s394
      %p396 = scmp.eq.s32.totalorder %s35, 0
      %p397 = por %p395, %p396
      %s399 = sadd.s32 %s398, 1
      %p402 = scmp.eq.s32.totalorder %s29, 2
      %p403 = scmp.ne.s32.totalorder %s398, %s400
      %p404 = scmp.eq.s32.totalorder %s29, 0
      %p405 = por %p403, %p404
      %p406 = scmp.ne.s32.totalorder %s398, %s400
      %p407 = scmp.eq.s32.totalorder %s34, 2
      %p408 = por %p406, %p407
      %p409 = scmp.ne.s32.totalorder %s400, %s401
      %p410 = scmp.eq.s32.totalorder %s34, 0
      %p411 = por %p409, %p410
      %p412 = scmp.ne.s32.totalorder %s400, %s401
      %p413 = scmp.eq.s32.totalorder %s35, 2
      %p414 = por %p412, %p413
      %p416 = scmp.ne.s32.totalorder %s401, %s415
      %p417 = scmp.eq.s32.totalorder %s35, 0
      %p418 = por %p416, %p417
      %p419 = scmp.le.s32.totalorder 1, %s29
      %p420 = scmp.lt.s32.totalorder %s29, 4
      %p421 = pnand %p419, %p420
      %p422 = pneg %p421
      // Predicated region
      $region9: #{tpu_custom_call.1} parent=5 // pred_check
        _
      $region10: #{tpu_custom_call.1} parent=5 // pred_check_branch
        %424 = sbr.rel (%p421) target = $region12
      $region11: #{tpu_custom_call.1} parent=5 // pred_region
        %s425 = ssub.s32 %s29, 1
        // Predicated region
        $region13: #{tpu_custom_call.1} parent=11 // pred_check
          %p426 = pneg %p154
        $region14: #{tpu_custom_call.1} parent=11 // pred_check_branch
          %428 = sbr.rel (%p426) target = $region16
        $region15: #{tpu_custom_call.1} parent=11 // pred_region
          _
        $region16: #{tpu_custom_call.1} parent=11 // pred_fallthru
          _
        // Predicated region
        $region17: #{tpu_custom_call.1} parent=11 // pred_check
          %p429 = pneg %p175
        $region18: #{tpu_custom_call.1} parent=11 // pred_check_branch
          %431 = sbr.rel (%p429) target = $region20
        $region19: #{tpu_custom_call.1} parent=11 // pred_region
          _
        $region20: #{tpu_custom_call.1} parent=11 // pred_fallthru
          _
        // Predicated region
        $region21: #{tpu_custom_call.1} parent=11 // pred_check
          %p432 = pneg %p196
        $region22: #{tpu_custom_call.1} parent=11 // pred_check_branch
          %434 = sbr.rel (%p432) target = $region24
        $region23: #{tpu_custom_call.1} parent=11 // pred_region
          _
        $region24: #{tpu_custom_call.1} parent=11 // pred_fallthru
          _
        // Predicated region
        $region25: #{tpu_custom_call.1} parent=11 // pred_check
          %p435 = pneg %p217
        $region26: #{tpu_custom_call.1} parent=11 // pred_check_branch
          %437 = sbr.rel (%p435) target = $region28
        $region27: #{tpu_custom_call.1} parent=11 // pred_region
          _
        $region28: #{tpu_custom_call.1} parent=11 // pred_fallthru
          _
        // Predicated region
        $region29: #{tpu_custom_call.1} parent=11 // pred_check
          %p438 = pneg %p238
        $region30: #{tpu_custom_call.1} parent=11 // pred_check_branch
          %440 = sbr.rel (%p438) target = $region32
        $region31: #{tpu_custom_call.1} parent=11 // pred_region
          _
        $region32: #{tpu_custom_call.1} parent=11 // pred_fallthru
          _
        // Predicated region
        $region33: #{tpu_custom_call.1} parent=11 // pred_check
          %p441 = pneg %p259
        $region34: #{tpu_custom_call.1} parent=11 // pred_check_branch
          %443 = sbr.rel (%p441) target = $region36
        $region35: #{tpu_custom_call.1} parent=11 // pred_region
          _
        $region36: #{tpu_custom_call.1} parent=11 // pred_fallthru
          _
        // Predicated region
        $region37: #{tpu_custom_call.1} parent=11 // pred_check
          %p444 = pneg %p280
        $region38: #{tpu_custom_call.1} parent=11 // pred_check_branch
          %446 = sbr.rel (%p444) target = $region40
        $region39: #{tpu_custom_call.1} parent=11 // pred_region
          _
        $region40: #{tpu_custom_call.1} parent=11 // pred_fallthru
          _
        // Predicated region
        $region41: #{tpu_custom_call.1} parent=11 // pred_check
          %p447 = pneg %p301
        $region42: #{tpu_custom_call.1} parent=11 // pred_check_branch
          %449 = sbr.rel (%p447) target = $region44
        $region43: #{tpu_custom_call.1} parent=11 // pred_region
          _
        $region44: #{tpu_custom_call.1} parent=11 // pred_fallthru
          _
        // Predicated region
        $region45: #{tpu_custom_call.1} parent=11 // pred_check
          %p450 = pneg %p322
        $region46: #{tpu_custom_call.1} parent=11 // pred_check_branch
          %452 = sbr.rel (%p450) target = $region48
        $region47: #{tpu_custom_call.1} parent=11 // pred_region
          _
        $region48: #{tpu_custom_call.1} parent=11 // pred_fallthru
          _
        // Predicated region
        $region49: #{tpu_custom_call.1} parent=11 // pred_check
          %p453 = pneg %p343
        $region50: #{tpu_custom_call.1} parent=11 // pred_check_branch
          %455 = sbr.rel (%p453) target = $region52
        $region51: #{tpu_custom_call.1} parent=11 // pred_region
          _
        $region52: #{tpu_custom_call.1} parent=11 // pred_fallthru
          _
        // Predicated region
        $region53: #{tpu_custom_call.1} parent=11 // pred_check
          %p456 = pneg %p364
        $region54: #{tpu_custom_call.1} parent=11 // pred_check_branch
          %458 = sbr.rel (%p456) target = $region56
        $region55: #{tpu_custom_call.1} parent=11 // pred_region
          _
        $region56: #{tpu_custom_call.1} parent=11 // pred_fallthru
          _
      $region12: #{tpu_custom_call.1} parent=5 // pred_fallthru
        _
      %p459 = scmp.lt.s32.totalorder %s29, 3
      // Predicated region
      $region57: #{tpu_custom_call.1} parent=5 // pred_check
        %p460 = pneg %p459
      $region58: #{tpu_custom_call.1} parent=5 // pred_check_branch
        %462 = sbr.rel (%p460) target = $region60
      $region59: #{tpu_custom_call.1} parent=5 // pred_region
        // Predicated region
        $region61: #{tpu_custom_call.1} parent=59 // pred_check
          %p463 = pneg %p49
        $region62: #{tpu_custom_call.1} parent=59 // pred_check_branch
          %465 = sbr.rel (%p463) target = $region64
        $region63: #{tpu_custom_call.1} parent=59 // pred_region
          %s466 = sand.u32 %s39, 1
          %s467 = sand.u32 %s39, 1
          %s468 = smul.addr %s467, 64
          %s469 = scalar_lea.vmem [#allocation6], %s468
          %s470 = smul.u32 4, %s29
          %s471 = smul.addr %s470, 4
          %s472 = scalar_lea.vmem %s1, %s471
          // Predicated region
          $region65: #{tpu_custom_call.1} parent=63 // pred_check
            _
          $region66: #{tpu_custom_call.1} parent=63 // pred_check_branch
            %474 = sbr.rel (0) target = $region68
          $region67: #{tpu_custom_call.1} parent=63 // pred_region
            // Predicated region
            $region69: #{tpu_custom_call.1} parent=67 // pred_check
              _
            $region70: #{tpu_custom_call.1} parent=67 // pred_check_branch
              %476 = sbr.rel target = $region72
            $region71: #{tpu_custom_call.1} parent=67 // pred_region
              // Predicated region
              $region84: #{tpu_custom_call.1} parent=71 // pred_check
                _
              $region85: #{tpu_custom_call.1} parent=71 // pred_check_branch
                %522 = sbr.rel (0) target = $region87
              $region86: #{tpu_custom_call.1} parent=71 // pred_region
                loop: start=0, step=1, limit=1
                $region88: #{tpu_custom_call.1} parent=86 // loop_pre_header
                  _
                $region89: #{tpu_custom_call.1} parent=86 // loop_header
                  %s524 = sphi 0, %s528
                  %p525 = scmp.ge.s32.totalorder %s524, 1
                  %s529 = sphi %s472, %s472
                  %s530 = sphi %s469, %s469
                $region90: #{tpu_custom_call.1} parent=86 // loop_header_branch
                  %527 = sbr.rel (%p525) target = $region94
                $region91: #{tpu_custom_call.1} parent=86 // loop_body
                  _
                $region92: #{tpu_custom_call.1} parent=86 // loop_footer
                  %s528 = sadd.s32 1, %s524
                $region93: #{tpu_custom_call.1} parent=86 // loop_footer_branch
                  %523 = sbr.rel target = $region89
                $region94: #{tpu_custom_call.1} parent=86 // loop_exit
                  _
                %s532 = ssub.s32 16, 1
                loop: start=0, step=1, limit=1
                $region95: #{tpu_custom_call.1} parent=86 // loop_pre_header
                  _
                $region96: #{tpu_custom_call.1} parent=86 // loop_header
                  %s534 = sphi 0, %s538
                  %p535 = scmp.ge.s32.totalorder %s534, 1
                  %s539 = sphi %s472, %s472
                  %s540 = sphi %s469, %s469
                $region97: #{tpu_custom_call.1} parent=86 // loop_header_branch
                  %537 = sbr.rel (%p535) target = $region101
                $region98: #{tpu_custom_call.1} parent=86 // loop_body
                  %v541 = vld [vmem:[%s539] sm:%s532]
                  %542 = vst [vmem:[%s540] sm:%s532] %v541
                  %v543 = vld [vmem:[%s539 + $0x4] sm:%s532]
                  %544 = vst [vmem:[%s540 + $0x4] sm:%s532] %v543
                  %v545 = vld [vmem:[%s539 + $0x8] sm:%s532]
                  %546 = vst [vmem:[%s540 + $0x8] sm:%s532] %v545
                  %v547 = vld [vmem:[%s539 + $0xc] sm:%s532]
                  %548 = vst [vmem:[%s540 + $0xc] sm:%s532] %v547
                  %v549 = vld [vmem:[%s539 + $0x30] sm:%s532]
                  %550 = vst [vmem:[%s540 + $0x10] sm:%s532] %v549
                  %v551 = vld [vmem:[%s539 + $0x34] sm:%s532]
                  %552 = vst [vmem:[%s540 + $0x14] sm:%s532] %v551
                  %v553 = vld [vmem:[%s539 + $0x38] sm:%s532]
                  %554 = vst [vmem:[%s540 + $0x18] sm:%s532] %v553
                  %v555 = vld [vmem:[%s539 + $0x3c] sm:%s532]
                  %556 = vst [vmem:[%s540 + $0x1c] sm:%s532] %v555
                  %v557 = vld [vmem:[%s539 + $0x60] sm:%s532]
                  %558 = vst [vmem:[%s540 + $0x20] sm:%s532] %v557
                  %v559 = vld [vmem:[%s539 + $0x64] sm:%s532]
                  %560 = vst [vmem:[%s540 + $0x24] sm:%s532] %v559
                  %v561 = vld [vmem:[%s539 + $0x68] sm:%s532]
                  %562 = vst [vmem:[%s540 + $0x28] sm:%s532] %v561
                  %v563 = vld [vmem:[%s539 + $0x6c] sm:%s532]
                  %564 = vst [vmem:[%s540 + $0x2c] sm:%s532] %v563
                  %v565 = vld [vmem:[%s539 + $0x90] sm:%s532]
                  %566 = vst [vmem:[%s540 + $0x30] sm:%s532] %v565
                  %v567 = vld [vmem:[%s539 + $0x94] sm:%s532]
                  %568 = vst [vmem:[%s540 + $0x34] sm:%s532] %v567
                  %v569 = vld [vmem:[%s539 + $0x98] sm:%s532]
                  %570 = vst [vmem:[%s540 + $0x38] sm:%s532] %v569
                  %v571 = vld [vmem:[%s539 + $0x9c] sm:%s532]
                  %572 = vst [vmem:[%s540 + $0x3c] sm:%s532] %v571
                $region99: #{tpu_custom_call.1} parent=86 // loop_footer
                  %s538 = sadd.s32 1, %s534
                $region100: #{tpu_custom_call.1} parent=86 // loop_footer_branch
                  %533 = sbr.rel target = $region96
                $region101: #{tpu_custom_call.1} parent=86 // loop_exit
                  _
              $region87: #{tpu_custom_call.1} parent=71 // pred_fallthru
                _
            $region72: #{tpu_custom_call.1} parent=67 // pred_fallthru
              _
            // Predicated region
            $region73: #{tpu_custom_call.1} parent=67 // pred_check
              _
            $region74: #{tpu_custom_call.1} parent=67 // pred_check_branch
              %478 = sbr.rel (0) target = $region76
            $region75: #{tpu_custom_call.1} parent=67 // pred_region
              %s480 = ssub.s32 16, 1
              loop: start=0, step=1, limit=1
              $region77: #{tpu_custom_call.1} parent=75 // loop_pre_header
                _
              $region78: #{tpu_custom_call.1} parent=75 // loop_header
                %s482 = sphi 0, %s486
                %p483 = scmp.ge.s32.totalorder %s482, 1
                %s487 = sphi %s472, %s472
                %s488 = sphi %s469, %s469
              $region79: #{tpu_custom_call.1} parent=75 // loop_header_branch
                %485 = sbr.rel (%p483) target = $region83
              $region80: #{tpu_custom_call.1} parent=75 // loop_body
                %v489 = vld [vmem:[%s487] sm:%s480]
                %490 = vst [vmem:[%s488] sm:%s480] %v489
                %v491 = vld [vmem:[%s487 + $0x4] sm:%s480]
                %492 = vst [vmem:[%s488 + $0x4] sm:%s480] %v491
                %v493 = vld [vmem:[%s487 + $0x8] sm:%s480]
                %494 = vst [vmem:[%s488 + $0x8] sm:%s480] %v493
                %v495 = vld [vmem:[%s487 + $0xc] sm:%s480]
                %496 = vst [vmem:[%s488 + $0xc] sm:%s480] %v495
                %v497 = vld [vmem:[%s487 + $0x30] sm:%s480]
                %498 = vst [vmem:[%s488 + $0x10] sm:%s480] %v497
                %v499 = vld [vmem:[%s487 + $0x34] sm:%s480]
                %500 = vst [vmem:[%s488 + $0x14] sm:%s480] %v499
                %v501 = vld [vmem:[%s487 + $0x38] sm:%s480]
                %502 = vst [vmem:[%s488 + $0x18] sm:%s480] %v501
                %v503 = vld [vmem:[%s487 + $0x3c] sm:%s480]
                %504 = vst [vmem:[%s488 + $0x1c] sm:%s480] %v503
                %v505 = vld [vmem:[%s487 + $0x60] sm:%s480]
                %506 = vst [vmem:[%s488 + $0x20] sm:%s480] %v505
                %v507 = vld [vmem:[%s487 + $0x64] sm:%s480]
                %508 = vst [vmem:[%s488 + $0x24] sm:%s480] %v507
                %v509 = vld [vmem:[%s487 + $0x68] sm:%s480]
                %510 = vst [vmem:[%s488 + $0x28] sm:%s480] %v509
                %v511 = vld [vmem:[%s487 + $0x6c] sm:%s480]
                %512 = vst [vmem:[%s488 + $0x2c] sm:%s480] %v511
                %v513 = vld [vmem:[%s487 + $0x90] sm:%s480]
                %514 = vst [vmem:[%s488 + $0x30] sm:%s480] %v513
                %v515 = vld [vmem:[%s487 + $0x94] sm:%s480]
                %516 = vst [vmem:[%s488 + $0x34] sm:%s480] %v515
                %v517 = vld [vmem:[%s487 + $0x98] sm:%s480]
                %518 = vst [vmem:[%s488 + $0x38] sm:%s480] %v517
                %v519 = vld [vmem:[%s487 + $0x9c] sm:%s480]
                %520 = vst [vmem:[%s488 + $0x3c] sm:%s480] %v519
              $region81: #{tpu_custom_call.1} parent=75 // loop_footer
                %s486 = sadd.s32 1, %s482
              $region82: #{tpu_custom_call.1} parent=75 // loop_footer_branch
                %481 = sbr.rel target = $region78
              $region83: #{tpu_custom_call.1} parent=75 // loop_exit
                _
            $region76: #{tpu_custom_call.1} parent=67 // pred_fallthru
              _
          $region68: #{tpu_custom_call.1} parent=63 // pred_fallthru
            _
          %573 = vnop
        $region64: #{tpu_custom_call.1} parent=59 // pred_fallthru
          _
        // Predicated region
        $region102: #{tpu_custom_call.1} parent=59 // pred_check
          %p574 = pneg %p75
        $region103: #{tpu_custom_call.1} parent=59 // pred_check_branch
          %576 = sbr.rel (%p574) target = $region105
        $region104: #{tpu_custom_call.1} parent=59 // pred_region
          %s577 = sand.u32 %s65, 1
          %s578 = sand.u32 %s65, 1
          %s579 = smul.addr %s578, 64
          %s580 = scalar_lea.vmem [#allocation7], %s579
          %s581 = smul.u32 4, %s29
          %s582 = smul.addr %s581, 4
          %s583 = scalar_lea.vmem %s2, %s582
          // Predicated region
          $region106: #{tpu_custom_call.1} parent=104 // pred_check
            _
          $region107: #{tpu_custom_call.1} parent=104 // pred_check_branch
            %585 = sbr.rel (0) target = $region109
          $region108: #{tpu_custom_call.1} parent=104 // pred_region
            // Predicated region
            $region110: #{tpu_custom_call.1} parent=108 // pred_check
              _
            $region111: #{tpu_custom_call.1} parent=108 // pred_check_branch
              %587 = sbr.rel target = $region113
            $region112: #{tpu_custom_call.1} parent=108 // pred_region
              // Predicated region
              $region125: #{tpu_custom_call.1} parent=112 // pred_check
                _
              $region126: #{tpu_custom_call.1} parent=112 // pred_check_branch
                %633 = sbr.rel (0) target = $region128
              $region127: #{tpu_custom_call.1} parent=112 // pred_region
                loop: start=0, step=1, limit=1
                $region129: #{tpu_custom_call.1} parent=127 // loop_pre_header
                  _
                $region130: #{tpu_custom_call.1} parent=127 // loop_header
                  %s635 = sphi 0, %s639
                  %p636 = scmp.ge.s32.totalorder %s635, 1
                  %s640 = sphi %s583, %s583
                  %s641 = sphi %s580, %s580
                $region131: #{tpu_custom_call.1} parent=127 // loop_header_branch
                  %638 = sbr.rel (%p636) target = $region135
                $region132: #{tpu_custom_call.1} parent=127 // loop_body
                  _
                $region133: #{tpu_custom_call.1} parent=127 // loop_footer
                  %s639 = sadd.s32 1, %s635
                $region134: #{tpu_custom_call.1} parent=127 // loop_footer_branch
                  %634 = sbr.rel target = $region130
                $region135: #{tpu_custom_call.1} parent=127 // loop_exit
                  _
                %s643 = ssub.s32 16, 1
                loop: start=0, step=1, limit=1
                $region136: #{tpu_custom_call.1} parent=127 // loop_pre_header
                  _
                $region137: #{tpu_custom_call.1} parent=127 // loop_header
                  %s645 = sphi 0, %s649
                  %p646 = scmp.ge.s32.totalorder %s645, 1
                  %s650 = sphi %s583, %s583
                  %s651 = sphi %s580, %s580
                $region138: #{tpu_custom_call.1} parent=127 // loop_header_branch
                  %648 = sbr.rel (%p646) target = $region142
                $region139: #{tpu_custom_call.1} parent=127 // loop_body
                  %v652 = vld [vmem:[%s650] sm:%s643]
                  %653 = vst [vmem:[%s651] sm:%s643] %v652
                  %v654 = vld [vmem:[%s650 + $0x4] sm:%s643]
                  %655 = vst [vmem:[%s651 + $0x4] sm:%s643] %v654
                  %v656 = vld [vmem:[%s650 + $0x8] sm:%s643]
                  %657 = vst [vmem:[%s651 + $0x8] sm:%s643] %v656
                  %v658 = vld [vmem:[%s650 + $0xc] sm:%s643]
                  %659 = vst [vmem:[%s651 + $0xc] sm:%s643] %v658
                  %v660 = vld [vmem:[%s650 + $0x30] sm:%s643]
                  %661 = vst [vmem:[%s651 + $0x10] sm:%s643] %v660
                  %v662 = vld [vmem:[%s650 + $0x34] sm:%s643]
                  %663 = vst [vmem:[%s651 + $0x14] sm:%s643] %v662
                  %v664 = vld [vmem:[%s650 + $0x38] sm:%s643]
                  %665 = vst [vmem:[%s651 + $0x18] sm:%s643] %v664
                  %v666 = vld [vmem:[%s650 + $0x3c] sm:%s643]
                  %667 = vst [vmem:[%s651 + $0x1c] sm:%s643] %v666
                  %v668 = vld [vmem:[%s650 + $0x60] sm:%s643]
                  %669 = vst [vmem:[%s651 + $0x20] sm:%s643] %v668
                  %v670 = vld [vmem:[%s650 + $0x64] sm:%s643]
                  %671 = vst [vmem:[%s651 + $0x24] sm:%s643] %v670
                  %v672 = vld [vmem:[%s650 + $0x68] sm:%s643]
                  %673 = vst [vmem:[%s651 + $0x28] sm:%s643] %v672
                  %v674 = vld [vmem:[%s650 + $0x6c] sm:%s643]
                  %675 = vst [vmem:[%s651 + $0x2c] sm:%s643] %v674
                  %v676 = vld [vmem:[%s650 + $0x90] sm:%s643]
                  %677 = vst [vmem:[%s651 + $0x30] sm:%s643] %v676
                  %v678 = vld [vmem:[%s650 + $0x94] sm:%s643]
                  %679 = vst [vmem:[%s651 + $0x34] sm:%s643] %v678
                  %v680 = vld [vmem:[%s650 + $0x98] sm:%s643]
                  %681 = vst [vmem:[%s651 + $0x38] sm:%s643] %v680
                  %v682 = vld [vmem:[%s650 + $0x9c] sm:%s643]
                  %683 = vst [vmem:[%s651 + $0x3c] sm:%s643] %v682
                $region140: #{tpu_custom_call.1} parent=127 // loop_footer
                  %s649 = sadd.s32 1, %s645
                $region141: #{tpu_custom_call.1} parent=127 // loop_footer_branch
                  %644 = sbr.rel target = $region137
                $region142: #{tpu_custom_call.1} parent=127 // loop_exit
                  _
              $region128: #{tpu_custom_call.1} parent=112 // pred_fallthru
                _
            $region113: #{tpu_custom_call.1} parent=108 // pred_fallthru
              _
            // Predicated region
            $region114: #{tpu_custom_call.1} parent=108 // pred_check
              _
            $region115: #{tpu_custom_call.1} parent=108 // pred_check_branch
              %589 = sbr.rel (0) target = $region117
            $region116: #{tpu_custom_call.1} parent=108 // pred_region
              %s591 = ssub.s32 16, 1
              loop: start=0, step=1, limit=1
              $region118: #{tpu_custom_call.1} parent=116 // loop_pre_header
                _
              $region119: #{tpu_custom_call.1} parent=116 // loop_header
                %s593 = sphi 0, %s597
                %p594 = scmp.ge.s32.totalorder %s593, 1
                %s598 = sphi %s583, %s583
                %s599 = sphi %s580, %s580
              $region120: #{tpu_custom_call.1} parent=116 // loop_header_branch
                %596 = sbr.rel (%p594) target = $region124
              $region121: #{tpu_custom_call.1} parent=116 // loop_body
                %v600 = vld [vmem:[%s598] sm:%s591]
                %601 = vst [vmem:[%s599] sm:%s591] %v600
                %v602 = vld [vmem:[%s598 + $0x4] sm:%s591]
                %603 = vst [vmem:[%s599 + $0x4] sm:%s591] %v602
                %v604 = vld [vmem:[%s598 + $0x8] sm:%s591]
                %605 = vst [vmem:[%s599 + $0x8] sm:%s591] %v604
                %v606 = vld [vmem:[%s598 + $0xc] sm:%s591]
                %607 = vst [vmem:[%s599 + $0xc] sm:%s591] %v606
                %v608 = vld [vmem:[%s598 + $0x30] sm:%s591]
                %609 = vst [vmem:[%s599 + $0x10] sm:%s591] %v608
                %v610 = vld [vmem:[%s598 + $0x34] sm:%s591]
                %611 = vst [vmem:[%s599 + $0x14] sm:%s591] %v610
                %v612 = vld [vmem:[%s598 + $0x38] sm:%s591]
                %613 = vst [vmem:[%s599 + $0x18] sm:%s591] %v612
                %v614 = vld [vmem:[%s598 + $0x3c] sm:%s591]
                %615 = vst [vmem:[%s599 + $0x1c] sm:%s591] %v614
                %v616 = vld [vmem:[%s598 + $0x60] sm:%s591]
                %617 = vst [vmem:[%s599 + $0x20] sm:%s591] %v616
                %v618 = vld [vmem:[%s598 + $0x64] sm:%s591]
                %619 = vst [vmem:[%s599 + $0x24] sm:%s591] %v618
                %v620 = vld [vmem:[%s598 + $0x68] sm:%s591]
                %621 = vst [vmem:[%s599 + $0x28] sm:%s591] %v620
                %v622 = vld [vmem:[%s598 + $0x6c] sm:%s591]
                %623 = vst [vmem:[%s599 + $0x2c] sm:%s591] %v622
                %v624 = vld [vmem:[%s598 + $0x90] sm:%s591]
                %625 = vst [vmem:[%s599 + $0x30] sm:%s591] %v624
                %v626 = vld [vmem:[%s598 + $0x94] sm:%s591]
                %627 = vst [vmem:[%s599 + $0x34] sm:%s591] %v626
                %v628 = vld [vmem:[%s598 + $0x98] sm:%s591]
                %629 = vst [vmem:[%s599 + $0x38] sm:%s591] %v628
                %v630 = vld [vmem:[%s598 + $0x9c] sm:%s591]
                %631 = vst [vmem:[%s599 + $0x3c] sm:%s591] %v630
              $region122: #{tpu_custom_call.1} parent=116 // loop_footer
                %s597 = sadd.s32 1, %s593
              $region123: #{tpu_custom_call.1} parent=116 // loop_footer_branch
                %592 = sbr.rel target = $region119
              $region124: #{tpu_custom_call.1} parent=116 // loop_exit
                _
            $region117: #{tpu_custom_call.1} parent=108 // pred_fallthru
              _
          $region109: #{tpu_custom_call.1} parent=104 // pred_fallthru
            _
          %684 = vnop
        $region105: #{tpu_custom_call.1} parent=59 // pred_fallthru
          _
        // Predicated region
        $region143: #{tpu_custom_call.1} parent=59 // pred_check
          %p685 = pneg %p101
        $region144: #{tpu_custom_call.1} parent=59 // pred_check_branch
          %687 = sbr.rel (%p685) target = $region146
        $region145: #{tpu_custom_call.1} parent=59 // pred_region
          %s688 = sand.u32 %s91, 1
          %s689 = sand.u32 %s91, 1
          %s690 = smul.addr %s689, 64
          %s691 = scalar_lea.vmem [#allocation8], %s690
          %s692 = smul.u32 4, %s29
          %s693 = smul.addr %s692, 4
          %s694 = scalar_lea.vmem %s3, %s693
          // Predicated region
          $region147: #{tpu_custom_call.1} parent=145 // pred_check
            _
          $region148: #{tpu_custom_call.1} parent=145 // pred_check_branch
            %696 = sbr.rel (0) target = $region150
          $region149: #{tpu_custom_call.1} parent=145 // pred_region
            // Predicated region
            $region151: #{tpu_custom_call.1} parent=149 // pred_check
              _
            $region152: #{tpu_custom_call.1} parent=149 // pred_check_branch
              %698 = sbr.rel target = $region154
            $region153: #{tpu_custom_call.1} parent=149 // pred_region
              // Predicated region
              $region166: #{tpu_custom_call.1} parent=153 // pred_check
                _
              $region167: #{tpu_custom_call.1} parent=153 // pred_check_branch
                %744 = sbr.rel (0) target = $region169
              $region168: #{tpu_custom_call.1} parent=153 // pred_region
                loop: start=0, step=1, limit=1
                $region170: #{tpu_custom_call.1} parent=168 // loop_pre_header
                  _
                $region171: #{tpu_custom_call.1} parent=168 // loop_header
                  %s746 = sphi 0, %s750
                  %p747 = scmp.ge.s32.totalorder %s746, 1
                  %s751 = sphi %s694, %s694
                  %s752 = sphi %s691, %s691
                $region172: #{tpu_custom_call.1} parent=168 // loop_header_branch
                  %749 = sbr.rel (%p747) target = $region176
                $region173: #{tpu_custom_call.1} parent=168 // loop_body
                  _
                $region174: #{tpu_custom_call.1} parent=168 // loop_footer
                  %s750 = sadd.s32 1, %s746
                $region175: #{tpu_custom_call.1} parent=168 // loop_footer_branch
                  %745 = sbr.rel target = $region171
                $region176: #{tpu_custom_call.1} parent=168 // loop_exit
                  _
                %s754 = ssub.s32 16, 1
                loop: start=0, step=1, limit=1
                $region177: #{tpu_custom_call.1} parent=168 // loop_pre_header
                  _
                $region178: #{tpu_custom_call.1} parent=168 // loop_header
                  %s756 = sphi 0, %s760
                  %p757 = scmp.ge.s32.totalorder %s756, 1
                  %s761 = sphi %s694, %s694
                  %s762 = sphi %s691, %s691
                $region179: #{tpu_custom_call.1} parent=168 // loop_header_branch
                  %759 = sbr.rel (%p757) target = $region183
                $region180: #{tpu_custom_call.1} parent=168 // loop_body
                  %v763 = vld [vmem:[%s761] sm:%s754]
                  %764 = vst [vmem:[%s762] sm:%s754] %v763
                  %v765 = vld [vmem:[%s761 + $0x4] sm:%s754]
                  %766 = vst [vmem:[%s762 + $0x4] sm:%s754] %v765
                  %v767 = vld [vmem:[%s761 + $0x8] sm:%s754]
                  %768 = vst [vmem:[%s762 + $0x8] sm:%s754] %v767
                  %v769 = vld [vmem:[%s761 + $0xc] sm:%s754]
                  %770 = vst [vmem:[%s762 + $0xc] sm:%s754] %v769
                  %v771 = vld [vmem:[%s761 + $0x30] sm:%s754]
                  %772 = vst [vmem:[%s762 + $0x10] sm:%s754] %v771
                  %v773 = vld [vmem:[%s761 + $0x34] sm:%s754]
                  %774 = vst [vmem:[%s762 + $0x14] sm:%s754] %v773
                  %v775 = vld [vmem:[%s761 + $0x38] sm:%s754]
                  %776 = vst [vmem:[%s762 + $0x18] sm:%s754] %v775
                  %v777 = vld [vmem:[%s761 + $0x3c] sm:%s754]
                  %778 = vst [vmem:[%s762 + $0x1c] sm:%s754] %v777
                  %v779 = vld [vmem:[%s761 + $0x60] sm:%s754]
                  %780 = vst [vmem:[%s762 + $0x20] sm:%s754] %v779
                  %v781 = vld [vmem:[%s761 + $0x64] sm:%s754]
                  %782 = vst [vmem:[%s762 + $0x24] sm:%s754] %v781
                  %v783 = vld [vmem:[%s761 + $0x68] sm:%s754]
                  %784 = vst [vmem:[%s762 + $0x28] sm:%s754] %v783
                  %v785 = vld [vmem:[%s761 + $0x6c] sm:%s754]
                  %786 = vst [vmem:[%s762 + $0x2c] sm:%s754] %v785
                  %v787 = vld [vmem:[%s761 + $0x90] sm:%s754]
                  %788 = vst [vmem:[%s762 + $0x30] sm:%s754] %v787
                  %v789 = vld [vmem:[%s761 + $0x94] sm:%s754]
                  %790 = vst [vmem:[%s762 + $0x34] sm:%s754] %v789
                  %v791 = vld [vmem:[%s761 + $0x98] sm:%s754]
                  %792 = vst [vmem:[%s762 + $0x38] sm:%s754] %v791
                  %v793 = vld [vmem:[%s761 + $0x9c] sm:%s754]
                  %794 = vst [vmem:[%s762 + $0x3c] sm:%s754] %v793
                $region181: #{tpu_custom_call.1} parent=168 // loop_footer
                  %s760 = sadd.s32 1, %s756
                $region182: #{tpu_custom_call.1} parent=168 // loop_footer_branch
                  %755 = sbr.rel target = $region178
                $region183: #{tpu_custom_call.1} parent=168 // loop_exit
                  _
              $region169: #{tpu_custom_call.1} parent=153 // pred_fallthru
                _
            $region154: #{tpu_custom_call.1} parent=149 // pred_fallthru
              _
            // Predicated region
            $region155: #{tpu_custom_call.1} parent=149 // pred_check
              _
            $region156: #{tpu_custom_call.1} parent=149 // pred_check_branch
              %700 = sbr.rel (0) target = $region158
            $region157: #{tpu_custom_call.1} parent=149 // pred_region
              %s702 = ssub.s32 16, 1
              loop: start=0, step=1, limit=1
              $region159: #{tpu_custom_call.1} parent=157 // loop_pre_header
                _
              $region160: #{tpu_custom_call.1} parent=157 // loop_header
                %s704 = sphi 0, %s708
                %p705 = scmp.ge.s32.totalorder %s704, 1
                %s709 = sphi %s694, %s694
                %s710 = sphi %s691, %s691
              $region161: #{tpu_custom_call.1} parent=157 // loop_header_branch
                %707 = sbr.rel (%p705) target = $region165
              $region162: #{tpu_custom_call.1} parent=157 // loop_body
                %v711 = vld [vmem:[%s709] sm:%s702]
                %712 = vst [vmem:[%s710] sm:%s702] %v711
                %v713 = vld [vmem:[%s709 + $0x4] sm:%s702]
                %714 = vst [vmem:[%s710 + $0x4] sm:%s702] %v713
                %v715 = vld [vmem:[%s709 + $0x8] sm:%s702]
                %716 = vst [vmem:[%s710 + $0x8] sm:%s702] %v715
                %v717 = vld [vmem:[%s709 + $0xc] sm:%s702]
                %718 = vst [vmem:[%s710 + $0xc] sm:%s702] %v717
                %v719 = vld [vmem:[%s709 + $0x30] sm:%s702]
                %720 = vst [vmem:[%s710 + $0x10] sm:%s702] %v719
                %v721 = vld [vmem:[%s709 + $0x34] sm:%s702]
                %722 = vst [vmem:[%s710 + $0x14] sm:%s702] %v721
                %v723 = vld [vmem:[%s709 + $0x38] sm:%s702]
                %724 = vst [vmem:[%s710 + $0x18] sm:%s702] %v723
                %v725 = vld [vmem:[%s709 + $0x3c] sm:%s702]
                %726 = vst [vmem:[%s710 + $0x1c] sm:%s702] %v725
                %v727 = vld [vmem:[%s709 + $0x60] sm:%s702]
                %728 = vst [vmem:[%s710 + $0x20] sm:%s702] %v727
                %v729 = vld [vmem:[%s709 + $0x64] sm:%s702]
                %730 = vst [vmem:[%s710 + $0x24] sm:%s702] %v729
                %v731 = vld [vmem:[%s709 + $0x68] sm:%s702]
                %732 = vst [vmem:[%s710 + $0x28] sm:%s702] %v731
                %v733 = vld [vmem:[%s709 + $0x6c] sm:%s702]
                %734 = vst [vmem:[%s710 + $0x2c] sm:%s702] %v733
                %v735 = vld [vmem:[%s709 + $0x90] sm:%s702]
                %736 = vst [vmem:[%s710 + $0x30] sm:%s702] %v735
                %v737 = vld [vmem:[%s709 + $0x94] sm:%s702]
                %738 = vst [vmem:[%s710 + $0x34] sm:%s702] %v737
                %v739 = vld [vmem:[%s709 + $0x98] sm:%s702]
                %740 = vst [vmem:[%s710 + $0x38] sm:%s702] %v739
                %v741 = vld [vmem:[%s709 + $0x9c] sm:%s702]
                %742 = vst [vmem:[%s710 + $0x3c] sm:%s702] %v741
              $region163: #{tpu_custom_call.1} parent=157 // loop_footer
                %s708 = sadd.s32 1, %s704
              $region164: #{tpu_custom_call.1} parent=157 // loop_footer_branch
                %703 = sbr.rel target = $region160
              $region165: #{tpu_custom_call.1} parent=157 // loop_exit
                _
            $region158: #{tpu_custom_call.1} parent=149 // pred_fallthru
              _
          $region150: #{tpu_custom_call.1} parent=145 // pred_fallthru
            _
          %795 = vnop
        $region146: #{tpu_custom_call.1} parent=59 // pred_fallthru
          _
        // Predicated region
        $region184: #{tpu_custom_call.1} parent=59 // pred_check
          %p796 = pneg %p127
        $region185: #{tpu_custom_call.1} parent=59 // pred_check_branch
          %798 = sbr.rel (%p796) target = $region187
        $region186: #{tpu_custom_call.1} parent=59 // pred_region
          %s799 = sand.u32 %s117, 1
          %s800 = sand.u32 %s117, 1
          %s801 = smul.addr %s800, 64
          %s802 = scalar_lea.vmem [#allocation9], %s801
          %s803 = smul.u32 4, %s29
          %s804 = smul.addr %s803, 4
          %s805 = scalar_lea.vmem %s4, %s804
          // Predicated region
          $region188: #{tpu_custom_call.1} parent=186 // pred_check
            _
          $region189: #{tpu_custom_call.1} parent=186 // pred_check_branch
            %807 = sbr.rel (0) target = $region191
          $region190: #{tpu_custom_call.1} parent=186 // pred_region
            // Predicated region
            $region192: #{tpu_custom_call.1} parent=190 // pred_check
              _
            $region193: #{tpu_custom_call.1} parent=190 // pred_check_branch
              %809 = sbr.rel target = $region195
            $region194: #{tpu_custom_call.1} parent=190 // pred_region
              // Predicated region
              $region207: #{tpu_custom_call.1} parent=194 // pred_check
                _
              $region208: #{tpu_custom_call.1} parent=194 // pred_check_branch
                %855 = sbr.rel (0) target = $region210
              $region209: #{tpu_custom_call.1} parent=194 // pred_region
                loop: start=0, step=1, limit=1
                $region211: #{tpu_custom_call.1} parent=209 // loop_pre_header
                  _
                $region212: #{tpu_custom_call.1} parent=209 // loop_header
                  %s857 = sphi 0, %s861
                  %p858 = scmp.ge.s32.totalorder %s857, 1
                  %s862 = sphi %s805, %s805
                  %s863 = sphi %s802, %s802
                $region213: #{tpu_custom_call.1} parent=209 // loop_header_branch
                  %860 = sbr.rel (%p858) target = $region217
                $region214: #{tpu_custom_call.1} parent=209 // loop_body
                  _
                $region215: #{tpu_custom_call.1} parent=209 // loop_footer
                  %s861 = sadd.s32 1, %s857
                $region216: #{tpu_custom_call.1} parent=209 // loop_footer_branch
                  %856 = sbr.rel target = $region212
                $region217: #{tpu_custom_call.1} parent=209 // loop_exit
                  _
                %s865 = ssub.s32 16, 1
                loop: start=0, step=1, limit=1
                $region218: #{tpu_custom_call.1} parent=209 // loop_pre_header
                  _
                $region219: #{tpu_custom_call.1} parent=209 // loop_header
                  %s867 = sphi 0, %s871
                  %p868 = scmp.ge.s32.totalorder %s867, 1
                  %s872 = sphi %s805, %s805
                  %s873 = sphi %s802, %s802
                $region220: #{tpu_custom_call.1} parent=209 // loop_header_branch
                  %870 = sbr.rel (%p868) target = $region224
                $region221: #{tpu_custom_call.1} parent=209 // loop_body
                  %v874 = vld [vmem:[%s872] sm:%s865]
                  %875 = vst [vmem:[%s873] sm:%s865] %v874
                  %v876 = vld [vmem:[%s872 + $0x4] sm:%s865]
                  %877 = vst [vmem:[%s873 + $0x4] sm:%s865] %v876
                  %v878 = vld [vmem:[%s872 + $0x8] sm:%s865]
                  %879 = vst [vmem:[%s873 + $0x8] sm:%s865] %v878
                  %v880 = vld [vmem:[%s872 + $0xc] sm:%s865]
                  %881 = vst [vmem:[%s873 + $0xc] sm:%s865] %v880
                  %v882 = vld [vmem:[%s872 + $0x30] sm:%s865]
                  %883 = vst [vmem:[%s873 + $0x10] sm:%s865] %v882
                  %v884 = vld [vmem:[%s872 + $0x34] sm:%s865]
                  %885 = vst [vmem:[%s873 + $0x14] sm:%s865] %v884
                  %v886 = vld [vmem:[%s872 + $0x38] sm:%s865]
                  %887 = vst [vmem:[%s873 + $0x18] sm:%s865] %v886
                  %v888 = vld [vmem:[%s872 + $0x3c] sm:%s865]
                  %889 = vst [vmem:[%s873 + $0x1c] sm:%s865] %v888
                  %v890 = vld [vmem:[%s872 + $0x60] sm:%s865]
                  %891 = vst [vmem:[%s873 + $0x20] sm:%s865] %v890
                  %v892 = vld [vmem:[%s872 + $0x64] sm:%s865]
                  %893 = vst [vmem:[%s873 + $0x24] sm:%s865] %v892
                  %v894 = vld [vmem:[%s872 + $0x68] sm:%s865]
                  %895 = vst [vmem:[%s873 + $0x28] sm:%s865] %v894
                  %v896 = vld [vmem:[%s872 + $0x6c] sm:%s865]
                  %897 = vst [vmem:[%s873 + $0x2c] sm:%s865] %v896
                  %v898 = vld [vmem:[%s872 + $0x90] sm:%s865]
                  %899 = vst [vmem:[%s873 + $0x30] sm:%s865] %v898
                  %v900 = vld [vmem:[%s872 + $0x94] sm:%s865]
                  %901 = vst [vmem:[%s873 + $0x34] sm:%s865] %v900
                  %v902 = vld [vmem:[%s872 + $0x98] sm:%s865]
                  %903 = vst [vmem:[%s873 + $0x38] sm:%s865] %v902
                  %v904 = vld [vmem:[%s872 + $0x9c] sm:%s865]
                  %905 = vst [vmem:[%s873 + $0x3c] sm:%s865] %v904
                $region222: #{tpu_custom_call.1} parent=209 // loop_footer
                  %s871 = sadd.s32 1, %s867
                $region223: #{tpu_custom_call.1} parent=209 // loop_footer_branch
                  %866 = sbr.rel target = $region219
                $region224: #{tpu_custom_call.1} parent=209 // loop_exit
                  _
              $region210: #{tpu_custom_call.1} parent=194 // pred_fallthru
                _
            $region195: #{tpu_custom_call.1} parent=190 // pred_fallthru
              _
            // Predicated region
            $region196: #{tpu_custom_call.1} parent=190 // pred_check
              _
            $region197: #{tpu_custom_call.1} parent=190 // pred_check_branch
              %811 = sbr.rel (0) target = $region199
            $region198: #{tpu_custom_call.1} parent=190 // pred_region
              %s813 = ssub.s32 16, 1
              loop: start=0, step=1, limit=1
              $region200: #{tpu_custom_call.1} parent=198 // loop_pre_header
                _
              $region201: #{tpu_custom_call.1} parent=198 // loop_header
                %s815 = sphi 0, %s819
                %p816 = scmp.ge.s32.totalorder %s815, 1
                %s820 = sphi %s805, %s805
                %s821 = sphi %s802, %s802
              $region202: #{tpu_custom_call.1} parent=198 // loop_header_branch
                %818 = sbr.rel (%p816) target = $region206
              $region203: #{tpu_custom_call.1} parent=198 // loop_body
                %v822 = vld [vmem:[%s820] sm:%s813]
                %823 = vst [vmem:[%s821] sm:%s813] %v822
                %v824 = vld [vmem:[%s820 + $0x4] sm:%s813]
                %825 = vst [vmem:[%s821 + $0x4] sm:%s813] %v824
                %v826 = vld [vmem:[%s820 + $0x8] sm:%s813]
                %827 = vst [vmem:[%s821 + $0x8] sm:%s813] %v826
                %v828 = vld [vmem:[%s820 + $0xc] sm:%s813]
                %829 = vst [vmem:[%s821 + $0xc] sm:%s813] %v828
                %v830 = vld [vmem:[%s820 + $0x30] sm:%s813]
                %831 = vst [vmem:[%s821 + $0x10] sm:%s813] %v830
                %v832 = vld [vmem:[%s820 + $0x34] sm:%s813]
                %833 = vst [vmem:[%s821 + $0x14] sm:%s813] %v832
                %v834 = vld [vmem:[%s820 + $0x38] sm:%s813]
                %835 = vst [vmem:[%s821 + $0x18] sm:%s813] %v834
                %v836 = vld [vmem:[%s820 + $0x3c] sm:%s813]
                %837 = vst [vmem:[%s821 + $0x1c] sm:%s813] %v836
                %v838 = vld [vmem:[%s820 + $0x60] sm:%s813]
                %839 = vst [vmem:[%s821 + $0x20] sm:%s813] %v838
                %v840 = vld [vmem:[%s820 + $0x64] sm:%s813]
                %841 = vst [vmem:[%s821 + $0x24] sm:%s813] %v840
                %v842 = vld [vmem:[%s820 + $0x68] sm:%s813]
                %843 = vst [vmem:[%s821 + $0x28] sm:%s813] %v842
                %v844 = vld [vmem:[%s820 + $0x6c] sm:%s813]
                %845 = vst [vmem:[%s821 + $0x2c] sm:%s813] %v844
                %v846 = vld [vmem:[%s820 + $0x90] sm:%s813]
                %847 = vst [vmem:[%s821 + $0x30] sm:%s813] %v846
                %v848 = vld [vmem:[%s820 + $0x94] sm:%s813]
                %849 = vst [vmem:[%s821 + $0x34] sm:%s813] %v848
                %v850 = vld [vmem:[%s820 + $0x98] sm:%s813]
                %851 = vst [vmem:[%s821 + $0x38] sm:%s813] %v850
                %v852 = vld [vmem:[%s820 + $0x9c] sm:%s813]
                %853 = vst [vmem:[%s821 + $0x3c] sm:%s813] %v852
              $region204: #{tpu_custom_call.1} parent=198 // loop_footer
                %s819 = sadd.s32 1, %s815
              $region205: #{tpu_custom_call.1} parent=198 // loop_footer_branch
                %814 = sbr.rel target = $region201
              $region206: #{tpu_custom_call.1} parent=198 // loop_exit
                _
            $region199: #{tpu_custom_call.1} parent=190 // pred_fallthru
              _
          $region191: #{tpu_custom_call.1} parent=186 // pred_fallthru
            _
          %906 = vnop
        $region187: #{tpu_custom_call.1} parent=59 // pred_fallthru
          _
      $region60: #{tpu_custom_call.1} parent=5 // pred_fallthru
        _
      %p907 = scmp.le.s32.totalorder 1, %s29
      %p908 = scmp.lt.s32.totalorder %s29, 4
      %p909 = pnand %p907, %p908
      %p910 = pneg %p909
      // Predicated region
      $region225: #{tpu_custom_call.1} parent=5 // pred_check
        _
      $region226: #{tpu_custom_call.1} parent=5 // pred_check_branch
        %912 = sbr.rel (%p909) target = $region228
      $region227: #{tpu_custom_call.1} parent=5 // pred_region
        %s913 = ssub.s32 %s29, 1
        %s914 = sand.u32 %s42, 1
        %s915 = sand.u32 %s42, 1
        %s916 = smul.addr %s915, 64
        %s917 = scalar_lea.vmem [#allocation6], %s916
        // Predicated region
        $region229: #{tpu_custom_call.1} parent=227 // pred_check
          %p918 = pneg %p55
        $region230: #{tpu_custom_call.1} parent=227 // pred_check_branch
          %920 = sbr.rel (%p918) target = $region232
        $region231: #{tpu_custom_call.1} parent=227 // pred_region
          _
        $region232: #{tpu_custom_call.1} parent=227 // pred_fallthru
          _
        %s921 = sand.u32 %s68, 1
        %s922 = sand.u32 %s68, 1
        %s923 = smul.addr %s922, 64
        %s924 = scalar_lea.vmem [#allocation7], %s923
        // Predicated region
        $region233: #{tpu_custom_call.1} parent=227 // pred_check
          %p925 = pneg %p81
        $region234: #{tpu_custom_call.1} parent=227 // pred_check_branch
          %927 = sbr.rel (%p925) target = $region236
        $region235: #{tpu_custom_call.1} parent=227 // pred_region
          _
        $region236: #{tpu_custom_call.1} parent=227 // pred_fallthru
          _
        %s928 = sand.u32 %s94, 1
        %s929 = sand.u32 %s94, 1
        %s930 = smul.addr %s929, 64
        %s931 = scalar_lea.vmem [#allocation8], %s930
        // Predicated region
        $region237: #{tpu_custom_call.1} parent=227 // pred_check
          %p932 = pneg %p107
        $region238: #{tpu_custom_call.1} parent=227 // pred_check_branch
          %934 = sbr.rel (%p932) target = $region240
        $region239: #{tpu_custom_call.1} parent=227 // pred_region
          _
        $region240: #{tpu_custom_call.1} parent=227 // pred_fallthru
          _
        %s935 = sand.u32 %s120, 1
        %s936 = sand.u32 %s120, 1
        %s937 = smul.addr %s936, 64
        %s938 = scalar_lea.vmem [#allocation9], %s937
        // Predicated region
        $region241: #{tpu_custom_call.1} parent=227 // pred_check
          %p939 = pneg %p133
        $region242: #{tpu_custom_call.1} parent=227 // pred_check_branch
          %941 = sbr.rel (%p939) target = $region244
        $region243: #{tpu_custom_call.1} parent=227 // pred_region
          _
        $region244: #{tpu_custom_call.1} parent=227 // pred_fallthru
          _
        %s942 = sand.u32 %s42, 1
        %s943 = sand.u32 %s42, 1
        %s944 = smul.addr %s943, 64
        %s945 = scalar_lea.vmem [#allocation6], %s944
        %p946 = pneg %p55
        %p947 = pneg %p52
        %s948 = sand.u32 %s68, 1
        %s949 = sand.u32 %s68, 1
        %s950 = smul.addr %s949, 64
        %s951 = scalar_lea.vmem [#allocation7], %s950
        %p952 = pneg %p81
        %p953 = pneg %p78
        %s954 = sand.u32 %s94, 1
        %s955 = sand.u32 %s94, 1
        %s956 = smul.addr %s955, 64
        %s957 = scalar_lea.vmem [#allocation8], %s956
        %p958 = pneg %p107
        %p959 = pneg %p104
        %s960 = sand.u32 %s120, 1
        %s961 = sand.u32 %s120, 1
        %s962 = smul.addr %s961, 64
        %s963 = scalar_lea.vmem [#allocation9], %s962
        %p964 = pneg %p133
        %p965 = pneg %p130
        %p966 = pneg %p154
        %p967 = pneg %p151
        %p968 = pneg %p175
        %p969 = pneg %p172
        %p970 = pneg %p196
        %p971 = pneg %p193
        %p972 = pneg %p217
        %p973 = pneg %p214
        %p974 = pneg %p238
        %p975 = pneg %p235
        %p976 = pneg %p259
        %p977 = pneg %p256
        %p978 = pneg %p280
        %p979 = pneg %p277
        %p980 = pneg %p301
        %p981 = pneg %p298
        %p982 = pneg %p322
        %p983 = pneg %p319
        %p984 = pneg %p343
        %p985 = pneg %p340
        %p986 = pneg %p364
        %p987 = pneg %p361
        %p988 = pneg %p390
        %p989 = pneg %p387
        %s990 = sand.u32 %s377, 1
        %s991 = scalar_lea.sflag [#allocation11], %s990
        %s992 = sand.u32 %s377, 1
        %s993 = smul.addr %s992, 64
        %s994 = scalar_lea.vmem [#allocation10], %s993
        %p995 = pneg %p411
        %p996 = pneg %p408
        %s997 = smul.u32 4, %s34
        %s998 = smul.u32 4, %s34
        %s999 = smul.u32 4, %s34
        %s1000 = smul.u32 4, %s34
        %s1001 = smul.u32 4, %s34
        %p1003 = scmp.eq.s32.totalorder %s34, 0
        // Predicated region
        $region245: #{tpu_custom_call.1} parent=227 // pred_check
          %p1004 = pneg %p1003
        $region246: #{tpu_custom_call.1} parent=227 // pred_check_branch
          %1006 = sbr.rel (%p1004) target = $region248
        $region247: #{tpu_custom_call.1} parent=227 // pred_region
          %vm1007 = vcmask 257024
          %1008 = vst.msk [vmem:[#allocation2] sm:$0xf] %vm1007, 0.0
          %1009 = vst.msk [vmem:[#allocation3] sm:$0xf] %vm1007, 0.0
        $region248: #{tpu_custom_call.1} parent=227 // pred_fallthru
          _
        %v1010 = vld [vmem:[%s917] sm:$0xf]
        %v1011 = vld [vmem:[%s917 + $0x4] sm:$0xf]
        %v1012 = vld [vmem:[%s917 + $0x8] sm:$0xf]
        %v1013 = vld [vmem:[%s917 + $0xc] sm:$0xf]
        %v1014 = vld [vmem:[%s917 + $0x10] sm:$0xf]
        %v1015 = vld [vmem:[%s917 + $0x14] sm:$0xf]
        %v1016 = vld [vmem:[%s917 + $0x18] sm:$0xf]
        %v1017 = vld [vmem:[%s917 + $0x1c] sm:$0xf]
        %v1018 = vld [vmem:[%s917 + $0x20] sm:$0xf]
        %v1019 = vld [vmem:[%s917 + $0x24] sm:$0xf]
        %v1020 = vld [vmem:[%s917 + $0x28] sm:$0xf]
        %v1021 = vld [vmem:[%s917 + $0x2c] sm:$0xf]
        %v1022 = vld [vmem:[%s917 + $0x30] sm:$0xf]
        %v1023 = vld [vmem:[%s917 + $0x34] sm:$0xf]
        %v1024 = vld [vmem:[%s917 + $0x38] sm:$0xf]
        %v1025 = vld [vmem:[%s917 + $0x3c] sm:$0xf]
        %v1026 = vld [vmem:[%s924] sm:$0xf]
        %v1027 = vld [vmem:[%s924 + $0x4] sm:$0xf]
        %v1028 = vld [vmem:[%s924 + $0x8] sm:$0xf]
        %v1029 = vld [vmem:[%s924 + $0xc] sm:$0xf]
        %v1030 = vld [vmem:[%s924 + $0x10] sm:$0xf]
        %v1031 = vld [vmem:[%s924 + $0x14] sm:$0xf]
        %v1032 = vld [vmem:[%s924 + $0x18] sm:$0xf]
        %v1033 = vld [vmem:[%s924 + $0x1c] sm:$0xf]
        %v1034 = vld [vmem:[%s924 + $0x20] sm:$0xf]
        %v1035 = vld [vmem:[%s924 + $0x24] sm:$0xf]
        %v1036 = vld [vmem:[%s924 + $0x28] sm:$0xf]
        %v1037 = vld [vmem:[%s924 + $0x2c] sm:$0xf]
        %v1038 = vld [vmem:[%s924 + $0x30] sm:$0xf]
        %v1039 = vld [vmem:[%s924 + $0x34] sm:$0xf]
        %v1040 = vld [vmem:[%s924 + $0x38] sm:$0xf]
        %v1041 = vld [vmem:[%s924 + $0x3c] sm:$0xf]
        %v1042 = vmul.bf16 %v1010, %v1026
        %v1043 = vmul.bf16 %v1011, %v1027
        %v1044 = vmul.bf16 %v1012, %v1028
        %v1045 = vmul.bf16 %v1013, %v1029
        %v1046 = vmul.bf16 %v1014, %v1030
        %v1047 = vmul.bf16 %v1015, %v1031
        %v1048 = vmul.bf16 %v1016, %v1032
        %v1049 = vmul.bf16 %v1017, %v1033
        %v1050 = vmul.bf16 %v1018, %v1034
        %v1051 = vmul.bf16 %v1019, %v1035
        %v1052 = vmul.bf16 %v1020, %v1036
        %v1053 = vmul.bf16 %v1021, %v1037
        %v1054 = vmul.bf16 %v1022, %v1038
        %v1055 = vmul.bf16 %v1023, %v1039
        %v1056 = vmul.bf16 %v1024, %v1040
        %v1057 = vmul.bf16 %v1025, %v1041
        %v1058 = vld [vmem:[%s931] sm:$0xf]
        %v1059 = vld [vmem:[%s931 + $0x4] sm:$0xf]
        %v1060 = vld [vmem:[%s931 + $0x8] sm:$0xf]
        %v1061 = vld [vmem:[%s931 + $0xc] sm:$0xf]
        %v1062 = vld [vmem:[%s931 + $0x10] sm:$0xf]
        %v1063 = vld [vmem:[%s931 + $0x14] sm:$0xf]
        %v1064 = vld [vmem:[%s931 + $0x18] sm:$0xf]
        %v1065 = vld [vmem:[%s931 + $0x1c] sm:$0xf]
        %v1066 = vld [vmem:[%s931 + $0x20] sm:$0xf]
        %v1067 = vld [vmem:[%s931 + $0x24] sm:$0xf]
        %v1068 = vld [vmem:[%s931 + $0x28] sm:$0xf]
        %v1069 = vld [vmem:[%s931 + $0x2c] sm:$0xf]
        %v1070 = vld [vmem:[%s931 + $0x30] sm:$0xf]
        %v1071 = vld [vmem:[%s931 + $0x34] sm:$0xf]
        %v1072 = vld [vmem:[%s931 + $0x38] sm:$0xf]
        %v1073 = vld [vmem:[%s931 + $0x3c] sm:$0xf]
        %v1074 = vld [vmem:[%s938] sm:$0xf]
        %v1075 = vld [vmem:[%s938 + $0x4] sm:$0xf]
        %v1076 = vld [vmem:[%s938 + $0x8] sm:$0xf]
        %v1077 = vld [vmem:[%s938 + $0xc] sm:$0xf]
        %v1078 = vld [vmem:[%s938 + $0x10] sm:$0xf]
        %v1079 = vld [vmem:[%s938 + $0x14] sm:$0xf]
        %v1080 = vld [vmem:[%s938 + $0x18] sm:$0xf]
        %v1081 = vld [vmem:[%s938 + $0x1c] sm:$0xf]
        %v1082 = vld [vmem:[%s938 + $0x20] sm:$0xf]
        %v1083 = vld [vmem:[%s938 + $0x24] sm:$0xf]
        %v1084 = vld [vmem:[%s938 + $0x28] sm:$0xf]
        %v1085 = vld [vmem:[%s938 + $0x2c] sm:$0xf]
        %v1086 = vld [vmem:[%s938 + $0x30] sm:$0xf]
        %v1087 = vld [vmem:[%s938 + $0x34] sm:$0xf]
        %v1088 = vld [vmem:[%s938 + $0x38] sm:$0xf]
        %v1089 = vld [vmem:[%s938 + $0x3c] sm:$0xf]
        %v1090 = vmul.bf16 %v1058, %v1074
        %v1091 = vmul.bf16 %v1059, %v1075
        %v1092 = vmul.bf16 %v1060, %v1076
        %v1093 = vmul.bf16 %v1061, %v1077
        %v1094 = vmul.bf16 %v1062, %v1078
        %v1095 = vmul.bf16 %v1063, %v1079
        %v1096 = vmul.bf16 %v1064, %v1080
        %v1097 = vmul.bf16 %v1065, %v1081
        %v1098 = vmul.bf16 %v1066, %v1082
        %v1099 = vmul.bf16 %v1067, %v1083
        %v1100 = vmul.bf16 %v1068, %v1084
        %v1101 = vmul.bf16 %v1069, %v1085
        %v1102 = vmul.bf16 %v1070, %v1086
        %v1103 = vmul.bf16 %v1071, %v1087
        %v1104 = vmul.bf16 %v1072, %v1088
        %v1105 = vmul.bf16 %v1073, %v1089
        %v1106 = vld [vmem:[%s6] sm:$0xf]
        %v1107 = vld [vmem:[%s6 + $0x4] sm:$0xf]
        %v1108 = vld [vmem:[%s6 + $0x8] sm:$0xf]
        %v1109 = vld [vmem:[%s6 + $0xc] sm:$0xf]
        %v1110 = vld [vmem:[%s7] sm:$0xf]
        %v1111 = vld [vmem:[%s7 + $0x4] sm:$0xf]
        %v1112 = vld [vmem:[%s7 + $0x8] sm:$0xf]
        %v1113 = vld [vmem:[%s7 + $0xc] sm:$0xf]
        %v1130 = vunpack.c.l.b16 %v1090
        %v1131 = vunpack.c.l.b16 %v1091
        %v1132 = vunpack.c.l.b16 %v1092
        %v1133 = vunpack.c.l.b16 %v1093
        %v1134 = vunpack.c.l.b16 %v1094
        %v1135 = vunpack.c.l.b16 %v1095
        %v1136 = vunpack.c.l.b16 %v1096
        %v1137 = vunpack.c.l.b16 %v1097
        %v1138 = vunpack.c.l.b16 %v1098
        %v1139 = vunpack.c.l.b16 %v1099
        %v1140 = vunpack.c.l.b16 %v1100
        %v1141 = vunpack.c.l.b16 %v1101
        %v1142 = vunpack.c.l.b16 %v1102
        %v1143 = vunpack.c.l.b16 %v1103
        %v1144 = vunpack.c.l.b16 %v1104
        %v1145 = vunpack.c.l.b16 %v1105
        %v1146 = vpack.c.b16 %v1131, %v1130
        %v1147 = vpack.c.b16 %v1133, %v1132
        %v1148 = vpack.c.b16 %v1135, %v1134
        %v1149 = vpack.c.b16 %v1137, %v1136
        %v1150 = vpack.c.b16 %v1139, %v1138
        %v1151 = vpack.c.b16 %v1141, %v1140
        %v1152 = vpack.c.b16 %v1143, %v1142
        %v1153 = vpack.c.b16 %v1145, %v1144
        %v1158 = vunpack.c.l.b16 %v1110
        %v1159 = vunpack.c.l.b16 %v1111
        %v1160 = vunpack.c.l.b16 %v1112
        %v1161 = vunpack.c.l.b16 %v1113
        %v1162 = vpack.c.b16 %v1159, %v1158
        %v1163 = vpack.c.b16 %v1161, %v1160
        %vm1166 = vcmask 261120
        %v1168 = vsel %vm1166, %v1146, 0
        %v1171 = vsel %vm1166, %v1147, 0
        %v1174 = vsel %vm1166, %v1148, 0
        %v1177 = vsel %vm1166, %v1149, 0
        %v1180 = vsel %vm1166, %v1150, 0
        %v1183 = vsel %vm1166, %v1151, 0
        %v1186 = vsel %vm1166, %v1152, 0
        %v1189 = vsel %vm1166, %v1153, 0
        %1191 = vmatprep.subr.bf16.mxu0 0
        %1192 = vmatpush1.bf16.msra.mxu0 0
        %1193 = vmatprep.subr.bf16.mxu0 0
        %1194 = vmatpush1.bf16.msra.mxu0 0
        %1195 = vmatprep.subr.bf16.mxu0 0
        %1196 = vmatpush1.bf16.msra.mxu0 0
        %1197 = vmatprep.subr.bf16.mxu0 0
        %1198 = vmatpush1.bf16.msra.mxu0 0
        %1199 = vmatprep.subr.bf16.mxu0 0
        %1200 = vmatpush1.bf16.msra.mxu0 0
        %1201 = vmatprep.subr.bf16.mxu0 0
        %1202 = vmatpush1.bf16.msra.mxu0 0
        %1203 = vmatprep.subr.bf16.mxu0 0
        %1204 = vmatpush1.bf16.msra.mxu0 %v1163
        %1205 = vmatprep.subr.bf16.mxu0 0
        %1206 = vmatpush1.bf16.msra.mxu0 %v1162
        %1207 = vmatprep.subr.bf16.mxu0 0
        %1208 = vmatpush2.bf16.msra.mxu0 0
        %1209 = vmatprep.subr.bf16.mxu0 0
        %1210 = vmatpush2.bf16.msra.mxu0 0
        %1211 = vmatprep.subr.bf16.mxu0 0
        %1212 = vmatpush2.bf16.msra.mxu0 0
        %1213 = vmatprep.subr.bf16.mxu0 0
        %1214 = vmatpush2.bf16.msra.mxu0 0
        %1215 = vmatprep.subr.bf16.mxu0 0
        %1216 = vmatpush2.bf16.msra.mxu0 0
        %1217 = vmatprep.subr.bf16.mxu0 0
        %1218 = vmatpush2.bf16.msra.mxu0 0
        %1219 = vmatprep.subr.bf16.mxu0 0
        %1220 = vmatpush2.bf16.msra.mxu0 0
        %1221 = vmatprep.subr.bf16.mxu0 0
        %1222 = vmatpush2.bf16.msra.mxu0 0
        %1223 = vmatprep.mubr.bf16.mxu0 0
        %1224 = vmatmul.mubr.bf16.gmra.mxu0 %v1168
        %v1225 = vpop.f32.mrf.mxu0
        %v1226 = vadd.f32 0.0, %v1225
        %v1227 = vpop.f32.mrf.mxu0
        %v1228 = vpop.f32.mrf.mxu0
        %v1229 = vadd.f32 0.0, %v1228
        %v1230 = vpop.f32.mrf.mxu0
        %1231 = vmatprep.mubr.bf16.mxu0 0
        %1232 = vmatmul.mubr.bf16.gmra.mxu0 %v1171
        %v1233 = vpop.f32.mrf.mxu0
        %v1234 = vadd.f32 0.0, %v1233
        %v1235 = vpop.f32.mrf.mxu0
        %v1236 = vpop.f32.mrf.mxu0
        %v1237 = vadd.f32 0.0, %v1236
        %v1238 = vpop.f32.mrf.mxu0
        %1239 = vmatprep.mubr.bf16.mxu0 0
        %1240 = vmatmul.mubr.bf16.gmra.mxu0 %v1174
        %v1241 = vpop.f32.mrf.mxu0
        %v1242 = vadd.f32 0.0, %v1241
        %v1243 = vpop.f32.mrf.mxu0
        %v1244 = vpop.f32.mrf.mxu0
        %v1245 = vadd.f32 0.0, %v1244
        %v1246 = vpop.f32.mrf.mxu0
        %1247 = vmatprep.mubr.bf16.mxu0 0
        %1248 = vmatmul.mubr.bf16.gmra.mxu0 %v1177
        %v1249 = vpop.f32.mrf.mxu0
        %v1250 = vadd.f32 0.0, %v1249
        %v1251 = vpop.f32.mrf.mxu0
        %v1252 = vpop.f32.mrf.mxu0
        %v1253 = vadd.f32 0.0, %v1252
        %v1254 = vpop.f32.mrf.mxu0
        %1255 = vmatprep.mubr.bf16.mxu0 0
        %1256 = vmatmul.mubr.bf16.gmra.mxu0 %v1180
        %v1257 = vpop.f32.mrf.mxu0
        %v1258 = vadd.f32 0.0, %v1257
        %v1259 = vpop.f32.mrf.mxu0
        %v1260 = vpop.f32.mrf.mxu0
        %v1261 = vadd.f32 0.0, %v1260
        %v1262 = vpop.f32.mrf.mxu0
        %1263 = vmatprep.mubr.bf16.mxu0 0
        %1264 = vmatmul.mubr.bf16.gmra.mxu0 %v1183
        %v1265 = vpop.f32.mrf.mxu0
        %v1266 = vadd.f32 0.0, %v1265
        %v1267 = vpop.f32.mrf.mxu0
        %v1268 = vpop.f32.mrf.mxu0
        %v1269 = vadd.f32 0.0, %v1268
        %v1270 = vpop.f32.mrf.mxu0
        %1271 = vmatprep.mubr.bf16.mxu0 0
        %1272 = vmatmul.mubr.bf16.gmra.mxu0 %v1186
        %v1273 = vpop.f32.mrf.mxu0
        %v1274 = vadd.f32 0.0, %v1273
        %v1275 = vpop.f32.mrf.mxu0
        %v1276 = vpop.f32.mrf.mxu0
        %v1277 = vadd.f32 0.0, %v1276
        %v1278 = vpop.f32.mrf.mxu0
        %1279 = vmatprep.mubr.bf16.mxu0 0
        %1280 = vmatmul.mubr.bf16.gmra.mxu0 %v1189
        %v1281 = vpop.f32.mrf.mxu0
        %v1282 = vadd.f32 0.0, %v1281
        %v1283 = vpop.f32.mrf.mxu0
        %v1284 = vpop.f32.mrf.mxu0
        %v1285 = vadd.f32 0.0, %v1284
        %v1286 = vpop.f32.mrf.mxu0
        %1287 = vdwg.mxu0
        %v1304 = vunpack.c.l.b16 %v1042
        %v1305 = vunpack.c.l.b16 %v1043
        %v1306 = vunpack.c.l.b16 %v1044
        %v1307 = vunpack.c.l.b16 %v1045
        %v1308 = vunpack.c.l.b16 %v1046
        %v1309 = vunpack.c.l.b16 %v1047
        %v1310 = vunpack.c.l.b16 %v1048
        %v1311 = vunpack.c.l.b16 %v1049
        %v1312 = vunpack.c.l.b16 %v1050
        %v1313 = vunpack.c.l.b16 %v1051
        %v1314 = vunpack.c.l.b16 %v1052
        %v1315 = vunpack.c.l.b16 %v1053
        %v1316 = vunpack.c.l.b16 %v1054
        %v1317 = vunpack.c.l.b16 %v1055
        %v1318 = vunpack.c.l.b16 %v1056
        %v1319 = vunpack.c.l.b16 %v1057
        %v1320 = vpack.c.b16 %v1305, %v1304
        %v1321 = vpack.c.b16 %v1307, %v1306
        %v1322 = vpack.c.b16 %v1309, %v1308
        %v1323 = vpack.c.b16 %v1311, %v1310
        %v1324 = vpack.c.b16 %v1313, %v1312
        %v1325 = vpack.c.b16 %v1315, %v1314
        %v1326 = vpack.c.b16 %v1317, %v1316
        %v1327 = vpack.c.b16 %v1319, %v1318
        %v1332 = vunpack.c.l.b16 %v1106
        %v1333 = vunpack.c.l.b16 %v1107
        %v1334 = vunpack.c.l.b16 %v1108
        %v1335 = vunpack.c.l.b16 %v1109
        %v1336 = vpack.c.b16 %v1333, %v1332
        %v1337 = vpack.c.b16 %v1335, %v1334
        %v1341 = vsel %vm1166, %v1320, 0
        %v1344 = vsel %vm1166, %v1321, 0
        %v1347 = vsel %vm1166, %v1322, 0
        %v1350 = vsel %vm1166, %v1323, 0
        %v1353 = vsel %vm1166, %v1324, 0
        %v1356 = vsel %vm1166, %v1325, 0
        %v1359 = vsel %vm1166, %v1326, 0
        %v1362 = vsel %vm1166, %v1327, 0
        %1364 = vmatprep.subr.bf16.mxu0 0
        %1365 = vmatpush1.bf16.msra.mxu0 0
        %1366 = vmatprep.subr.bf16.mxu0 0
        %1367 = vmatpush1.bf16.msra.mxu0 0
        %1368 = vmatprep.subr.bf16.mxu0 0
        %1369 = vmatpush1.bf16.msra.mxu0 0
        %1370 = vmatprep.subr.bf16.mxu0 0
        %1371 = vmatpush1.bf16.msra.mxu0 0
        %1372 = vmatprep.subr.bf16.mxu0 0
        %1373 = vmatpush1.bf16.msra.mxu0 0
        %1374 = vmatprep.subr.bf16.mxu0 0
        %1375 = vmatpush1.bf16.msra.mxu0 0
        %1376 = vmatprep.subr.bf16.mxu0 0
        %1377 = vmatpush1.bf16.msra.mxu0 %v1337
        %1378 = vmatprep.subr.bf16.mxu0 0
        %1379 = vmatpush1.bf16.msra.mxu0 %v1336
        %1380 = vmatprep.subr.bf16.mxu0 0
        %1381 = vmatpush2.bf16.msra.mxu0 0
        %1382 = vmatprep.subr.bf16.mxu0 0
        %1383 = vmatpush2.bf16.msra.mxu0 0
        %1384 = vmatprep.subr.bf16.mxu0 0
        %1385 = vmatpush2.bf16.msra.mxu0 0
        %1386 = vmatprep.subr.bf16.mxu0 0
        %1387 = vmatpush2.bf16.msra.mxu0 0
        %1388 = vmatprep.subr.bf16.mxu0 0
        %1389 = vmatpush2.bf16.msra.mxu0 0
        %1390 = vmatprep.subr.bf16.mxu0 0
        %1391 = vmatpush2.bf16.msra.mxu0 0
        %1392 = vmatprep.subr.bf16.mxu0 0
        %1393 = vmatpush2.bf16.msra.mxu0 0
        %1394 = vmatprep.subr.bf16.mxu0 0
        %1395 = vmatpush2.bf16.msra.mxu0 0
        %1396 = vmatprep.mubr.bf16.mxu0 0
        %1397 = vmatmul.mubr.bf16.gmra.mxu0 %v1341
        %v1398 = vpop.f32.mrf.mxu0
        %v1399 = vadd.f32 %v1226, %v1398
        %v1400 = vpop.f32.mrf.mxu0
        %v1401 = vpop.f32.mrf.mxu0
        %v1402 = vadd.f32 %v1229, %v1401
        %v1403 = vpop.f32.mrf.mxu0
        %1404 = vmatprep.mubr.bf16.mxu0 0
        %1405 = vmatmul.mubr.bf16.gmra.mxu0 %v1344
        %v1406 = vpop.f32.mrf.mxu0
        %v1407 = vadd.f32 %v1234, %v1406
        %v1408 = vpop.f32.mrf.mxu0
        %v1409 = vpop.f32.mrf.mxu0
        %v1410 = vadd.f32 %v1237, %v1409
        %v1411 = vpop.f32.mrf.mxu0
        %1412 = vmatprep.mubr.bf16.mxu0 0
        %1413 = vmatmul.mubr.bf16.gmra.mxu0 %v1347
        %v1414 = vpop.f32.mrf.mxu0
        %v1415 = vadd.f32 %v1242, %v1414
        %v1416 = vpop.f32.mrf.mxu0
        %v1417 = vpop.f32.mrf.mxu0
        %v1418 = vadd.f32 %v1245, %v1417
        %v1419 = vpop.f32.mrf.mxu0
        %1420 = vmatprep.mubr.bf16.mxu0 0
        %1421 = vmatmul.mubr.bf16.gmra.mxu0 %v1350
        %v1422 = vpop.f32.mrf.mxu0
        %v1423 = vadd.f32 %v1250, %v1422
        %v1424 = vpop.f32.mrf.mxu0
        %v1425 = vpop.f32.mrf.mxu0
        %v1426 = vadd.f32 %v1253, %v1425
        %v1427 = vpop.f32.mrf.mxu0
        %1428 = vmatprep.mubr.bf16.mxu0 0
        %1429 = vmatmul.mubr.bf16.gmra.mxu0 %v1353
        %v1430 = vpop.f32.mrf.mxu0
        %v1431 = vadd.f32 %v1258, %v1430
        %v1432 = vpop.f32.mrf.mxu0
        %v1433 = vpop.f32.mrf.mxu0
        %v1434 = vadd.f32 %v1261, %v1433
        %v1435 = vpop.f32.mrf.mxu0
        %1436 = vmatprep.mubr.bf16.mxu0 0
        %1437 = vmatmul.mubr.bf16.gmra.mxu0 %v1356
        %v1438 = vpop.f32.mrf.mxu0
        %v1439 = vadd.f32 %v1266, %v1438
        %v1440 = vpop.f32.mrf.mxu0
        %v1441 = vpop.f32.mrf.mxu0
        %v1442 = vadd.f32 %v1269, %v1441
        %v1443 = vpop.f32.mrf.mxu0
        %1444 = vmatprep.mubr.bf16.mxu0 0
        %1445 = vmatmul.mubr.bf16.gmra.mxu0 %v1359
        %v1446 = vpop.f32.mrf.mxu0
        %v1447 = vadd.f32 %v1274, %v1446
        %v1448 = vpop.f32.mrf.mxu0
        %v1449 = vpop.f32.mrf.mxu0
        %v1450 = vadd.f32 %v1277, %v1449
        %v1451 = vpop.f32.mrf.mxu0
        %1452 = vmatprep.mubr.bf16.mxu0 0
        %1453 = vmatmul.mubr.bf16.gmra.mxu0 %v1362
        %v1454 = vpop.f32.mrf.mxu0
        %v1455 = vadd.f32 %v1282, %v1454
        %v1456 = vpop.f32.mrf.mxu0
        %v1457 = vpop.f32.mrf.mxu0
        %v1458 = vadd.f32 %v1285, %v1457
        %v1459 = vpop.f32.mrf.mxu0
        %1460 = vdwg.mxu0
        %v1461 = vld [vmem:[%s8] sm:$0x1]
        %v1463 = vlaneseq
        %v1464 = vshrl.u32 %v1463, 7
        %v1465 = vsub.s32 0, %v1464
        %v1466 = vrot.slane %v1461, %v1465
        %v1468 = vadd.f32 %v1399, %v1466
        %v1469 = vadd.f32 %v1402, %v1466
        %v1470 = vadd.f32 %v1407, %v1466
        %v1471 = vadd.f32 %v1410, %v1466
        %v1472 = vadd.f32 %v1415, %v1466
        %v1473 = vadd.f32 %v1418, %v1466
        %v1474 = vadd.f32 %v1423, %v1466
        %v1475 = vadd.f32 %v1426, %v1466
        %v1476 = vadd.f32 %v1431, %v1466
        %v1477 = vadd.f32 %v1434, %v1466
        %v1478 = vadd.f32 %v1439, %v1466
        %v1479 = vadd.f32 %v1442, %v1466
        %v1480 = vadd.f32 %v1447, %v1466
        %v1481 = vadd.f32 %v1450, %v1466
        %v1482 = vadd.f32 %v1455, %v1466
        %v1483 = vadd.f32 %v1458, %v1466
        %v1484 = vpack.c.bf16 %v1469, %v1468
        %v1485 = vpack.c.bf16 %v1471, %v1470
        %v1486 = vpack.c.bf16 %v1473, %v1472
        %v1487 = vpack.c.bf16 %v1475, %v1474
        %v1488 = vpack.c.bf16 %v1477, %v1476
        %v1489 = vpack.c.bf16 %v1479, %v1478
        %v1490 = vpack.c.bf16 %v1481, %v1480
        %v1491 = vpack.c.bf16 %v1483, %v1482
        %v1492 = vld [vmem:[%s9] sm:$0xf]
        %v1493 = vld [vmem:[%s9 + $0x4] sm:$0xf]
        %v1494 = vld [vmem:[%s9 + $0x8] sm:$0xf]
        %v1495 = vld [vmem:[%s9 + $0xc] sm:$0xf]
        %v1496 = vld [vmem:[%s10] sm:$0x1]
        %v1498 = vlaneseq
        %v1499 = vshrl.u32 %v1498, 7
        %v1500 = vsub.s32 0, %v1499
        %v1501 = vrot.slane %v1496, %v1500
        %v1507 = vunpack.c.l.b16 %v1492
        %v1508 = vunpack.c.l.b16 %v1493
        %v1509 = vunpack.c.l.b16 %v1494
        %v1510 = vunpack.c.l.b16 %v1495
        %v1511 = vpack.c.b16 %v1508, %v1507
        %v1512 = vpack.c.b16 %v1510, %v1509
        %v1516 = vsel %vm1166, %v1484, 0
        %v1519 = vsel %vm1166, %v1485, 0
        %v1522 = vsel %vm1166, %v1486, 0
        %v1525 = vsel %vm1166, %v1487, 0
        %v1528 = vsel %vm1166, %v1488, 0
        %v1531 = vsel %vm1166, %v1489, 0
        %v1534 = vsel %vm1166, %v1490, 0
        %v1537 = vsel %vm1166, %v1491, 0
        %1539 = vmatprep.subr.bf16.mxu0 0
        %1540 = vmatpush1.bf16.msra.mxu0 0
        %1541 = vmatprep.subr.bf16.mxu0 0
        %1542 = vmatpush1.bf16.msra.mxu0 0
        %1543 = vmatprep.subr.bf16.mxu0 0
        %1544 = vmatpush1.bf16.msra.mxu0 0
        %1545 = vmatprep.subr.bf16.mxu0 0
        %1546 = vmatpush1.bf16.msra.mxu0 0
        %1547 = vmatprep.subr.bf16.mxu0 0
        %1548 = vmatpush1.bf16.msra.mxu0 0
        %1549 = vmatprep.subr.bf16.mxu0 0
        %1550 = vmatpush1.bf16.msra.mxu0 0
        %1551 = vmatprep.subr.bf16.mxu0 0
        %1552 = vmatpush1.bf16.msra.mxu0 %v1512
        %1553 = vmatprep.subr.bf16.mxu0 0
        %1554 = vmatpush1.bf16.msra.mxu0 %v1511
        %1555 = vmatprep.subr.bf16.mxu0 0
        %1556 = vmatpush2.bf16.msra.mxu0 0
        %1557 = vmatprep.subr.bf16.mxu0 0
        %1558 = vmatpush2.bf16.msra.mxu0 0
        %1559 = vmatprep.subr.bf16.mxu0 0
        %1560 = vmatpush2.bf16.msra.mxu0 0
        %1561 = vmatprep.subr.bf16.mxu0 0
        %1562 = vmatpush2.bf16.msra.mxu0 0
        %1563 = vmatprep.subr.bf16.mxu0 0
        %1564 = vmatpush2.bf16.msra.mxu0 0
        %1565 = vmatprep.subr.bf16.mxu0 0
        %1566 = vmatpush2.bf16.msra.mxu0 0
        %1567 = vmatprep.subr.bf16.mxu0 0
        %1568 = vmatpush2.bf16.msra.mxu0 0
        %1569 = vmatprep.subr.bf16.mxu0 0
        %1570 = vmatpush2.bf16.msra.mxu0 0
        %1571 = vmatprep.mubr.bf16.mxu0 0
        %1572 = vmatmul.mubr.bf16.gmra.mxu0 %v1516
        %v1573 = vpop.f32.mrf.mxu0
        %v1574 = vadd.f32 %v1501, %v1573
        %v1575 = vpop.f32.mrf.mxu0
        %v1576 = vpop.f32.mrf.mxu0
        %v1577 = vadd.f32 %v1501, %v1576
        %v1578 = vpop.f32.mrf.mxu0
        %1579 = vmatprep.mubr.bf16.mxu0 0
        %1580 = vmatmul.mubr.bf16.gmra.mxu0 %v1519
        %v1581 = vpop.f32.mrf.mxu0
        %v1582 = vadd.f32 %v1501, %v1581
        %v1583 = vpop.f32.mrf.mxu0
        %v1584 = vpop.f32.mrf.mxu0
        %v1585 = vadd.f32 %v1501, %v1584
        %v1586 = vpop.f32.mrf.mxu0
        %1587 = vmatprep.mubr.bf16.mxu0 0
        %1588 = vmatmul.mubr.bf16.gmra.mxu0 %v1522
        %v1589 = vpop.f32.mrf.mxu0
        %v1590 = vadd.f32 %v1501, %v1589
        %v1591 = vpop.f32.mrf.mxu0
        %v1592 = vpop.f32.mrf.mxu0
        %v1593 = vadd.f32 %v1501, %v1592
        %v1594 = vpop.f32.mrf.mxu0
        %1595 = vmatprep.mubr.bf16.mxu0 0
        %1596 = vmatmul.mubr.bf16.gmra.mxu0 %v1525
        %v1597 = vpop.f32.mrf.mxu0
        %v1598 = vadd.f32 %v1501, %v1597
        %v1599 = vpop.f32.mrf.mxu0
        %v1600 = vpop.f32.mrf.mxu0
        %v1601 = vadd.f32 %v1501, %v1600
        %v1602 = vpop.f32.mrf.mxu0
        %1603 = vmatprep.mubr.bf16.mxu0 0
        %1604 = vmatmul.mubr.bf16.gmra.mxu0 %v1528
        %v1605 = vpop.f32.mrf.mxu0
        %v1606 = vadd.f32 %v1501, %v1605
        %v1607 = vpop.f32.mrf.mxu0
        %v1608 = vpop.f32.mrf.mxu0
        %v1609 = vadd.f32 %v1501, %v1608
        %v1610 = vpop.f32.mrf.mxu0
        %1611 = vmatprep.mubr.bf16.mxu0 0
        %1612 = vmatmul.mubr.bf16.gmra.mxu0 %v1531
        %v1613 = vpop.f32.mrf.mxu0
        %v1614 = vadd.f32 %v1501, %v1613
        %v1615 = vpop.f32.mrf.mxu0
        %v1616 = vpop.f32.mrf.mxu0
        %v1617 = vadd.f32 %v1501, %v1616
        %v1618 = vpop.f32.mrf.mxu0
        %1619 = vmatprep.mubr.bf16.mxu0 0
        %1620 = vmatmul.mubr.bf16.gmra.mxu0 %v1534
        %v1621 = vpop.f32.mrf.mxu0
        %v1622 = vadd.f32 %v1501, %v1621
        %v1623 = vpop.f32.mrf.mxu0
        %v1624 = vpop.f32.mrf.mxu0
        %v1625 = vadd.f32 %v1501, %v1624
        %v1626 = vpop.f32.mrf.mxu0
        %1627 = vmatprep.mubr.bf16.mxu0 0
        %1628 = vmatmul.mubr.bf16.gmra.mxu0 %v1537
        %v1629 = vpop.f32.mrf.mxu0
        %v1630 = vadd.f32 %v1501, %v1629
        %v1631 = vpop.f32.mrf.mxu0
        %v1632 = vpop.f32.mrf.mxu0
        %v1633 = vadd.f32 %v1501, %v1632
        %v1634 = vpop.f32.mrf.mxu0
        %1635 = vdwg.mxu0
        %v1636 = vpack.c.bf16 %v1577, %v1574
        %v1637 = vpack.c.bf16 %v1585, %v1582
        %v1638 = vpack.c.bf16 %v1593, %v1590
        %v1639 = vpack.c.bf16 %v1601, %v1598
        %v1640 = vpack.c.bf16 %v1609, %v1606
        %v1641 = vpack.c.bf16 %v1617, %v1614
        %v1642 = vpack.c.bf16 %v1625, %v1622
        %v1643 = vpack.c.bf16 %v1633, %v1630
        %v1652 = vunpack.c.l.b16 %v1636
        %v1653 = vunpack.c.h.b16 %v1636
        %v1654 = vunpack.c.l.b16 %v1637
        %v1655 = vunpack.c.h.b16 %v1637
        %v1656 = vunpack.c.l.b16 %v1638
        %v1657 = vunpack.c.h.b16 %v1638
        %v1658 = vunpack.c.l.b16 %v1639
        %v1659 = vunpack.c.h.b16 %v1639
        %v1660 = vunpack.c.l.b16 %v1640
        %v1661 = vunpack.c.h.b16 %v1640
        %v1662 = vunpack.c.l.b16 %v1641
        %v1663 = vunpack.c.h.b16 %v1641
        %v1664 = vunpack.c.l.b16 %v1642
        %v1665 = vunpack.c.h.b16 %v1642
        %v1666 = vunpack.c.l.b16 %v1643
        %v1667 = vunpack.c.h.b16 %v1643
        %v1668 = vpack.c.b16 %v1652, %v1652
        %v1669 = vpack.c.b16 %v1653, %v1653
        %v1670 = vpack.c.b16 %v1654, %v1654
        %v1671 = vpack.c.b16 %v1655, %v1655
        %v1672 = vpack.c.b16 %v1656, %v1656
        %v1673 = vpack.c.b16 %v1657, %v1657
        %v1674 = vpack.c.b16 %v1658, %v1658
        %v1675 = vpack.c.b16 %v1659, %v1659
        %v1676 = vpack.c.b16 %v1660, %v1660
        %v1677 = vpack.c.b16 %v1661, %v1661
        %v1678 = vpack.c.b16 %v1662, %v1662
        %v1679 = vpack.c.b16 %v1663, %v1663
        %v1680 = vpack.c.b16 %v1664, %v1664
        %v1681 = vpack.c.b16 %v1665, %v1665
        %v1682 = vpack.c.b16 %v1666, %v1666
        %v1683 = vpack.c.b16 %v1667, %v1667
        %1700 = vst [vmem:[%s994] sm:$0xf] %v1668
        %1701 = vst [vmem:[%s994 + $0x4] sm:$0xf] %v1669
        %1702 = vst [vmem:[%s994 + $0x8] sm:$0xf] %v1670
        %1703 = vst [vmem:[%s994 + $0xc] sm:$0xf] %v1671
        %1704 = vst [vmem:[%s994 + $0x10] sm:$0xf] %v1672
        %1705 = vst [vmem:[%s994 + $0x14] sm:$0xf] %v1673
        %1706 = vst [vmem:[%s994 + $0x18] sm:$0xf] %v1674
        %1707 = vst [vmem:[%s994 + $0x1c] sm:$0xf] %v1675
        %1708 = vst [vmem:[%s994 + $0x20] sm:$0xf] %v1676
        %1709 = vst [vmem:[%s994 + $0x24] sm:$0xf] %v1677
        %1710 = vst [vmem:[%s994 + $0x28] sm:$0xf] %v1678
        %1711 = vst [vmem:[%s994 + $0x2c] sm:$0xf] %v1679
        %1712 = vst [vmem:[%s994 + $0x30] sm:$0xf] %v1680
        %1713 = vst [vmem:[%s994 + $0x34] sm:$0xf] %v1681
        %1714 = vst [vmem:[%s994 + $0x38] sm:$0xf] %v1682
        %1715 = vst [vmem:[%s994 + $0x3c] sm:$0xf] %v1683
        %s1716 = smul.u32 %s34, 32
        %s1717 = sld [smem:[#allocation5]]
        %p1718 = scmp.lt.s32.totalorder %s1716, %s1717
        // Predicated region
        $region249: #{tpu_custom_call.1} parent=227 // pred_check
          %p1719 = pneg %p1718
        $region250: #{tpu_custom_call.1} parent=227 // pred_check_branch
          %1721 = sbr.rel (%p1719) target = $region252
        $region251: #{tpu_custom_call.1} parent=227 // pred_region
          %v1722 = vld [vmem:[%s11] sm:$0xf]
          %v1723 = vld [vmem:[%s11 + $0x4] sm:$0xf]
          %v1724 = vld [vmem:[%s11 + $0x8] sm:$0xf]
          %v1725 = vld [vmem:[%s11 + $0xc] sm:$0xf]
          %v1726 = vld [vmem:[%s13] sm:$0x1]
          %v1728 = vlaneseq
          %v1729 = vshrl.u32 %v1728, 7
          %v1730 = vsub.s32 0, %v1729
          %v1731 = vrot.slane %v1726, %v1730
          %v1737 = vunpack.c.l.b16 %v1722
          %v1738 = vunpack.c.l.b16 %v1723
          %v1739 = vunpack.c.l.b16 %v1724
          %v1740 = vunpack.c.l.b16 %v1725
          %v1741 = vpack.c.b16 %v1738, %v1737
          %v1742 = vpack.c.b16 %v1740, %v1739
          %1745 = vmatprep.subr.bf16.mxu0 0
          %1746 = vmatpush1.bf16.msra.mxu0 0
          %1747 = vmatprep.subr.bf16.mxu0 0
          %1748 = vmatpush1.bf16.msra.mxu0 0
          %1749 = vmatprep.subr.bf16.mxu0 0
          %1750 = vmatpush1.bf16.msra.mxu0 0
          %1751 = vmatprep.subr.bf16.mxu0 0
          %1752 = vmatpush1.bf16.msra.mxu0 0
          %1753 = vmatprep.subr.bf16.mxu0 0
          %1754 = vmatpush1.bf16.msra.mxu0 0
          %1755 = vmatprep.subr.bf16.mxu0 0
          %1756 = vmatpush1.bf16.msra.mxu0 0
          %1757 = vmatprep.subr.bf16.mxu0 0
          %1758 = vmatpush1.bf16.msra.mxu0 %v1742
          %1759 = vmatprep.subr.bf16.mxu0 0
          %1760 = vmatpush1.bf16.msra.mxu0 %v1741
          %1761 = vmatprep.subr.bf16.mxu0 0
          %1762 = vmatpush2.bf16.msra.mxu0 0
          %1763 = vmatprep.subr.bf16.mxu0 0
          %1764 = vmatpush2.bf16.msra.mxu0 0
          %1765 = vmatprep.subr.bf16.mxu0 0
          %1766 = vmatpush2.bf16.msra.mxu0 0
          %1767 = vmatprep.subr.bf16.mxu0 0
          %1768 = vmatpush2.bf16.msra.mxu0 0
          %1769 = vmatprep.subr.bf16.mxu0 0
          %1770 = vmatpush2.bf16.msra.mxu0 0
          %1771 = vmatprep.subr.bf16.mxu0 0
          %1772 = vmatpush2.bf16.msra.mxu0 0
          %1773 = vmatprep.subr.bf16.mxu0 0
          %1774 = vmatpush2.bf16.msra.mxu0 0
          %1775 = vmatprep.subr.bf16.mxu0 0
          %1776 = vmatpush2.bf16.msra.mxu0 0
          %1777 = vmatprep.mubr.bf16.mxu0 0
          %1778 = vmatmul.mubr.bf16.gmra.mxu0 %v1516
          %v1779 = vpop.f32.mrf.mxu0
          %v1780 = vadd.f32 %v1731, %v1779
          %v1781 = vpop.f32.mrf.mxu0
          %v1782 = vpop.f32.mrf.mxu0
          %v1783 = vadd.f32 %v1731, %v1782
          %v1784 = vpop.f32.mrf.mxu0
          %1785 = vmatprep.mubr.bf16.mxu0 0
          %1786 = vmatmul.mubr.bf16.gmra.mxu0 %v1519
          %v1787 = vpop.f32.mrf.mxu0
          %v1788 = vadd.f32 %v1731, %v1787
          %v1789 = vpop.f32.mrf.mxu0
          %v1790 = vpop.f32.mrf.mxu0
          %v1791 = vadd.f32 %v1731, %v1790
          %v1792 = vpop.f32.mrf.mxu0
          %1793 = vmatprep.mubr.bf16.mxu0 0
          %1794 = vmatmul.mubr.bf16.gmra.mxu0 %v1522
          %v1795 = vpop.f32.mrf.mxu0
          %v1796 = vadd.f32 %v1731, %v1795
          %v1797 = vpop.f32.mrf.mxu0
          %v1798 = vpop.f32.mrf.mxu0
          %v1799 = vadd.f32 %v1731, %v1798
          %v1800 = vpop.f32.mrf.mxu0
          %1801 = vmatprep.mubr.bf16.mxu0 0
          %1802 = vmatmul.mubr.bf16.gmra.mxu0 %v1525
          %v1803 = vpop.f32.mrf.mxu0
          %v1804 = vadd.f32 %v1731, %v1803
          %v1805 = vpop.f32.mrf.mxu0
          %v1806 = vpop.f32.mrf.mxu0
          %v1807 = vadd.f32 %v1731, %v1806
          %v1808 = vpop.f32.mrf.mxu0
          %1809 = vmatprep.mubr.bf16.mxu0 0
          %1810 = vmatmul.mubr.bf16.gmra.mxu0 %v1528
          %v1811 = vpop.f32.mrf.mxu0
          %v1812 = vadd.f32 %v1731, %v1811
          %v1813 = vpop.f32.mrf.mxu0
          %v1814 = vpop.f32.mrf.mxu0
          %v1815 = vadd.f32 %v1731, %v1814
          %v1816 = vpop.f32.mrf.mxu0
          %1817 = vmatprep.mubr.bf16.mxu0 0
          %1818 = vmatmul.mubr.bf16.gmra.mxu0 %v1531
          %v1819 = vpop.f32.mrf.mxu0
          %v1820 = vadd.f32 %v1731, %v1819
          %v1821 = vpop.f32.mrf.mxu0
          %v1822 = vpop.f32.mrf.mxu0
          %v1823 = vadd.f32 %v1731, %v1822
          %v1824 = vpop.f32.mrf.mxu0
          %1825 = vmatprep.mubr.bf16.mxu0 0
          %1826 = vmatmul.mubr.bf16.gmra.mxu0 %v1534
          %v1827 = vpop.f32.mrf.mxu0
          %v1828 = vadd.f32 %v1731, %v1827
          %v1829 = vpop.f32.mrf.mxu0
          %v1830 = vpop.f32.mrf.mxu0
          %v1831 = vadd.f32 %v1731, %v1830
          %v1832 = vpop.f32.mrf.mxu0
          %1833 = vmatprep.mubr.bf16.mxu0 0
          %1834 = vmatmul.mubr.bf16.gmra.mxu0 %v1537
          %v1835 = vpop.f32.mrf.mxu0
          %v1836 = vadd.f32 %v1731, %v1835
          %v1837 = vpop.f32.mrf.mxu0
          %v1838 = vpop.f32.mrf.mxu0
          %v1839 = vadd.f32 %v1731, %v1838
          %v1840 = vpop.f32.mrf.mxu0
          %1841 = vdwg.mxu0
          %v1842 = vld [vmem:[%s5] sm:$0xf]
          %v1843 = vstv %s1716
          %v1844 = vsub.s32 %v1842, %v1843
          %v1845 = vld [vmem:[#allocation2] sm:$0xf]
          %v1846 = vld [vmem:[#allocation3] sm:$0xf]
          %v1847 = vpack.c.bf16 %v1845, %v1845
          %v1848 = vld [vmem:[%s12] sm:$0xf]
          %v1849 = vld [vmem:[%s12 + $0x4] sm:$0xf]
          %v1850 = vld [vmem:[%s12 + $0x8] sm:$0xf]
          %v1851 = vld [vmem:[%s12 + $0xc] sm:$0xf]
          %v1856 = vunpack.c.l.b16 %v1848
          %v1857 = vunpack.c.l.b16 %v1849
          %v1858 = vunpack.c.l.b16 %v1850
          %v1859 = vunpack.c.l.b16 %v1851
          %v1860 = vpack.c.b16 %v1857, %v1856
          %v1861 = vpack.c.b16 %v1859, %v1858
          %v1865 = vsel %vm1166, %v1847, 0
          %1867 = vmatprep.subr.bf16.mxu0 0
          %1868 = vmatpush1.bf16.msra.mxu0 0
          %1869 = vmatprep.subr.bf16.mxu0 0
          %1870 = vmatpush1.bf16.msra.mxu0 0
          %1871 = vmatprep.subr.bf16.mxu0 0
          %1872 = vmatpush1.bf16.msra.mxu0 0
          %1873 = vmatprep.subr.bf16.mxu0 0
          %1874 = vmatpush1.bf16.msra.mxu0 0
          %1875 = vmatprep.subr.bf16.mxu0 0
          %1876 = vmatpush1.bf16.msra.mxu0 0
          %1877 = vmatprep.subr.bf16.mxu0 0
          %1878 = vmatpush1.bf16.msra.mxu0 0
          %1879 = vmatprep.subr.bf16.mxu0 0
          %1880 = vmatpush1.bf16.msra.mxu0 %v1861
          %1881 = vmatprep.subr.bf16.mxu0 0
          %1882 = vmatpush1.bf16.msra.mxu0 %v1860
          %1883 = vmatprep.subr.bf16.mxu0 0
          %1884 = vmatpush2.bf16.msra.mxu0 0
          %1885 = vmatprep.subr.bf16.mxu0 0
          %1886 = vmatpush2.bf16.msra.mxu0 0
          %1887 = vmatprep.subr.bf16.mxu0 0
          %1888 = vmatpush2.bf16.msra.mxu0 0
          %1889 = vmatprep.subr.bf16.mxu0 0
          %1890 = vmatpush2.bf16.msra.mxu0 0
          %1891 = vmatprep.subr.bf16.mxu0 0
          %1892 = vmatpush2.bf16.msra.mxu0 0
          %1893 = vmatprep.subr.bf16.mxu0 0
          %1894 = vmatpush2.bf16.msra.mxu0 0
          %1895 = vmatprep.subr.bf16.mxu0 0
          %1896 = vmatpush2.bf16.msra.mxu0 0
          %1897 = vmatprep.subr.bf16.mxu0 0
          %1898 = vmatpush2.bf16.msra.mxu0 0
          %1899 = vmatprep.mubr.bf16.mxu0 0
          %1900 = vmatmul.mubr.bf16.gmra.mxu0 %v1865
          %v1901 = vpop.f32.mrf.mxu0
          %v1902 = vadd.f32 0.0, %v1901
          %v1903 = vpop.f32.mrf.mxu0
          %v1904 = vpop.f32.mrf.mxu0
          %v1905 = vpop.f32.mrf.mxu0
          %1906 = vdwg.mxu0
          %v1908 = vrot.slane %v1902, 1
          %v1909 = vrot.slane %v1902, 2
          %v1910 = vrot.slane %v1902, 3
          %v1915 = vadd.f32 %v1780, %v1902
          %v1916 = vadd.f32 %v1796, %v1908
          %v1917 = vadd.f32 %v1812, %v1909
          %v1918 = vadd.f32 %v1828, %v1910
          %v1919 = vxor.u32 %v1915, 2147483648
          %v1920 = vxor.u32 %v1916, 2147483648
          %v1921 = vxor.u32 %v1917, 2147483648
          %v1922 = vxor.u32 %v1918, 2147483648
          %v1923 = vmul.f32 %v1919, 1.442695
          %v1924 = vpow.pop %v1923
          %v1925 = vmul.f32 %v1920, 1.442695
          %v1926 = vpow.pop %v1925
          %v1927 = vmul.f32 %v1921, 1.442695
          %v1928 = vpow.pop %v1927
          %v1929 = vmul.f32 %v1922, 1.442695
          %v1930 = vpow.pop %v1929
          %v1931 = vadd.f32 %v1924, 1.0
          %v1932 = vadd.f32 %v1926, 1.0
          %v1933 = vadd.f32 %v1928, 1.0
          %v1934 = vadd.f32 %v1930, 1.0
          %v1935 = vrcp.pop %v1931
          %v1936 = vmul.f32 1.0, %v1935
          %v1937 = vrcp.pop %v1932
          %v1938 = vmul.f32 1.0, %v1937
          %v1939 = vrcp.pop %v1933
          %v1940 = vmul.f32 1.0, %v1939
          %v1941 = vrcp.pop %v1934
          %v1942 = vmul.f32 1.0, %v1941
          %v1943 = vtanh.pop %v1915
          %v1944 = vtanh.pop %v1916
          %v1945 = vtanh.pop %v1917
          %v1946 = vtanh.pop %v1918
          %v1948 = vrot.slane %v1846, 1
          %v1949 = vrot.slane %v1846, 2
          %v1950 = vrot.slane %v1846, 3
          %1951 = vrot.lane.b32.xlu0 %v1846, 32
          %v1952 = vpop.permute.xlu0 %1951
          %1953 = vrot.lane.b32.xlu0 %v1948, 32
          %v1954 = vpop.permute.xlu0 %1953
          %1955 = vrot.lane.b32.xlu0 %v1949, 32
          %v1956 = vpop.permute.xlu0 %1955
          %1957 = vrot.lane.b32.xlu0 %v1950, 32
          %v1958 = vpop.permute.xlu0 %1957
          %v1963 = vmul.f32 %v1936, %v1952
          %v1964 = vmul.f32 %v1938, %v1954
          %v1965 = vmul.f32 %v1940, %v1956
          %v1966 = vmul.f32 %v1942, %v1958
          %1971 = vrot.lane.b32.xlu0 %v1943, 64
          %v1972 = vpop.permute.xlu0 %1971
          %1973 = vrot.lane.b32.xlu0 %v1944, 64
          %v1974 = vpop.permute.xlu0 %1973
          %1975 = vrot.lane.b32.xlu0 %v1945, 64
          %v1976 = vpop.permute.xlu0 %1975
          %1977 = vrot.lane.b32.xlu0 %v1946, 64
          %v1978 = vpop.permute.xlu0 %1977
          %v1983 = vmul.f32 %v1936, %v1972
          %v1984 = vmul.f32 %v1938, %v1974
          %v1985 = vmul.f32 %v1940, %v1976
          %v1986 = vmul.f32 %v1942, %v1978
          %1991 = vrot.lane.b32.xlu0 %v1983, 32
          %v1992 = vpop.permute.xlu0 %1991
          %1993 = vrot.lane.b32.xlu0 %v1984, 32
          %v1994 = vpop.permute.xlu0 %1993
          %1995 = vrot.lane.b32.xlu0 %v1985, 32
          %v1996 = vpop.permute.xlu0 %1995
          %1997 = vrot.lane.b32.xlu0 %v1986, 32
          %v1998 = vpop.permute.xlu0 %1997
          %v2003 = vadd.f32 %v1963, %v1992
          %v2004 = vadd.f32 %v1964, %v1994
          %v2005 = vadd.f32 %v1965, %v1996
          %v2006 = vadd.f32 %v1966, %v1998
          %v2007 = vtanh.pop %v2003
          %v2008 = vtanh.pop %v2004
          %v2009 = vtanh.pop %v2005
          %v2010 = vtanh.pop %v2006
          %2015 = vrot.lane.b32.xlu0 %v2007, 64
          %v2016 = vpop.permute.xlu0 %2015
          %2017 = vrot.lane.b32.xlu0 %v2008, 64
          %v2018 = vpop.permute.xlu0 %2017
          %2019 = vrot.lane.b32.xlu0 %v2009, 64
          %v2020 = vpop.permute.xlu0 %2019
          %2021 = vrot.lane.b32.xlu0 %v2010, 64
          %v2022 = vpop.permute.xlu0 %2021
          %v2027 = vmul.f32 %v1936, %v2016
          %v2028 = vmul.f32 %v1938, %v2018
          %v2029 = vmul.f32 %v1940, %v2020
          %v2030 = vmul.f32 %v1942, %v2022
          %vm2031 = vcmp.gt.s32.totalorder %v1844, 0
          %v2032 = vsel %vm2031, 1, 0
          %2033 = vset.pattern.permute.xlu0 0
          %2034 = vperm.xlu0 %2033, %v2032
          %v2035 = vpop.permute.xlu0 %2034
          %vm2036 = vcmp.eq.s32.totalorder %v2035, 1
          %v2041 = vrot.slane %v2028, 7
          %vm2042 = vcmask 1041409
          %v2043 = vsel %vm2042, %v2041, %v2027
          %v2044 = vrot.slane %v2029, 6
          %vm2045 = vcmask 1042434
          %v2046 = vsel %vm2045, %v2044, %v2043
          %v2047 = vrot.slane %v2030, 5
          %vm2048 = vcmask 1043459
          %v2049 = vsel %vm2048, %v2047, %v2046
          %2050 = vrot.lane.b32.xlu0 %v2049, 32
          %v2051 = vpop.permute.xlu0 %2050
          %v2053 = vsel %vm2036, %v2051, %v1845
          %v2058 = vrot.slane %v2004, 7
          %v2059 = vsel %vm2042, %v2058, %v2003
          %v2060 = vrot.slane %v2005, 6
          %v2061 = vsel %vm2045, %v2060, %v2059
          %v2062 = vrot.slane %v2006, 5
          %v2063 = vsel %vm2048, %v2062, %v2061
          %2064 = vrot.lane.b32.xlu0 %v2063, 96
          %v2065 = vpop.permute.xlu0 %2064
          %v2067 = vsel %vm2036, %v2065, %v1846
          %v2068 = vpack.c.bf16 %v2053, %v2053
          %v2070 = vsel %vm1166, %v2068, 0
          %2072 = vmatprep.subr.bf16.mxu0 0
          %2073 = vmatpush1.bf16.msra.mxu0 0
          %2074 = vmatprep.subr.bf16.mxu0 0
          %2075 = vmatpush1.bf16.msra.mxu0 0
          %2076 = vmatprep.subr.bf16.mxu0 0
          %2077 = vmatpush1.bf16.msra.mxu0 0
          %2078 = vmatprep.subr.bf16.mxu0 0
          %2079 = vmatpush1.bf16.msra.mxu0 0
          %2080 = vmatprep.subr.bf16.mxu0 0
          %2081 = vmatpush1.bf16.msra.mxu0 0
          %2082 = vmatprep.subr.bf16.mxu0 0
          %2083 = vmatpush1.bf16.msra.mxu0 0
          %2084 = vmatprep.subr.bf16.mxu0 0
          %2085 = vmatpush1.bf16.msra.mxu0 %v1861
          %2086 = vmatprep.subr.bf16.mxu0 0
          %2087 = vmatpush1.bf16.msra.mxu0 %v1860
          %2088 = vmatprep.subr.bf16.mxu0 0
          %2089 = vmatpush2.bf16.msra.mxu0 0
          %2090 = vmatprep.subr.bf16.mxu0 0
          %2091 = vmatpush2.bf16.msra.mxu0 0
          %2092 = vmatprep.subr.bf16.mxu0 0
          %2093 = vmatpush2.bf16.msra.mxu0 0
          %2094 = vmatprep.subr.bf16.mxu0 0
          %2095 = vmatpush2.bf16.msra.mxu0 0
          %2096 = vmatprep.subr.bf16.mxu0 0
          %2097 = vmatpush2.bf16.msra.mxu0 0
          %2098 = vmatprep.subr.bf16.mxu0 0
          %2099 = vmatpush2.bf16.msra.mxu0 0
          %2100 = vmatprep.subr.bf16.mxu0 0
          %2101 = vmatpush2.bf16.msra.mxu0 0
          %2102 = vmatprep.subr.bf16.mxu0 0
          %2103 = vmatpush2.bf16.msra.mxu0 0
          %2104 = vmatprep.mubr.bf16.mxu0 0
          %2105 = vmatmul.mubr.bf16.gmra.mxu0 %v2070
          %v2106 = vpop.f32.mrf.mxu0
          %v2107 = vadd.f32 0.0, %v2106
          %v2108 = vpop.f32.mrf.mxu0
          %v2109 = vpop.f32.mrf.mxu0
          %v2110 = vpop.f32.mrf.mxu0
          %2111 = vdwg.mxu0
          %v2113 = vrot.slane %v2107, 7
          %v2114 = vrot.slane %v2107, 1
          %v2115 = vrot.slane %v2107, 2
          %v2120 = vadd.f32 %v1780, %v2113
          %v2121 = vadd.f32 %v1796, %v2107
          %v2122 = vadd.f32 %v1812, %v2114
          %v2123 = vadd.f32 %v1828, %v2115
          %v2124 = vxor.u32 %v2120, 2147483648
          %v2125 = vxor.u32 %v2121, 2147483648
          %v2126 = vxor.u32 %v2122, 2147483648
          %v2127 = vxor.u32 %v2123, 2147483648
          %v2128 = vmul.f32 %v2124, 1.442695
          %v2129 = vpow.pop %v2128
          %v2130 = vmul.f32 %v2125, 1.442695
          %v2131 = vpow.pop %v2130
          %v2132 = vmul.f32 %v2126, 1.442695
          %v2133 = vpow.pop %v2132
          %v2134 = vmul.f32 %v2127, 1.442695
          %v2135 = vpow.pop %v2134
          %v2136 = vadd.f32 %v2129, 1.0
          %v2137 = vadd.f32 %v2131, 1.0
          %v2138 = vadd.f32 %v2133, 1.0
          %v2139 = vadd.f32 %v2135, 1.0
          %v2140 = vrcp.pop %v2136
          %v2141 = vmul.f32 1.0, %v2140
          %v2142 = vrcp.pop %v2137
          %v2143 = vmul.f32 1.0, %v2142
          %v2144 = vrcp.pop %v2138
          %v2145 = vmul.f32 1.0, %v2144
          %v2146 = vrcp.pop %v2139
          %v2147 = vmul.f32 1.0, %v2146
          %v2148 = vtanh.pop %v2120
          %v2149 = vtanh.pop %v2121
          %v2150 = vtanh.pop %v2122
          %v2151 = vtanh.pop %v2123
          %v2153 = vrot.slane %v2067, 7
          %v2154 = vrot.slane %v2067, 1
          %v2155 = vrot.slane %v2067, 2
          %2156 = vrot.lane.b32.xlu0 %v2153, 32
          %v2157 = vpop.permute.xlu0 %2156
          %2158 = vrot.lane.b32.xlu0 %v2067, 32
          %v2159 = vpop.permute.xlu0 %2158
          %2160 = vrot.lane.b32.xlu0 %v2154, 32
          %v2161 = vpop.permute.xlu0 %2160
          %2162 = vrot.lane.b32.xlu0 %v2155, 32
          %v2163 = vpop.permute.xlu0 %2162
          %v2168 = vmul.f32 %v2141, %v2157
          %v2169 = vmul.f32 %v2143, %v2159
          %v2170 = vmul.f32 %v2145, %v2161
          %v2171 = vmul.f32 %v2147, %v2163
          %2176 = vrot.lane.b32.xlu0 %v2148, 64
          %v2177 = vpop.permute.xlu0 %2176
          %2178 = vrot.lane.b32.xlu0 %v2149, 64
          %v2179 = vpop.permute.xlu0 %2178
          %2180 = vrot.lane.b32.xlu0 %v2150, 64
          %v2181 = vpop.permute.xlu0 %2180
          %2182 = vrot.lane.b32.xlu0 %v2151, 64
          %v2183 = vpop.permute.xlu0 %2182
          %v2188 = vmul.f32 %v2141, %v2177
          %v2189 = vmul.f32 %v2143, %v2179
          %v2190 = vmul.f32 %v2145, %v2181
          %v2191 = vmul.f32 %v2147, %v2183
          %2196 = vrot.lane.b32.xlu0 %v2188, 32
          %v2197 = vpop.permute.xlu0 %2196
          %2198 = vrot.lane.b32.xlu0 %v2189, 32
          %v2199 = vpop.permute.xlu0 %2198
          %2200 = vrot.lane.b32.xlu0 %v2190, 32
          %v2201 = vpop.permute.xlu0 %2200
          %2202 = vrot.lane.b32.xlu0 %v2191, 32
          %v2203 = vpop.permute.xlu0 %2202
          %v2208 = vadd.f32 %v2168, %v2197
          %v2209 = vadd.f32 %v2169, %v2199
          %v2210 = vadd.f32 %v2170, %v2201
          %v2211 = vadd.f32 %v2171, %v2203
          %v2212 = vtanh.pop %v2208
          %v2213 = vtanh.pop %v2209
          %v2214 = vtanh.pop %v2210
          %v2215 = vtanh.pop %v2211
          %2220 = vrot.lane.b32.xlu0 %v2212, 64
          %v2221 = vpop.permute.xlu0 %2220
          %2222 = vrot.lane.b32.xlu0 %v2213, 64
          %v2223 = vpop.permute.xlu0 %2222
          %2224 = vrot.lane.b32.xlu0 %v2214, 64
          %v2225 = vpop.permute.xlu0 %2224
          %2226 = vrot.lane.b32.xlu0 %v2215, 64
          %v2227 = vpop.permute.xlu0 %2226
          %v2232 = vmul.f32 %v2141, %v2221
          %v2233 = vmul.f32 %v2143, %v2223
          %v2234 = vmul.f32 %v2145, %v2225
          %v2235 = vmul.f32 %v2147, %v2227
          %vm2236 = vcmp.gt.s32.totalorder %v1844, 1
          %v2237 = vsel %vm2236, 1, 0
          %2238 = vset.pattern.permute.xlu0 0
          %2239 = vperm.xlu0 %2238, %v2237
          %v2240 = vpop.permute.xlu0 %2239
          %vm2241 = vcmp.eq.s32.totalorder %v2240, 1
          %v2246 = vrot.slane %v2232, 1
          %v2247 = vsel %vm2042, %v2233, %v2246
          %v2248 = vrot.slane %v2234, 7
          %v2249 = vsel %vm2045, %v2248, %v2247
          %v2250 = vrot.slane %v2235, 6
          %v2251 = vsel %vm2048, %v2250, %v2249
          %2252 = vrot.lane.b32.xlu0 %v2251, 32
          %v2253 = vpop.permute.xlu0 %2252
          %v2255 = vsel %vm2241, %v2253, %v2053
          %v2260 = vrot.slane %v2208, 1
          %v2261 = vsel %vm2042, %v2209, %v2260
          %v2262 = vrot.slane %v2210, 7
          %v2263 = vsel %vm2045, %v2262, %v2261
          %v2264 = vrot.slane %v2211, 6
          %v2265 = vsel %vm2048, %v2264, %v2263
          %2266 = vrot.lane.b32.xlu0 %v2265, 96
          %v2267 = vpop.permute.xlu0 %2266
          %v2269 = vsel %vm2241, %v2267, %v2067
          %v2270 = vpack.c.bf16 %v2255, %v2255
          %v2272 = vsel %vm1166, %v2270, 0
          %2274 = vmatprep.subr.bf16.mxu0 0
          %2275 = vmatpush1.bf16.msra.mxu0 0
          %2276 = vmatprep.subr.bf16.mxu0 0
          %2277 = vmatpush1.bf16.msra.mxu0 0
          %2278 = vmatprep.subr.bf16.mxu0 0
          %2279 = vmatpush1.bf16.msra.mxu0 0
          %2280 = vmatprep.subr.bf16.mxu0 0
          %2281 = vmatpush1.bf16.msra.mxu0 0
          %2282 = vmatprep.subr.bf16.mxu0 0
          %2283 = vmatpush1.bf16.msra.mxu0 0
          %2284 = vmatprep.subr.bf16.mxu0 0
          %2285 = vmatpush1.bf16.msra.mxu0 0
          %2286 = vmatprep.subr.bf16.mxu0 0
          %2287 = vmatpush1.bf16.msra.mxu0 %v1861
          %2288 = vmatprep.subr.bf16.mxu0 0
          %2289 = vmatpush1.bf16.msra.mxu0 %v1860
          %2290 = vmatprep.subr.bf16.mxu0 0
          %2291 = vmatpush2.bf16.msra.mxu0 0
          %2292 = vmatprep.subr.bf16.mxu0 0
          %2293 = vmatpush2.bf16.msra.mxu0 0
          %2294 = vmatprep.subr.bf16.mxu0 0
          %2295 = vmatpush2.bf16.msra.mxu0 0
          %2296 = vmatprep.subr.bf16.mxu0 0
          %2297 = vmatpush2.bf16.msra.mxu0 0
          %2298 = vmatprep.subr.bf16.mxu0 0
          %2299 = vmatpush2.bf16.msra.mxu0 0
          %2300 = vmatprep.subr.bf16.mxu0 0
          %2301 = vmatpush2.bf16.msra.mxu0 0
          %2302 = vmatprep.subr.bf16.mxu0 0
          %2303 = vmatpush2.bf16.msra.mxu0 0
          %2304 = vmatprep.subr.bf16.mxu0 0
          %2305 = vmatpush2.bf16.msra.mxu0 0
          %2306 = vmatprep.mubr.bf16.mxu0 0
          %2307 = vmatmul.mubr.bf16.gmra.mxu0 %v2272
          %v2308 = vpop.f32.mrf.mxu0
          %v2309 = vadd.f32 0.0, %v2308
          %v2310 = vpop.f32.mrf.mxu0
          %v2311 = vpop.f32.mrf.mxu0
          %v2312 = vpop.f32.mrf.mxu0
          %2313 = vdwg.mxu0
          %v2315 = vrot.slane %v2309, 6
          %v2316 = vrot.slane %v2309, 7
          %v2317 = vrot.slane %v2309, 1
          %v2322 = vadd.f32 %v1780, %v2315
          %v2323 = vadd.f32 %v1796, %v2316
          %v2324 = vadd.f32 %v1812, %v2309
          %v2325 = vadd.f32 %v1828, %v2317
          %v2326 = vxor.u32 %v2322, 2147483648
          %v2327 = vxor.u32 %v2323, 2147483648
          %v2328 = vxor.u32 %v2324, 2147483648
          %v2329 = vxor.u32 %v2325, 2147483648
          %v2330 = vmul.f32 %v2326, 1.442695
          %v2331 = vpow.pop %v2330
          %v2332 = vmul.f32 %v2327, 1.442695
          %v2333 = vpow.pop %v2332
          %v2334 = vmul.f32 %v2328, 1.442695
          %v2335 = vpow.pop %v2334
          %v2336 = vmul.f32 %v2329, 1.442695
          %v2337 = vpow.pop %v2336
          %v2338 = vadd.f32 %v2331, 1.0
          %v2339 = vadd.f32 %v2333, 1.0
          %v2340 = vadd.f32 %v2335, 1.0
          %v2341 = vadd.f32 %v2337, 1.0
          %v2342 = vrcp.pop %v2338
          %v2343 = vmul.f32 1.0, %v2342
          %v2344 = vrcp.pop %v2339
          %v2345 = vmul.f32 1.0, %v2344
          %v2346 = vrcp.pop %v2340
          %v2347 = vmul.f32 1.0, %v2346
          %v2348 = vrcp.pop %v2341
          %v2349 = vmul.f32 1.0, %v2348
          %v2350 = vtanh.pop %v2322
          %v2351 = vtanh.pop %v2323
          %v2352 = vtanh.pop %v2324
          %v2353 = vtanh.pop %v2325
          %v2355 = vrot.slane %v2269, 6
          %v2356 = vrot.slane %v2269, 7
          %v2357 = vrot.slane %v2269, 1
          %2358 = vrot.lane.b32.xlu0 %v2355, 32
          %v2359 = vpop.permute.xlu0 %2358
          %2360 = vrot.lane.b32.xlu0 %v2356, 32
          %v2361 = vpop.permute.xlu0 %2360
          %2362 = vrot.lane.b32.xlu0 %v2269, 32
          %v2363 = vpop.permute.xlu0 %2362
          %2364 = vrot.lane.b32.xlu0 %v2357, 32
          %v2365 = vpop.permute.xlu0 %2364
          %v2370 = vmul.f32 %v2343, %v2359
          %v2371 = vmul.f32 %v2345, %v2361
          %v2372 = vmul.f32 %v2347, %v2363
          %v2373 = vmul.f32 %v2349, %v2365
          %2378 = vrot.lane.b32.xlu0 %v2350, 64
          %v2379 = vpop.permute.xlu0 %2378
          %2380 = vrot.lane.b32.xlu0 %v2351, 64
          %v2381 = vpop.permute.xlu0 %2380
          %2382 = vrot.lane.b32.xlu0 %v2352, 64
          %v2383 = vpop.permute.xlu0 %2382
          %2384 = vrot.lane.b32.xlu0 %v2353, 64
          %v2385 = vpop.permute.xlu0 %2384
          %v2390 = vmul.f32 %v2343, %v2379
          %v2391 = vmul.f32 %v2345, %v2381
          %v2392 = vmul.f32 %v2347, %v2383
          %v2393 = vmul.f32 %v2349, %v2385
          %2398 = vrot.lane.b32.xlu0 %v2390, 32
          %v2399 = vpop.permute.xlu0 %2398
          %2400 = vrot.lane.b32.xlu0 %v2391, 32
          %v2401 = vpop.permute.xlu0 %2400
          %2402 = vrot.lane.b32.xlu0 %v2392, 32
          %v2403 = vpop.permute.xlu0 %2402
          %2404 = vrot.lane.b32.xlu0 %v2393, 32
          %v2405 = vpop.permute.xlu0 %2404
          %v2410 = vadd.f32 %v2370, %v2399
          %v2411 = vadd.f32 %v2371, %v2401
          %v2412 = vadd.f32 %v2372, %v2403
          %v2413 = vadd.f32 %v2373, %v2405
          %v2414 = vtanh.pop %v2410
          %v2415 = vtanh.pop %v2411
          %v2416 = vtanh.pop %v2412
          %v2417 = vtanh.pop %v2413
          %2422 = vrot.lane.b32.xlu0 %v2414, 64
          %v2423 = vpop.permute.xlu0 %2422
          %2424 = vrot.lane.b32.xlu0 %v2415, 64
          %v2425 = vpop.permute.xlu0 %2424
          %2426 = vrot.lane.b32.xlu0 %v2416, 64
          %v2427 = vpop.permute.xlu0 %2426
          %2428 = vrot.lane.b32.xlu0 %v2417, 64
          %v2429 = vpop.permute.xlu0 %2428
          %v2434 = vmul.f32 %v2343, %v2423
          %v2435 = vmul.f32 %v2345, %v2425
          %v2436 = vmul.f32 %v2347, %v2427
          %v2437 = vmul.f32 %v2349, %v2429
          %vm2438 = vcmp.gt.s32.totalorder %v1844, 2
          %v2439 = vsel %vm2438, 1, 0
          %2440 = vset.pattern.permute.xlu0 0
          %2441 = vperm.xlu0 %2440, %v2439
          %v2442 = vpop.permute.xlu0 %2441
          %vm2443 = vcmp.eq.s32.totalorder %v2442, 1
          %v2448 = vrot.slane %v2434, 2
          %v2449 = vrot.slane %v2435, 1
          %v2450 = vsel %vm2042, %v2449, %v2448
          %v2451 = vsel %vm2045, %v2436, %v2450
          %v2452 = vrot.slane %v2437, 7
          %v2453 = vsel %vm2048, %v2452, %v2451
          %2454 = vrot.lane.b32.xlu0 %v2453, 32
          %v2455 = vpop.permute.xlu0 %2454
          %v2457 = vsel %vm2443, %v2455, %v2255
          %v2462 = vrot.slane %v2410, 2
          %v2463 = vrot.slane %v2411, 1
          %v2464 = vsel %vm2042, %v2463, %v2462
          %v2465 = vsel %vm2045, %v2412, %v2464
          %v2466 = vrot.slane %v2413, 7
          %v2467 = vsel %vm2048, %v2466, %v2465
          %2468 = vrot.lane.b32.xlu0 %v2467, 96
          %v2469 = vpop.permute.xlu0 %2468
          %v2471 = vsel %vm2443, %v2469, %v2269
          %v2472 = vpack.c.bf16 %v2457, %v2457
          %v2474 = vsel %vm1166, %v2472, 0
          %2476 = vmatprep.subr.bf16.mxu0 0
          %2477 = vmatpush1.bf16.msra.mxu0 0
          %2478 = vmatprep.subr.bf16.mxu0 0
          %2479 = vmatpush1.bf16.msra.mxu0 0
          %2480 = vmatprep.subr.bf16.mxu0 0
          %2481 = vmatpush1.bf16.msra.mxu0 0
          %2482 = vmatprep.subr.bf16.mxu0 0
          %2483 = vmatpush1.bf16.msra.mxu0 0
          %2484 = vmatprep.subr.bf16.mxu0 0
          %2485 = vmatpush1.bf16.msra.mxu0 0
          %2486 = vmatprep.subr.bf16.mxu0 0
          %2487 = vmatpush1.bf16.msra.mxu0 0
          %2488 = vmatprep.subr.bf16.mxu0 0
          %2489 = vmatpush1.bf16.msra.mxu0 %v1861
          %2490 = vmatprep.subr.bf16.mxu0 0
          %2491 = vmatpush1.bf16.msra.mxu0 %v1860
          %2492 = vmatprep.subr.bf16.mxu0 0
          %2493 = vmatpush2.bf16.msra.mxu0 0
          %2494 = vmatprep.subr.bf16.mxu0 0
          %2495 = vmatpush2.bf16.msra.mxu0 0
          %2496 = vmatprep.subr.bf16.mxu0 0
          %2497 = vmatpush2.bf16.msra.mxu0 0
          %2498 = vmatprep.subr.bf16.mxu0 0
          %2499 = vmatpush2.bf16.msra.mxu0 0
          %2500 = vmatprep.subr.bf16.mxu0 0
          %2501 = vmatpush2.bf16.msra.mxu0 0
          %2502 = vmatprep.subr.bf16.mxu0 0
          %2503 = vmatpush2.bf16.msra.mxu0 0
          %2504 = vmatprep.subr.bf16.mxu0 0
          %2505 = vmatpush2.bf16.msra.mxu0 0
          %2506 = vmatprep.subr.bf16.mxu0 0
          %2507 = vmatpush2.bf16.msra.mxu0 0
          %2508 = vmatprep.mubr.bf16.mxu0 0
          %2509 = vmatmul.mubr.bf16.gmra.mxu0 %v2474
          %v2510 = vpop.f32.mrf.mxu0
          %v2511 = vadd.f32 0.0, %v2510
          %v2512 = vpop.f32.mrf.mxu0
          %v2513 = vpop.f32.mrf.mxu0
          %v2514 = vpop.f32.mrf.mxu0
          %2515 = vdwg.mxu0
          %v2517 = vrot.slane %v2511, 5
          %v2518 = vrot.slane %v2511, 6
          %v2519 = vrot.slane %v2511, 7
          %v2524 = vadd.f32 %v1780, %v2517
          %v2525 = vadd.f32 %v1796, %v2518
          %v2526 = vadd.f32 %v1812, %v2519
          %v2527 = vadd.f32 %v1828, %v2511
          %v2528 = vxor.u32 %v2524, 2147483648
          %v2529 = vxor.u32 %v2525, 2147483648
          %v2530 = vxor.u32 %v2526, 2147483648
          %v2531 = vxor.u32 %v2527, 2147483648
          %v2532 = vmul.f32 %v2528, 1.442695
          %v2533 = vpow.pop %v2532
          %v2534 = vmul.f32 %v2529, 1.442695
          %v2535 = vpow.pop %v2534
          %v2536 = vmul.f32 %v2530, 1.442695
          %v2537 = vpow.pop %v2536
          %v2538 = vmul.f32 %v2531, 1.442695
          %v2539 = vpow.pop %v2538
          %v2540 = vadd.f32 %v2533, 1.0
          %v2541 = vadd.f32 %v2535, 1.0
          %v2542 = vadd.f32 %v2537, 1.0
          %v2543 = vadd.f32 %v2539, 1.0
          %v2544 = vrcp.pop %v2540
          %v2545 = vmul.f32 1.0, %v2544
          %v2546 = vrcp.pop %v2541
          %v2547 = vmul.f32 1.0, %v2546
          %v2548 = vrcp.pop %v2542
          %v2549 = vmul.f32 1.0, %v2548
          %v2550 = vrcp.pop %v2543
          %v2551 = vmul.f32 1.0, %v2550
          %v2552 = vtanh.pop %v2524
          %v2553 = vtanh.pop %v2525
          %v2554 = vtanh.pop %v2526
          %v2555 = vtanh.pop %v2527
          %v2557 = vrot.slane %v2471, 5
          %v2558 = vrot.slane %v2471, 6
          %v2559 = vrot.slane %v2471, 7
          %2560 = vrot.lane.b32.xlu0 %v2557, 32
          %v2561 = vpop.permute.xlu0 %2560
          %2562 = vrot.lane.b32.xlu0 %v2558, 32
          %v2563 = vpop.permute.xlu0 %2562
          %2564 = vrot.lane.b32.xlu0 %v2559, 32
          %v2565 = vpop.permute.xlu0 %2564
          %2566 = vrot.lane.b32.xlu0 %v2471, 32
          %v2567 = vpop.permute.xlu0 %2566
          %v2572 = vmul.f32 %v2545, %v2561
          %v2573 = vmul.f32 %v2547, %v2563
          %v2574 = vmul.f32 %v2549, %v2565
          %v2575 = vmul.f32 %v2551, %v2567
          %2580 = vrot.lane.b32.xlu0 %v2552, 64
          %v2581 = vpop.permute.xlu0 %2580
          %2582 = vrot.lane.b32.xlu0 %v2553, 64
          %v2583 = vpop.permute.xlu0 %2582
          %2584 = vrot.lane.b32.xlu0 %v2554, 64
          %v2585 = vpop.permute.xlu0 %2584
          %2586 = vrot.lane.b32.xlu0 %v2555, 64
          %v2587 = vpop.permute.xlu0 %2586
          %v2592 = vmul.f32 %v2545, %v2581
          %v2593 = vmul.f32 %v2547, %v2583
          %v2594 = vmul.f32 %v2549, %v2585
          %v2595 = vmul.f32 %v2551, %v2587
          %2600 = vrot.lane.b32.xlu0 %v2592, 32
          %v2601 = vpop.permute.xlu0 %2600
          %2602 = vrot.lane.b32.xlu0 %v2593, 32
          %v2603 = vpop.permute.xlu0 %2602
          %2604 = vrot.lane.b32.xlu0 %v2594, 32
          %v2605 = vpop.permute.xlu0 %2604
          %2606 = vrot.lane.b32.xlu0 %v2595, 32
          %v2607 = vpop.permute.xlu0 %2606
          %v2612 = vadd.f32 %v2572, %v2601
          %v2613 = vadd.f32 %v2573, %v2603
          %v2614 = vadd.f32 %v2574, %v2605
          %v2615 = vadd.f32 %v2575, %v2607
          %v2616 = vtanh.pop %v2612
          %v2617 = vtanh.pop %v2613
          %v2618 = vtanh.pop %v2614
          %v2619 = vtanh.pop %v2615
          %2624 = vrot.lane.b32.xlu0 %v2616, 64
          %v2625 = vpop.permute.xlu0 %2624
          %2626 = vrot.lane.b32.xlu0 %v2617, 64
          %v2627 = vpop.permute.xlu0 %2626
          %2628 = vrot.lane.b32.xlu0 %v2618, 64
          %v2629 = vpop.permute.xlu0 %2628
          %2630 = vrot.lane.b32.xlu0 %v2619, 64
          %v2631 = vpop.permute.xlu0 %2630
          %v2636 = vmul.f32 %v2545, %v2625
          %v2637 = vmul.f32 %v2547, %v2627
          %v2638 = vmul.f32 %v2549, %v2629
          %v2639 = vmul.f32 %v2551, %v2631
          %vm2640 = vcmp.gt.s32.totalorder %v1844, 3
          %v2641 = vsel %vm2640, 1, 0
          %2642 = vset.pattern.permute.xlu0 0
          %2643 = vperm.xlu0 %2642, %v2641
          %v2644 = vpop.permute.xlu0 %2643
          %vm2645 = vcmp.eq.s32.totalorder %v2644, 1
          %v2650 = vrot.slane %v2636, 3
          %v2651 = vrot.slane %v2637, 2
          %v2652 = vsel %vm2042, %v2651, %v2650
          %v2653 = vrot.slane %v2638, 1
          %v2654 = vsel %vm2045, %v2653, %v2652
          %v2655 = vsel %vm2048, %v2639, %v2654
          %2656 = vrot.lane.b32.xlu0 %v2655, 32
          %v2657 = vpop.permute.xlu0 %2656
          %v2659 = vsel %vm2645, %v2657, %v2457
          %v2664 = vrot.slane %v2612, 3
          %v2665 = vrot.slane %v2613, 2
          %v2666 = vsel %vm2042, %v2665, %v2664
          %v2667 = vrot.slane %v2614, 1
          %v2668 = vsel %vm2045, %v2667, %v2666
          %v2669 = vsel %vm2048, %v2615, %v2668
          %2670 = vrot.lane.b32.xlu0 %v2669, 96
          %v2671 = vpop.permute.xlu0 %2670
          %v2673 = vsel %vm2645, %v2671, %v2471
          %v2674 = vpack.c.bf16 %v2659, %v2659
          %v2676 = vsel %vm1166, %v2674, 0
          %2678 = vmatprep.subr.bf16.mxu0 0
          %2679 = vmatpush1.bf16.msra.mxu0 0
          %2680 = vmatprep.subr.bf16.mxu0 0
          %2681 = vmatpush1.bf16.msra.mxu0 0
          %2682 = vmatprep.subr.bf16.mxu0 0
          %2683 = vmatpush1.bf16.msra.mxu0 0
          %2684 = vmatprep.subr.bf16.mxu0 0
          %2685 = vmatpush1.bf16.msra.mxu0 0
          %2686 = vmatprep.subr.bf16.mxu0 0
          %2687 = vmatpush1.bf16.msra.mxu0 0
          %2688 = vmatprep.subr.bf16.mxu0 0
          %2689 = vmatpush1.bf16.msra.mxu0 0
          %2690 = vmatprep.subr.bf16.mxu0 0
          %2691 = vmatpush1.bf16.msra.mxu0 %v1861
          %2692 = vmatprep.subr.bf16.mxu0 0
          %2693 = vmatpush1.bf16.msra.mxu0 %v1860
          %2694 = vmatprep.subr.bf16.mxu0 0
          %2695 = vmatpush2.bf16.msra.mxu0 0
          %2696 = vmatprep.subr.bf16.mxu0 0
          %2697 = vmatpush2.bf16.msra.mxu0 0
          %2698 = vmatprep.subr.bf16.mxu0 0
          %2699 = vmatpush2.bf16.msra.mxu0 0
          %2700 = vmatprep.subr.bf16.mxu0 0
          %2701 = vmatpush2.bf16.msra.mxu0 0
          %2702 = vmatprep.subr.bf16.mxu0 0
          %2703 = vmatpush2.bf16.msra.mxu0 0
          %2704 = vmatprep.subr.bf16.mxu0 0
          %2705 = vmatpush2.bf16.msra.mxu0 0
          %2706 = vmatprep.subr.bf16.mxu0 0
          %2707 = vmatpush2.bf16.msra.mxu0 0
          %2708 = vmatprep.subr.bf16.mxu0 0
          %2709 = vmatpush2.bf16.msra.mxu0 0
          %2710 = vmatprep.mubr.bf16.mxu0 0
          %2711 = vmatmul.mubr.bf16.gmra.mxu0 %v2676
          %v2712 = vpop.f32.mrf.mxu0
          %v2713 = vadd.f32 0.0, %v2712
          %v2714 = vpop.f32.mrf.mxu0
          %v2715 = vpop.f32.mrf.mxu0
          %v2716 = vpop.f32.mrf.mxu0
          %2717 = vdwg.mxu0
          %v2719 = vrot.slane %v2713, 4
          %v2720 = vrot.slane %v2713, 5
          %v2721 = vrot.slane %v2713, 6
          %v2722 = vrot.slane %v2713, 7
          %v2727 = vadd.f32 %v1780, %v2719
          %v2728 = vadd.f32 %v1796, %v2720
          %v2729 = vadd.f32 %v1812, %v2721
          %v2730 = vadd.f32 %v1828, %v2722
          %v2731 = vxor.u32 %v2727, 2147483648
          %v2732 = vxor.u32 %v2728, 2147483648
          %v2733 = vxor.u32 %v2729, 2147483648
          %v2734 = vxor.u32 %v2730, 2147483648
          %v2735 = vmul.f32 %v2731, 1.442695
          %v2736 = vpow.pop %v2735
          %v2737 = vmul.f32 %v2732, 1.442695
          %v2738 = vpow.pop %v2737
          %v2739 = vmul.f32 %v2733, 1.442695
          %v2740 = vpow.pop %v2739
          %v2741 = vmul.f32 %v2734, 1.442695
          %v2742 = vpow.pop %v2741
          %v2743 = vadd.f32 %v2736, 1.0
          %v2744 = vadd.f32 %v2738, 1.0
          %v2745 = vadd.f32 %v2740, 1.0
          %v2746 = vadd.f32 %v2742, 1.0
          %v2747 = vrcp.pop %v2743
          %v2748 = vmul.f32 1.0, %v2747
          %v2749 = vrcp.pop %v2744
          %v2750 = vmul.f32 1.0, %v2749
          %v2751 = vrcp.pop %v2745
          %v2752 = vmul.f32 1.0, %v2751
          %v2753 = vrcp.pop %v2746
          %v2754 = vmul.f32 1.0, %v2753
          %v2755 = vtanh.pop %v2727
          %v2756 = vtanh.pop %v2728
          %v2757 = vtanh.pop %v2729
          %v2758 = vtanh.pop %v2730
          %v2760 = vrot.slane %v2673, 4
          %v2761 = vrot.slane %v2673, 5
          %v2762 = vrot.slane %v2673, 6
          %v2763 = vrot.slane %v2673, 7
          %2764 = vrot.lane.b32.xlu0 %v2760, 32
          %v2765 = vpop.permute.xlu0 %2764
          %2766 = vrot.lane.b32.xlu0 %v2761, 32
          %v2767 = vpop.permute.xlu0 %2766
          %2768 = vrot.lane.b32.xlu0 %v2762, 32
          %v2769 = vpop.permute.xlu0 %2768
          %2770 = vrot.lane.b32.xlu0 %v2763, 32
          %v2771 = vpop.permute.xlu0 %2770
          %v2776 = vmul.f32 %v2748, %v2765
          %v2777 = vmul.f32 %v2750, %v2767
          %v2778 = vmul.f32 %v2752, %v2769
          %v2779 = vmul.f32 %v2754, %v2771
          %2784 = vrot.lane.b32.xlu0 %v2755, 64
          %v2785 = vpop.permute.xlu0 %2784
          %2786 = vrot.lane.b32.xlu0 %v2756, 64
          %v2787 = vpop.permute.xlu0 %2786
          %2788 = vrot.lane.b32.xlu0 %v2757, 64
          %v2789 = vpop.permute.xlu0 %2788
          %2790 = vrot.lane.b32.xlu0 %v2758, 64
          %v2791 = vpop.permute.xlu0 %2790
          %v2796 = vmul.f32 %v2748, %v2785
          %v2797 = vmul.f32 %v2750, %v2787
          %v2798 = vmul.f32 %v2752, %v2789
          %v2799 = vmul.f32 %v2754, %v2791
          %2804 = vrot.lane.b32.xlu0 %v2796, 32
          %v2805 = vpop.permute.xlu0 %2804
          %2806 = vrot.lane.b32.xlu0 %v2797, 32
          %v2807 = vpop.permute.xlu0 %2806
          %2808 = vrot.lane.b32.xlu0 %v2798, 32
          %v2809 = vpop.permute.xlu0 %2808
          %2810 = vrot.lane.b32.xlu0 %v2799, 32
          %v2811 = vpop.permute.xlu0 %2810
          %v2816 = vadd.f32 %v2776, %v2805
          %v2817 = vadd.f32 %v2777, %v2807
          %v2818 = vadd.f32 %v2778, %v2809
          %v2819 = vadd.f32 %v2779, %v2811
          %v2820 = vtanh.pop %v2816
          %v2821 = vtanh.pop %v2817
          %v2822 = vtanh.pop %v2818
          %v2823 = vtanh.pop %v2819
          %2828 = vrot.lane.b32.xlu0 %v2820, 64
          %v2829 = vpop.permute.xlu0 %2828
          %2830 = vrot.lane.b32.xlu0 %v2821, 64
          %v2831 = vpop.permute.xlu0 %2830
          %2832 = vrot.lane.b32.xlu0 %v2822, 64
          %v2833 = vpop.permute.xlu0 %2832
          %2834 = vrot.lane.b32.xlu0 %v2823, 64
          %v2835 = vpop.permute.xlu0 %2834
          %v2840 = vmul.f32 %v2748, %v2829
          %v2841 = vmul.f32 %v2750, %v2831
          %v2842 = vmul.f32 %v2752, %v2833
          %v2843 = vmul.f32 %v2754, %v2835
          %vm2844 = vcmp.gt.s32.totalorder %v1844, 4
          %v2845 = vsel %vm2844, 1, 0
          %2846 = vset.pattern.permute.xlu0 0
          %2847 = vperm.xlu0 %2846, %v2845
          %v2848 = vpop.permute.xlu0 %2847
          %vm2849 = vcmp.eq.s32.totalorder %v2848, 1
          %v2854 = vrot.slane %v2840, 4
          %v2855 = vrot.slane %v2841, 3
          %v2856 = vsel %vm2042, %v2855, %v2854
          %v2857 = vrot.slane %v2842, 2
          %v2858 = vsel %vm2045, %v2857, %v2856
          %v2859 = vrot.slane %v2843, 1
          %v2860 = vsel %vm2048, %v2859, %v2858
          %2861 = vrot.lane.b32.xlu0 %v2860, 32
          %v2862 = vpop.permute.xlu0 %2861
          %v2864 = vsel %vm2849, %v2862, %v2659
          %v2869 = vrot.slane %v2816, 4
          %v2870 = vrot.slane %v2817, 3
          %v2871 = vsel %vm2042, %v2870, %v2869
          %v2872 = vrot.slane %v2818, 2
          %v2873 = vsel %vm2045, %v2872, %v2871
          %v2874 = vrot.slane %v2819, 1
          %v2875 = vsel %vm2048, %v2874, %v2873
          %2876 = vrot.lane.b32.xlu0 %v2875, 96
          %v2877 = vpop.permute.xlu0 %2876
          %v2879 = vsel %vm2849, %v2877, %v2673
          %v2880 = vpack.c.bf16 %v2864, %v2864
          %v2882 = vsel %vm1166, %v2880, 0
          %2884 = vmatprep.subr.bf16.mxu0 0
          %2885 = vmatpush1.bf16.msra.mxu0 0
          %2886 = vmatprep.subr.bf16.mxu0 0
          %2887 = vmatpush1.bf16.msra.mxu0 0
          %2888 = vmatprep.subr.bf16.mxu0 0
          %2889 = vmatpush1.bf16.msra.mxu0 0
          %2890 = vmatprep.subr.bf16.mxu0 0
          %2891 = vmatpush1.bf16.msra.mxu0 0
          %2892 = vmatprep.subr.bf16.mxu0 0
          %2893 = vmatpush1.bf16.msra.mxu0 0
          %2894 = vmatprep.subr.bf16.mxu0 0
          %2895 = vmatpush1.bf16.msra.mxu0 0
          %2896 = vmatprep.subr.bf16.mxu0 0
          %2897 = vmatpush1.bf16.msra.mxu0 %v1861
          %2898 = vmatprep.subr.bf16.mxu0 0
          %2899 = vmatpush1.bf16.msra.mxu0 %v1860
          %2900 = vmatprep.subr.bf16.mxu0 0
          %2901 = vmatpush2.bf16.msra.mxu0 0
          %2902 = vmatprep.subr.bf16.mxu0 0
          %2903 = vmatpush2.bf16.msra.mxu0 0
          %2904 = vmatprep.subr.bf16.mxu0 0
          %2905 = vmatpush2.bf16.msra.mxu0 0
          %2906 = vmatprep.subr.bf16.mxu0 0
          %2907 = vmatpush2.bf16.msra.mxu0 0
          %2908 = vmatprep.subr.bf16.mxu0 0
          %2909 = vmatpush2.bf16.msra.mxu0 0
          %2910 = vmatprep.subr.bf16.mxu0 0
          %2911 = vmatpush2.bf16.msra.mxu0 0
          %2912 = vmatprep.subr.bf16.mxu0 0
          %2913 = vmatpush2.bf16.msra.mxu0 0
          %2914 = vmatprep.subr.bf16.mxu0 0
          %2915 = vmatpush2.bf16.msra.mxu0 0
          %2916 = vmatprep.mubr.bf16.mxu0 0
          %2917 = vmatmul.mubr.bf16.gmra.mxu0 %v2882
          %v2918 = vpop.f32.mrf.mxu0
          %v2919 = vadd.f32 0.0, %v2918
          %v2920 = vpop.f32.mrf.mxu0
          %v2921 = vpop.f32.mrf.mxu0
          %v2922 = vpop.f32.mrf.mxu0
          %2923 = vdwg.mxu0
          %v2925 = vrot.slane %v2919, 3
          %v2926 = vrot.slane %v2919, 4
          %v2927 = vrot.slane %v2919, 5
          %v2928 = vrot.slane %v2919, 6
          %v2933 = vadd.f32 %v1780, %v2925
          %v2934 = vadd.f32 %v1796, %v2926
          %v2935 = vadd.f32 %v1812, %v2927
          %v2936 = vadd.f32 %v1828, %v2928
          %v2937 = vxor.u32 %v2933, 2147483648
          %v2938 = vxor.u32 %v2934, 2147483648
          %v2939 = vxor.u32 %v2935, 2147483648
          %v2940 = vxor.u32 %v2936, 2147483648
          %v2941 = vmul.f32 %v2937, 1.442695
          %v2942 = vpow.pop %v2941
          %v2943 = vmul.f32 %v2938, 1.442695
          %v2944 = vpow.pop %v2943
          %v2945 = vmul.f32 %v2939, 1.442695
          %v2946 = vpow.pop %v2945
          %v2947 = vmul.f32 %v2940, 1.442695
          %v2948 = vpow.pop %v2947
          %v2949 = vadd.f32 %v2942, 1.0
          %v2950 = vadd.f32 %v2944, 1.0
          %v2951 = vadd.f32 %v2946, 1.0
          %v2952 = vadd.f32 %v2948, 1.0
          %v2953 = vrcp.pop %v2949
          %v2954 = vmul.f32 1.0, %v2953
          %v2955 = vrcp.pop %v2950
          %v2956 = vmul.f32 1.0, %v2955
          %v2957 = vrcp.pop %v2951
          %v2958 = vmul.f32 1.0, %v2957
          %v2959 = vrcp.pop %v2952
          %v2960 = vmul.f32 1.0, %v2959
          %v2961 = vtanh.pop %v2933
          %v2962 = vtanh.pop %v2934
          %v2963 = vtanh.pop %v2935
          %v2964 = vtanh.pop %v2936
          %v2966 = vrot.slane %v2879, 3
          %v2967 = vrot.slane %v2879, 4
          %v2968 = vrot.slane %v2879, 5
          %v2969 = vrot.slane %v2879, 6
          %2970 = vrot.lane.b32.xlu0 %v2966, 32
          %v2971 = vpop.permute.xlu0 %2970
          %2972 = vrot.lane.b32.xlu0 %v2967, 32
          %v2973 = vpop.permute.xlu0 %2972
          %2974 = vrot.lane.b32.xlu0 %v2968, 32
          %v2975 = vpop.permute.xlu0 %2974
          %2976 = vrot.lane.b32.xlu0 %v2969, 32
          %v2977 = vpop.permute.xlu0 %2976
          %v2982 = vmul.f32 %v2954, %v2971
          %v2983 = vmul.f32 %v2956, %v2973
          %v2984 = vmul.f32 %v2958, %v2975
          %v2985 = vmul.f32 %v2960, %v2977
          %2990 = vrot.lane.b32.xlu0 %v2961, 64
          %v2991 = vpop.permute.xlu0 %2990
          %2992 = vrot.lane.b32.xlu0 %v2962, 64
          %v2993 = vpop.permute.xlu0 %2992
          %2994 = vrot.lane.b32.xlu0 %v2963, 64
          %v2995 = vpop.permute.xlu0 %2994
          %2996 = vrot.lane.b32.xlu0 %v2964, 64
          %v2997 = vpop.permute.xlu0 %2996
          %v3002 = vmul.f32 %v2954, %v2991
          %v3003 = vmul.f32 %v2956, %v2993
          %v3004 = vmul.f32 %v2958, %v2995
          %v3005 = vmul.f32 %v2960, %v2997
          %3010 = vrot.lane.b32.xlu0 %v3002, 32
          %v3011 = vpop.permute.xlu0 %3010
          %3012 = vrot.lane.b32.xlu0 %v3003, 32
          %v3013 = vpop.permute.xlu0 %3012
          %3014 = vrot.lane.b32.xlu0 %v3004, 32
          %v3015 = vpop.permute.xlu0 %3014
          %3016 = vrot.lane.b32.xlu0 %v3005, 32
          %v3017 = vpop.permute.xlu0 %3016
          %v3022 = vadd.f32 %v2982, %v3011
          %v3023 = vadd.f32 %v2983, %v3013
          %v3024 = vadd.f32 %v2984, %v3015
          %v3025 = vadd.f32 %v2985, %v3017
          %v3026 = vtanh.pop %v3022
          %v3027 = vtanh.pop %v3023
          %v3028 = vtanh.pop %v3024
          %v3029 = vtanh.pop %v3025
          %3034 = vrot.lane.b32.xlu0 %v3026, 64
          %v3035 = vpop.permute.xlu0 %3034
          %3036 = vrot.lane.b32.xlu0 %v3027, 64
          %v3037 = vpop.permute.xlu0 %3036
          %3038 = vrot.lane.b32.xlu0 %v3028, 64
          %v3039 = vpop.permute.xlu0 %3038
          %3040 = vrot.lane.b32.xlu0 %v3029, 64
          %v3041 = vpop.permute.xlu0 %3040
          %v3046 = vmul.f32 %v2954, %v3035
          %v3047 = vmul.f32 %v2956, %v3037
          %v3048 = vmul.f32 %v2958, %v3039
          %v3049 = vmul.f32 %v2960, %v3041
          %vm3050 = vcmp.gt.s32.totalorder %v1844, 5
          %v3051 = vsel %vm3050, 1, 0
          %3052 = vset.pattern.permute.xlu0 0
          %3053 = vperm.xlu0 %3052, %v3051
          %v3054 = vpop.permute.xlu0 %3053
          %vm3055 = vcmp.eq.s32.totalorder %v3054, 1
          %v3060 = vrot.slane %v3046, 5
          %v3061 = vrot.slane %v3047, 4
          %v3062 = vsel %vm2042, %v3061, %v3060
          %v3063 = vrot.slane %v3048, 3
          %v3064 = vsel %vm2045, %v3063, %v3062
          %v3065 = vrot.slane %v3049, 2
          %v3066 = vsel %vm2048, %v3065, %v3064
          %3067 = vrot.lane.b32.xlu0 %v3066, 32
          %v3068 = vpop.permute.xlu0 %3067
          %v3070 = vsel %vm3055, %v3068, %v2864
          %v3075 = vrot.slane %v3022, 5
          %v3076 = vrot.slane %v3023, 4
          %v3077 = vsel %vm2042, %v3076, %v3075
          %v3078 = vrot.slane %v3024, 3
          %v3079 = vsel %vm2045, %v3078, %v3077
          %v3080 = vrot.slane %v3025, 2
          %v3081 = vsel %vm2048, %v3080, %v3079
          %3082 = vrot.lane.b32.xlu0 %v3081, 96
          %v3083 = vpop.permute.xlu0 %3082
          %v3085 = vsel %vm3055, %v3083, %v2879
          %v3086 = vpack.c.bf16 %v3070, %v3070
          %v3088 = vsel %vm1166, %v3086, 0
          %3090 = vmatprep.subr.bf16.mxu0 0
          %3091 = vmatpush1.bf16.msra.mxu0 0
          %3092 = vmatprep.subr.bf16.mxu0 0
          %3093 = vmatpush1.bf16.msra.mxu0 0
          %3094 = vmatprep.subr.bf16.mxu0 0
          %3095 = vmatpush1.bf16.msra.mxu0 0
          %3096 = vmatprep.subr.bf16.mxu0 0
          %3097 = vmatpush1.bf16.msra.mxu0 0
          %3098 = vmatprep.subr.bf16.mxu0 0
          %3099 = vmatpush1.bf16.msra.mxu0 0
          %3100 = vmatprep.subr.bf16.mxu0 0
          %3101 = vmatpush1.bf16.msra.mxu0 0
          %3102 = vmatprep.subr.bf16.mxu0 0
          %3103 = vmatpush1.bf16.msra.mxu0 %v1861
          %3104 = vmatprep.subr.bf16.mxu0 0
          %3105 = vmatpush1.bf16.msra.mxu0 %v1860
          %3106 = vmatprep.subr.bf16.mxu0 0
          %3107 = vmatpush2.bf16.msra.mxu0 0
          %3108 = vmatprep.subr.bf16.mxu0 0
          %3109 = vmatpush2.bf16.msra.mxu0 0
          %3110 = vmatprep.subr.bf16.mxu0 0
          %3111 = vmatpush2.bf16.msra.mxu0 0
          %3112 = vmatprep.subr.bf16.mxu0 0
          %3113 = vmatpush2.bf16.msra.mxu0 0
          %3114 = vmatprep.subr.bf16.mxu0 0
          %3115 = vmatpush2.bf16.msra.mxu0 0
          %3116 = vmatprep.subr.bf16.mxu0 0
          %3117 = vmatpush2.bf16.msra.mxu0 0
          %3118 = vmatprep.subr.bf16.mxu0 0
          %3119 = vmatpush2.bf16.msra.mxu0 0
          %3120 = vmatprep.subr.bf16.mxu0 0
          %3121 = vmatpush2.bf16.msra.mxu0 0
          %3122 = vmatprep.mubr.bf16.mxu0 0
          %3123 = vmatmul.mubr.bf16.gmra.mxu0 %v3088
          %v3124 = vpop.f32.mrf.mxu0
          %v3125 = vadd.f32 0.0, %v3124
          %v3126 = vpop.f32.mrf.mxu0
          %v3127 = vpop.f32.mrf.mxu0
          %v3128 = vpop.f32.mrf.mxu0
          %3129 = vdwg.mxu0
          %v3131 = vrot.slane %v3125, 2
          %v3132 = vrot.slane %v3125, 3
          %v3133 = vrot.slane %v3125, 4
          %v3134 = vrot.slane %v3125, 5
          %v3139 = vadd.f32 %v1780, %v3131
          %v3140 = vadd.f32 %v1796, %v3132
          %v3141 = vadd.f32 %v1812, %v3133
          %v3142 = vadd.f32 %v1828, %v3134
          %v3143 = vxor.u32 %v3139, 2147483648
          %v3144 = vxor.u32 %v3140, 2147483648
          %v3145 = vxor.u32 %v3141, 2147483648
          %v3146 = vxor.u32 %v3142, 2147483648
          %v3147 = vmul.f32 %v3143, 1.442695
          %v3148 = vpow.pop %v3147
          %v3149 = vmul.f32 %v3144, 1.442695
          %v3150 = vpow.pop %v3149
          %v3151 = vmul.f32 %v3145, 1.442695
          %v3152 = vpow.pop %v3151
          %v3153 = vmul.f32 %v3146, 1.442695
          %v3154 = vpow.pop %v3153
          %v3155 = vadd.f32 %v3148, 1.0
          %v3156 = vadd.f32 %v3150, 1.0
          %v3157 = vadd.f32 %v3152, 1.0
          %v3158 = vadd.f32 %v3154, 1.0
          %v3159 = vrcp.pop %v3155
          %v3160 = vmul.f32 1.0, %v3159
          %v3161 = vrcp.pop %v3156
          %v3162 = vmul.f32 1.0, %v3161
          %v3163 = vrcp.pop %v3157
          %v3164 = vmul.f32 1.0, %v3163
          %v3165 = vrcp.pop %v3158
          %v3166 = vmul.f32 1.0, %v3165
          %v3167 = vtanh.pop %v3139
          %v3168 = vtanh.pop %v3140
          %v3169 = vtanh.pop %v3141
          %v3170 = vtanh.pop %v3142
          %v3172 = vrot.slane %v3085, 2
          %v3173 = vrot.slane %v3085, 3
          %v3174 = vrot.slane %v3085, 4
          %v3175 = vrot.slane %v3085, 5
          %3176 = vrot.lane.b32.xlu0 %v3172, 32
          %v3177 = vpop.permute.xlu0 %3176
          %3178 = vrot.lane.b32.xlu0 %v3173, 32
          %v3179 = vpop.permute.xlu0 %3178
          %3180 = vrot.lane.b32.xlu0 %v3174, 32
          %v3181 = vpop.permute.xlu0 %3180
          %3182 = vrot.lane.b32.xlu0 %v3175, 32
          %v3183 = vpop.permute.xlu0 %3182
          %v3188 = vmul.f32 %v3160, %v3177
          %v3189 = vmul.f32 %v3162, %v3179
          %v3190 = vmul.f32 %v3164, %v3181
          %v3191 = vmul.f32 %v3166, %v3183
          %3196 = vrot.lane.b32.xlu0 %v3167, 64
          %v3197 = vpop.permute.xlu0 %3196
          %3198 = vrot.lane.b32.xlu0 %v3168, 64
          %v3199 = vpop.permute.xlu0 %3198
          %3200 = vrot.lane.b32.xlu0 %v3169, 64
          %v3201 = vpop.permute.xlu0 %3200
          %3202 = vrot.lane.b32.xlu0 %v3170, 64
          %v3203 = vpop.permute.xlu0 %3202
          %v3208 = vmul.f32 %v3160, %v3197
          %v3209 = vmul.f32 %v3162, %v3199
          %v3210 = vmul.f32 %v3164, %v3201
          %v3211 = vmul.f32 %v3166, %v3203
          %3216 = vrot.lane.b32.xlu0 %v3208, 32
          %v3217 = vpop.permute.xlu0 %3216
          %3218 = vrot.lane.b32.xlu0 %v3209, 32
          %v3219 = vpop.permute.xlu0 %3218
          %3220 = vrot.lane.b32.xlu0 %v3210, 32
          %v3221 = vpop.permute.xlu0 %3220
          %3222 = vrot.lane.b32.xlu0 %v3211, 32
          %v3223 = vpop.permute.xlu0 %3222
          %v3228 = vadd.f32 %v3188, %v3217
          %v3229 = vadd.f32 %v3189, %v3219
          %v3230 = vadd.f32 %v3190, %v3221
          %v3231 = vadd.f32 %v3191, %v3223
          %v3232 = vtanh.pop %v3228
          %v3233 = vtanh.pop %v3229
          %v3234 = vtanh.pop %v3230
          %v3235 = vtanh.pop %v3231
          %3240 = vrot.lane.b32.xlu0 %v3232, 64
          %v3241 = vpop.permute.xlu0 %3240
          %3242 = vrot.lane.b32.xlu0 %v3233, 64
          %v3243 = vpop.permute.xlu0 %3242
          %3244 = vrot.lane.b32.xlu0 %v3234, 64
          %v3245 = vpop.permute.xlu0 %3244
          %3246 = vrot.lane.b32.xlu0 %v3235, 64
          %v3247 = vpop.permute.xlu0 %3246
          %v3252 = vmul.f32 %v3160, %v3241
          %v3253 = vmul.f32 %v3162, %v3243
          %v3254 = vmul.f32 %v3164, %v3245
          %v3255 = vmul.f32 %v3166, %v3247
          %vm3256 = vcmp.gt.s32.totalorder %v1844, 6
          %v3257 = vsel %vm3256, 1, 0
          %3258 = vset.pattern.permute.xlu0 0
          %3259 = vperm.xlu0 %3258, %v3257
          %v3260 = vpop.permute.xlu0 %3259
          %vm3261 = vcmp.eq.s32.totalorder %v3260, 1
          %v3266 = vrot.slane %v3252, 6
          %v3267 = vrot.slane %v3253, 5
          %v3268 = vsel %vm2042, %v3267, %v3266
          %v3269 = vrot.slane %v3254, 4
          %v3270 = vsel %vm2045, %v3269, %v3268
          %v3271 = vrot.slane %v3255, 3
          %v3272 = vsel %vm2048, %v3271, %v3270
          %3273 = vrot.lane.b32.xlu0 %v3272, 32
          %v3274 = vpop.permute.xlu0 %3273
          %v3276 = vsel %vm3261, %v3274, %v3070
          %v3281 = vrot.slane %v3228, 6
          %v3282 = vrot.slane %v3229, 5
          %v3283 = vsel %vm2042, %v3282, %v3281
          %v3284 = vrot.slane %v3230, 4
          %v3285 = vsel %vm2045, %v3284, %v3283
          %v3286 = vrot.slane %v3231, 3
          %v3287 = vsel %vm2048, %v3286, %v3285
          %3288 = vrot.lane.b32.xlu0 %v3287, 96
          %v3289 = vpop.permute.xlu0 %3288
          %v3291 = vsel %vm3261, %v3289, %v3085
          %v3292 = vpack.c.bf16 %v3276, %v3276
          %v3294 = vsel %vm1166, %v3292, 0
          %3296 = vmatprep.subr.bf16.mxu0 0
          %3297 = vmatpush1.bf16.msra.mxu0 0
          %3298 = vmatprep.subr.bf16.mxu0 0
          %3299 = vmatpush1.bf16.msra.mxu0 0
          %3300 = vmatprep.subr.bf16.mxu0 0
          %3301 = vmatpush1.bf16.msra.mxu0 0
          %3302 = vmatprep.subr.bf16.mxu0 0
          %3303 = vmatpush1.bf16.msra.mxu0 0
          %3304 = vmatprep.subr.bf16.mxu0 0
          %3305 = vmatpush1.bf16.msra.mxu0 0
          %3306 = vmatprep.subr.bf16.mxu0 0
          %3307 = vmatpush1.bf16.msra.mxu0 0
          %3308 = vmatprep.subr.bf16.mxu0 0
          %3309 = vmatpush1.bf16.msra.mxu0 %v1861
          %3310 = vmatprep.subr.bf16.mxu0 0
          %3311 = vmatpush1.bf16.msra.mxu0 %v1860
          %3312 = vmatprep.subr.bf16.mxu0 0
          %3313 = vmatpush2.bf16.msra.mxu0 0
          %3314 = vmatprep.subr.bf16.mxu0 0
          %3315 = vmatpush2.bf16.msra.mxu0 0
          %3316 = vmatprep.subr.bf16.mxu0 0
          %3317 = vmatpush2.bf16.msra.mxu0 0
          %3318 = vmatprep.subr.bf16.mxu0 0
          %3319 = vmatpush2.bf16.msra.mxu0 0
          %3320 = vmatprep.subr.bf16.mxu0 0
          %3321 = vmatpush2.bf16.msra.mxu0 0
          %3322 = vmatprep.subr.bf16.mxu0 0
          %3323 = vmatpush2.bf16.msra.mxu0 0
          %3324 = vmatprep.subr.bf16.mxu0 0
          %3325 = vmatpush2.bf16.msra.mxu0 0
          %3326 = vmatprep.subr.bf16.mxu0 0
          %3327 = vmatpush2.bf16.msra.mxu0 0
          %3328 = vmatprep.mubr.bf16.mxu0 0
          %3329 = vmatmul.mubr.bf16.gmra.mxu0 %v3294
          %v3330 = vpop.f32.mrf.mxu0
          %v3331 = vadd.f32 0.0, %v3330
          %v3332 = vpop.f32.mrf.mxu0
          %v3333 = vpop.f32.mrf.mxu0
          %v3334 = vpop.f32.mrf.mxu0
          %3335 = vdwg.mxu0
          %v3337 = vrot.slane %v3331, 1
          %v3338 = vrot.slane %v3331, 2
          %v3339 = vrot.slane %v3331, 3
          %v3340 = vrot.slane %v3331, 4
          %v3345 = vadd.f32 %v1780, %v3337
          %v3346 = vadd.f32 %v1796, %v3338
          %v3347 = vadd.f32 %v1812, %v3339
          %v3348 = vadd.f32 %v1828, %v3340
          %v3349 = vxor.u32 %v3345, 2147483648
          %v3350 = vxor.u32 %v3346, 2147483648
          %v3351 = vxor.u32 %v3347, 2147483648
          %v3352 = vxor.u32 %v3348, 2147483648
          %v3353 = vmul.f32 %v3349, 1.442695
          %v3354 = vpow.pop %v3353
          %v3355 = vmul.f32 %v3350, 1.442695
          %v3356 = vpow.pop %v3355
          %v3357 = vmul.f32 %v3351, 1.442695
          %v3358 = vpow.pop %v3357
          %v3359 = vmul.f32 %v3352, 1.442695
          %v3360 = vpow.pop %v3359
          %v3361 = vadd.f32 %v3354, 1.0
          %v3362 = vadd.f32 %v3356, 1.0
          %v3363 = vadd.f32 %v3358, 1.0
          %v3364 = vadd.f32 %v3360, 1.0
          %v3365 = vrcp.pop %v3361
          %v3366 = vmul.f32 1.0, %v3365
          %v3367 = vrcp.pop %v3362
          %v3368 = vmul.f32 1.0, %v3367
          %v3369 = vrcp.pop %v3363
          %v3370 = vmul.f32 1.0, %v3369
          %v3371 = vrcp.pop %v3364
          %v3372 = vmul.f32 1.0, %v3371
          %v3373 = vtanh.pop %v3345
          %v3374 = vtanh.pop %v3346
          %v3375 = vtanh.pop %v3347
          %v3376 = vtanh.pop %v3348
          %v3378 = vrot.slane %v3291, 1
          %v3379 = vrot.slane %v3291, 2
          %v3380 = vrot.slane %v3291, 3
          %v3381 = vrot.slane %v3291, 4
          %3382 = vrot.lane.b32.xlu0 %v3378, 32
          %v3383 = vpop.permute.xlu0 %3382
          %3384 = vrot.lane.b32.xlu0 %v3379, 32
          %v3385 = vpop.permute.xlu0 %3384
          %3386 = vrot.lane.b32.xlu0 %v3380, 32
          %v3387 = vpop.permute.xlu0 %3386
          %3388 = vrot.lane.b32.xlu0 %v3381, 32
          %v3389 = vpop.permute.xlu0 %3388
          %v3394 = vmul.f32 %v3366, %v3383
          %v3395 = vmul.f32 %v3368, %v3385
          %v3396 = vmul.f32 %v3370, %v3387
          %v3397 = vmul.f32 %v3372, %v3389
          %3402 = vrot.lane.b32.xlu0 %v3373, 64
          %v3403 = vpop.permute.xlu0 %3402
          %3404 = vrot.lane.b32.xlu0 %v3374, 64
          %v3405 = vpop.permute.xlu0 %3404
          %3406 = vrot.lane.b32.xlu0 %v3375, 64
          %v3407 = vpop.permute.xlu0 %3406
          %3408 = vrot.lane.b32.xlu0 %v3376, 64
          %v3409 = vpop.permute.xlu0 %3408
          %v3414 = vmul.f32 %v3366, %v3403
          %v3415 = vmul.f32 %v3368, %v3405
          %v3416 = vmul.f32 %v3370, %v3407
          %v3417 = vmul.f32 %v3372, %v3409
          %3422 = vrot.lane.b32.xlu0 %v3414, 32
          %v3423 = vpop.permute.xlu0 %3422
          %3424 = vrot.lane.b32.xlu0 %v3415, 32
          %v3425 = vpop.permute.xlu0 %3424
          %3426 = vrot.lane.b32.xlu0 %v3416, 32
          %v3427 = vpop.permute.xlu0 %3426
          %3428 = vrot.lane.b32.xlu0 %v3417, 32
          %v3429 = vpop.permute.xlu0 %3428
          %v3434 = vadd.f32 %v3394, %v3423
          %v3435 = vadd.f32 %v3395, %v3425
          %v3436 = vadd.f32 %v3396, %v3427
          %v3437 = vadd.f32 %v3397, %v3429
          %v3438 = vtanh.pop %v3434
          %v3439 = vtanh.pop %v3435
          %v3440 = vtanh.pop %v3436
          %v3441 = vtanh.pop %v3437
          %3446 = vrot.lane.b32.xlu0 %v3438, 64
          %v3447 = vpop.permute.xlu0 %3446
          %3448 = vrot.lane.b32.xlu0 %v3439, 64
          %v3449 = vpop.permute.xlu0 %3448
          %3450 = vrot.lane.b32.xlu0 %v3440, 64
          %v3451 = vpop.permute.xlu0 %3450
          %3452 = vrot.lane.b32.xlu0 %v3441, 64
          %v3453 = vpop.permute.xlu0 %3452
          %v3458 = vmul.f32 %v3366, %v3447
          %v3459 = vmul.f32 %v3368, %v3449
          %v3460 = vmul.f32 %v3370, %v3451
          %v3461 = vmul.f32 %v3372, %v3453
          %vm3462 = vcmp.gt.s32.totalorder %v1844, 7
          %v3463 = vsel %vm3462, 1, 0
          %3464 = vset.pattern.permute.xlu0 0
          %3465 = vperm.xlu0 %3464, %v3463
          %v3466 = vpop.permute.xlu0 %3465
          %vm3467 = vcmp.eq.s32.totalorder %v3466, 1
          %v3472 = vrot.slane %v3458, 7
          %v3473 = vrot.slane %v3459, 6
          %v3474 = vsel %vm2042, %v3473, %v3472
          %v3475 = vrot.slane %v3460, 5
          %v3476 = vsel %vm2045, %v3475, %v3474
          %v3477 = vrot.slane %v3461, 4
          %v3478 = vsel %vm2048, %v3477, %v3476
          %3479 = vrot.lane.b32.xlu0 %v3478, 32
          %v3480 = vpop.permute.xlu0 %3479
          %v3482 = vsel %vm3467, %v3480, %v3276
          %v3487 = vrot.slane %v3434, 7
          %v3488 = vrot.slane %v3435, 6
          %v3489 = vsel %vm2042, %v3488, %v3487
          %v3490 = vrot.slane %v3436, 5
          %v3491 = vsel %vm2045, %v3490, %v3489
          %v3492 = vrot.slane %v3437, 4
          %v3493 = vsel %vm2048, %v3492, %v3491
          %3494 = vrot.lane.b32.xlu0 %v3493, 96
          %v3495 = vpop.permute.xlu0 %3494
          %v3497 = vsel %vm3467, %v3495, %v3291
          %v3498 = vpack.c.bf16 %v3482, %v3482
          %v3500 = vsel %vm1166, %v3498, 0
          %3502 = vmatprep.subr.bf16.mxu0 0
          %3503 = vmatpush1.bf16.msra.mxu0 0
          %3504 = vmatprep.subr.bf16.mxu0 0
          %3505 = vmatpush1.bf16.msra.mxu0 0
          %3506 = vmatprep.subr.bf16.mxu0 0
          %3507 = vmatpush1.bf16.msra.mxu0 0
          %3508 = vmatprep.subr.bf16.mxu0 0
          %3509 = vmatpush1.bf16.msra.mxu0 0
          %3510 = vmatprep.subr.bf16.mxu0 0
          %3511 = vmatpush1.bf16.msra.mxu0 0
          %3512 = vmatprep.subr.bf16.mxu0 0
          %3513 = vmatpush1.bf16.msra.mxu0 0
          %3514 = vmatprep.subr.bf16.mxu0 0
          %3515 = vmatpush1.bf16.msra.mxu0 %v1861
          %3516 = vmatprep.subr.bf16.mxu0 0
          %3517 = vmatpush1.bf16.msra.mxu0 %v1860
          %3518 = vmatprep.subr.bf16.mxu0 0
          %3519 = vmatpush2.bf16.msra.mxu0 0
          %3520 = vmatprep.subr.bf16.mxu0 0
          %3521 = vmatpush2.bf16.msra.mxu0 0
          %3522 = vmatprep.subr.bf16.mxu0 0
          %3523 = vmatpush2.bf16.msra.mxu0 0
          %3524 = vmatprep.subr.bf16.mxu0 0
          %3525 = vmatpush2.bf16.msra.mxu0 0
          %3526 = vmatprep.subr.bf16.mxu0 0
          %3527 = vmatpush2.bf16.msra.mxu0 0
          %3528 = vmatprep.subr.bf16.mxu0 0
          %3529 = vmatpush2.bf16.msra.mxu0 0
          %3530 = vmatprep.subr.bf16.mxu0 0
          %3531 = vmatpush2.bf16.msra.mxu0 0
          %3532 = vmatprep.subr.bf16.mxu0 0
          %3533 = vmatpush2.bf16.msra.mxu0 0
          %3534 = vmatprep.mubr.bf16.mxu0 0
          %3535 = vmatmul.mubr.bf16.gmra.mxu0 %v3500
          %v3536 = vpop.f32.mrf.mxu0
          %v3537 = vadd.f32 0.0, %v3536
          %v3538 = vpop.f32.mrf.mxu0
          %v3539 = vpop.f32.mrf.mxu0
          %v3540 = vpop.f32.mrf.mxu0
          %3541 = vdwg.mxu0
          %v3543 = vrot.slane %v3537, 1
          %v3544 = vrot.slane %v3537, 2
          %v3545 = vrot.slane %v3537, 3
          %v3550 = vadd.f32 %v1783, %v3537
          %v3551 = vadd.f32 %v1799, %v3543
          %v3552 = vadd.f32 %v1815, %v3544
          %v3553 = vadd.f32 %v1831, %v3545
          %v3554 = vxor.u32 %v3550, 2147483648
          %v3555 = vxor.u32 %v3551, 2147483648
          %v3556 = vxor.u32 %v3552, 2147483648
          %v3557 = vxor.u32 %v3553, 2147483648
          %v3558 = vmul.f32 %v3554, 1.442695
          %v3559 = vpow.pop %v3558
          %v3560 = vmul.f32 %v3555, 1.442695
          %v3561 = vpow.pop %v3560
          %v3562 = vmul.f32 %v3556, 1.442695
          %v3563 = vpow.pop %v3562
          %v3564 = vmul.f32 %v3557, 1.442695
          %v3565 = vpow.pop %v3564
          %v3566 = vadd.f32 %v3559, 1.0
          %v3567 = vadd.f32 %v3561, 1.0
          %v3568 = vadd.f32 %v3563, 1.0
          %v3569 = vadd.f32 %v3565, 1.0
          %v3570 = vrcp.pop %v3566
          %v3571 = vmul.f32 1.0, %v3570
          %v3572 = vrcp.pop %v3567
          %v3573 = vmul.f32 1.0, %v3572
          %v3574 = vrcp.pop %v3568
          %v3575 = vmul.f32 1.0, %v3574
          %v3576 = vrcp.pop %v3569
          %v3577 = vmul.f32 1.0, %v3576
          %v3578 = vtanh.pop %v3550
          %v3579 = vtanh.pop %v3551
          %v3580 = vtanh.pop %v3552
          %v3581 = vtanh.pop %v3553
          %v3583 = vrot.slane %v3497, 1
          %v3584 = vrot.slane %v3497, 2
          %v3585 = vrot.slane %v3497, 3
          %3586 = vrot.lane.b32.xlu0 %v3497, 32
          %v3587 = vpop.permute.xlu0 %3586
          %3588 = vrot.lane.b32.xlu0 %v3583, 32
          %v3589 = vpop.permute.xlu0 %3588
          %3590 = vrot.lane.b32.xlu0 %v3584, 32
          %v3591 = vpop.permute.xlu0 %3590
          %3592 = vrot.lane.b32.xlu0 %v3585, 32
          %v3593 = vpop.permute.xlu0 %3592
          %v3598 = vmul.f32 %v3571, %v3587
          %v3599 = vmul.f32 %v3573, %v3589
          %v3600 = vmul.f32 %v3575, %v3591
          %v3601 = vmul.f32 %v3577, %v3593
          %3606 = vrot.lane.b32.xlu0 %v3578, 64
          %v3607 = vpop.permute.xlu0 %3606
          %3608 = vrot.lane.b32.xlu0 %v3579, 64
          %v3609 = vpop.permute.xlu0 %3608
          %3610 = vrot.lane.b32.xlu0 %v3580, 64
          %v3611 = vpop.permute.xlu0 %3610
          %3612 = vrot.lane.b32.xlu0 %v3581, 64
          %v3613 = vpop.permute.xlu0 %3612
          %v3618 = vmul.f32 %v3571, %v3607
          %v3619 = vmul.f32 %v3573, %v3609
          %v3620 = vmul.f32 %v3575, %v3611
          %v3621 = vmul.f32 %v3577, %v3613
          %3626 = vrot.lane.b32.xlu0 %v3618, 32
          %v3627 = vpop.permute.xlu0 %3626
          %3628 = vrot.lane.b32.xlu0 %v3619, 32
          %v3629 = vpop.permute.xlu0 %3628
          %3630 = vrot.lane.b32.xlu0 %v3620, 32
          %v3631 = vpop.permute.xlu0 %3630
          %3632 = vrot.lane.b32.xlu0 %v3621, 32
          %v3633 = vpop.permute.xlu0 %3632
          %v3638 = vadd.f32 %v3598, %v3627
          %v3639 = vadd.f32 %v3599, %v3629
          %v3640 = vadd.f32 %v3600, %v3631
          %v3641 = vadd.f32 %v3601, %v3633
          %v3642 = vtanh.pop %v3638
          %v3643 = vtanh.pop %v3639
          %v3644 = vtanh.pop %v3640
          %v3645 = vtanh.pop %v3641
          %3650 = vrot.lane.b32.xlu0 %v3642, 64
          %v3651 = vpop.permute.xlu0 %3650
          %3652 = vrot.lane.b32.xlu0 %v3643, 64
          %v3653 = vpop.permute.xlu0 %3652
          %3654 = vrot.lane.b32.xlu0 %v3644, 64
          %v3655 = vpop.permute.xlu0 %3654
          %3656 = vrot.lane.b32.xlu0 %v3645, 64
          %v3657 = vpop.permute.xlu0 %3656
          %v3662 = vmul.f32 %v3571, %v3651
          %v3663 = vmul.f32 %v3573, %v3653
          %v3664 = vmul.f32 %v3575, %v3655
          %v3665 = vmul.f32 %v3577, %v3657
          %vm3666 = vcmp.gt.s32.totalorder %v1844, 8
          %v3667 = vsel %vm3666, 1, 0
          %3668 = vset.pattern.permute.xlu0 0
          %3669 = vperm.xlu0 %3668, %v3667
          %v3670 = vpop.permute.xlu0 %3669
          %vm3671 = vcmp.eq.s32.totalorder %v3670, 1
          %v3676 = vrot.slane %v3663, 7
          %v3677 = vsel %vm2042, %v3676, %v3662
          %v3678 = vrot.slane %v3664, 6
          %v3679 = vsel %vm2045, %v3678, %v3677
          %v3680 = vrot.slane %v3665, 5
          %v3681 = vsel %vm2048, %v3680, %v3679
          %3682 = vrot.lane.b32.xlu0 %v3681, 32
          %v3683 = vpop.permute.xlu0 %3682
          %v3685 = vsel %vm3671, %v3683, %v3482
          %v3690 = vrot.slane %v3639, 7
          %v3691 = vsel %vm2042, %v3690, %v3638
          %v3692 = vrot.slane %v3640, 6
          %v3693 = vsel %vm2045, %v3692, %v3691
          %v3694 = vrot.slane %v3641, 5
          %v3695 = vsel %vm2048, %v3694, %v3693
          %3696 = vrot.lane.b32.xlu0 %v3695, 96
          %v3697 = vpop.permute.xlu0 %3696
          %v3699 = vsel %vm3671, %v3697, %v3497
          %v3700 = vpack.c.bf16 %v3685, %v3685
          %v3702 = vsel %vm1166, %v3700, 0
          %3704 = vmatprep.subr.bf16.mxu0 0
          %3705 = vmatpush1.bf16.msra.mxu0 0
          %3706 = vmatprep.subr.bf16.mxu0 0
          %3707 = vmatpush1.bf16.msra.mxu0 0
          %3708 = vmatprep.subr.bf16.mxu0 0
          %3709 = vmatpush1.bf16.msra.mxu0 0
          %3710 = vmatprep.subr.bf16.mxu0 0
          %3711 = vmatpush1.bf16.msra.mxu0 0
          %3712 = vmatprep.subr.bf16.mxu0 0
          %3713 = vmatpush1.bf16.msra.mxu0 0
          %3714 = vmatprep.subr.bf16.mxu0 0
          %3715 = vmatpush1.bf16.msra.mxu0 0
          %3716 = vmatprep.subr.bf16.mxu0 0
          %3717 = vmatpush1.bf16.msra.mxu0 %v1861
          %3718 = vmatprep.subr.bf16.mxu0 0
          %3719 = vmatpush1.bf16.msra.mxu0 %v1860
          %3720 = vmatprep.subr.bf16.mxu0 0
          %3721 = vmatpush2.bf16.msra.mxu0 0
          %3722 = vmatprep.subr.bf16.mxu0 0
          %3723 = vmatpush2.bf16.msra.mxu0 0
          %3724 = vmatprep.subr.bf16.mxu0 0
          %3725 = vmatpush2.bf16.msra.mxu0 0
          %3726 = vmatprep.subr.bf16.mxu0 0
          %3727 = vmatpush2.bf16.msra.mxu0 0
          %3728 = vmatprep.subr.bf16.mxu0 0
          %3729 = vmatpush2.bf16.msra.mxu0 0
          %3730 = vmatprep.subr.bf16.mxu0 0
          %3731 = vmatpush2.bf16.msra.mxu0 0
          %3732 = vmatprep.subr.bf16.mxu0 0
          %3733 = vmatpush2.bf16.msra.mxu0 0
          %3734 = vmatprep.subr.bf16.mxu0 0
          %3735 = vmatpush2.bf16.msra.mxu0 0
          %3736 = vmatprep.mubr.bf16.mxu0 0
          %3737 = vmatmul.mubr.bf16.gmra.mxu0 %v3702
          %v3738 = vpop.f32.mrf.mxu0
          %v3739 = vadd.f32 0.0, %v3738
          %v3740 = vpop.f32.mrf.mxu0
          %v3741 = vpop.f32.mrf.mxu0
          %v3742 = vpop.f32.mrf.mxu0
          %3743 = vdwg.mxu0
          %v3745 = vrot.slane %v3739, 7
          %v3746 = vrot.slane %v3739, 1
          %v3747 = vrot.slane %v3739, 2
          %v3752 = vadd.f32 %v1783, %v3745
          %v3753 = vadd.f32 %v1799, %v3739
          %v3754 = vadd.f32 %v1815, %v3746
          %v3755 = vadd.f32 %v1831, %v3747
          %v3756 = vxor.u32 %v3752, 2147483648
          %v3757 = vxor.u32 %v3753, 2147483648
          %v3758 = vxor.u32 %v3754, 2147483648
          %v3759 = vxor.u32 %v3755, 2147483648
          %v3760 = vmul.f32 %v3756, 1.442695
          %v3761 = vpow.pop %v3760
          %v3762 = vmul.f32 %v3757, 1.442695
          %v3763 = vpow.pop %v3762
          %v3764 = vmul.f32 %v3758, 1.442695
          %v3765 = vpow.pop %v3764
          %v3766 = vmul.f32 %v3759, 1.442695
          %v3767 = vpow.pop %v3766
          %v3768 = vadd.f32 %v3761, 1.0
          %v3769 = vadd.f32 %v3763, 1.0
          %v3770 = vadd.f32 %v3765, 1.0
          %v3771 = vadd.f32 %v3767, 1.0
          %v3772 = vrcp.pop %v3768
          %v3773 = vmul.f32 1.0, %v3772
          %v3774 = vrcp.pop %v3769
          %v3775 = vmul.f32 1.0, %v3774
          %v3776 = vrcp.pop %v3770
          %v3777 = vmul.f32 1.0, %v3776
          %v3778 = vrcp.pop %v3771
          %v3779 = vmul.f32 1.0, %v3778
          %v3780 = vtanh.pop %v3752
          %v3781 = vtanh.pop %v3753
          %v3782 = vtanh.pop %v3754
          %v3783 = vtanh.pop %v3755
          %v3785 = vrot.slane %v3699, 7
          %v3786 = vrot.slane %v3699, 1
          %v3787 = vrot.slane %v3699, 2
          %3788 = vrot.lane.b32.xlu0 %v3785, 32
          %v3789 = vpop.permute.xlu0 %3788
          %3790 = vrot.lane.b32.xlu0 %v3699, 32
          %v3791 = vpop.permute.xlu0 %3790
          %3792 = vrot.lane.b32.xlu0 %v3786, 32
          %v3793 = vpop.permute.xlu0 %3792
          %3794 = vrot.lane.b32.xlu0 %v3787, 32
          %v3795 = vpop.permute.xlu0 %3794
          %v3800 = vmul.f32 %v3773, %v3789
          %v3801 = vmul.f32 %v3775, %v3791
          %v3802 = vmul.f32 %v3777, %v3793
          %v3803 = vmul.f32 %v3779, %v3795
          %3808 = vrot.lane.b32.xlu0 %v3780, 64
          %v3809 = vpop.permute.xlu0 %3808
          %3810 = vrot.lane.b32.xlu0 %v3781, 64
          %v3811 = vpop.permute.xlu0 %3810
          %3812 = vrot.lane.b32.xlu0 %v3782, 64
          %v3813 = vpop.permute.xlu0 %3812
          %3814 = vrot.lane.b32.xlu0 %v3783, 64
          %v3815 = vpop.permute.xlu0 %3814
          %v3820 = vmul.f32 %v3773, %v3809
          %v3821 = vmul.f32 %v3775, %v3811
          %v3822 = vmul.f32 %v3777, %v3813
          %v3823 = vmul.f32 %v3779, %v3815
          %3828 = vrot.lane.b32.xlu0 %v3820, 32
          %v3829 = vpop.permute.xlu0 %3828
          %3830 = vrot.lane.b32.xlu0 %v3821, 32
          %v3831 = vpop.permute.xlu0 %3830
          %3832 = vrot.lane.b32.xlu0 %v3822, 32
          %v3833 = vpop.permute.xlu0 %3832
          %3834 = vrot.lane.b32.xlu0 %v3823, 32
          %v3835 = vpop.permute.xlu0 %3834
          %v3840 = vadd.f32 %v3800, %v3829
          %v3841 = vadd.f32 %v3801, %v3831
          %v3842 = vadd.f32 %v3802, %v3833
          %v3843 = vadd.f32 %v3803, %v3835
          %v3844 = vtanh.pop %v3840
          %v3845 = vtanh.pop %v3841
          %v3846 = vtanh.pop %v3842
          %v3847 = vtanh.pop %v3843
          %3852 = vrot.lane.b32.xlu0 %v3844, 64
          %v3853 = vpop.permute.xlu0 %3852
          %3854 = vrot.lane.b32.xlu0 %v3845, 64
          %v3855 = vpop.permute.xlu0 %3854
          %3856 = vrot.lane.b32.xlu0 %v3846, 64
          %v3857 = vpop.permute.xlu0 %3856
          %3858 = vrot.lane.b32.xlu0 %v3847, 64
          %v3859 = vpop.permute.xlu0 %3858
          %v3864 = vmul.f32 %v3773, %v3853
          %v3865 = vmul.f32 %v3775, %v3855
          %v3866 = vmul.f32 %v3777, %v3857
          %v3867 = vmul.f32 %v3779, %v3859
          %vm3868 = vcmp.gt.s32.totalorder %v1844, 9
          %v3869 = vsel %vm3868, 1, 0
          %3870 = vset.pattern.permute.xlu0 0
          %3871 = vperm.xlu0 %3870, %v3869
          %v3872 = vpop.permute.xlu0 %3871
          %vm3873 = vcmp.eq.s32.totalorder %v3872, 1
          %v3878 = vrot.slane %v3864, 1
          %v3879 = vsel %vm2042, %v3865, %v3878
          %v3880 = vrot.slane %v3866, 7
          %v3881 = vsel %vm2045, %v3880, %v3879
          %v3882 = vrot.slane %v3867, 6
          %v3883 = vsel %vm2048, %v3882, %v3881
          %3884 = vrot.lane.b32.xlu0 %v3883, 32
          %v3885 = vpop.permute.xlu0 %3884
          %v3887 = vsel %vm3873, %v3885, %v3685
          %v3892 = vrot.slane %v3840, 1
          %v3893 = vsel %vm2042, %v3841, %v3892
          %v3894 = vrot.slane %v3842, 7
          %v3895 = vsel %vm2045, %v3894, %v3893
          %v3896 = vrot.slane %v3843, 6
          %v3897 = vsel %vm2048, %v3896, %v3895
          %3898 = vrot.lane.b32.xlu0 %v3897, 96
          %v3899 = vpop.permute.xlu0 %3898
          %v3901 = vsel %vm3873, %v3899, %v3699
          %v3902 = vpack.c.bf16 %v3887, %v3887
          %v3904 = vsel %vm1166, %v3902, 0
          %3906 = vmatprep.subr.bf16.mxu0 0
          %3907 = vmatpush1.bf16.msra.mxu0 0
          %3908 = vmatprep.subr.bf16.mxu0 0
          %3909 = vmatpush1.bf16.msra.mxu0 0
          %3910 = vmatprep.subr.bf16.mxu0 0
          %3911 = vmatpush1.bf16.msra.mxu0 0
          %3912 = vmatprep.subr.bf16.mxu0 0
          %3913 = vmatpush1.bf16.msra.mxu0 0
          %3914 = vmatprep.subr.bf16.mxu0 0
          %3915 = vmatpush1.bf16.msra.mxu0 0
          %3916 = vmatprep.subr.bf16.mxu0 0
          %3917 = vmatpush1.bf16.msra.mxu0 0
          %3918 = vmatprep.subr.bf16.mxu0 0
          %3919 = vmatpush1.bf16.msra.mxu0 %v1861
          %3920 = vmatprep.subr.bf16.mxu0 0
          %3921 = vmatpush1.bf16.msra.mxu0 %v1860
          %3922 = vmatprep.subr.bf16.mxu0 0
          %3923 = vmatpush2.bf16.msra.mxu0 0
          %3924 = vmatprep.subr.bf16.mxu0 0
          %3925 = vmatpush2.bf16.msra.mxu0 0
          %3926 = vmatprep.subr.bf16.mxu0 0
          %3927 = vmatpush2.bf16.msra.mxu0 0
          %3928 = vmatprep.subr.bf16.mxu0 0
          %3929 = vmatpush2.bf16.msra.mxu0 0
          %3930 = vmatprep.subr.bf16.mxu0 0
          %3931 = vmatpush2.bf16.msra.mxu0 0
          %3932 = vmatprep.subr.bf16.mxu0 0
          %3933 = vmatpush2.bf16.msra.mxu0 0
          %3934 = vmatprep.subr.bf16.mxu0 0
          %3935 = vmatpush2.bf16.msra.mxu0 0
          %3936 = vmatprep.subr.bf16.mxu0 0
          %3937 = vmatpush2.bf16.msra.mxu0 0
          %3938 = vmatprep.mubr.bf16.mxu0 0
          %3939 = vmatmul.mubr.bf16.gmra.mxu0 %v3904
          %v3940 = vpop.f32.mrf.mxu0
          %v3941 = vadd.f32 0.0, %v3940
          %v3942 = vpop.f32.mrf.mxu0
          %v3943 = vpop.f32.mrf.mxu0
          %v3944 = vpop.f32.mrf.mxu0
          %3945 = vdwg.mxu0
          %v3947 = vrot.slane %v3941, 6
          %v3948 = vrot.slane %v3941, 7
          %v3949 = vrot.slane %v3941, 1
          %v3954 = vadd.f32 %v1783, %v3947
          %v3955 = vadd.f32 %v1799, %v3948
          %v3956 = vadd.f32 %v1815, %v3941
          %v3957 = vadd.f32 %v1831, %v3949
          %v3958 = vxor.u32 %v3954, 2147483648
          %v3959 = vxor.u32 %v3955, 2147483648
          %v3960 = vxor.u32 %v3956, 2147483648
          %v3961 = vxor.u32 %v3957, 2147483648
          %v3962 = vmul.f32 %v3958, 1.442695
          %v3963 = vpow.pop %v3962
          %v3964 = vmul.f32 %v3959, 1.442695
          %v3965 = vpow.pop %v3964
          %v3966 = vmul.f32 %v3960, 1.442695
          %v3967 = vpow.pop %v3966
          %v3968 = vmul.f32 %v3961, 1.442695
          %v3969 = vpow.pop %v3968
          %v3970 = vadd.f32 %v3963, 1.0
          %v3971 = vadd.f32 %v3965, 1.0
          %v3972 = vadd.f32 %v3967, 1.0
          %v3973 = vadd.f32 %v3969, 1.0
          %v3974 = vrcp.pop %v3970
          %v3975 = vmul.f32 1.0, %v3974
          %v3976 = vrcp.pop %v3971
          %v3977 = vmul.f32 1.0, %v3976
          %v3978 = vrcp.pop %v3972
          %v3979 = vmul.f32 1.0, %v3978
          %v3980 = vrcp.pop %v3973
          %v3981 = vmul.f32 1.0, %v3980
          %v3982 = vtanh.pop %v3954
          %v3983 = vtanh.pop %v3955
          %v3984 = vtanh.pop %v3956
          %v3985 = vtanh.pop %v3957
          %v3987 = vrot.slane %v3901, 6
          %v3988 = vrot.slane %v3901, 7
          %v3989 = vrot.slane %v3901, 1
          %3990 = vrot.lane.b32.xlu0 %v3987, 32
          %v3991 = vpop.permute.xlu0 %3990
          %3992 = vrot.lane.b32.xlu0 %v3988, 32
          %v3993 = vpop.permute.xlu0 %3992
          %3994 = vrot.lane.b32.xlu0 %v3901, 32
          %v3995 = vpop.permute.xlu0 %3994
          %3996 = vrot.lane.b32.xlu0 %v3989, 32
          %v3997 = vpop.permute.xlu0 %3996
          %v4002 = vmul.f32 %v3975, %v3991
          %v4003 = vmul.f32 %v3977, %v3993
          %v4004 = vmul.f32 %v3979, %v3995
          %v4005 = vmul.f32 %v3981, %v3997
          %4010 = vrot.lane.b32.xlu0 %v3982, 64
          %v4011 = vpop.permute.xlu0 %4010
          %4012 = vrot.lane.b32.xlu0 %v3983, 64
          %v4013 = vpop.permute.xlu0 %4012
          %4014 = vrot.lane.b32.xlu0 %v3984, 64
          %v4015 = vpop.permute.xlu0 %4014
          %4016 = vrot.lane.b32.xlu0 %v3985, 64
          %v4017 = vpop.permute.xlu0 %4016
          %v4022 = vmul.f32 %v3975, %v4011
          %v4023 = vmul.f32 %v3977, %v4013
          %v4024 = vmul.f32 %v3979, %v4015
          %v4025 = vmul.f32 %v3981, %v4017
          %4030 = vrot.lane.b32.xlu0 %v4022, 32
          %v4031 = vpop.permute.xlu0 %4030
          %4032 = vrot.lane.b32.xlu0 %v4023, 32
          %v4033 = vpop.permute.xlu0 %4032
          %4034 = vrot.lane.b32.xlu0 %v4024, 32
          %v4035 = vpop.permute.xlu0 %4034
          %4036 = vrot.lane.b32.xlu0 %v4025, 32
          %v4037 = vpop.permute.xlu0 %4036
          %v4042 = vadd.f32 %v4002, %v4031
          %v4043 = vadd.f32 %v4003, %v4033
          %v4044 = vadd.f32 %v4004, %v4035
          %v4045 = vadd.f32 %v4005, %v4037
          %v4046 = vtanh.pop %v4042
          %v4047 = vtanh.pop %v4043
          %v4048 = vtanh.pop %v4044
          %v4049 = vtanh.pop %v4045
          %4054 = vrot.lane.b32.xlu0 %v4046, 64
          %v4055 = vpop.permute.xlu0 %4054
          %4056 = vrot.lane.b32.xlu0 %v4047, 64
          %v4057 = vpop.permute.xlu0 %4056
          %4058 = vrot.lane.b32.xlu0 %v4048, 64
          %v4059 = vpop.permute.xlu0 %4058
          %4060 = vrot.lane.b32.xlu0 %v4049, 64
          %v4061 = vpop.permute.xlu0 %4060
          %v4066 = vmul.f32 %v3975, %v4055
          %v4067 = vmul.f32 %v3977, %v4057
          %v4068 = vmul.f32 %v3979, %v4059
          %v4069 = vmul.f32 %v3981, %v4061
          %vm4070 = vcmp.gt.s32.totalorder %v1844, 10
          %v4071 = vsel %vm4070, 1, 0
          %4072 = vset.pattern.permute.xlu0 0
          %4073 = vperm.xlu0 %4072, %v4071
          %v4074 = vpop.permute.xlu0 %4073
          %vm4075 = vcmp.eq.s32.totalorder %v4074, 1
          %v4080 = vrot.slane %v4066, 2
          %v4081 = vrot.slane %v4067, 1
          %v4082 = vsel %vm2042, %v4081, %v4080
          %v4083 = vsel %vm2045, %v4068, %v4082
          %v4084 = vrot.slane %v4069, 7
          %v4085 = vsel %vm2048, %v4084, %v4083
          %4086 = vrot.lane.b32.xlu0 %v4085, 32
          %v4087 = vpop.permute.xlu0 %4086
          %v4089 = vsel %vm4075, %v4087, %v3887
          %v4094 = vrot.slane %v4042, 2
          %v4095 = vrot.slane %v4043, 1
          %v4096 = vsel %vm2042, %v4095, %v4094
          %v4097 = vsel %vm2045, %v4044, %v4096
          %v4098 = vrot.slane %v4045, 7
          %v4099 = vsel %vm2048, %v4098, %v4097
          %4100 = vrot.lane.b32.xlu0 %v4099, 96
          %v4101 = vpop.permute.xlu0 %4100
          %v4103 = vsel %vm4075, %v4101, %v3901
          %v4104 = vpack.c.bf16 %v4089, %v4089
          %v4106 = vsel %vm1166, %v4104, 0
          %4108 = vmatprep.subr.bf16.mxu0 0
          %4109 = vmatpush1.bf16.msra.mxu0 0
          %4110 = vmatprep.subr.bf16.mxu0 0
          %4111 = vmatpush1.bf16.msra.mxu0 0
          %4112 = vmatprep.subr.bf16.mxu0 0
          %4113 = vmatpush1.bf16.msra.mxu0 0
          %4114 = vmatprep.subr.bf16.mxu0 0
          %4115 = vmatpush1.bf16.msra.mxu0 0
          %4116 = vmatprep.subr.bf16.mxu0 0
          %4117 = vmatpush1.bf16.msra.mxu0 0
          %4118 = vmatprep.subr.bf16.mxu0 0
          %4119 = vmatpush1.bf16.msra.mxu0 0
          %4120 = vmatprep.subr.bf16.mxu0 0
          %4121 = vmatpush1.bf16.msra.mxu0 %v1861
          %4122 = vmatprep.subr.bf16.mxu0 0
          %4123 = vmatpush1.bf16.msra.mxu0 %v1860
          %4124 = vmatprep.subr.bf16.mxu0 0
          %4125 = vmatpush2.bf16.msra.mxu0 0
          %4126 = vmatprep.subr.bf16.mxu0 0
          %4127 = vmatpush2.bf16.msra.mxu0 0
          %4128 = vmatprep.subr.bf16.mxu0 0
          %4129 = vmatpush2.bf16.msra.mxu0 0
          %4130 = vmatprep.subr.bf16.mxu0 0
          %4131 = vmatpush2.bf16.msra.mxu0 0
          %4132 = vmatprep.subr.bf16.mxu0 0
          %4133 = vmatpush2.bf16.msra.mxu0 0
          %4134 = vmatprep.subr.bf16.mxu0 0
          %4135 = vmatpush2.bf16.msra.mxu0 0
          %4136 = vmatprep.subr.bf16.mxu0 0
          %4137 = vmatpush2.bf16.msra.mxu0 0
          %4138 = vmatprep.subr.bf16.mxu0 0
          %4139 = vmatpush2.bf16.msra.mxu0 0
          %4140 = vmatprep.mubr.bf16.mxu0 0
          %4141 = vmatmul.mubr.bf16.gmra.mxu0 %v4106
          %v4142 = vpop.f32.mrf.mxu0
          %v4143 = vadd.f32 0.0, %v4142
          %v4144 = vpop.f32.mrf.mxu0
          %v4145 = vpop.f32.mrf.mxu0
          %v4146 = vpop.f32.mrf.mxu0
          %4147 = vdwg.mxu0
          %v4149 = vrot.slane %v4143, 5
          %v4150 = vrot.slane %v4143, 6
          %v4151 = vrot.slane %v4143, 7
          %v4156 = vadd.f32 %v1783, %v4149
          %v4157 = vadd.f32 %v1799, %v4150
          %v4158 = vadd.f32 %v1815, %v4151
          %v4159 = vadd.f32 %v1831, %v4143
          %v4160 = vxor.u32 %v4156, 2147483648
          %v4161 = vxor.u32 %v4157, 2147483648
          %v4162 = vxor.u32 %v4158, 2147483648
          %v4163 = vxor.u32 %v4159, 2147483648
          %v4164 = vmul.f32 %v4160, 1.442695
          %v4165 = vpow.pop %v4164
          %v4166 = vmul.f32 %v4161, 1.442695
          %v4167 = vpow.pop %v4166
          %v4168 = vmul.f32 %v4162, 1.442695
          %v4169 = vpow.pop %v4168
          %v4170 = vmul.f32 %v4163, 1.442695
          %v4171 = vpow.pop %v4170
          %v4172 = vadd.f32 %v4165, 1.0
          %v4173 = vadd.f32 %v4167, 1.0
          %v4174 = vadd.f32 %v4169, 1.0
          %v4175 = vadd.f32 %v4171, 1.0
          %v4176 = vrcp.pop %v4172
          %v4177 = vmul.f32 1.0, %v4176
          %v4178 = vrcp.pop %v4173
          %v4179 = vmul.f32 1.0, %v4178
          %v4180 = vrcp.pop %v4174
          %v4181 = vmul.f32 1.0, %v4180
          %v4182 = vrcp.pop %v4175
          %v4183 = vmul.f32 1.0, %v4182
          %v4184 = vtanh.pop %v4156
          %v4185 = vtanh.pop %v4157
          %v4186 = vtanh.pop %v4158
          %v4187 = vtanh.pop %v4159
          %v4189 = vrot.slane %v4103, 5
          %v4190 = vrot.slane %v4103, 6
          %v4191 = vrot.slane %v4103, 7
          %4192 = vrot.lane.b32.xlu0 %v4189, 32
          %v4193 = vpop.permute.xlu0 %4192
          %4194 = vrot.lane.b32.xlu0 %v4190, 32
          %v4195 = vpop.permute.xlu0 %4194
          %4196 = vrot.lane.b32.xlu0 %v4191, 32
          %v4197 = vpop.permute.xlu0 %4196
          %4198 = vrot.lane.b32.xlu0 %v4103, 32
          %v4199 = vpop.permute.xlu0 %4198
          %v4204 = vmul.f32 %v4177, %v4193
          %v4205 = vmul.f32 %v4179, %v4195
          %v4206 = vmul.f32 %v4181, %v4197
          %v4207 = vmul.f32 %v4183, %v4199
          %4212 = vrot.lane.b32.xlu0 %v4184, 64
          %v4213 = vpop.permute.xlu0 %4212
          %4214 = vrot.lane.b32.xlu0 %v4185, 64
          %v4215 = vpop.permute.xlu0 %4214
          %4216 = vrot.lane.b32.xlu0 %v4186, 64
          %v4217 = vpop.permute.xlu0 %4216
          %4218 = vrot.lane.b32.xlu0 %v4187, 64
          %v4219 = vpop.permute.xlu0 %4218
          %v4224 = vmul.f32 %v4177, %v4213
          %v4225 = vmul.f32 %v4179, %v4215
          %v4226 = vmul.f32 %v4181, %v4217
          %v4227 = vmul.f32 %v4183, %v4219
          %4232 = vrot.lane.b32.xlu0 %v4224, 32
          %v4233 = vpop.permute.xlu0 %4232
          %4234 = vrot.lane.b32.xlu0 %v4225, 32
          %v4235 = vpop.permute.xlu0 %4234
          %4236 = vrot.lane.b32.xlu0 %v4226, 32
          %v4237 = vpop.permute.xlu0 %4236
          %4238 = vrot.lane.b32.xlu0 %v4227, 32
          %v4239 = vpop.permute.xlu0 %4238
          %v4244 = vadd.f32 %v4204, %v4233
          %v4245 = vadd.f32 %v4205, %v4235
          %v4246 = vadd.f32 %v4206, %v4237
          %v4247 = vadd.f32 %v4207, %v4239
          %v4248 = vtanh.pop %v4244
          %v4249 = vtanh.pop %v4245
          %v4250 = vtanh.pop %v4246
          %v4251 = vtanh.pop %v4247
          %4256 = vrot.lane.b32.xlu0 %v4248, 64
          %v4257 = vpop.permute.xlu0 %4256
          %4258 = vrot.lane.b32.xlu0 %v4249, 64
          %v4259 = vpop.permute.xlu0 %4258
          %4260 = vrot.lane.b32.xlu0 %v4250, 64
          %v4261 = vpop.permute.xlu0 %4260
          %4262 = vrot.lane.b32.xlu0 %v4251, 64
          %v4263 = vpop.permute.xlu0 %4262
          %v4268 = vmul.f32 %v4177, %v4257
          %v4269 = vmul.f32 %v4179, %v4259
          %v4270 = vmul.f32 %v4181, %v4261
          %v4271 = vmul.f32 %v4183, %v4263
          %vm4272 = vcmp.gt.s32.totalorder %v1844, 11
          %v4273 = vsel %vm4272, 1, 0
          %4274 = vset.pattern.permute.xlu0 0
          %4275 = vperm.xlu0 %4274, %v4273
          %v4276 = vpop.permute.xlu0 %4275
          %vm4277 = vcmp.eq.s32.totalorder %v4276, 1
          %v4282 = vrot.slane %v4268, 3
          %v4283 = vrot.slane %v4269, 2
          %v4284 = vsel %vm2042, %v4283, %v4282
          %v4285 = vrot.slane %v4270, 1
          %v4286 = vsel %vm2045, %v4285, %v4284
          %v4287 = vsel %vm2048, %v4271, %v4286
          %4288 = vrot.lane.b32.xlu0 %v4287, 32
          %v4289 = vpop.permute.xlu0 %4288
          %v4291 = vsel %vm4277, %v4289, %v4089
          %v4296 = vrot.slane %v4244, 3
          %v4297 = vrot.slane %v4245, 2
          %v4298 = vsel %vm2042, %v4297, %v4296
          %v4299 = vrot.slane %v4246, 1
          %v4300 = vsel %vm2045, %v4299, %v4298
          %v4301 = vsel %vm2048, %v4247, %v4300
          %4302 = vrot.lane.b32.xlu0 %v4301, 96
          %v4303 = vpop.permute.xlu0 %4302
          %v4305 = vsel %vm4277, %v4303, %v4103
          %v4306 = vpack.c.bf16 %v4291, %v4291
          %v4308 = vsel %vm1166, %v4306, 0
          %4310 = vmatprep.subr.bf16.mxu0 0
          %4311 = vmatpush1.bf16.msra.mxu0 0
          %4312 = vmatprep.subr.bf16.mxu0 0
          %4313 = vmatpush1.bf16.msra.mxu0 0
          %4314 = vmatprep.subr.bf16.mxu0 0
          %4315 = vmatpush1.bf16.msra.mxu0 0
          %4316 = vmatprep.subr.bf16.mxu0 0
          %4317 = vmatpush1.bf16.msra.mxu0 0
          %4318 = vmatprep.subr.bf16.mxu0 0
          %4319 = vmatpush1.bf16.msra.mxu0 0
          %4320 = vmatprep.subr.bf16.mxu0 0
          %4321 = vmatpush1.bf16.msra.mxu0 0
          %4322 = vmatprep.subr.bf16.mxu0 0
          %4323 = vmatpush1.bf16.msra.mxu0 %v1861
          %4324 = vmatprep.subr.bf16.mxu0 0
          %4325 = vmatpush1.bf16.msra.mxu0 %v1860
          %4326 = vmatprep.subr.bf16.mxu0 0
          %4327 = vmatpush2.bf16.msra.mxu0 0
          %4328 = vmatprep.subr.bf16.mxu0 0
          %4329 = vmatpush2.bf16.msra.mxu0 0
          %4330 = vmatprep.subr.bf16.mxu0 0
          %4331 = vmatpush2.bf16.msra.mxu0 0
          %4332 = vmatprep.subr.bf16.mxu0 0
          %4333 = vmatpush2.bf16.msra.mxu0 0
          %4334 = vmatprep.subr.bf16.mxu0 0
          %4335 = vmatpush2.bf16.msra.mxu0 0
          %4336 = vmatprep.subr.bf16.mxu0 0
          %4337 = vmatpush2.bf16.msra.mxu0 0
          %4338 = vmatprep.subr.bf16.mxu0 0
          %4339 = vmatpush2.bf16.msra.mxu0 0
          %4340 = vmatprep.subr.bf16.mxu0 0
          %4341 = vmatpush2.bf16.msra.mxu0 0
          %4342 = vmatprep.mubr.bf16.mxu0 0
          %4343 = vmatmul.mubr.bf16.gmra.mxu0 %v4308
          %v4344 = vpop.f32.mrf.mxu0
          %v4345 = vadd.f32 0.0, %v4344
          %v4346 = vpop.f32.mrf.mxu0
          %v4347 = vpop.f32.mrf.mxu0
          %v4348 = vpop.f32.mrf.mxu0
          %4349 = vdwg.mxu0
          %v4351 = vrot.slane %v4345, 4
          %v4352 = vrot.slane %v4345, 5
          %v4353 = vrot.slane %v4345, 6
          %v4354 = vrot.slane %v4345, 7
          %v4359 = vadd.f32 %v1783, %v4351
          %v4360 = vadd.f32 %v1799, %v4352
          %v4361 = vadd.f32 %v1815, %v4353
          %v4362 = vadd.f32 %v1831, %v4354
          %v4363 = vxor.u32 %v4359, 2147483648
          %v4364 = vxor.u32 %v4360, 2147483648
          %v4365 = vxor.u32 %v4361, 2147483648
          %v4366 = vxor.u32 %v4362, 2147483648
          %v4367 = vmul.f32 %v4363, 1.442695
          %v4368 = vpow.pop %v4367
          %v4369 = vmul.f32 %v4364, 1.442695
          %v4370 = vpow.pop %v4369
          %v4371 = vmul.f32 %v4365, 1.442695
          %v4372 = vpow.pop %v4371
          %v4373 = vmul.f32 %v4366, 1.442695
          %v4374 = vpow.pop %v4373
          %v4375 = vadd.f32 %v4368, 1.0
          %v4376 = vadd.f32 %v4370, 1.0
          %v4377 = vadd.f32 %v4372, 1.0
          %v4378 = vadd.f32 %v4374, 1.0
          %v4379 = vrcp.pop %v4375
          %v4380 = vmul.f32 1.0, %v4379
          %v4381 = vrcp.pop %v4376
          %v4382 = vmul.f32 1.0, %v4381
          %v4383 = vrcp.pop %v4377
          %v4384 = vmul.f32 1.0, %v4383
          %v4385 = vrcp.pop %v4378
          %v4386 = vmul.f32 1.0, %v4385
          %v4387 = vtanh.pop %v4359
          %v4388 = vtanh.pop %v4360
          %v4389 = vtanh.pop %v4361
          %v4390 = vtanh.pop %v4362
          %v4392 = vrot.slane %v4305, 4
          %v4393 = vrot.slane %v4305, 5
          %v4394 = vrot.slane %v4305, 6
          %v4395 = vrot.slane %v4305, 7
          %4396 = vrot.lane.b32.xlu0 %v4392, 32
          %v4397 = vpop.permute.xlu0 %4396
          %4398 = vrot.lane.b32.xlu0 %v4393, 32
          %v4399 = vpop.permute.xlu0 %4398
          %4400 = vrot.lane.b32.xlu0 %v4394, 32
          %v4401 = vpop.permute.xlu0 %4400
          %4402 = vrot.lane.b32.xlu0 %v4395, 32
          %v4403 = vpop.permute.xlu0 %4402
          %v4408 = vmul.f32 %v4380, %v4397
          %v4409 = vmul.f32 %v4382, %v4399
          %v4410 = vmul.f32 %v4384, %v4401
          %v4411 = vmul.f32 %v4386, %v4403
          %4416 = vrot.lane.b32.xlu0 %v4387, 64
          %v4417 = vpop.permute.xlu0 %4416
          %4418 = vrot.lane.b32.xlu0 %v4388, 64
          %v4419 = vpop.permute.xlu0 %4418
          %4420 = vrot.lane.b32.xlu0 %v4389, 64
          %v4421 = vpop.permute.xlu0 %4420
          %4422 = vrot.lane.b32.xlu0 %v4390, 64
          %v4423 = vpop.permute.xlu0 %4422
          %v4428 = vmul.f32 %v4380, %v4417
          %v4429 = vmul.f32 %v4382, %v4419
          %v4430 = vmul.f32 %v4384, %v4421
          %v4431 = vmul.f32 %v4386, %v4423
          %4436 = vrot.lane.b32.xlu0 %v4428, 32
          %v4437 = vpop.permute.xlu0 %4436
          %4438 = vrot.lane.b32.xlu0 %v4429, 32
          %v4439 = vpop.permute.xlu0 %4438
          %4440 = vrot.lane.b32.xlu0 %v4430, 32
          %v4441 = vpop.permute.xlu0 %4440
          %4442 = vrot.lane.b32.xlu0 %v4431, 32
          %v4443 = vpop.permute.xlu0 %4442
          %v4448 = vadd.f32 %v4408, %v4437
          %v4449 = vadd.f32 %v4409, %v4439
          %v4450 = vadd.f32 %v4410, %v4441
          %v4451 = vadd.f32 %v4411, %v4443
          %v4452 = vtanh.pop %v4448
          %v4453 = vtanh.pop %v4449
          %v4454 = vtanh.pop %v4450
          %v4455 = vtanh.pop %v4451
          %4460 = vrot.lane.b32.xlu0 %v4452, 64
          %v4461 = vpop.permute.xlu0 %4460
          %4462 = vrot.lane.b32.xlu0 %v4453, 64
          %v4463 = vpop.permute.xlu0 %4462
          %4464 = vrot.lane.b32.xlu0 %v4454, 64
          %v4465 = vpop.permute.xlu0 %4464
          %4466 = vrot.lane.b32.xlu0 %v4455, 64
          %v4467 = vpop.permute.xlu0 %4466
          %v4472 = vmul.f32 %v4380, %v4461
          %v4473 = vmul.f32 %v4382, %v4463
          %v4474 = vmul.f32 %v4384, %v4465
          %v4475 = vmul.f32 %v4386, %v4467
          %vm4476 = vcmp.gt.s32.totalorder %v1844, 12
          %v4477 = vsel %vm4476, 1, 0
          %4478 = vset.pattern.permute.xlu0 0
          %4479 = vperm.xlu0 %4478, %v4477
          %v4480 = vpop.permute.xlu0 %4479
          %vm4481 = vcmp.eq.s32.totalorder %v4480, 1
          %v4486 = vrot.slane %v4472, 4
          %v4487 = vrot.slane %v4473, 3
          %v4488 = vsel %vm2042, %v4487, %v4486
          %v4489 = vrot.slane %v4474, 2
          %v4490 = vsel %vm2045, %v4489, %v4488
          %v4491 = vrot.slane %v4475, 1
          %v4492 = vsel %vm2048, %v4491, %v4490
          %4493 = vrot.lane.b32.xlu0 %v4492, 32
          %v4494 = vpop.permute.xlu0 %4493
          %v4496 = vsel %vm4481, %v4494, %v4291
          %v4501 = vrot.slane %v4448, 4
          %v4502 = vrot.slane %v4449, 3
          %v4503 = vsel %vm2042, %v4502, %v4501
          %v4504 = vrot.slane %v4450, 2
          %v4505 = vsel %vm2045, %v4504, %v4503
          %v4506 = vrot.slane %v4451, 1
          %v4507 = vsel %vm2048, %v4506, %v4505
          %4508 = vrot.lane.b32.xlu0 %v4507, 96
          %v4509 = vpop.permute.xlu0 %4508
          %v4511 = vsel %vm4481, %v4509, %v4305
          %v4512 = vpack.c.bf16 %v4496, %v4496
          %v4514 = vsel %vm1166, %v4512, 0
          %4516 = vmatprep.subr.bf16.mxu0 0
          %4517 = vmatpush1.bf16.msra.mxu0 0
          %4518 = vmatprep.subr.bf16.mxu0 0
          %4519 = vmatpush1.bf16.msra.mxu0 0
          %4520 = vmatprep.subr.bf16.mxu0 0
          %4521 = vmatpush1.bf16.msra.mxu0 0
          %4522 = vmatprep.subr.bf16.mxu0 0
          %4523 = vmatpush1.bf16.msra.mxu0 0
          %4524 = vmatprep.subr.bf16.mxu0 0
          %4525 = vmatpush1.bf16.msra.mxu0 0
          %4526 = vmatprep.subr.bf16.mxu0 0
          %4527 = vmatpush1.bf16.msra.mxu0 0
          %4528 = vmatprep.subr.bf16.mxu0 0
          %4529 = vmatpush1.bf16.msra.mxu0 %v1861
          %4530 = vmatprep.subr.bf16.mxu0 0
          %4531 = vmatpush1.bf16.msra.mxu0 %v1860
          %4532 = vmatprep.subr.bf16.mxu0 0
          %4533 = vmatpush2.bf16.msra.mxu0 0
          %4534 = vmatprep.subr.bf16.mxu0 0
          %4535 = vmatpush2.bf16.msra.mxu0 0
          %4536 = vmatprep.subr.bf16.mxu0 0
          %4537 = vmatpush2.bf16.msra.mxu0 0
          %4538 = vmatprep.subr.bf16.mxu0 0
          %4539 = vmatpush2.bf16.msra.mxu0 0
          %4540 = vmatprep.subr.bf16.mxu0 0
          %4541 = vmatpush2.bf16.msra.mxu0 0
          %4542 = vmatprep.subr.bf16.mxu0 0
          %4543 = vmatpush2.bf16.msra.mxu0 0
          %4544 = vmatprep.subr.bf16.mxu0 0
          %4545 = vmatpush2.bf16.msra.mxu0 0
          %4546 = vmatprep.subr.bf16.mxu0 0
          %4547 = vmatpush2.bf16.msra.mxu0 0
          %4548 = vmatprep.mubr.bf16.mxu0 0
          %4549 = vmatmul.mubr.bf16.gmra.mxu0 %v4514
          %v4550 = vpop.f32.mrf.mxu0
          %v4551 = vadd.f32 0.0, %v4550
          %v4552 = vpop.f32.mrf.mxu0
          %v4553 = vpop.f32.mrf.mxu0
          %v4554 = vpop.f32.mrf.mxu0
          %4555 = vdwg.mxu0
          %v4557 = vrot.slane %v4551, 3
          %v4558 = vrot.slane %v4551, 4
          %v4559 = vrot.slane %v4551, 5
          %v4560 = vrot.slane %v4551, 6
          %v4565 = vadd.f32 %v1783, %v4557
          %v4566 = vadd.f32 %v1799, %v4558
          %v4567 = vadd.f32 %v1815, %v4559
          %v4568 = vadd.f32 %v1831, %v4560
          %v4569 = vxor.u32 %v4565, 2147483648
          %v4570 = vxor.u32 %v4566, 2147483648
          %v4571 = vxor.u32 %v4567, 2147483648
          %v4572 = vxor.u32 %v4568, 2147483648
          %v4573 = vmul.f32 %v4569, 1.442695
          %v4574 = vpow.pop %v4573
          %v4575 = vmul.f32 %v4570, 1.442695
          %v4576 = vpow.pop %v4575
          %v4577 = vmul.f32 %v4571, 1.442695
          %v4578 = vpow.pop %v4577
          %v4579 = vmul.f32 %v4572, 1.442695
          %v4580 = vpow.pop %v4579
          %v4581 = vadd.f32 %v4574, 1.0
          %v4582 = vadd.f32 %v4576, 1.0
          %v4583 = vadd.f32 %v4578, 1.0
          %v4584 = vadd.f32 %v4580, 1.0
          %v4585 = vrcp.pop %v4581
          %v4586 = vmul.f32 1.0, %v4585
          %v4587 = vrcp.pop %v4582
          %v4588 = vmul.f32 1.0, %v4587
          %v4589 = vrcp.pop %v4583
          %v4590 = vmul.f32 1.0, %v4589
          %v4591 = vrcp.pop %v4584
          %v4592 = vmul.f32 1.0, %v4591
          %v4593 = vtanh.pop %v4565
          %v4594 = vtanh.pop %v4566
          %v4595 = vtanh.pop %v4567
          %v4596 = vtanh.pop %v4568
          %v4598 = vrot.slane %v4511, 3
          %v4599 = vrot.slane %v4511, 4
          %v4600 = vrot.slane %v4511, 5
          %v4601 = vrot.slane %v4511, 6
          %4602 = vrot.lane.b32.xlu0 %v4598, 32
          %v4603 = vpop.permute.xlu0 %4602
          %4604 = vrot.lane.b32.xlu0 %v4599, 32
          %v4605 = vpop.permute.xlu0 %4604
          %4606 = vrot.lane.b32.xlu0 %v4600, 32
          %v4607 = vpop.permute.xlu0 %4606
          %4608 = vrot.lane.b32.xlu0 %v4601, 32
          %v4609 = vpop.permute.xlu0 %4608
          %v4614 = vmul.f32 %v4586, %v4603
          %v4615 = vmul.f32 %v4588, %v4605
          %v4616 = vmul.f32 %v4590, %v4607
          %v4617 = vmul.f32 %v4592, %v4609
          %4622 = vrot.lane.b32.xlu0 %v4593, 64
          %v4623 = vpop.permute.xlu0 %4622
          %4624 = vrot.lane.b32.xlu0 %v4594, 64
          %v4625 = vpop.permute.xlu0 %4624
          %4626 = vrot.lane.b32.xlu0 %v4595, 64
          %v4627 = vpop.permute.xlu0 %4626
          %4628 = vrot.lane.b32.xlu0 %v4596, 64
          %v4629 = vpop.permute.xlu0 %4628
          %v4634 = vmul.f32 %v4586, %v4623
          %v4635 = vmul.f32 %v4588, %v4625
          %v4636 = vmul.f32 %v4590, %v4627
          %v4637 = vmul.f32 %v4592, %v4629
          %4642 = vrot.lane.b32.xlu0 %v4634, 32
          %v4643 = vpop.permute.xlu0 %4642
          %4644 = vrot.lane.b32.xlu0 %v4635, 32
          %v4645 = vpop.permute.xlu0 %4644
          %4646 = vrot.lane.b32.xlu0 %v4636, 32
          %v4647 = vpop.permute.xlu0 %4646
          %4648 = vrot.lane.b32.xlu0 %v4637, 32
          %v4649 = vpop.permute.xlu0 %4648
          %v4654 = vadd.f32 %v4614, %v4643
          %v4655 = vadd.f32 %v4615, %v4645
          %v4656 = vadd.f32 %v4616, %v4647
          %v4657 = vadd.f32 %v4617, %v4649
          %v4658 = vtanh.pop %v4654
          %v4659 = vtanh.pop %v4655
          %v4660 = vtanh.pop %v4656
          %v4661 = vtanh.pop %v4657
          %4666 = vrot.lane.b32.xlu0 %v4658, 64
          %v4667 = vpop.permute.xlu0 %4666
          %4668 = vrot.lane.b32.xlu0 %v4659, 64
          %v4669 = vpop.permute.xlu0 %4668
          %4670 = vrot.lane.b32.xlu0 %v4660, 64
          %v4671 = vpop.permute.xlu0 %4670
          %4672 = vrot.lane.b32.xlu0 %v4661, 64
          %v4673 = vpop.permute.xlu0 %4672
          %v4678 = vmul.f32 %v4586, %v4667
          %v4679 = vmul.f32 %v4588, %v4669
          %v4680 = vmul.f32 %v4590, %v4671
          %v4681 = vmul.f32 %v4592, %v4673
          %vm4682 = vcmp.gt.s32.totalorder %v1844, 13
          %v4683 = vsel %vm4682, 1, 0
          %4684 = vset.pattern.permute.xlu0 0
          %4685 = vperm.xlu0 %4684, %v4683
          %v4686 = vpop.permute.xlu0 %4685
          %vm4687 = vcmp.eq.s32.totalorder %v4686, 1
          %v4692 = vrot.slane %v4678, 5
          %v4693 = vrot.slane %v4679, 4
          %v4694 = vsel %vm2042, %v4693, %v4692
          %v4695 = vrot.slane %v4680, 3
          %v4696 = vsel %vm2045, %v4695, %v4694
          %v4697 = vrot.slane %v4681, 2
          %v4698 = vsel %vm2048, %v4697, %v4696
          %4699 = vrot.lane.b32.xlu0 %v4698, 32
          %v4700 = vpop.permute.xlu0 %4699
          %v4702 = vsel %vm4687, %v4700, %v4496
          %v4707 = vrot.slane %v4654, 5
          %v4708 = vrot.slane %v4655, 4
          %v4709 = vsel %vm2042, %v4708, %v4707
          %v4710 = vrot.slane %v4656, 3
          %v4711 = vsel %vm2045, %v4710, %v4709
          %v4712 = vrot.slane %v4657, 2
          %v4713 = vsel %vm2048, %v4712, %v4711
          %4714 = vrot.lane.b32.xlu0 %v4713, 96
          %v4715 = vpop.permute.xlu0 %4714
          %v4717 = vsel %vm4687, %v4715, %v4511
          %v4718 = vpack.c.bf16 %v4702, %v4702
          %v4720 = vsel %vm1166, %v4718, 0
          %4722 = vmatprep.subr.bf16.mxu0 0
          %4723 = vmatpush1.bf16.msra.mxu0 0
          %4724 = vmatprep.subr.bf16.mxu0 0
          %4725 = vmatpush1.bf16.msra.mxu0 0
          %4726 = vmatprep.subr.bf16.mxu0 0
          %4727 = vmatpush1.bf16.msra.mxu0 0
          %4728 = vmatprep.subr.bf16.mxu0 0
          %4729 = vmatpush1.bf16.msra.mxu0 0
          %4730 = vmatprep.subr.bf16.mxu0 0
          %4731 = vmatpush1.bf16.msra.mxu0 0
          %4732 = vmatprep.subr.bf16.mxu0 0
          %4733 = vmatpush1.bf16.msra.mxu0 0
          %4734 = vmatprep.subr.bf16.mxu0 0
          %4735 = vmatpush1.bf16.msra.mxu0 %v1861
          %4736 = vmatprep.subr.bf16.mxu0 0
          %4737 = vmatpush1.bf16.msra.mxu0 %v1860
          %4738 = vmatprep.subr.bf16.mxu0 0
          %4739 = vmatpush2.bf16.msra.mxu0 0
          %4740 = vmatprep.subr.bf16.mxu0 0
          %4741 = vmatpush2.bf16.msra.mxu0 0
          %4742 = vmatprep.subr.bf16.mxu0 0
          %4743 = vmatpush2.bf16.msra.mxu0 0
          %4744 = vmatprep.subr.bf16.mxu0 0
          %4745 = vmatpush2.bf16.msra.mxu0 0
          %4746 = vmatprep.subr.bf16.mxu0 0
          %4747 = vmatpush2.bf16.msra.mxu0 0
          %4748 = vmatprep.subr.bf16.mxu0 0
          %4749 = vmatpush2.bf16.msra.mxu0 0
          %4750 = vmatprep.subr.bf16.mxu0 0
          %4751 = vmatpush2.bf16.msra.mxu0 0
          %4752 = vmatprep.subr.bf16.mxu0 0
          %4753 = vmatpush2.bf16.msra.mxu0 0
          %4754 = vmatprep.mubr.bf16.mxu0 0
          %4755 = vmatmul.mubr.bf16.gmra.mxu0 %v4720
          %v4756 = vpop.f32.mrf.mxu0
          %v4757 = vadd.f32 0.0, %v4756
          %v4758 = vpop.f32.mrf.mxu0
          %v4759 = vpop.f32.mrf.mxu0
          %v4760 = vpop.f32.mrf.mxu0
          %4761 = vdwg.mxu0
          %v4763 = vrot.slane %v4757, 2
          %v4764 = vrot.slane %v4757, 3
          %v4765 = vrot.slane %v4757, 4
          %v4766 = vrot.slane %v4757, 5
          %v4771 = vadd.f32 %v1783, %v4763
          %v4772 = vadd.f32 %v1799, %v4764
          %v4773 = vadd.f32 %v1815, %v4765
          %v4774 = vadd.f32 %v1831, %v4766
          %v4775 = vxor.u32 %v4771, 2147483648
          %v4776 = vxor.u32 %v4772, 2147483648
          %v4777 = vxor.u32 %v4773, 2147483648
          %v4778 = vxor.u32 %v4774, 2147483648
          %v4779 = vmul.f32 %v4775, 1.442695
          %v4780 = vpow.pop %v4779
          %v4781 = vmul.f32 %v4776, 1.442695
          %v4782 = vpow.pop %v4781
          %v4783 = vmul.f32 %v4777, 1.442695
          %v4784 = vpow.pop %v4783
          %v4785 = vmul.f32 %v4778, 1.442695
          %v4786 = vpow.pop %v4785
          %v4787 = vadd.f32 %v4780, 1.0
          %v4788 = vadd.f32 %v4782, 1.0
          %v4789 = vadd.f32 %v4784, 1.0
          %v4790 = vadd.f32 %v4786, 1.0
          %v4791 = vrcp.pop %v4787
          %v4792 = vmul.f32 1.0, %v4791
          %v4793 = vrcp.pop %v4788
          %v4794 = vmul.f32 1.0, %v4793
          %v4795 = vrcp.pop %v4789
          %v4796 = vmul.f32 1.0, %v4795
          %v4797 = vrcp.pop %v4790
          %v4798 = vmul.f32 1.0, %v4797
          %v4799 = vtanh.pop %v4771
          %v4800 = vtanh.pop %v4772
          %v4801 = vtanh.pop %v4773
          %v4802 = vtanh.pop %v4774
          %v4804 = vrot.slane %v4717, 2
          %v4805 = vrot.slane %v4717, 3
          %v4806 = vrot.slane %v4717, 4
          %v4807 = vrot.slane %v4717, 5
          %4808 = vrot.lane.b32.xlu0 %v4804, 32
          %v4809 = vpop.permute.xlu0 %4808
          %4810 = vrot.lane.b32.xlu0 %v4805, 32
          %v4811 = vpop.permute.xlu0 %4810
          %4812 = vrot.lane.b32.xlu0 %v4806, 32
          %v4813 = vpop.permute.xlu0 %4812
          %4814 = vrot.lane.b32.xlu0 %v4807, 32
          %v4815 = vpop.permute.xlu0 %4814
          %v4820 = vmul.f32 %v4792, %v4809
          %v4821 = vmul.f32 %v4794, %v4811
          %v4822 = vmul.f32 %v4796, %v4813
          %v4823 = vmul.f32 %v4798, %v4815
          %4828 = vrot.lane.b32.xlu0 %v4799, 64
          %v4829 = vpop.permute.xlu0 %4828
          %4830 = vrot.lane.b32.xlu0 %v4800, 64
          %v4831 = vpop.permute.xlu0 %4830
          %4832 = vrot.lane.b32.xlu0 %v4801, 64
          %v4833 = vpop.permute.xlu0 %4832
          %4834 = vrot.lane.b32.xlu0 %v4802, 64
          %v4835 = vpop.permute.xlu0 %4834
          %v4840 = vmul.f32 %v4792, %v4829
          %v4841 = vmul.f32 %v4794, %v4831
          %v4842 = vmul.f32 %v4796, %v4833
          %v4843 = vmul.f32 %v4798, %v4835
          %4848 = vrot.lane.b32.xlu0 %v4840, 32
          %v4849 = vpop.permute.xlu0 %4848
          %4850 = vrot.lane.b32.xlu0 %v4841, 32
          %v4851 = vpop.permute.xlu0 %4850
          %4852 = vrot.lane.b32.xlu0 %v4842, 32
          %v4853 = vpop.permute.xlu0 %4852
          %4854 = vrot.lane.b32.xlu0 %v4843, 32
          %v4855 = vpop.permute.xlu0 %4854
          %v4860 = vadd.f32 %v4820, %v4849
          %v4861 = vadd.f32 %v4821, %v4851
          %v4862 = vadd.f32 %v4822, %v4853
          %v4863 = vadd.f32 %v4823, %v4855
          %v4864 = vtanh.pop %v4860
          %v4865 = vtanh.pop %v4861
          %v4866 = vtanh.pop %v4862
          %v4867 = vtanh.pop %v4863
          %4872 = vrot.lane.b32.xlu0 %v4864, 64
          %v4873 = vpop.permute.xlu0 %4872
          %4874 = vrot.lane.b32.xlu0 %v4865, 64
          %v4875 = vpop.permute.xlu0 %4874
          %4876 = vrot.lane.b32.xlu0 %v4866, 64
          %v4877 = vpop.permute.xlu0 %4876
          %4878 = vrot.lane.b32.xlu0 %v4867, 64
          %v4879 = vpop.permute.xlu0 %4878
          %v4884 = vmul.f32 %v4792, %v4873
          %v4885 = vmul.f32 %v4794, %v4875
          %v4886 = vmul.f32 %v4796, %v4877
          %v4887 = vmul.f32 %v4798, %v4879
          %vm4888 = vcmp.gt.s32.totalorder %v1844, 14
          %v4889 = vsel %vm4888, 1, 0
          %4890 = vset.pattern.permute.xlu0 0
          %4891 = vperm.xlu0 %4890, %v4889
          %v4892 = vpop.permute.xlu0 %4891
          %vm4893 = vcmp.eq.s32.totalorder %v4892, 1
          %v4898 = vrot.slane %v4884, 6
          %v4899 = vrot.slane %v4885, 5
          %v4900 = vsel %vm2042, %v4899, %v4898
          %v4901 = vrot.slane %v4886, 4
          %v4902 = vsel %vm2045, %v4901, %v4900
          %v4903 = vrot.slane %v4887, 3
          %v4904 = vsel %vm2048, %v4903, %v4902
          %4905 = vrot.lane.b32.xlu0 %v4904, 32
          %v4906 = vpop.permute.xlu0 %4905
          %v4908 = vsel %vm4893, %v4906, %v4702
          %v4913 = vrot.slane %v4860, 6
          %v4914 = vrot.slane %v4861, 5
          %v4915 = vsel %vm2042, %v4914, %v4913
          %v4916 = vrot.slane %v4862, 4
          %v4917 = vsel %vm2045, %v4916, %v4915
          %v4918 = vrot.slane %v4863, 3
          %v4919 = vsel %vm2048, %v4918, %v4917
          %4920 = vrot.lane.b32.xlu0 %v4919, 96
          %v4921 = vpop.permute.xlu0 %4920
          %v4923 = vsel %vm4893, %v4921, %v4717
          %v4924 = vpack.c.bf16 %v4908, %v4908
          %v4926 = vsel %vm1166, %v4924, 0
          %4928 = vmatprep.subr.bf16.mxu0 0
          %4929 = vmatpush1.bf16.msra.mxu0 0
          %4930 = vmatprep.subr.bf16.mxu0 0
          %4931 = vmatpush1.bf16.msra.mxu0 0
          %4932 = vmatprep.subr.bf16.mxu0 0
          %4933 = vmatpush1.bf16.msra.mxu0 0
          %4934 = vmatprep.subr.bf16.mxu0 0
          %4935 = vmatpush1.bf16.msra.mxu0 0
          %4936 = vmatprep.subr.bf16.mxu0 0
          %4937 = vmatpush1.bf16.msra.mxu0 0
          %4938 = vmatprep.subr.bf16.mxu0 0
          %4939 = vmatpush1.bf16.msra.mxu0 0
          %4940 = vmatprep.subr.bf16.mxu0 0
          %4941 = vmatpush1.bf16.msra.mxu0 %v1861
          %4942 = vmatprep.subr.bf16.mxu0 0
          %4943 = vmatpush1.bf16.msra.mxu0 %v1860
          %4944 = vmatprep.subr.bf16.mxu0 0
          %4945 = vmatpush2.bf16.msra.mxu0 0
          %4946 = vmatprep.subr.bf16.mxu0 0
          %4947 = vmatpush2.bf16.msra.mxu0 0
          %4948 = vmatprep.subr.bf16.mxu0 0
          %4949 = vmatpush2.bf16.msra.mxu0 0
          %4950 = vmatprep.subr.bf16.mxu0 0
          %4951 = vmatpush2.bf16.msra.mxu0 0
          %4952 = vmatprep.subr.bf16.mxu0 0
          %4953 = vmatpush2.bf16.msra.mxu0 0
          %4954 = vmatprep.subr.bf16.mxu0 0
          %4955 = vmatpush2.bf16.msra.mxu0 0
          %4956 = vmatprep.subr.bf16.mxu0 0
          %4957 = vmatpush2.bf16.msra.mxu0 0
          %4958 = vmatprep.subr.bf16.mxu0 0
          %4959 = vmatpush2.bf16.msra.mxu0 0
          %4960 = vmatprep.mubr.bf16.mxu0 0
          %4961 = vmatmul.mubr.bf16.gmra.mxu0 %v4926
          %v4962 = vpop.f32.mrf.mxu0
          %v4963 = vadd.f32 0.0, %v4962
          %v4964 = vpop.f32.mrf.mxu0
          %v4965 = vpop.f32.mrf.mxu0
          %v4966 = vpop.f32.mrf.mxu0
          %4967 = vdwg.mxu0
          %v4969 = vrot.slane %v4963, 1
          %v4970 = vrot.slane %v4963, 2
          %v4971 = vrot.slane %v4963, 3
          %v4972 = vrot.slane %v4963, 4
          %v4977 = vadd.f32 %v1783, %v4969
          %v4978 = vadd.f32 %v1799, %v4970
          %v4979 = vadd.f32 %v1815, %v4971
          %v4980 = vadd.f32 %v1831, %v4972
          %v4981 = vxor.u32 %v4977, 2147483648
          %v4982 = vxor.u32 %v4978, 2147483648
          %v4983 = vxor.u32 %v4979, 2147483648
          %v4984 = vxor.u32 %v4980, 2147483648
          %v4985 = vmul.f32 %v4981, 1.442695
          %v4986 = vpow.pop %v4985
          %v4987 = vmul.f32 %v4982, 1.442695
          %v4988 = vpow.pop %v4987
          %v4989 = vmul.f32 %v4983, 1.442695
          %v4990 = vpow.pop %v4989
          %v4991 = vmul.f32 %v4984, 1.442695
          %v4992 = vpow.pop %v4991
          %v4993 = vadd.f32 %v4986, 1.0
          %v4994 = vadd.f32 %v4988, 1.0
          %v4995 = vadd.f32 %v4990, 1.0
          %v4996 = vadd.f32 %v4992, 1.0
          %v4997 = vrcp.pop %v4993
          %v4998 = vmul.f32 1.0, %v4997
          %v4999 = vrcp.pop %v4994
          %v5000 = vmul.f32 1.0, %v4999
          %v5001 = vrcp.pop %v4995
          %v5002 = vmul.f32 1.0, %v5001
          %v5003 = vrcp.pop %v4996
          %v5004 = vmul.f32 1.0, %v5003
          %v5005 = vtanh.pop %v4977
          %v5006 = vtanh.pop %v4978
          %v5007 = vtanh.pop %v4979
          %v5008 = vtanh.pop %v4980
          %v5010 = vrot.slane %v4923, 1
          %v5011 = vrot.slane %v4923, 2
          %v5012 = vrot.slane %v4923, 3
          %v5013 = vrot.slane %v4923, 4
          %5014 = vrot.lane.b32.xlu0 %v5010, 32
          %v5015 = vpop.permute.xlu0 %5014
          %5016 = vrot.lane.b32.xlu0 %v5011, 32
          %v5017 = vpop.permute.xlu0 %5016
          %5018 = vrot.lane.b32.xlu0 %v5012, 32
          %v5019 = vpop.permute.xlu0 %5018
          %5020 = vrot.lane.b32.xlu0 %v5013, 32
          %v5021 = vpop.permute.xlu0 %5020
          %v5026 = vmul.f32 %v4998, %v5015
          %v5027 = vmul.f32 %v5000, %v5017
          %v5028 = vmul.f32 %v5002, %v5019
          %v5029 = vmul.f32 %v5004, %v5021
          %5034 = vrot.lane.b32.xlu0 %v5005, 64
          %v5035 = vpop.permute.xlu0 %5034
          %5036 = vrot.lane.b32.xlu0 %v5006, 64
          %v5037 = vpop.permute.xlu0 %5036
          %5038 = vrot.lane.b32.xlu0 %v5007, 64
          %v5039 = vpop.permute.xlu0 %5038
          %5040 = vrot.lane.b32.xlu0 %v5008, 64
          %v5041 = vpop.permute.xlu0 %5040
          %v5046 = vmul.f32 %v4998, %v5035
          %v5047 = vmul.f32 %v5000, %v5037
          %v5048 = vmul.f32 %v5002, %v5039
          %v5049 = vmul.f32 %v5004, %v5041
          %5054 = vrot.lane.b32.xlu0 %v5046, 32
          %v5055 = vpop.permute.xlu0 %5054
          %5056 = vrot.lane.b32.xlu0 %v5047, 32
          %v5057 = vpop.permute.xlu0 %5056
          %5058 = vrot.lane.b32.xlu0 %v5048, 32
          %v5059 = vpop.permute.xlu0 %5058
          %5060 = vrot.lane.b32.xlu0 %v5049, 32
          %v5061 = vpop.permute.xlu0 %5060
          %v5066 = vadd.f32 %v5026, %v5055
          %v5067 = vadd.f32 %v5027, %v5057
          %v5068 = vadd.f32 %v5028, %v5059
          %v5069 = vadd.f32 %v5029, %v5061
          %v5070 = vtanh.pop %v5066
          %v5071 = vtanh.pop %v5067
          %v5072 = vtanh.pop %v5068
          %v5073 = vtanh.pop %v5069
          %5078 = vrot.lane.b32.xlu0 %v5070, 64
          %v5079 = vpop.permute.xlu0 %5078
          %5080 = vrot.lane.b32.xlu0 %v5071, 64
          %v5081 = vpop.permute.xlu0 %5080
          %5082 = vrot.lane.b32.xlu0 %v5072, 64
          %v5083 = vpop.permute.xlu0 %5082
          %5084 = vrot.lane.b32.xlu0 %v5073, 64
          %v5085 = vpop.permute.xlu0 %5084
          %v5090 = vmul.f32 %v4998, %v5079
          %v5091 = vmul.f32 %v5000, %v5081
          %v5092 = vmul.f32 %v5002, %v5083
          %v5093 = vmul.f32 %v5004, %v5085
          %vm5094 = vcmp.gt.s32.totalorder %v1844, 15
          %v5095 = vsel %vm5094, 1, 0
          %5096 = vset.pattern.permute.xlu0 0
          %5097 = vperm.xlu0 %5096, %v5095
          %v5098 = vpop.permute.xlu0 %5097
          %vm5099 = vcmp.eq.s32.totalorder %v5098, 1
          %v5104 = vrot.slane %v5090, 7
          %v5105 = vrot.slane %v5091, 6
          %v5106 = vsel %vm2042, %v5105, %v5104
          %v5107 = vrot.slane %v5092, 5
          %v5108 = vsel %vm2045, %v5107, %v5106
          %v5109 = vrot.slane %v5093, 4
          %v5110 = vsel %vm2048, %v5109, %v5108
          %5111 = vrot.lane.b32.xlu0 %v5110, 32
          %v5112 = vpop.permute.xlu0 %5111
          %v5114 = vsel %vm5099, %v5112, %v4908
          %v5119 = vrot.slane %v5066, 7
          %v5120 = vrot.slane %v5067, 6
          %v5121 = vsel %vm2042, %v5120, %v5119
          %v5122 = vrot.slane %v5068, 5
          %v5123 = vsel %vm2045, %v5122, %v5121
          %v5124 = vrot.slane %v5069, 4
          %v5125 = vsel %vm2048, %v5124, %v5123
          %5126 = vrot.lane.b32.xlu0 %v5125, 96
          %v5127 = vpop.permute.xlu0 %5126
          %v5129 = vsel %vm5099, %v5127, %v4923
          %v5130 = vpack.c.bf16 %v5114, %v5114
          %v5132 = vsel %vm1166, %v5130, 0
          %5134 = vmatprep.subr.bf16.mxu0 0
          %5135 = vmatpush1.bf16.msra.mxu0 0
          %5136 = vmatprep.subr.bf16.mxu0 0
          %5137 = vmatpush1.bf16.msra.mxu0 0
          %5138 = vmatprep.subr.bf16.mxu0 0
          %5139 = vmatpush1.bf16.msra.mxu0 0
          %5140 = vmatprep.subr.bf16.mxu0 0
          %5141 = vmatpush1.bf16.msra.mxu0 0
          %5142 = vmatprep.subr.bf16.mxu0 0
          %5143 = vmatpush1.bf16.msra.mxu0 0
          %5144 = vmatprep.subr.bf16.mxu0 0
          %5145 = vmatpush1.bf16.msra.mxu0 0
          %5146 = vmatprep.subr.bf16.mxu0 0
          %5147 = vmatpush1.bf16.msra.mxu0 %v1861
          %5148 = vmatprep.subr.bf16.mxu0 0
          %5149 = vmatpush1.bf16.msra.mxu0 %v1860
          %5150 = vmatprep.subr.bf16.mxu0 0
          %5151 = vmatpush2.bf16.msra.mxu0 0
          %5152 = vmatprep.subr.bf16.mxu0 0
          %5153 = vmatpush2.bf16.msra.mxu0 0
          %5154 = vmatprep.subr.bf16.mxu0 0
          %5155 = vmatpush2.bf16.msra.mxu0 0
          %5156 = vmatprep.subr.bf16.mxu0 0
          %5157 = vmatpush2.bf16.msra.mxu0 0
          %5158 = vmatprep.subr.bf16.mxu0 0
          %5159 = vmatpush2.bf16.msra.mxu0 0
          %5160 = vmatprep.subr.bf16.mxu0 0
          %5161 = vmatpush2.bf16.msra.mxu0 0
          %5162 = vmatprep.subr.bf16.mxu0 0
          %5163 = vmatpush2.bf16.msra.mxu0 0
          %5164 = vmatprep.subr.bf16.mxu0 0
          %5165 = vmatpush2.bf16.msra.mxu0 0
          %5166 = vmatprep.mubr.bf16.mxu0 0
          %5167 = vmatmul.mubr.bf16.gmra.mxu0 %v5132
          %v5168 = vpop.f32.mrf.mxu0
          %v5169 = vadd.f32 0.0, %v5168
          %v5170 = vpop.f32.mrf.mxu0
          %v5171 = vpop.f32.mrf.mxu0
          %v5172 = vpop.f32.mrf.mxu0
          %5173 = vdwg.mxu0
          %v5175 = vrot.slane %v5169, 1
          %v5176 = vrot.slane %v5169, 2
          %v5177 = vrot.slane %v5169, 3
          %v5182 = vadd.f32 %v1788, %v5169
          %v5183 = vadd.f32 %v1804, %v5175
          %v5184 = vadd.f32 %v1820, %v5176
          %v5185 = vadd.f32 %v1836, %v5177
          %v5186 = vxor.u32 %v5182, 2147483648
          %v5187 = vxor.u32 %v5183, 2147483648
          %v5188 = vxor.u32 %v5184, 2147483648
          %v5189 = vxor.u32 %v5185, 2147483648
          %v5190 = vmul.f32 %v5186, 1.442695
          %v5191 = vpow.pop %v5190
          %v5192 = vmul.f32 %v5187, 1.442695
          %v5193 = vpow.pop %v5192
          %v5194 = vmul.f32 %v5188, 1.442695
          %v5195 = vpow.pop %v5194
          %v5196 = vmul.f32 %v5189, 1.442695
          %v5197 = vpow.pop %v5196
          %v5198 = vadd.f32 %v5191, 1.0
          %v5199 = vadd.f32 %v5193, 1.0
          %v5200 = vadd.f32 %v5195, 1.0
          %v5201 = vadd.f32 %v5197, 1.0
          %v5202 = vrcp.pop %v5198
          %v5203 = vmul.f32 1.0, %v5202
          %v5204 = vrcp.pop %v5199
          %v5205 = vmul.f32 1.0, %v5204
          %v5206 = vrcp.pop %v5200
          %v5207 = vmul.f32 1.0, %v5206
          %v5208 = vrcp.pop %v5201
          %v5209 = vmul.f32 1.0, %v5208
          %v5210 = vtanh.pop %v5182
          %v5211 = vtanh.pop %v5183
          %v5212 = vtanh.pop %v5184
          %v5213 = vtanh.pop %v5185
          %v5215 = vrot.slane %v5129, 1
          %v5216 = vrot.slane %v5129, 2
          %v5217 = vrot.slane %v5129, 3
          %5218 = vrot.lane.b32.xlu0 %v5129, 32
          %v5219 = vpop.permute.xlu0 %5218
          %5220 = vrot.lane.b32.xlu0 %v5215, 32
          %v5221 = vpop.permute.xlu0 %5220
          %5222 = vrot.lane.b32.xlu0 %v5216, 32
          %v5223 = vpop.permute.xlu0 %5222
          %5224 = vrot.lane.b32.xlu0 %v5217, 32
          %v5225 = vpop.permute.xlu0 %5224
          %v5230 = vmul.f32 %v5203, %v5219
          %v5231 = vmul.f32 %v5205, %v5221
          %v5232 = vmul.f32 %v5207, %v5223
          %v5233 = vmul.f32 %v5209, %v5225
          %5238 = vrot.lane.b32.xlu0 %v5210, 64
          %v5239 = vpop.permute.xlu0 %5238
          %5240 = vrot.lane.b32.xlu0 %v5211, 64
          %v5241 = vpop.permute.xlu0 %5240
          %5242 = vrot.lane.b32.xlu0 %v5212, 64
          %v5243 = vpop.permute.xlu0 %5242
          %5244 = vrot.lane.b32.xlu0 %v5213, 64
          %v5245 = vpop.permute.xlu0 %5244
          %v5250 = vmul.f32 %v5203, %v5239
          %v5251 = vmul.f32 %v5205, %v5241
          %v5252 = vmul.f32 %v5207, %v5243
          %v5253 = vmul.f32 %v5209, %v5245
          %5258 = vrot.lane.b32.xlu0 %v5250, 32
          %v5259 = vpop.permute.xlu0 %5258
          %5260 = vrot.lane.b32.xlu0 %v5251, 32
          %v5261 = vpop.permute.xlu0 %5260
          %5262 = vrot.lane.b32.xlu0 %v5252, 32
          %v5263 = vpop.permute.xlu0 %5262
          %5264 = vrot.lane.b32.xlu0 %v5253, 32
          %v5265 = vpop.permute.xlu0 %5264
          %v5270 = vadd.f32 %v5230, %v5259
          %v5271 = vadd.f32 %v5231, %v5261
          %v5272 = vadd.f32 %v5232, %v5263
          %v5273 = vadd.f32 %v5233, %v5265
          %v5274 = vtanh.pop %v5270
          %v5275 = vtanh.pop %v5271
          %v5276 = vtanh.pop %v5272
          %v5277 = vtanh.pop %v5273
          %5282 = vrot.lane.b32.xlu0 %v5274, 64
          %v5283 = vpop.permute.xlu0 %5282
          %5284 = vrot.lane.b32.xlu0 %v5275, 64
          %v5285 = vpop.permute.xlu0 %5284
          %5286 = vrot.lane.b32.xlu0 %v5276, 64
          %v5287 = vpop.permute.xlu0 %5286
          %5288 = vrot.lane.b32.xlu0 %v5277, 64
          %v5289 = vpop.permute.xlu0 %5288
          %v5294 = vmul.f32 %v5203, %v5283
          %v5295 = vmul.f32 %v5205, %v5285
          %v5296 = vmul.f32 %v5207, %v5287
          %v5297 = vmul.f32 %v5209, %v5289
          %vm5298 = vcmp.gt.s32.totalorder %v1844, 16
          %v5299 = vsel %vm5298, 1, 0
          %5300 = vset.pattern.permute.xlu0 0
          %5301 = vperm.xlu0 %5300, %v5299
          %v5302 = vpop.permute.xlu0 %5301
          %vm5303 = vcmp.eq.s32.totalorder %v5302, 1
          %v5308 = vrot.slane %v5295, 7
          %v5309 = vsel %vm2042, %v5308, %v5294
          %v5310 = vrot.slane %v5296, 6
          %v5311 = vsel %vm2045, %v5310, %v5309
          %v5312 = vrot.slane %v5297, 5
          %v5313 = vsel %vm2048, %v5312, %v5311
          %5314 = vrot.lane.b32.xlu0 %v5313, 32
          %v5315 = vpop.permute.xlu0 %5314
          %v5317 = vsel %vm5303, %v5315, %v5114
          %v5322 = vrot.slane %v5271, 7
          %v5323 = vsel %vm2042, %v5322, %v5270
          %v5324 = vrot.slane %v5272, 6
          %v5325 = vsel %vm2045, %v5324, %v5323
          %v5326 = vrot.slane %v5273, 5
          %v5327 = vsel %vm2048, %v5326, %v5325
          %5328 = vrot.lane.b32.xlu0 %v5327, 96
          %v5329 = vpop.permute.xlu0 %5328
          %v5331 = vsel %vm5303, %v5329, %v5129
          %v5332 = vpack.c.bf16 %v5317, %v5317
          %v5334 = vsel %vm1166, %v5332, 0
          %5336 = vmatprep.subr.bf16.mxu0 0
          %5337 = vmatpush1.bf16.msra.mxu0 0
          %5338 = vmatprep.subr.bf16.mxu0 0
          %5339 = vmatpush1.bf16.msra.mxu0 0
          %5340 = vmatprep.subr.bf16.mxu0 0
          %5341 = vmatpush1.bf16.msra.mxu0 0
          %5342 = vmatprep.subr.bf16.mxu0 0
          %5343 = vmatpush1.bf16.msra.mxu0 0
          %5344 = vmatprep.subr.bf16.mxu0 0
          %5345 = vmatpush1.bf16.msra.mxu0 0
          %5346 = vmatprep.subr.bf16.mxu0 0
          %5347 = vmatpush1.bf16.msra.mxu0 0
          %5348 = vmatprep.subr.bf16.mxu0 0
          %5349 = vmatpush1.bf16.msra.mxu0 %v1861
          %5350 = vmatprep.subr.bf16.mxu0 0
          %5351 = vmatpush1.bf16.msra.mxu0 %v1860
          %5352 = vmatprep.subr.bf16.mxu0 0
          %5353 = vmatpush2.bf16.msra.mxu0 0
          %5354 = vmatprep.subr.bf16.mxu0 0
          %5355 = vmatpush2.bf16.msra.mxu0 0
          %5356 = vmatprep.subr.bf16.mxu0 0
          %5357 = vmatpush2.bf16.msra.mxu0 0
          %5358 = vmatprep.subr.bf16.mxu0 0
          %5359 = vmatpush2.bf16.msra.mxu0 0
          %5360 = vmatprep.subr.bf16.mxu0 0
          %5361 = vmatpush2.bf16.msra.mxu0 0
          %5362 = vmatprep.subr.bf16.mxu0 0
          %5363 = vmatpush2.bf16.msra.mxu0 0
          %5364 = vmatprep.subr.bf16.mxu0 0
          %5365 = vmatpush2.bf16.msra.mxu0 0
          %5366 = vmatprep.subr.bf16.mxu0 0
          %5367 = vmatpush2.bf16.msra.mxu0 0
          %5368 = vmatprep.mubr.bf16.mxu0 0
          %5369 = vmatmul.mubr.bf16.gmra.mxu0 %v5334
          %v5370 = vpop.f32.mrf.mxu0
          %v5371 = vadd.f32 0.0, %v5370
          %v5372 = vpop.f32.mrf.mxu0
          %v5373 = vpop.f32.mrf.mxu0
          %v5374 = vpop.f32.mrf.mxu0
          %5375 = vdwg.mxu0
          %v5377 = vrot.slane %v5371, 7
          %v5378 = vrot.slane %v5371, 1
          %v5379 = vrot.slane %v5371, 2
          %v5384 = vadd.f32 %v1788, %v5377
          %v5385 = vadd.f32 %v1804, %v5371
          %v5386 = vadd.f32 %v1820, %v5378
          %v5387 = vadd.f32 %v1836, %v5379
          %v5388 = vxor.u32 %v5384, 2147483648
          %v5389 = vxor.u32 %v5385, 2147483648
          %v5390 = vxor.u32 %v5386, 2147483648
          %v5391 = vxor.u32 %v5387, 2147483648
          %v5392 = vmul.f32 %v5388, 1.442695
          %v5393 = vpow.pop %v5392
          %v5394 = vmul.f32 %v5389, 1.442695
          %v5395 = vpow.pop %v5394
          %v5396 = vmul.f32 %v5390, 1.442695
          %v5397 = vpow.pop %v5396
          %v5398 = vmul.f32 %v5391, 1.442695
          %v5399 = vpow.pop %v5398
          %v5400 = vadd.f32 %v5393, 1.0
          %v5401 = vadd.f32 %v5395, 1.0
          %v5402 = vadd.f32 %v5397, 1.0
          %v5403 = vadd.f32 %v5399, 1.0
          %v5404 = vrcp.pop %v5400
          %v5405 = vmul.f32 1.0, %v5404
          %v5406 = vrcp.pop %v5401
          %v5407 = vmul.f32 1.0, %v5406
          %v5408 = vrcp.pop %v5402
          %v5409 = vmul.f32 1.0, %v5408
          %v5410 = vrcp.pop %v5403
          %v5411 = vmul.f32 1.0, %v5410
          %v5412 = vtanh.pop %v5384
          %v5413 = vtanh.pop %v5385
          %v5414 = vtanh.pop %v5386
          %v5415 = vtanh.pop %v5387
          %v5417 = vrot.slane %v5331, 7
          %v5418 = vrot.slane %v5331, 1
          %v5419 = vrot.slane %v5331, 2
          %5420 = vrot.lane.b32.xlu0 %v5417, 32
          %v5421 = vpop.permute.xlu0 %5420
          %5422 = vrot.lane.b32.xlu0 %v5331, 32
          %v5423 = vpop.permute.xlu0 %5422
          %5424 = vrot.lane.b32.xlu0 %v5418, 32
          %v5425 = vpop.permute.xlu0 %5424
          %5426 = vrot.lane.b32.xlu0 %v5419, 32
          %v5427 = vpop.permute.xlu0 %5426
          %v5432 = vmul.f32 %v5405, %v5421
          %v5433 = vmul.f32 %v5407, %v5423
          %v5434 = vmul.f32 %v5409, %v5425
          %v5435 = vmul.f32 %v5411, %v5427
          %5440 = vrot.lane.b32.xlu0 %v5412, 64
          %v5441 = vpop.permute.xlu0 %5440
          %5442 = vrot.lane.b32.xlu0 %v5413, 64
          %v5443 = vpop.permute.xlu0 %5442
          %5444 = vrot.lane.b32.xlu0 %v5414, 64
          %v5445 = vpop.permute.xlu0 %5444
          %5446 = vrot.lane.b32.xlu0 %v5415, 64
          %v5447 = vpop.permute.xlu0 %5446
          %v5452 = vmul.f32 %v5405, %v5441
          %v5453 = vmul.f32 %v5407, %v5443
          %v5454 = vmul.f32 %v5409, %v5445
          %v5455 = vmul.f32 %v5411, %v5447
          %5460 = vrot.lane.b32.xlu0 %v5452, 32
          %v5461 = vpop.permute.xlu0 %5460
          %5462 = vrot.lane.b32.xlu0 %v5453, 32
          %v5463 = vpop.permute.xlu0 %5462
          %5464 = vrot.lane.b32.xlu0 %v5454, 32
          %v5465 = vpop.permute.xlu0 %5464
          %5466 = vrot.lane.b32.xlu0 %v5455, 32
          %v5467 = vpop.permute.xlu0 %5466
          %v5472 = vadd.f32 %v5432, %v5461
          %v5473 = vadd.f32 %v5433, %v5463
          %v5474 = vadd.f32 %v5434, %v5465
          %v5475 = vadd.f32 %v5435, %v5467
          %v5476 = vtanh.pop %v5472
          %v5477 = vtanh.pop %v5473
          %v5478 = vtanh.pop %v5474
          %v5479 = vtanh.pop %v5475
          %5484 = vrot.lane.b32.xlu0 %v5476, 64
          %v5485 = vpop.permute.xlu0 %5484
          %5486 = vrot.lane.b32.xlu0 %v5477, 64
          %v5487 = vpop.permute.xlu0 %5486
          %5488 = vrot.lane.b32.xlu0 %v5478, 64
          %v5489 = vpop.permute.xlu0 %5488
          %5490 = vrot.lane.b32.xlu0 %v5479, 64
          %v5491 = vpop.permute.xlu0 %5490
          %v5496 = vmul.f32 %v5405, %v5485
          %v5497 = vmul.f32 %v5407, %v5487
          %v5498 = vmul.f32 %v5409, %v5489
          %v5499 = vmul.f32 %v5411, %v5491
          %vm5500 = vcmp.gt.s32.totalorder %v1844, 17
          %v5501 = vsel %vm5500, 1, 0
          %5502 = vset.pattern.permute.xlu0 0
          %5503 = vperm.xlu0 %5502, %v5501
          %v5504 = vpop.permute.xlu0 %5503
          %vm5505 = vcmp.eq.s32.totalorder %v5504, 1
          %v5510 = vrot.slane %v5496, 1
          %v5511 = vsel %vm2042, %v5497, %v5510
          %v5512 = vrot.slane %v5498, 7
          %v5513 = vsel %vm2045, %v5512, %v5511
          %v5514 = vrot.slane %v5499, 6
          %v5515 = vsel %vm2048, %v5514, %v5513
          %5516 = vrot.lane.b32.xlu0 %v5515, 32
          %v5517 = vpop.permute.xlu0 %5516
          %v5519 = vsel %vm5505, %v5517, %v5317
          %v5524 = vrot.slane %v5472, 1
          %v5525 = vsel %vm2042, %v5473, %v5524
          %v5526 = vrot.slane %v5474, 7
          %v5527 = vsel %vm2045, %v5526, %v5525
          %v5528 = vrot.slane %v5475, 6
          %v5529 = vsel %vm2048, %v5528, %v5527
          %5530 = vrot.lane.b32.xlu0 %v5529, 96
          %v5531 = vpop.permute.xlu0 %5530
          %v5533 = vsel %vm5505, %v5531, %v5331
          %v5534 = vpack.c.bf16 %v5519, %v5519
          %v5536 = vsel %vm1166, %v5534, 0
          %5538 = vmatprep.subr.bf16.mxu0 0
          %5539 = vmatpush1.bf16.msra.mxu0 0
          %5540 = vmatprep.subr.bf16.mxu0 0
          %5541 = vmatpush1.bf16.msra.mxu0 0
          %5542 = vmatprep.subr.bf16.mxu0 0
          %5543 = vmatpush1.bf16.msra.mxu0 0
          %5544 = vmatprep.subr.bf16.mxu0 0
          %5545 = vmatpush1.bf16.msra.mxu0 0
          %5546 = vmatprep.subr.bf16.mxu0 0
          %5547 = vmatpush1.bf16.msra.mxu0 0
          %5548 = vmatprep.subr.bf16.mxu0 0
          %5549 = vmatpush1.bf16.msra.mxu0 0
          %5550 = vmatprep.subr.bf16.mxu0 0
          %5551 = vmatpush1.bf16.msra.mxu0 %v1861
          %5552 = vmatprep.subr.bf16.mxu0 0
          %5553 = vmatpush1.bf16.msra.mxu0 %v1860
          %5554 = vmatprep.subr.bf16.mxu0 0
          %5555 = vmatpush2.bf16.msra.mxu0 0
          %5556 = vmatprep.subr.bf16.mxu0 0
          %5557 = vmatpush2.bf16.msra.mxu0 0
          %5558 = vmatprep.subr.bf16.mxu0 0
          %5559 = vmatpush2.bf16.msra.mxu0 0
          %5560 = vmatprep.subr.bf16.mxu0 0
          %5561 = vmatpush2.bf16.msra.mxu0 0
          %5562 = vmatprep.subr.bf16.mxu0 0
          %5563 = vmatpush2.bf16.msra.mxu0 0
          %5564 = vmatprep.subr.bf16.mxu0 0
          %5565 = vmatpush2.bf16.msra.mxu0 0
          %5566 = vmatprep.subr.bf16.mxu0 0
          %5567 = vmatpush2.bf16.msra.mxu0 0
          %5568 = vmatprep.subr.bf16.mxu0 0
          %5569 = vmatpush2.bf16.msra.mxu0 0
          %5570 = vmatprep.mubr.bf16.mxu0 0
          %5571 = vmatmul.mubr.bf16.gmra.mxu0 %v5536
          %v5572 = vpop.f32.mrf.mxu0
          %v5573 = vadd.f32 0.0, %v5572
          %v5574 = vpop.f32.mrf.mxu0
          %v5575 = vpop.f32.mrf.mxu0
          %v5576 = vpop.f32.mrf.mxu0
          %5577 = vdwg.mxu0
          %v5579 = vrot.slane %v5573, 6
          %v5580 = vrot.slane %v5573, 7
          %v5581 = vrot.slane %v5573, 1
          %v5586 = vadd.f32 %v1788, %v5579
          %v5587 = vadd.f32 %v1804, %v5580
          %v5588 = vadd.f32 %v1820, %v5573
          %v5589 = vadd.f32 %v1836, %v5581
          %v5590 = vxor.u32 %v5586, 2147483648
          %v5591 = vxor.u32 %v5587, 2147483648
          %v5592 = vxor.u32 %v5588, 2147483648
          %v5593 = vxor.u32 %v5589, 2147483648
          %v5594 = vmul.f32 %v5590, 1.442695
          %v5595 = vpow.pop %v5594
          %v5596 = vmul.f32 %v5591, 1.442695
          %v5597 = vpow.pop %v5596
          %v5598 = vmul.f32 %v5592, 1.442695
          %v5599 = vpow.pop %v5598
          %v5600 = vmul.f32 %v5593, 1.442695
          %v5601 = vpow.pop %v5600
          %v5602 = vadd.f32 %v5595, 1.0
          %v5603 = vadd.f32 %v5597, 1.0
          %v5604 = vadd.f32 %v5599, 1.0
          %v5605 = vadd.f32 %v5601, 1.0
          %v5606 = vrcp.pop %v5602
          %v5607 = vmul.f32 1.0, %v5606
          %v5608 = vrcp.pop %v5603
          %v5609 = vmul.f32 1.0, %v5608
          %v5610 = vrcp.pop %v5604
          %v5611 = vmul.f32 1.0, %v5610
          %v5612 = vrcp.pop %v5605
          %v5613 = vmul.f32 1.0, %v5612
          %v5614 = vtanh.pop %v5586
          %v5615 = vtanh.pop %v5587
          %v5616 = vtanh.pop %v5588
          %v5617 = vtanh.pop %v5589
          %v5619 = vrot.slane %v5533, 6
          %v5620 = vrot.slane %v5533, 7
          %v5621 = vrot.slane %v5533, 1
          %5622 = vrot.lane.b32.xlu0 %v5619, 32
          %v5623 = vpop.permute.xlu0 %5622
          %5624 = vrot.lane.b32.xlu0 %v5620, 32
          %v5625 = vpop.permute.xlu0 %5624
          %5626 = vrot.lane.b32.xlu0 %v5533, 32
          %v5627 = vpop.permute.xlu0 %5626
          %5628 = vrot.lane.b32.xlu0 %v5621, 32
          %v5629 = vpop.permute.xlu0 %5628
          %v5634 = vmul.f32 %v5607, %v5623
          %v5635 = vmul.f32 %v5609, %v5625
          %v5636 = vmul.f32 %v5611, %v5627
          %v5637 = vmul.f32 %v5613, %v5629
          %5642 = vrot.lane.b32.xlu0 %v5614, 64
          %v5643 = vpop.permute.xlu0 %5642
          %5644 = vrot.lane.b32.xlu0 %v5615, 64
          %v5645 = vpop.permute.xlu0 %5644
          %5646 = vrot.lane.b32.xlu0 %v5616, 64
          %v5647 = vpop.permute.xlu0 %5646
          %5648 = vrot.lane.b32.xlu0 %v5617, 64
          %v5649 = vpop.permute.xlu0 %5648
          %v5654 = vmul.f32 %v5607, %v5643
          %v5655 = vmul.f32 %v5609, %v5645
          %v5656 = vmul.f32 %v5611, %v5647
          %v5657 = vmul.f32 %v5613, %v5649
          %5662 = vrot.lane.b32.xlu0 %v5654, 32
          %v5663 = vpop.permute.xlu0 %5662
          %5664 = vrot.lane.b32.xlu0 %v5655, 32
          %v5665 = vpop.permute.xlu0 %5664
          %5666 = vrot.lane.b32.xlu0 %v5656, 32
          %v5667 = vpop.permute.xlu0 %5666
          %5668 = vrot.lane.b32.xlu0 %v5657, 32
          %v5669 = vpop.permute.xlu0 %5668
          %v5674 = vadd.f32 %v5634, %v5663
          %v5675 = vadd.f32 %v5635, %v5665
          %v5676 = vadd.f32 %v5636, %v5667
          %v5677 = vadd.f32 %v5637, %v5669
          %v5678 = vtanh.pop %v5674
          %v5679 = vtanh.pop %v5675
          %v5680 = vtanh.pop %v5676
          %v5681 = vtanh.pop %v5677
          %5686 = vrot.lane.b32.xlu0 %v5678, 64
          %v5687 = vpop.permute.xlu0 %5686
          %5688 = vrot.lane.b32.xlu0 %v5679, 64
          %v5689 = vpop.permute.xlu0 %5688
          %5690 = vrot.lane.b32.xlu0 %v5680, 64
          %v5691 = vpop.permute.xlu0 %5690
          %5692 = vrot.lane.b32.xlu0 %v5681, 64
          %v5693 = vpop.permute.xlu0 %5692
          %v5698 = vmul.f32 %v5607, %v5687
          %v5699 = vmul.f32 %v5609, %v5689
          %v5700 = vmul.f32 %v5611, %v5691
          %v5701 = vmul.f32 %v5613, %v5693
          %vm5702 = vcmp.gt.s32.totalorder %v1844, 18
          %v5703 = vsel %vm5702, 1, 0
          %5704 = vset.pattern.permute.xlu0 0
          %5705 = vperm.xlu0 %5704, %v5703
          %v5706 = vpop.permute.xlu0 %5705
          %vm5707 = vcmp.eq.s32.totalorder %v5706, 1
          %v5712 = vrot.slane %v5698, 2
          %v5713 = vrot.slane %v5699, 1
          %v5714 = vsel %vm2042, %v5713, %v5712
          %v5715 = vsel %vm2045, %v5700, %v5714
          %v5716 = vrot.slane %v5701, 7
          %v5717 = vsel %vm2048, %v5716, %v5715
          %5718 = vrot.lane.b32.xlu0 %v5717, 32
          %v5719 = vpop.permute.xlu0 %5718
          %v5721 = vsel %vm5707, %v5719, %v5519
          %v5726 = vrot.slane %v5674, 2
          %v5727 = vrot.slane %v5675, 1
          %v5728 = vsel %vm2042, %v5727, %v5726
          %v5729 = vsel %vm2045, %v5676, %v5728
          %v5730 = vrot.slane %v5677, 7
          %v5731 = vsel %vm2048, %v5730, %v5729
          %5732 = vrot.lane.b32.xlu0 %v5731, 96
          %v5733 = vpop.permute.xlu0 %5732
          %v5735 = vsel %vm5707, %v5733, %v5533
          %v5736 = vpack.c.bf16 %v5721, %v5721
          %v5738 = vsel %vm1166, %v5736, 0
          %5740 = vmatprep.subr.bf16.mxu0 0
          %5741 = vmatpush1.bf16.msra.mxu0 0
          %5742 = vmatprep.subr.bf16.mxu0 0
          %5743 = vmatpush1.bf16.msra.mxu0 0
          %5744 = vmatprep.subr.bf16.mxu0 0
          %5745 = vmatpush1.bf16.msra.mxu0 0
          %5746 = vmatprep.subr.bf16.mxu0 0
          %5747 = vmatpush1.bf16.msra.mxu0 0
          %5748 = vmatprep.subr.bf16.mxu0 0
          %5749 = vmatpush1.bf16.msra.mxu0 0
          %5750 = vmatprep.subr.bf16.mxu0 0
          %5751 = vmatpush1.bf16.msra.mxu0 0
          %5752 = vmatprep.subr.bf16.mxu0 0
          %5753 = vmatpush1.bf16.msra.mxu0 %v1861
          %5754 = vmatprep.subr.bf16.mxu0 0
          %5755 = vmatpush1.bf16.msra.mxu0 %v1860
          %5756 = vmatprep.subr.bf16.mxu0 0
          %5757 = vmatpush2.bf16.msra.mxu0 0
          %5758 = vmatprep.subr.bf16.mxu0 0
          %5759 = vmatpush2.bf16.msra.mxu0 0
          %5760 = vmatprep.subr.bf16.mxu0 0
          %5761 = vmatpush2.bf16.msra.mxu0 0
          %5762 = vmatprep.subr.bf16.mxu0 0
          %5763 = vmatpush2.bf16.msra.mxu0 0
          %5764 = vmatprep.subr.bf16.mxu0 0
          %5765 = vmatpush2.bf16.msra.mxu0 0
          %5766 = vmatprep.subr.bf16.mxu0 0
          %5767 = vmatpush2.bf16.msra.mxu0 0
          %5768 = vmatprep.subr.bf16.mxu0 0
          %5769 = vmatpush2.bf16.msra.mxu0 0
          %5770 = vmatprep.subr.bf16.mxu0 0
          %5771 = vmatpush2.bf16.msra.mxu0 0
          %5772 = vmatprep.mubr.bf16.mxu0 0
          %5773 = vmatmul.mubr.bf16.gmra.mxu0 %v5738
          %v5774 = vpop.f32.mrf.mxu0
          %v5775 = vadd.f32 0.0, %v5774
          %v5776 = vpop.f32.mrf.mxu0
          %v5777 = vpop.f32.mrf.mxu0
          %v5778 = vpop.f32.mrf.mxu0
          %5779 = vdwg.mxu0
          %v5781 = vrot.slane %v5775, 5
          %v5782 = vrot.slane %v5775, 6
          %v5783 = vrot.slane %v5775, 7
          %v5788 = vadd.f32 %v1788, %v5781
          %v5789 = vadd.f32 %v1804, %v5782
          %v5790 = vadd.f32 %v1820, %v5783
          %v5791 = vadd.f32 %v1836, %v5775
          %v5792 = vxor.u32 %v5788, 2147483648
          %v5793 = vxor.u32 %v5789, 2147483648
          %v5794 = vxor.u32 %v5790, 2147483648
          %v5795 = vxor.u32 %v5791, 2147483648
          %v5796 = vmul.f32 %v5792, 1.442695
          %v5797 = vpow.pop %v5796
          %v5798 = vmul.f32 %v5793, 1.442695
          %v5799 = vpow.pop %v5798
          %v5800 = vmul.f32 %v5794, 1.442695
          %v5801 = vpow.pop %v5800
          %v5802 = vmul.f32 %v5795, 1.442695
          %v5803 = vpow.pop %v5802
          %v5804 = vadd.f32 %v5797, 1.0
          %v5805 = vadd.f32 %v5799, 1.0
          %v5806 = vadd.f32 %v5801, 1.0
          %v5807 = vadd.f32 %v5803, 1.0
          %v5808 = vrcp.pop %v5804
          %v5809 = vmul.f32 1.0, %v5808
          %v5810 = vrcp.pop %v5805
          %v5811 = vmul.f32 1.0, %v5810
          %v5812 = vrcp.pop %v5806
          %v5813 = vmul.f32 1.0, %v5812
          %v5814 = vrcp.pop %v5807
          %v5815 = vmul.f32 1.0, %v5814
          %v5816 = vtanh.pop %v5788
          %v5817 = vtanh.pop %v5789
          %v5818 = vtanh.pop %v5790
          %v5819 = vtanh.pop %v5791
          %v5821 = vrot.slane %v5735, 5
          %v5822 = vrot.slane %v5735, 6
          %v5823 = vrot.slane %v5735, 7
          %5824 = vrot.lane.b32.xlu0 %v5821, 32
          %v5825 = vpop.permute.xlu0 %5824
          %5826 = vrot.lane.b32.xlu0 %v5822, 32
          %v5827 = vpop.permute.xlu0 %5826
          %5828 = vrot.lane.b32.xlu0 %v5823, 32
          %v5829 = vpop.permute.xlu0 %5828
          %5830 = vrot.lane.b32.xlu0 %v5735, 32
          %v5831 = vpop.permute.xlu0 %5830
          %v5836 = vmul.f32 %v5809, %v5825
          %v5837 = vmul.f32 %v5811, %v5827
          %v5838 = vmul.f32 %v5813, %v5829
          %v5839 = vmul.f32 %v5815, %v5831
          %5844 = vrot.lane.b32.xlu0 %v5816, 64
          %v5845 = vpop.permute.xlu0 %5844
          %5846 = vrot.lane.b32.xlu0 %v5817, 64
          %v5847 = vpop.permute.xlu0 %5846
          %5848 = vrot.lane.b32.xlu0 %v5818, 64
          %v5849 = vpop.permute.xlu0 %5848
          %5850 = vrot.lane.b32.xlu0 %v5819, 64
          %v5851 = vpop.permute.xlu0 %5850
          %v5856 = vmul.f32 %v5809, %v5845
          %v5857 = vmul.f32 %v5811, %v5847
          %v5858 = vmul.f32 %v5813, %v5849
          %v5859 = vmul.f32 %v5815, %v5851
          %5864 = vrot.lane.b32.xlu0 %v5856, 32
          %v5865 = vpop.permute.xlu0 %5864
          %5866 = vrot.lane.b32.xlu0 %v5857, 32
          %v5867 = vpop.permute.xlu0 %5866
          %5868 = vrot.lane.b32.xlu0 %v5858, 32
          %v5869 = vpop.permute.xlu0 %5868
          %5870 = vrot.lane.b32.xlu0 %v5859, 32
          %v5871 = vpop.permute.xlu0 %5870
          %v5876 = vadd.f32 %v5836, %v5865
          %v5877 = vadd.f32 %v5837, %v5867
          %v5878 = vadd.f32 %v5838, %v5869
          %v5879 = vadd.f32 %v5839, %v5871
          %v5880 = vtanh.pop %v5876
          %v5881 = vtanh.pop %v5877
          %v5882 = vtanh.pop %v5878
          %v5883 = vtanh.pop %v5879
          %5888 = vrot.lane.b32.xlu0 %v5880, 64
          %v5889 = vpop.permute.xlu0 %5888
          %5890 = vrot.lane.b32.xlu0 %v5881, 64
          %v5891 = vpop.permute.xlu0 %5890
          %5892 = vrot.lane.b32.xlu0 %v5882, 64
          %v5893 = vpop.permute.xlu0 %5892
          %5894 = vrot.lane.b32.xlu0 %v5883, 64
          %v5895 = vpop.permute.xlu0 %5894
          %v5900 = vmul.f32 %v5809, %v5889
          %v5901 = vmul.f32 %v5811, %v5891
          %v5902 = vmul.f32 %v5813, %v5893
          %v5903 = vmul.f32 %v5815, %v5895
          %vm5904 = vcmp.gt.s32.totalorder %v1844, 19
          %v5905 = vsel %vm5904, 1, 0
          %5906 = vset.pattern.permute.xlu0 0
          %5907 = vperm.xlu0 %5906, %v5905
          %v5908 = vpop.permute.xlu0 %5907
          %vm5909 = vcmp.eq.s32.totalorder %v5908, 1
          %v5914 = vrot.slane %v5900, 3
          %v5915 = vrot.slane %v5901, 2
          %v5916 = vsel %vm2042, %v5915, %v5914
          %v5917 = vrot.slane %v5902, 1
          %v5918 = vsel %vm2045, %v5917, %v5916
          %v5919 = vsel %vm2048, %v5903, %v5918
          %5920 = vrot.lane.b32.xlu0 %v5919, 32
          %v5921 = vpop.permute.xlu0 %5920
          %v5923 = vsel %vm5909, %v5921, %v5721
          %v5928 = vrot.slane %v5876, 3
          %v5929 = vrot.slane %v5877, 2
          %v5930 = vsel %vm2042, %v5929, %v5928
          %v5931 = vrot.slane %v5878, 1
          %v5932 = vsel %vm2045, %v5931, %v5930
          %v5933 = vsel %vm2048, %v5879, %v5932
          %5934 = vrot.lane.b32.xlu0 %v5933, 96
          %v5935 = vpop.permute.xlu0 %5934
          %v5937 = vsel %vm5909, %v5935, %v5735
          %v5938 = vpack.c.bf16 %v5923, %v5923
          %v5940 = vsel %vm1166, %v5938, 0
          %5942 = vmatprep.subr.bf16.mxu0 0
          %5943 = vmatpush1.bf16.msra.mxu0 0
          %5944 = vmatprep.subr.bf16.mxu0 0
          %5945 = vmatpush1.bf16.msra.mxu0 0
          %5946 = vmatprep.subr.bf16.mxu0 0
          %5947 = vmatpush1.bf16.msra.mxu0 0
          %5948 = vmatprep.subr.bf16.mxu0 0
          %5949 = vmatpush1.bf16.msra.mxu0 0
          %5950 = vmatprep.subr.bf16.mxu0 0
          %5951 = vmatpush1.bf16.msra.mxu0 0
          %5952 = vmatprep.subr.bf16.mxu0 0
          %5953 = vmatpush1.bf16.msra.mxu0 0
          %5954 = vmatprep.subr.bf16.mxu0 0
          %5955 = vmatpush1.bf16.msra.mxu0 %v1861
          %5956 = vmatprep.subr.bf16.mxu0 0
          %5957 = vmatpush1.bf16.msra.mxu0 %v1860
          %5958 = vmatprep.subr.bf16.mxu0 0
          %5959 = vmatpush2.bf16.msra.mxu0 0
          %5960 = vmatprep.subr.bf16.mxu0 0
          %5961 = vmatpush2.bf16.msra.mxu0 0
          %5962 = vmatprep.subr.bf16.mxu0 0
          %5963 = vmatpush2.bf16.msra.mxu0 0
          %5964 = vmatprep.subr.bf16.mxu0 0
          %5965 = vmatpush2.bf16.msra.mxu0 0
          %5966 = vmatprep.subr.bf16.mxu0 0
          %5967 = vmatpush2.bf16.msra.mxu0 0
          %5968 = vmatprep.subr.bf16.mxu0 0
          %5969 = vmatpush2.bf16.msra.mxu0 0
          %5970 = vmatprep.subr.bf16.mxu0 0
          %5971 = vmatpush2.bf16.msra.mxu0 0
          %5972 = vmatprep.subr.bf16.mxu0 0
          %5973 = vmatpush2.bf16.msra.mxu0 0
          %5974 = vmatprep.mubr.bf16.mxu0 0
          %5975 = vmatmul.mubr.bf16.gmra.mxu0 %v5940
          %v5976 = vpop.f32.mrf.mxu0
          %v5977 = vadd.f32 0.0, %v5976
          %v5978 = vpop.f32.mrf.mxu0
          %v5979 = vpop.f32.mrf.mxu0
          %v5980 = vpop.f32.mrf.mxu0
          %5981 = vdwg.mxu0
          %v5983 = vrot.slane %v5977, 4
          %v5984 = vrot.slane %v5977, 5
          %v5985 = vrot.slane %v5977, 6
          %v5986 = vrot.slane %v5977, 7
          %v5991 = vadd.f32 %v1788, %v5983
          %v5992 = vadd.f32 %v1804, %v5984
          %v5993 = vadd.f32 %v1820, %v5985
          %v5994 = vadd.f32 %v1836, %v5986
          %v5995 = vxor.u32 %v5991, 2147483648
          %v5996 = vxor.u32 %v5992, 2147483648
          %v5997 = vxor.u32 %v5993, 2147483648
          %v5998 = vxor.u32 %v5994, 2147483648
          %v5999 = vmul.f32 %v5995, 1.442695
          %v6000 = vpow.pop %v5999
          %v6001 = vmul.f32 %v5996, 1.442695
          %v6002 = vpow.pop %v6001
          %v6003 = vmul.f32 %v5997, 1.442695
          %v6004 = vpow.pop %v6003
          %v6005 = vmul.f32 %v5998, 1.442695
          %v6006 = vpow.pop %v6005
          %v6007 = vadd.f32 %v6000, 1.0
          %v6008 = vadd.f32 %v6002, 1.0
          %v6009 = vadd.f32 %v6004, 1.0
          %v6010 = vadd.f32 %v6006, 1.0
          %v6011 = vrcp.pop %v6007
          %v6012 = vmul.f32 1.0, %v6011
          %v6013 = vrcp.pop %v6008
          %v6014 = vmul.f32 1.0, %v6013
          %v6015 = vrcp.pop %v6009
          %v6016 = vmul.f32 1.0, %v6015
          %v6017 = vrcp.pop %v6010
          %v6018 = vmul.f32 1.0, %v6017
          %v6019 = vtanh.pop %v5991
          %v6020 = vtanh.pop %v5992
          %v6021 = vtanh.pop %v5993
          %v6022 = vtanh.pop %v5994
          %v6024 = vrot.slane %v5937, 4
          %v6025 = vrot.slane %v5937, 5
          %v6026 = vrot.slane %v5937, 6
          %v6027 = vrot.slane %v5937, 7
          %6028 = vrot.lane.b32.xlu0 %v6024, 32
          %v6029 = vpop.permute.xlu0 %6028
          %6030 = vrot.lane.b32.xlu0 %v6025, 32
          %v6031 = vpop.permute.xlu0 %6030
          %6032 = vrot.lane.b32.xlu0 %v6026, 32
          %v6033 = vpop.permute.xlu0 %6032
          %6034 = vrot.lane.b32.xlu0 %v6027, 32
          %v6035 = vpop.permute.xlu0 %6034
          %v6040 = vmul.f32 %v6012, %v6029
          %v6041 = vmul.f32 %v6014, %v6031
          %v6042 = vmul.f32 %v6016, %v6033
          %v6043 = vmul.f32 %v6018, %v6035
          %6048 = vrot.lane.b32.xlu0 %v6019, 64
          %v6049 = vpop.permute.xlu0 %6048
          %6050 = vrot.lane.b32.xlu0 %v6020, 64
          %v6051 = vpop.permute.xlu0 %6050
          %6052 = vrot.lane.b32.xlu0 %v6021, 64
          %v6053 = vpop.permute.xlu0 %6052
          %6054 = vrot.lane.b32.xlu0 %v6022, 64
          %v6055 = vpop.permute.xlu0 %6054
          %v6060 = vmul.f32 %v6012, %v6049
          %v6061 = vmul.f32 %v6014, %v6051
          %v6062 = vmul.f32 %v6016, %v6053
          %v6063 = vmul.f32 %v6018, %v6055
          %6068 = vrot.lane.b32.xlu0 %v6060, 32
          %v6069 = vpop.permute.xlu0 %6068
          %6070 = vrot.lane.b32.xlu0 %v6061, 32
          %v6071 = vpop.permute.xlu0 %6070
          %6072 = vrot.lane.b32.xlu0 %v6062, 32
          %v6073 = vpop.permute.xlu0 %6072
          %6074 = vrot.lane.b32.xlu0 %v6063, 32
          %v6075 = vpop.permute.xlu0 %6074
          %v6080 = vadd.f32 %v6040, %v6069
          %v6081 = vadd.f32 %v6041, %v6071
          %v6082 = vadd.f32 %v6042, %v6073
          %v6083 = vadd.f32 %v6043, %v6075
          %v6084 = vtanh.pop %v6080
          %v6085 = vtanh.pop %v6081
          %v6086 = vtanh.pop %v6082
          %v6087 = vtanh.pop %v6083
          %6092 = vrot.lane.b32.xlu0 %v6084, 64
          %v6093 = vpop.permute.xlu0 %6092
          %6094 = vrot.lane.b32.xlu0 %v6085, 64
          %v6095 = vpop.permute.xlu0 %6094
          %6096 = vrot.lane.b32.xlu0 %v6086, 64
          %v6097 = vpop.permute.xlu0 %6096
          %6098 = vrot.lane.b32.xlu0 %v6087, 64
          %v6099 = vpop.permute.xlu0 %6098
          %v6104 = vmul.f32 %v6012, %v6093
          %v6105 = vmul.f32 %v6014, %v6095
          %v6106 = vmul.f32 %v6016, %v6097
          %v6107 = vmul.f32 %v6018, %v6099
          %vm6108 = vcmp.gt.s32.totalorder %v1844, 20
          %v6109 = vsel %vm6108, 1, 0
          %6110 = vset.pattern.permute.xlu0 0
          %6111 = vperm.xlu0 %6110, %v6109
          %v6112 = vpop.permute.xlu0 %6111
          %vm6113 = vcmp.eq.s32.totalorder %v6112, 1
          %v6118 = vrot.slane %v6104, 4
          %v6119 = vrot.slane %v6105, 3
          %v6120 = vsel %vm2042, %v6119, %v6118
          %v6121 = vrot.slane %v6106, 2
          %v6122 = vsel %vm2045, %v6121, %v6120
          %v6123 = vrot.slane %v6107, 1
          %v6124 = vsel %vm2048, %v6123, %v6122
          %6125 = vrot.lane.b32.xlu0 %v6124, 32
          %v6126 = vpop.permute.xlu0 %6125
          %v6128 = vsel %vm6113, %v6126, %v5923
          %v6133 = vrot.slane %v6080, 4
          %v6134 = vrot.slane %v6081, 3
          %v6135 = vsel %vm2042, %v6134, %v6133
          %v6136 = vrot.slane %v6082, 2
          %v6137 = vsel %vm2045, %v6136, %v6135
          %v6138 = vrot.slane %v6083, 1
          %v6139 = vsel %vm2048, %v6138, %v6137
          %6140 = vrot.lane.b32.xlu0 %v6139, 96
          %v6141 = vpop.permute.xlu0 %6140
          %v6143 = vsel %vm6113, %v6141, %v5937
          %v6144 = vpack.c.bf16 %v6128, %v6128
          %v6146 = vsel %vm1166, %v6144, 0
          %6148 = vmatprep.subr.bf16.mxu0 0
          %6149 = vmatpush1.bf16.msra.mxu0 0
          %6150 = vmatprep.subr.bf16.mxu0 0
          %6151 = vmatpush1.bf16.msra.mxu0 0
          %6152 = vmatprep.subr.bf16.mxu0 0
          %6153 = vmatpush1.bf16.msra.mxu0 0
          %6154 = vmatprep.subr.bf16.mxu0 0
          %6155 = vmatpush1.bf16.msra.mxu0 0
          %6156 = vmatprep.subr.bf16.mxu0 0
          %6157 = vmatpush1.bf16.msra.mxu0 0
          %6158 = vmatprep.subr.bf16.mxu0 0
          %6159 = vmatpush1.bf16.msra.mxu0 0
          %6160 = vmatprep.subr.bf16.mxu0 0
          %6161 = vmatpush1.bf16.msra.mxu0 %v1861
          %6162 = vmatprep.subr.bf16.mxu0 0
          %6163 = vmatpush1.bf16.msra.mxu0 %v1860
          %6164 = vmatprep.subr.bf16.mxu0 0
          %6165 = vmatpush2.bf16.msra.mxu0 0
          %6166 = vmatprep.subr.bf16.mxu0 0
          %6167 = vmatpush2.bf16.msra.mxu0 0
          %6168 = vmatprep.subr.bf16.mxu0 0
          %6169 = vmatpush2.bf16.msra.mxu0 0
          %6170 = vmatprep.subr.bf16.mxu0 0
          %6171 = vmatpush2.bf16.msra.mxu0 0
          %6172 = vmatprep.subr.bf16.mxu0 0
          %6173 = vmatpush2.bf16.msra.mxu0 0
          %6174 = vmatprep.subr.bf16.mxu0 0
          %6175 = vmatpush2.bf16.msra.mxu0 0
          %6176 = vmatprep.subr.bf16.mxu0 0
          %6177 = vmatpush2.bf16.msra.mxu0 0
          %6178 = vmatprep.subr.bf16.mxu0 0
          %6179 = vmatpush2.bf16.msra.mxu0 0
          %6180 = vmatprep.mubr.bf16.mxu0 0
          %6181 = vmatmul.mubr.bf16.gmra.mxu0 %v6146
          %v6182 = vpop.f32.mrf.mxu0
          %v6183 = vadd.f32 0.0, %v6182
          %v6184 = vpop.f32.mrf.mxu0
          %v6185 = vpop.f32.mrf.mxu0
          %v6186 = vpop.f32.mrf.mxu0
          %6187 = vdwg.mxu0
          %v6189 = vrot.slane %v6183, 3
          %v6190 = vrot.slane %v6183, 4
          %v6191 = vrot.slane %v6183, 5
          %v6192 = vrot.slane %v6183, 6
          %v6197 = vadd.f32 %v1788, %v6189
          %v6198 = vadd.f32 %v1804, %v6190
          %v6199 = vadd.f32 %v1820, %v6191
          %v6200 = vadd.f32 %v1836, %v6192
          %v6201 = vxor.u32 %v6197, 2147483648
          %v6202 = vxor.u32 %v6198, 2147483648
          %v6203 = vxor.u32 %v6199, 2147483648
          %v6204 = vxor.u32 %v6200, 2147483648
          %v6205 = vmul.f32 %v6201, 1.442695
          %v6206 = vpow.pop %v6205
          %v6207 = vmul.f32 %v6202, 1.442695
          %v6208 = vpow.pop %v6207
          %v6209 = vmul.f32 %v6203, 1.442695
          %v6210 = vpow.pop %v6209
          %v6211 = vmul.f32 %v6204, 1.442695
          %v6212 = vpow.pop %v6211
          %v6213 = vadd.f32 %v6206, 1.0
          %v6214 = vadd.f32 %v6208, 1.0
          %v6215 = vadd.f32 %v6210, 1.0
          %v6216 = vadd.f32 %v6212, 1.0
          %v6217 = vrcp.pop %v6213
          %v6218 = vmul.f32 1.0, %v6217
          %v6219 = vrcp.pop %v6214
          %v6220 = vmul.f32 1.0, %v6219
          %v6221 = vrcp.pop %v6215
          %v6222 = vmul.f32 1.0, %v6221
          %v6223 = vrcp.pop %v6216
          %v6224 = vmul.f32 1.0, %v6223
          %v6225 = vtanh.pop %v6197
          %v6226 = vtanh.pop %v6198
          %v6227 = vtanh.pop %v6199
          %v6228 = vtanh.pop %v6200
          %v6230 = vrot.slane %v6143, 3
          %v6231 = vrot.slane %v6143, 4
          %v6232 = vrot.slane %v6143, 5
          %v6233 = vrot.slane %v6143, 6
          %6234 = vrot.lane.b32.xlu0 %v6230, 32
          %v6235 = vpop.permute.xlu0 %6234
          %6236 = vrot.lane.b32.xlu0 %v6231, 32
          %v6237 = vpop.permute.xlu0 %6236
          %6238 = vrot.lane.b32.xlu0 %v6232, 32
          %v6239 = vpop.permute.xlu0 %6238
          %6240 = vrot.lane.b32.xlu0 %v6233, 32
          %v6241 = vpop.permute.xlu0 %6240
          %v6246 = vmul.f32 %v6218, %v6235
          %v6247 = vmul.f32 %v6220, %v6237
          %v6248 = vmul.f32 %v6222, %v6239
          %v6249 = vmul.f32 %v6224, %v6241
          %6254 = vrot.lane.b32.xlu0 %v6225, 64
          %v6255 = vpop.permute.xlu0 %6254
          %6256 = vrot.lane.b32.xlu0 %v6226, 64
          %v6257 = vpop.permute.xlu0 %6256
          %6258 = vrot.lane.b32.xlu0 %v6227, 64
          %v6259 = vpop.permute.xlu0 %6258
          %6260 = vrot.lane.b32.xlu0 %v6228, 64
          %v6261 = vpop.permute.xlu0 %6260
          %v6266 = vmul.f32 %v6218, %v6255
          %v6267 = vmul.f32 %v6220, %v6257
          %v6268 = vmul.f32 %v6222, %v6259
          %v6269 = vmul.f32 %v6224, %v6261
          %6274 = vrot.lane.b32.xlu0 %v6266, 32
          %v6275 = vpop.permute.xlu0 %6274
          %6276 = vrot.lane.b32.xlu0 %v6267, 32
          %v6277 = vpop.permute.xlu0 %6276
          %6278 = vrot.lane.b32.xlu0 %v6268, 32
          %v6279 = vpop.permute.xlu0 %6278
          %6280 = vrot.lane.b32.xlu0 %v6269, 32
          %v6281 = vpop.permute.xlu0 %6280
          %v6286 = vadd.f32 %v6246, %v6275
          %v6287 = vadd.f32 %v6247, %v6277
          %v6288 = vadd.f32 %v6248, %v6279
          %v6289 = vadd.f32 %v6249, %v6281
          %v6290 = vtanh.pop %v6286
          %v6291 = vtanh.pop %v6287
          %v6292 = vtanh.pop %v6288
          %v6293 = vtanh.pop %v6289
          %6298 = vrot.lane.b32.xlu0 %v6290, 64
          %v6299 = vpop.permute.xlu0 %6298
          %6300 = vrot.lane.b32.xlu0 %v6291, 64
          %v6301 = vpop.permute.xlu0 %6300
          %6302 = vrot.lane.b32.xlu0 %v6292, 64
          %v6303 = vpop.permute.xlu0 %6302
          %6304 = vrot.lane.b32.xlu0 %v6293, 64
          %v6305 = vpop.permute.xlu0 %6304
          %v6310 = vmul.f32 %v6218, %v6299
          %v6311 = vmul.f32 %v6220, %v6301
          %v6312 = vmul.f32 %v6222, %v6303
          %v6313 = vmul.f32 %v6224, %v6305
          %vm6314 = vcmp.gt.s32.totalorder %v1844, 21
          %v6315 = vsel %vm6314, 1, 0
          %6316 = vset.pattern.permute.xlu0 0
          %6317 = vperm.xlu0 %6316, %v6315
          %v6318 = vpop.permute.xlu0 %6317
          %vm6319 = vcmp.eq.s32.totalorder %v6318, 1
          %v6324 = vrot.slane %v6310, 5
          %v6325 = vrot.slane %v6311, 4
          %v6326 = vsel %vm2042, %v6325, %v6324
          %v6327 = vrot.slane %v6312, 3
          %v6328 = vsel %vm2045, %v6327, %v6326
          %v6329 = vrot.slane %v6313, 2
          %v6330 = vsel %vm2048, %v6329, %v6328
          %6331 = vrot.lane.b32.xlu0 %v6330, 32
          %v6332 = vpop.permute.xlu0 %6331
          %v6334 = vsel %vm6319, %v6332, %v6128
          %v6339 = vrot.slane %v6286, 5
          %v6340 = vrot.slane %v6287, 4
          %v6341 = vsel %vm2042, %v6340, %v6339
          %v6342 = vrot.slane %v6288, 3
          %v6343 = vsel %vm2045, %v6342, %v6341
          %v6344 = vrot.slane %v6289, 2
          %v6345 = vsel %vm2048, %v6344, %v6343
          %6346 = vrot.lane.b32.xlu0 %v6345, 96
          %v6347 = vpop.permute.xlu0 %6346
          %v6349 = vsel %vm6319, %v6347, %v6143
          %v6350 = vpack.c.bf16 %v6334, %v6334
          %v6352 = vsel %vm1166, %v6350, 0
          %6354 = vmatprep.subr.bf16.mxu0 0
          %6355 = vmatpush1.bf16.msra.mxu0 0
          %6356 = vmatprep.subr.bf16.mxu0 0
          %6357 = vmatpush1.bf16.msra.mxu0 0
          %6358 = vmatprep.subr.bf16.mxu0 0
          %6359 = vmatpush1.bf16.msra.mxu0 0
          %6360 = vmatprep.subr.bf16.mxu0 0
          %6361 = vmatpush1.bf16.msra.mxu0 0
          %6362 = vmatprep.subr.bf16.mxu0 0
          %6363 = vmatpush1.bf16.msra.mxu0 0
          %6364 = vmatprep.subr.bf16.mxu0 0
          %6365 = vmatpush1.bf16.msra.mxu0 0
          %6366 = vmatprep.subr.bf16.mxu0 0
          %6367 = vmatpush1.bf16.msra.mxu0 %v1861
          %6368 = vmatprep.subr.bf16.mxu0 0
          %6369 = vmatpush1.bf16.msra.mxu0 %v1860
          %6370 = vmatprep.subr.bf16.mxu0 0
          %6371 = vmatpush2.bf16.msra.mxu0 0
          %6372 = vmatprep.subr.bf16.mxu0 0
          %6373 = vmatpush2.bf16.msra.mxu0 0
          %6374 = vmatprep.subr.bf16.mxu0 0
          %6375 = vmatpush2.bf16.msra.mxu0 0
          %6376 = vmatprep.subr.bf16.mxu0 0
          %6377 = vmatpush2.bf16.msra.mxu0 0
          %6378 = vmatprep.subr.bf16.mxu0 0
          %6379 = vmatpush2.bf16.msra.mxu0 0
          %6380 = vmatprep.subr.bf16.mxu0 0
          %6381 = vmatpush2.bf16.msra.mxu0 0
          %6382 = vmatprep.subr.bf16.mxu0 0
          %6383 = vmatpush2.bf16.msra.mxu0 0
          %6384 = vmatprep.subr.bf16.mxu0 0
          %6385 = vmatpush2.bf16.msra.mxu0 0
          %6386 = vmatprep.mubr.bf16.mxu0 0
          %6387 = vmatmul.mubr.bf16.gmra.mxu0 %v6352
          %v6388 = vpop.f32.mrf.mxu0
          %v6389 = vadd.f32 0.0, %v6388
          %v6390 = vpop.f32.mrf.mxu0
          %v6391 = vpop.f32.mrf.mxu0
          %v6392 = vpop.f32.mrf.mxu0
          %6393 = vdwg.mxu0
          %v6395 = vrot.slane %v6389, 2
          %v6396 = vrot.slane %v6389, 3
          %v6397 = vrot.slane %v6389, 4
          %v6398 = vrot.slane %v6389, 5
          %v6403 = vadd.f32 %v1788, %v6395
          %v6404 = vadd.f32 %v1804, %v6396
          %v6405 = vadd.f32 %v1820, %v6397
          %v6406 = vadd.f32 %v1836, %v6398
          %v6407 = vxor.u32 %v6403, 2147483648
          %v6408 = vxor.u32 %v6404, 2147483648
          %v6409 = vxor.u32 %v6405, 2147483648
          %v6410 = vxor.u32 %v6406, 2147483648
          %v6411 = vmul.f32 %v6407, 1.442695
          %v6412 = vpow.pop %v6411
          %v6413 = vmul.f32 %v6408, 1.442695
          %v6414 = vpow.pop %v6413
          %v6415 = vmul.f32 %v6409, 1.442695
          %v6416 = vpow.pop %v6415
          %v6417 = vmul.f32 %v6410, 1.442695
          %v6418 = vpow.pop %v6417
          %v6419 = vadd.f32 %v6412, 1.0
          %v6420 = vadd.f32 %v6414, 1.0
          %v6421 = vadd.f32 %v6416, 1.0
          %v6422 = vadd.f32 %v6418, 1.0
          %v6423 = vrcp.pop %v6419
          %v6424 = vmul.f32 1.0, %v6423
          %v6425 = vrcp.pop %v6420
          %v6426 = vmul.f32 1.0, %v6425
          %v6427 = vrcp.pop %v6421
          %v6428 = vmul.f32 1.0, %v6427
          %v6429 = vrcp.pop %v6422
          %v6430 = vmul.f32 1.0, %v6429
          %v6431 = vtanh.pop %v6403
          %v6432 = vtanh.pop %v6404
          %v6433 = vtanh.pop %v6405
          %v6434 = vtanh.pop %v6406
          %v6436 = vrot.slane %v6349, 2
          %v6437 = vrot.slane %v6349, 3
          %v6438 = vrot.slane %v6349, 4
          %v6439 = vrot.slane %v6349, 5
          %6440 = vrot.lane.b32.xlu0 %v6436, 32
          %v6441 = vpop.permute.xlu0 %6440
          %6442 = vrot.lane.b32.xlu0 %v6437, 32
          %v6443 = vpop.permute.xlu0 %6442
          %6444 = vrot.lane.b32.xlu0 %v6438, 32
          %v6445 = vpop.permute.xlu0 %6444
          %6446 = vrot.lane.b32.xlu0 %v6439, 32
          %v6447 = vpop.permute.xlu0 %6446
          %v6452 = vmul.f32 %v6424, %v6441
          %v6453 = vmul.f32 %v6426, %v6443
          %v6454 = vmul.f32 %v6428, %v6445
          %v6455 = vmul.f32 %v6430, %v6447
          %6460 = vrot.lane.b32.xlu0 %v6431, 64
          %v6461 = vpop.permute.xlu0 %6460
          %6462 = vrot.lane.b32.xlu0 %v6432, 64
          %v6463 = vpop.permute.xlu0 %6462
          %6464 = vrot.lane.b32.xlu0 %v6433, 64
          %v6465 = vpop.permute.xlu0 %6464
          %6466 = vrot.lane.b32.xlu0 %v6434, 64
          %v6467 = vpop.permute.xlu0 %6466
          %v6472 = vmul.f32 %v6424, %v6461
          %v6473 = vmul.f32 %v6426, %v6463
          %v6474 = vmul.f32 %v6428, %v6465
          %v6475 = vmul.f32 %v6430, %v6467
          %6480 = vrot.lane.b32.xlu0 %v6472, 32
          %v6481 = vpop.permute.xlu0 %6480
          %6482 = vrot.lane.b32.xlu0 %v6473, 32
          %v6483 = vpop.permute.xlu0 %6482
          %6484 = vrot.lane.b32.xlu0 %v6474, 32
          %v6485 = vpop.permute.xlu0 %6484
          %6486 = vrot.lane.b32.xlu0 %v6475, 32
          %v6487 = vpop.permute.xlu0 %6486
          %v6492 = vadd.f32 %v6452, %v6481
          %v6493 = vadd.f32 %v6453, %v6483
          %v6494 = vadd.f32 %v6454, %v6485
          %v6495 = vadd.f32 %v6455, %v6487
          %v6496 = vtanh.pop %v6492
          %v6497 = vtanh.pop %v6493
          %v6498 = vtanh.pop %v6494
          %v6499 = vtanh.pop %v6495
          %6504 = vrot.lane.b32.xlu0 %v6496, 64
          %v6505 = vpop.permute.xlu0 %6504
          %6506 = vrot.lane.b32.xlu0 %v6497, 64
          %v6507 = vpop.permute.xlu0 %6506
          %6508 = vrot.lane.b32.xlu0 %v6498, 64
          %v6509 = vpop.permute.xlu0 %6508
          %6510 = vrot.lane.b32.xlu0 %v6499, 64
          %v6511 = vpop.permute.xlu0 %6510
          %v6516 = vmul.f32 %v6424, %v6505
          %v6517 = vmul.f32 %v6426, %v6507
          %v6518 = vmul.f32 %v6428, %v6509
          %v6519 = vmul.f32 %v6430, %v6511
          %vm6520 = vcmp.gt.s32.totalorder %v1844, 22
          %v6521 = vsel %vm6520, 1, 0
          %6522 = vset.pattern.permute.xlu0 0
          %6523 = vperm.xlu0 %6522, %v6521
          %v6524 = vpop.permute.xlu0 %6523
          %vm6525 = vcmp.eq.s32.totalorder %v6524, 1
          %v6530 = vrot.slane %v6516, 6
          %v6531 = vrot.slane %v6517, 5
          %v6532 = vsel %vm2042, %v6531, %v6530
          %v6533 = vrot.slane %v6518, 4
          %v6534 = vsel %vm2045, %v6533, %v6532
          %v6535 = vrot.slane %v6519, 3
          %v6536 = vsel %vm2048, %v6535, %v6534
          %6537 = vrot.lane.b32.xlu0 %v6536, 32
          %v6538 = vpop.permute.xlu0 %6537
          %v6540 = vsel %vm6525, %v6538, %v6334
          %v6545 = vrot.slane %v6492, 6
          %v6546 = vrot.slane %v6493, 5
          %v6547 = vsel %vm2042, %v6546, %v6545
          %v6548 = vrot.slane %v6494, 4
          %v6549 = vsel %vm2045, %v6548, %v6547
          %v6550 = vrot.slane %v6495, 3
          %v6551 = vsel %vm2048, %v6550, %v6549
          %6552 = vrot.lane.b32.xlu0 %v6551, 96
          %v6553 = vpop.permute.xlu0 %6552
          %v6555 = vsel %vm6525, %v6553, %v6349
          %v6556 = vpack.c.bf16 %v6540, %v6540
          %v6558 = vsel %vm1166, %v6556, 0
          %6560 = vmatprep.subr.bf16.mxu0 0
          %6561 = vmatpush1.bf16.msra.mxu0 0
          %6562 = vmatprep.subr.bf16.mxu0 0
          %6563 = vmatpush1.bf16.msra.mxu0 0
          %6564 = vmatprep.subr.bf16.mxu0 0
          %6565 = vmatpush1.bf16.msra.mxu0 0
          %6566 = vmatprep.subr.bf16.mxu0 0
          %6567 = vmatpush1.bf16.msra.mxu0 0
          %6568 = vmatprep.subr.bf16.mxu0 0
          %6569 = vmatpush1.bf16.msra.mxu0 0
          %6570 = vmatprep.subr.bf16.mxu0 0
          %6571 = vmatpush1.bf16.msra.mxu0 0
          %6572 = vmatprep.subr.bf16.mxu0 0
          %6573 = vmatpush1.bf16.msra.mxu0 %v1861
          %6574 = vmatprep.subr.bf16.mxu0 0
          %6575 = vmatpush1.bf16.msra.mxu0 %v1860
          %6576 = vmatprep.subr.bf16.mxu0 0
          %6577 = vmatpush2.bf16.msra.mxu0 0
          %6578 = vmatprep.subr.bf16.mxu0 0
          %6579 = vmatpush2.bf16.msra.mxu0 0
          %6580 = vmatprep.subr.bf16.mxu0 0
          %6581 = vmatpush2.bf16.msra.mxu0 0
          %6582 = vmatprep.subr.bf16.mxu0 0
          %6583 = vmatpush2.bf16.msra.mxu0 0
          %6584 = vmatprep.subr.bf16.mxu0 0
          %6585 = vmatpush2.bf16.msra.mxu0 0
          %6586 = vmatprep.subr.bf16.mxu0 0
          %6587 = vmatpush2.bf16.msra.mxu0 0
          %6588 = vmatprep.subr.bf16.mxu0 0
          %6589 = vmatpush2.bf16.msra.mxu0 0
          %6590 = vmatprep.subr.bf16.mxu0 0
          %6591 = vmatpush2.bf16.msra.mxu0 0
          %6592 = vmatprep.mubr.bf16.mxu0 0
          %6593 = vmatmul.mubr.bf16.gmra.mxu0 %v6558
          %v6594 = vpop.f32.mrf.mxu0
          %v6595 = vadd.f32 0.0, %v6594
          %v6596 = vpop.f32.mrf.mxu0
          %v6597 = vpop.f32.mrf.mxu0
          %v6598 = vpop.f32.mrf.mxu0
          %6599 = vdwg.mxu0
          %v6601 = vrot.slane %v6595, 1
          %v6602 = vrot.slane %v6595, 2
          %v6603 = vrot.slane %v6595, 3
          %v6604 = vrot.slane %v6595, 4
          %v6609 = vadd.f32 %v1788, %v6601
          %v6610 = vadd.f32 %v1804, %v6602
          %v6611 = vadd.f32 %v1820, %v6603
          %v6612 = vadd.f32 %v1836, %v6604
          %v6613 = vxor.u32 %v6609, 2147483648
          %v6614 = vxor.u32 %v6610, 2147483648
          %v6615 = vxor.u32 %v6611, 2147483648
          %v6616 = vxor.u32 %v6612, 2147483648
          %v6617 = vmul.f32 %v6613, 1.442695
          %v6618 = vpow.pop %v6617
          %v6619 = vmul.f32 %v6614, 1.442695
          %v6620 = vpow.pop %v6619
          %v6621 = vmul.f32 %v6615, 1.442695
          %v6622 = vpow.pop %v6621
          %v6623 = vmul.f32 %v6616, 1.442695
          %v6624 = vpow.pop %v6623
          %v6625 = vadd.f32 %v6618, 1.0
          %v6626 = vadd.f32 %v6620, 1.0
          %v6627 = vadd.f32 %v6622, 1.0
          %v6628 = vadd.f32 %v6624, 1.0
          %v6629 = vrcp.pop %v6625
          %v6630 = vmul.f32 1.0, %v6629
          %v6631 = vrcp.pop %v6626
          %v6632 = vmul.f32 1.0, %v6631
          %v6633 = vrcp.pop %v6627
          %v6634 = vmul.f32 1.0, %v6633
          %v6635 = vrcp.pop %v6628
          %v6636 = vmul.f32 1.0, %v6635
          %v6637 = vtanh.pop %v6609
          %v6638 = vtanh.pop %v6610
          %v6639 = vtanh.pop %v6611
          %v6640 = vtanh.pop %v6612
          %v6642 = vrot.slane %v6555, 1
          %v6643 = vrot.slane %v6555, 2
          %v6644 = vrot.slane %v6555, 3
          %v6645 = vrot.slane %v6555, 4
          %6646 = vrot.lane.b32.xlu0 %v6642, 32
          %v6647 = vpop.permute.xlu0 %6646
          %6648 = vrot.lane.b32.xlu0 %v6643, 32
          %v6649 = vpop.permute.xlu0 %6648
          %6650 = vrot.lane.b32.xlu0 %v6644, 32
          %v6651 = vpop.permute.xlu0 %6650
          %6652 = vrot.lane.b32.xlu0 %v6645, 32
          %v6653 = vpop.permute.xlu0 %6652
          %v6658 = vmul.f32 %v6630, %v6647
          %v6659 = vmul.f32 %v6632, %v6649
          %v6660 = vmul.f32 %v6634, %v6651
          %v6661 = vmul.f32 %v6636, %v6653
          %6666 = vrot.lane.b32.xlu0 %v6637, 64
          %v6667 = vpop.permute.xlu0 %6666
          %6668 = vrot.lane.b32.xlu0 %v6638, 64
          %v6669 = vpop.permute.xlu0 %6668
          %6670 = vrot.lane.b32.xlu0 %v6639, 64
          %v6671 = vpop.permute.xlu0 %6670
          %6672 = vrot.lane.b32.xlu0 %v6640, 64
          %v6673 = vpop.permute.xlu0 %6672
          %v6678 = vmul.f32 %v6630, %v6667
          %v6679 = vmul.f32 %v6632, %v6669
          %v6680 = vmul.f32 %v6634, %v6671
          %v6681 = vmul.f32 %v6636, %v6673
          %6686 = vrot.lane.b32.xlu0 %v6678, 32
          %v6687 = vpop.permute.xlu0 %6686
          %6688 = vrot.lane.b32.xlu0 %v6679, 32
          %v6689 = vpop.permute.xlu0 %6688
          %6690 = vrot.lane.b32.xlu0 %v6680, 32
          %v6691 = vpop.permute.xlu0 %6690
          %6692 = vrot.lane.b32.xlu0 %v6681, 32
          %v6693 = vpop.permute.xlu0 %6692
          %v6698 = vadd.f32 %v6658, %v6687
          %v6699 = vadd.f32 %v6659, %v6689
          %v6700 = vadd.f32 %v6660, %v6691
          %v6701 = vadd.f32 %v6661, %v6693
          %v6702 = vtanh.pop %v6698
          %v6703 = vtanh.pop %v6699
          %v6704 = vtanh.pop %v6700
          %v6705 = vtanh.pop %v6701
          %6710 = vrot.lane.b32.xlu0 %v6702, 64
          %v6711 = vpop.permute.xlu0 %6710
          %6712 = vrot.lane.b32.xlu0 %v6703, 64
          %v6713 = vpop.permute.xlu0 %6712
          %6714 = vrot.lane.b32.xlu0 %v6704, 64
          %v6715 = vpop.permute.xlu0 %6714
          %6716 = vrot.lane.b32.xlu0 %v6705, 64
          %v6717 = vpop.permute.xlu0 %6716
          %v6722 = vmul.f32 %v6630, %v6711
          %v6723 = vmul.f32 %v6632, %v6713
          %v6724 = vmul.f32 %v6634, %v6715
          %v6725 = vmul.f32 %v6636, %v6717
          %vm6726 = vcmp.gt.s32.totalorder %v1844, 23
          %v6727 = vsel %vm6726, 1, 0
          %6728 = vset.pattern.permute.xlu0 0
          %6729 = vperm.xlu0 %6728, %v6727
          %v6730 = vpop.permute.xlu0 %6729
          %vm6731 = vcmp.eq.s32.totalorder %v6730, 1
          %v6736 = vrot.slane %v6722, 7
          %v6737 = vrot.slane %v6723, 6
          %v6738 = vsel %vm2042, %v6737, %v6736
          %v6739 = vrot.slane %v6724, 5
          %v6740 = vsel %vm2045, %v6739, %v6738
          %v6741 = vrot.slane %v6725, 4
          %v6742 = vsel %vm2048, %v6741, %v6740
          %6743 = vrot.lane.b32.xlu0 %v6742, 32
          %v6744 = vpop.permute.xlu0 %6743
          %v6746 = vsel %vm6731, %v6744, %v6540
          %v6751 = vrot.slane %v6698, 7
          %v6752 = vrot.slane %v6699, 6
          %v6753 = vsel %vm2042, %v6752, %v6751
          %v6754 = vrot.slane %v6700, 5
          %v6755 = vsel %vm2045, %v6754, %v6753
          %v6756 = vrot.slane %v6701, 4
          %v6757 = vsel %vm2048, %v6756, %v6755
          %6758 = vrot.lane.b32.xlu0 %v6757, 96
          %v6759 = vpop.permute.xlu0 %6758
          %v6761 = vsel %vm6731, %v6759, %v6555
          %v6762 = vpack.c.bf16 %v6746, %v6746
          %v6764 = vsel %vm1166, %v6762, 0
          %6766 = vmatprep.subr.bf16.mxu0 0
          %6767 = vmatpush1.bf16.msra.mxu0 0
          %6768 = vmatprep.subr.bf16.mxu0 0
          %6769 = vmatpush1.bf16.msra.mxu0 0
          %6770 = vmatprep.subr.bf16.mxu0 0
          %6771 = vmatpush1.bf16.msra.mxu0 0
          %6772 = vmatprep.subr.bf16.mxu0 0
          %6773 = vmatpush1.bf16.msra.mxu0 0
          %6774 = vmatprep.subr.bf16.mxu0 0
          %6775 = vmatpush1.bf16.msra.mxu0 0
          %6776 = vmatprep.subr.bf16.mxu0 0
          %6777 = vmatpush1.bf16.msra.mxu0 0
          %6778 = vmatprep.subr.bf16.mxu0 0
          %6779 = vmatpush1.bf16.msra.mxu0 %v1861
          %6780 = vmatprep.subr.bf16.mxu0 0
          %6781 = vmatpush1.bf16.msra.mxu0 %v1860
          %6782 = vmatprep.subr.bf16.mxu0 0
          %6783 = vmatpush2.bf16.msra.mxu0 0
          %6784 = vmatprep.subr.bf16.mxu0 0
          %6785 = vmatpush2.bf16.msra.mxu0 0
          %6786 = vmatprep.subr.bf16.mxu0 0
          %6787 = vmatpush2.bf16.msra.mxu0 0
          %6788 = vmatprep.subr.bf16.mxu0 0
          %6789 = vmatpush2.bf16.msra.mxu0 0
          %6790 = vmatprep.subr.bf16.mxu0 0
          %6791 = vmatpush2.bf16.msra.mxu0 0
          %6792 = vmatprep.subr.bf16.mxu0 0
          %6793 = vmatpush2.bf16.msra.mxu0 0
          %6794 = vmatprep.subr.bf16.mxu0 0
          %6795 = vmatpush2.bf16.msra.mxu0 0
          %6796 = vmatprep.subr.bf16.mxu0 0
          %6797 = vmatpush2.bf16.msra.mxu0 0
          %6798 = vmatprep.mubr.bf16.mxu0 0
          %6799 = vmatmul.mubr.bf16.gmra.mxu0 %v6764
          %v6800 = vpop.f32.mrf.mxu0
          %v6801 = vadd.f32 0.0, %v6800
          %v6802 = vpop.f32.mrf.mxu0
          %v6803 = vpop.f32.mrf.mxu0
          %v6804 = vpop.f32.mrf.mxu0
          %6805 = vdwg.mxu0
          %v6807 = vrot.slane %v6801, 1
          %v6808 = vrot.slane %v6801, 2
          %v6809 = vrot.slane %v6801, 3
          %v6814 = vadd.f32 %v1791, %v6801
          %v6815 = vadd.f32 %v1807, %v6807
          %v6816 = vadd.f32 %v1823, %v6808
          %v6817 = vadd.f32 %v1839, %v6809
          %v6818 = vxor.u32 %v6814, 2147483648
          %v6819 = vxor.u32 %v6815, 2147483648
          %v6820 = vxor.u32 %v6816, 2147483648
          %v6821 = vxor.u32 %v6817, 2147483648
          %v6822 = vmul.f32 %v6818, 1.442695
          %v6823 = vpow.pop %v6822
          %v6824 = vmul.f32 %v6819, 1.442695
          %v6825 = vpow.pop %v6824
          %v6826 = vmul.f32 %v6820, 1.442695
          %v6827 = vpow.pop %v6826
          %v6828 = vmul.f32 %v6821, 1.442695
          %v6829 = vpow.pop %v6828
          %v6830 = vadd.f32 %v6823, 1.0
          %v6831 = vadd.f32 %v6825, 1.0
          %v6832 = vadd.f32 %v6827, 1.0
          %v6833 = vadd.f32 %v6829, 1.0
          %v6834 = vrcp.pop %v6830
          %v6835 = vmul.f32 1.0, %v6834
          %v6836 = vrcp.pop %v6831
          %v6837 = vmul.f32 1.0, %v6836
          %v6838 = vrcp.pop %v6832
          %v6839 = vmul.f32 1.0, %v6838
          %v6840 = vrcp.pop %v6833
          %v6841 = vmul.f32 1.0, %v6840
          %v6842 = vtanh.pop %v6814
          %v6843 = vtanh.pop %v6815
          %v6844 = vtanh.pop %v6816
          %v6845 = vtanh.pop %v6817
          %v6847 = vrot.slane %v6761, 1
          %v6848 = vrot.slane %v6761, 2
          %v6849 = vrot.slane %v6761, 3
          %6850 = vrot.lane.b32.xlu0 %v6761, 32
          %v6851 = vpop.permute.xlu0 %6850
          %6852 = vrot.lane.b32.xlu0 %v6847, 32
          %v6853 = vpop.permute.xlu0 %6852
          %6854 = vrot.lane.b32.xlu0 %v6848, 32
          %v6855 = vpop.permute.xlu0 %6854
          %6856 = vrot.lane.b32.xlu0 %v6849, 32
          %v6857 = vpop.permute.xlu0 %6856
          %v6862 = vmul.f32 %v6835, %v6851
          %v6863 = vmul.f32 %v6837, %v6853
          %v6864 = vmul.f32 %v6839, %v6855
          %v6865 = vmul.f32 %v6841, %v6857
          %6870 = vrot.lane.b32.xlu0 %v6842, 64
          %v6871 = vpop.permute.xlu0 %6870
          %6872 = vrot.lane.b32.xlu0 %v6843, 64
          %v6873 = vpop.permute.xlu0 %6872
          %6874 = vrot.lane.b32.xlu0 %v6844, 64
          %v6875 = vpop.permute.xlu0 %6874
          %6876 = vrot.lane.b32.xlu0 %v6845, 64
          %v6877 = vpop.permute.xlu0 %6876
          %v6882 = vmul.f32 %v6835, %v6871
          %v6883 = vmul.f32 %v6837, %v6873
          %v6884 = vmul.f32 %v6839, %v6875
          %v6885 = vmul.f32 %v6841, %v6877
          %6890 = vrot.lane.b32.xlu0 %v6882, 32
          %v6891 = vpop.permute.xlu0 %6890
          %6892 = vrot.lane.b32.xlu0 %v6883, 32
          %v6893 = vpop.permute.xlu0 %6892
          %6894 = vrot.lane.b32.xlu0 %v6884, 32
          %v6895 = vpop.permute.xlu0 %6894
          %6896 = vrot.lane.b32.xlu0 %v6885, 32
          %v6897 = vpop.permute.xlu0 %6896
          %v6902 = vadd.f32 %v6862, %v6891
          %v6903 = vadd.f32 %v6863, %v6893
          %v6904 = vadd.f32 %v6864, %v6895
          %v6905 = vadd.f32 %v6865, %v6897
          %v6906 = vtanh.pop %v6902
          %v6907 = vtanh.pop %v6903
          %v6908 = vtanh.pop %v6904
          %v6909 = vtanh.pop %v6905
          %6914 = vrot.lane.b32.xlu0 %v6906, 64
          %v6915 = vpop.permute.xlu0 %6914
          %6916 = vrot.lane.b32.xlu0 %v6907, 64
          %v6917 = vpop.permute.xlu0 %6916
          %6918 = vrot.lane.b32.xlu0 %v6908, 64
          %v6919 = vpop.permute.xlu0 %6918
          %6920 = vrot.lane.b32.xlu0 %v6909, 64
          %v6921 = vpop.permute.xlu0 %6920
          %v6926 = vmul.f32 %v6835, %v6915
          %v6927 = vmul.f32 %v6837, %v6917
          %v6928 = vmul.f32 %v6839, %v6919
          %v6929 = vmul.f32 %v6841, %v6921
          %vm6930 = vcmp.gt.s32.totalorder %v1844, 24
          %v6931 = vsel %vm6930, 1, 0
          %6932 = vset.pattern.permute.xlu0 0
          %6933 = vperm.xlu0 %6932, %v6931
          %v6934 = vpop.permute.xlu0 %6933
          %vm6935 = vcmp.eq.s32.totalorder %v6934, 1
          %v6940 = vrot.slane %v6927, 7
          %v6941 = vsel %vm2042, %v6940, %v6926
          %v6942 = vrot.slane %v6928, 6
          %v6943 = vsel %vm2045, %v6942, %v6941
          %v6944 = vrot.slane %v6929, 5
          %v6945 = vsel %vm2048, %v6944, %v6943
          %6946 = vrot.lane.b32.xlu0 %v6945, 32
          %v6947 = vpop.permute.xlu0 %6946
          %v6949 = vsel %vm6935, %v6947, %v6746
          %v6954 = vrot.slane %v6903, 7
          %v6955 = vsel %vm2042, %v6954, %v6902
          %v6956 = vrot.slane %v6904, 6
          %v6957 = vsel %vm2045, %v6956, %v6955
          %v6958 = vrot.slane %v6905, 5
          %v6959 = vsel %vm2048, %v6958, %v6957
          %6960 = vrot.lane.b32.xlu0 %v6959, 96
          %v6961 = vpop.permute.xlu0 %6960
          %v6963 = vsel %vm6935, %v6961, %v6761
          %v6964 = vpack.c.bf16 %v6949, %v6949
          %v6966 = vsel %vm1166, %v6964, 0
          %6968 = vmatprep.subr.bf16.mxu0 0
          %6969 = vmatpush1.bf16.msra.mxu0 0
          %6970 = vmatprep.subr.bf16.mxu0 0
          %6971 = vmatpush1.bf16.msra.mxu0 0
          %6972 = vmatprep.subr.bf16.mxu0 0
          %6973 = vmatpush1.bf16.msra.mxu0 0
          %6974 = vmatprep.subr.bf16.mxu0 0
          %6975 = vmatpush1.bf16.msra.mxu0 0
          %6976 = vmatprep.subr.bf16.mxu0 0
          %6977 = vmatpush1.bf16.msra.mxu0 0
          %6978 = vmatprep.subr.bf16.mxu0 0
          %6979 = vmatpush1.bf16.msra.mxu0 0
          %6980 = vmatprep.subr.bf16.mxu0 0
          %6981 = vmatpush1.bf16.msra.mxu0 %v1861
          %6982 = vmatprep.subr.bf16.mxu0 0
          %6983 = vmatpush1.bf16.msra.mxu0 %v1860
          %6984 = vmatprep.subr.bf16.mxu0 0
          %6985 = vmatpush2.bf16.msra.mxu0 0
          %6986 = vmatprep.subr.bf16.mxu0 0
          %6987 = vmatpush2.bf16.msra.mxu0 0
          %6988 = vmatprep.subr.bf16.mxu0 0
          %6989 = vmatpush2.bf16.msra.mxu0 0
          %6990 = vmatprep.subr.bf16.mxu0 0
          %6991 = vmatpush2.bf16.msra.mxu0 0
          %6992 = vmatprep.subr.bf16.mxu0 0
          %6993 = vmatpush2.bf16.msra.mxu0 0
          %6994 = vmatprep.subr.bf16.mxu0 0
          %6995 = vmatpush2.bf16.msra.mxu0 0
          %6996 = vmatprep.subr.bf16.mxu0 0
          %6997 = vmatpush2.bf16.msra.mxu0 0
          %6998 = vmatprep.subr.bf16.mxu0 0
          %6999 = vmatpush2.bf16.msra.mxu0 0
          %7000 = vmatprep.mubr.bf16.mxu0 0
          %7001 = vmatmul.mubr.bf16.gmra.mxu0 %v6966
          %v7002 = vpop.f32.mrf.mxu0
          %v7003 = vadd.f32 0.0, %v7002
          %v7004 = vpop.f32.mrf.mxu0
          %v7005 = vpop.f32.mrf.mxu0
          %v7006 = vpop.f32.mrf.mxu0
          %7007 = vdwg.mxu0
          %v7009 = vrot.slane %v7003, 7
          %v7010 = vrot.slane %v7003, 1
          %v7011 = vrot.slane %v7003, 2
          %v7016 = vadd.f32 %v1791, %v7009
          %v7017 = vadd.f32 %v1807, %v7003
          %v7018 = vadd.f32 %v1823, %v7010
          %v7019 = vadd.f32 %v1839, %v7011
          %v7020 = vxor.u32 %v7016, 2147483648
          %v7021 = vxor.u32 %v7017, 2147483648
          %v7022 = vxor.u32 %v7018, 2147483648
          %v7023 = vxor.u32 %v7019, 2147483648
          %v7024 = vmul.f32 %v7020, 1.442695
          %v7025 = vpow.pop %v7024
          %v7026 = vmul.f32 %v7021, 1.442695
          %v7027 = vpow.pop %v7026
          %v7028 = vmul.f32 %v7022, 1.442695
          %v7029 = vpow.pop %v7028
          %v7030 = vmul.f32 %v7023, 1.442695
          %v7031 = vpow.pop %v7030
          %v7032 = vadd.f32 %v7025, 1.0
          %v7033 = vadd.f32 %v7027, 1.0
          %v7034 = vadd.f32 %v7029, 1.0
          %v7035 = vadd.f32 %v7031, 1.0
          %v7036 = vrcp.pop %v7032
          %v7037 = vmul.f32 1.0, %v7036
          %v7038 = vrcp.pop %v7033
          %v7039 = vmul.f32 1.0, %v7038
          %v7040 = vrcp.pop %v7034
          %v7041 = vmul.f32 1.0, %v7040
          %v7042 = vrcp.pop %v7035
          %v7043 = vmul.f32 1.0, %v7042
          %v7044 = vtanh.pop %v7016
          %v7045 = vtanh.pop %v7017
          %v7046 = vtanh.pop %v7018
          %v7047 = vtanh.pop %v7019
          %v7049 = vrot.slane %v6963, 7
          %v7050 = vrot.slane %v6963, 1
          %v7051 = vrot.slane %v6963, 2
          %7052 = vrot.lane.b32.xlu0 %v7049, 32
          %v7053 = vpop.permute.xlu0 %7052
          %7054 = vrot.lane.b32.xlu0 %v6963, 32
          %v7055 = vpop.permute.xlu0 %7054
          %7056 = vrot.lane.b32.xlu0 %v7050, 32
          %v7057 = vpop.permute.xlu0 %7056
          %7058 = vrot.lane.b32.xlu0 %v7051, 32
          %v7059 = vpop.permute.xlu0 %7058
          %v7064 = vmul.f32 %v7037, %v7053
          %v7065 = vmul.f32 %v7039, %v7055
          %v7066 = vmul.f32 %v7041, %v7057
          %v7067 = vmul.f32 %v7043, %v7059
          %7072 = vrot.lane.b32.xlu0 %v7044, 64
          %v7073 = vpop.permute.xlu0 %7072
          %7074 = vrot.lane.b32.xlu0 %v7045, 64
          %v7075 = vpop.permute.xlu0 %7074
          %7076 = vrot.lane.b32.xlu0 %v7046, 64
          %v7077 = vpop.permute.xlu0 %7076
          %7078 = vrot.lane.b32.xlu0 %v7047, 64
          %v7079 = vpop.permute.xlu0 %7078
          %v7084 = vmul.f32 %v7037, %v7073
          %v7085 = vmul.f32 %v7039, %v7075
          %v7086 = vmul.f32 %v7041, %v7077
          %v7087 = vmul.f32 %v7043, %v7079
          %7092 = vrot.lane.b32.xlu0 %v7084, 32
          %v7093 = vpop.permute.xlu0 %7092
          %7094 = vrot.lane.b32.xlu0 %v7085, 32
          %v7095 = vpop.permute.xlu0 %7094
          %7096 = vrot.lane.b32.xlu0 %v7086, 32
          %v7097 = vpop.permute.xlu0 %7096
          %7098 = vrot.lane.b32.xlu0 %v7087, 32
          %v7099 = vpop.permute.xlu0 %7098
          %v7104 = vadd.f32 %v7064, %v7093
          %v7105 = vadd.f32 %v7065, %v7095
          %v7106 = vadd.f32 %v7066, %v7097
          %v7107 = vadd.f32 %v7067, %v7099
          %v7108 = vtanh.pop %v7104
          %v7109 = vtanh.pop %v7105
          %v7110 = vtanh.pop %v7106
          %v7111 = vtanh.pop %v7107
          %7116 = vrot.lane.b32.xlu0 %v7108, 64
          %v7117 = vpop.permute.xlu0 %7116
          %7118 = vrot.lane.b32.xlu0 %v7109, 64
          %v7119 = vpop.permute.xlu0 %7118
          %7120 = vrot.lane.b32.xlu0 %v7110, 64
          %v7121 = vpop.permute.xlu0 %7120
          %7122 = vrot.lane.b32.xlu0 %v7111, 64
          %v7123 = vpop.permute.xlu0 %7122
          %v7128 = vmul.f32 %v7037, %v7117
          %v7129 = vmul.f32 %v7039, %v7119
          %v7130 = vmul.f32 %v7041, %v7121
          %v7131 = vmul.f32 %v7043, %v7123
          %vm7132 = vcmp.gt.s32.totalorder %v1844, 25
          %v7133 = vsel %vm7132, 1, 0
          %7134 = vset.pattern.permute.xlu0 0
          %7135 = vperm.xlu0 %7134, %v7133
          %v7136 = vpop.permute.xlu0 %7135
          %vm7137 = vcmp.eq.s32.totalorder %v7136, 1
          %v7142 = vrot.slane %v7128, 1
          %v7143 = vsel %vm2042, %v7129, %v7142
          %v7144 = vrot.slane %v7130, 7
          %v7145 = vsel %vm2045, %v7144, %v7143
          %v7146 = vrot.slane %v7131, 6
          %v7147 = vsel %vm2048, %v7146, %v7145
          %7148 = vrot.lane.b32.xlu0 %v7147, 32
          %v7149 = vpop.permute.xlu0 %7148
          %v7151 = vsel %vm7137, %v7149, %v6949
          %v7156 = vrot.slane %v7104, 1
          %v7157 = vsel %vm2042, %v7105, %v7156
          %v7158 = vrot.slane %v7106, 7
          %v7159 = vsel %vm2045, %v7158, %v7157
          %v7160 = vrot.slane %v7107, 6
          %v7161 = vsel %vm2048, %v7160, %v7159
          %7162 = vrot.lane.b32.xlu0 %v7161, 96
          %v7163 = vpop.permute.xlu0 %7162
          %v7165 = vsel %vm7137, %v7163, %v6963
          %v7166 = vpack.c.bf16 %v7151, %v7151
          %v7168 = vsel %vm1166, %v7166, 0
          %7170 = vmatprep.subr.bf16.mxu0 0
          %7171 = vmatpush1.bf16.msra.mxu0 0
          %7172 = vmatprep.subr.bf16.mxu0 0
          %7173 = vmatpush1.bf16.msra.mxu0 0
          %7174 = vmatprep.subr.bf16.mxu0 0
          %7175 = vmatpush1.bf16.msra.mxu0 0
          %7176 = vmatprep.subr.bf16.mxu0 0
          %7177 = vmatpush1.bf16.msra.mxu0 0
          %7178 = vmatprep.subr.bf16.mxu0 0
          %7179 = vmatpush1.bf16.msra.mxu0 0
          %7180 = vmatprep.subr.bf16.mxu0 0
          %7181 = vmatpush1.bf16.msra.mxu0 0
          %7182 = vmatprep.subr.bf16.mxu0 0
          %7183 = vmatpush1.bf16.msra.mxu0 %v1861
          %7184 = vmatprep.subr.bf16.mxu0 0
          %7185 = vmatpush1.bf16.msra.mxu0 %v1860
          %7186 = vmatprep.subr.bf16.mxu0 0
          %7187 = vmatpush2.bf16.msra.mxu0 0
          %7188 = vmatprep.subr.bf16.mxu0 0
          %7189 = vmatpush2.bf16.msra.mxu0 0
          %7190 = vmatprep.subr.bf16.mxu0 0
          %7191 = vmatpush2.bf16.msra.mxu0 0
          %7192 = vmatprep.subr.bf16.mxu0 0
          %7193 = vmatpush2.bf16.msra.mxu0 0
          %7194 = vmatprep.subr.bf16.mxu0 0
          %7195 = vmatpush2.bf16.msra.mxu0 0
          %7196 = vmatprep.subr.bf16.mxu0 0
          %7197 = vmatpush2.bf16.msra.mxu0 0
          %7198 = vmatprep.subr.bf16.mxu0 0
          %7199 = vmatpush2.bf16.msra.mxu0 0
          %7200 = vmatprep.subr.bf16.mxu0 0
          %7201 = vmatpush2.bf16.msra.mxu0 0
          %7202 = vmatprep.mubr.bf16.mxu0 0
          %7203 = vmatmul.mubr.bf16.gmra.mxu0 %v7168
          %v7204 = vpop.f32.mrf.mxu0
          %v7205 = vadd.f32 0.0, %v7204
          %v7206 = vpop.f32.mrf.mxu0
          %v7207 = vpop.f32.mrf.mxu0
          %v7208 = vpop.f32.mrf.mxu0
          %7209 = vdwg.mxu0
          %v7211 = vrot.slane %v7205, 6
          %v7212 = vrot.slane %v7205, 7
          %v7213 = vrot.slane %v7205, 1
          %v7218 = vadd.f32 %v1791, %v7211
          %v7219 = vadd.f32 %v1807, %v7212
          %v7220 = vadd.f32 %v1823, %v7205
          %v7221 = vadd.f32 %v1839, %v7213
          %v7222 = vxor.u32 %v7218, 2147483648
          %v7223 = vxor.u32 %v7219, 2147483648
          %v7224 = vxor.u32 %v7220, 2147483648
          %v7225 = vxor.u32 %v7221, 2147483648
          %v7226 = vmul.f32 %v7222, 1.442695
          %v7227 = vpow.pop %v7226
          %v7228 = vmul.f32 %v7223, 1.442695
          %v7229 = vpow.pop %v7228
          %v7230 = vmul.f32 %v7224, 1.442695
          %v7231 = vpow.pop %v7230
          %v7232 = vmul.f32 %v7225, 1.442695
          %v7233 = vpow.pop %v7232
          %v7234 = vadd.f32 %v7227, 1.0
          %v7235 = vadd.f32 %v7229, 1.0
          %v7236 = vadd.f32 %v7231, 1.0
          %v7237 = vadd.f32 %v7233, 1.0
          %v7238 = vrcp.pop %v7234
          %v7239 = vmul.f32 1.0, %v7238
          %v7240 = vrcp.pop %v7235
          %v7241 = vmul.f32 1.0, %v7240
          %v7242 = vrcp.pop %v7236
          %v7243 = vmul.f32 1.0, %v7242
          %v7244 = vrcp.pop %v7237
          %v7245 = vmul.f32 1.0, %v7244
          %v7246 = vtanh.pop %v7218
          %v7247 = vtanh.pop %v7219
          %v7248 = vtanh.pop %v7220
          %v7249 = vtanh.pop %v7221
          %v7251 = vrot.slane %v7165, 6
          %v7252 = vrot.slane %v7165, 7
          %v7253 = vrot.slane %v7165, 1
          %7254 = vrot.lane.b32.xlu0 %v7251, 32
          %v7255 = vpop.permute.xlu0 %7254
          %7256 = vrot.lane.b32.xlu0 %v7252, 32
          %v7257 = vpop.permute.xlu0 %7256
          %7258 = vrot.lane.b32.xlu0 %v7165, 32
          %v7259 = vpop.permute.xlu0 %7258
          %7260 = vrot.lane.b32.xlu0 %v7253, 32
          %v7261 = vpop.permute.xlu0 %7260
          %v7266 = vmul.f32 %v7239, %v7255
          %v7267 = vmul.f32 %v7241, %v7257
          %v7268 = vmul.f32 %v7243, %v7259
          %v7269 = vmul.f32 %v7245, %v7261
          %7274 = vrot.lane.b32.xlu0 %v7246, 64
          %v7275 = vpop.permute.xlu0 %7274
          %7276 = vrot.lane.b32.xlu0 %v7247, 64
          %v7277 = vpop.permute.xlu0 %7276
          %7278 = vrot.lane.b32.xlu0 %v7248, 64
          %v7279 = vpop.permute.xlu0 %7278
          %7280 = vrot.lane.b32.xlu0 %v7249, 64
          %v7281 = vpop.permute.xlu0 %7280
          %v7286 = vmul.f32 %v7239, %v7275
          %v7287 = vmul.f32 %v7241, %v7277
          %v7288 = vmul.f32 %v7243, %v7279
          %v7289 = vmul.f32 %v7245, %v7281
          %7294 = vrot.lane.b32.xlu0 %v7286, 32
          %v7295 = vpop.permute.xlu0 %7294
          %7296 = vrot.lane.b32.xlu0 %v7287, 32
          %v7297 = vpop.permute.xlu0 %7296
          %7298 = vrot.lane.b32.xlu0 %v7288, 32
          %v7299 = vpop.permute.xlu0 %7298
          %7300 = vrot.lane.b32.xlu0 %v7289, 32
          %v7301 = vpop.permute.xlu0 %7300
          %v7306 = vadd.f32 %v7266, %v7295
          %v7307 = vadd.f32 %v7267, %v7297
          %v7308 = vadd.f32 %v7268, %v7299
          %v7309 = vadd.f32 %v7269, %v7301
          %v7310 = vtanh.pop %v7306
          %v7311 = vtanh.pop %v7307
          %v7312 = vtanh.pop %v7308
          %v7313 = vtanh.pop %v7309
          %7318 = vrot.lane.b32.xlu0 %v7310, 64
          %v7319 = vpop.permute.xlu0 %7318
          %7320 = vrot.lane.b32.xlu0 %v7311, 64
          %v7321 = vpop.permute.xlu0 %7320
          %7322 = vrot.lane.b32.xlu0 %v7312, 64
          %v7323 = vpop.permute.xlu0 %7322
          %7324 = vrot.lane.b32.xlu0 %v7313, 64
          %v7325 = vpop.permute.xlu0 %7324
          %v7330 = vmul.f32 %v7239, %v7319
          %v7331 = vmul.f32 %v7241, %v7321
          %v7332 = vmul.f32 %v7243, %v7323
          %v7333 = vmul.f32 %v7245, %v7325
          %vm7334 = vcmp.gt.s32.totalorder %v1844, 26
          %v7335 = vsel %vm7334, 1, 0
          %7336 = vset.pattern.permute.xlu0 0
          %7337 = vperm.xlu0 %7336, %v7335
          %v7338 = vpop.permute.xlu0 %7337
          %vm7339 = vcmp.eq.s32.totalorder %v7338, 1
          %v7344 = vrot.slane %v7330, 2
          %v7345 = vrot.slane %v7331, 1
          %v7346 = vsel %vm2042, %v7345, %v7344
          %v7347 = vsel %vm2045, %v7332, %v7346
          %v7348 = vrot.slane %v7333, 7
          %v7349 = vsel %vm2048, %v7348, %v7347
          %7350 = vrot.lane.b32.xlu0 %v7349, 32
          %v7351 = vpop.permute.xlu0 %7350
          %v7353 = vsel %vm7339, %v7351, %v7151
          %v7358 = vrot.slane %v7306, 2
          %v7359 = vrot.slane %v7307, 1
          %v7360 = vsel %vm2042, %v7359, %v7358
          %v7361 = vsel %vm2045, %v7308, %v7360
          %v7362 = vrot.slane %v7309, 7
          %v7363 = vsel %vm2048, %v7362, %v7361
          %7364 = vrot.lane.b32.xlu0 %v7363, 96
          %v7365 = vpop.permute.xlu0 %7364
          %v7367 = vsel %vm7339, %v7365, %v7165
          %v7368 = vpack.c.bf16 %v7353, %v7353
          %v7370 = vsel %vm1166, %v7368, 0
          %7372 = vmatprep.subr.bf16.mxu0 0
          %7373 = vmatpush1.bf16.msra.mxu0 0
          %7374 = vmatprep.subr.bf16.mxu0 0
          %7375 = vmatpush1.bf16.msra.mxu0 0
          %7376 = vmatprep.subr.bf16.mxu0 0
          %7377 = vmatpush1.bf16.msra.mxu0 0
          %7378 = vmatprep.subr.bf16.mxu0 0
          %7379 = vmatpush1.bf16.msra.mxu0 0
          %7380 = vmatprep.subr.bf16.mxu0 0
          %7381 = vmatpush1.bf16.msra.mxu0 0
          %7382 = vmatprep.subr.bf16.mxu0 0
          %7383 = vmatpush1.bf16.msra.mxu0 0
          %7384 = vmatprep.subr.bf16.mxu0 0
          %7385 = vmatpush1.bf16.msra.mxu0 %v1861
          %7386 = vmatprep.subr.bf16.mxu0 0
          %7387 = vmatpush1.bf16.msra.mxu0 %v1860
          %7388 = vmatprep.subr.bf16.mxu0 0
          %7389 = vmatpush2.bf16.msra.mxu0 0
          %7390 = vmatprep.subr.bf16.mxu0 0
          %7391 = vmatpush2.bf16.msra.mxu0 0
          %7392 = vmatprep.subr.bf16.mxu0 0
          %7393 = vmatpush2.bf16.msra.mxu0 0
          %7394 = vmatprep.subr.bf16.mxu0 0
          %7395 = vmatpush2.bf16.msra.mxu0 0
          %7396 = vmatprep.subr.bf16.mxu0 0
          %7397 = vmatpush2.bf16.msra.mxu0 0
          %7398 = vmatprep.subr.bf16.mxu0 0
          %7399 = vmatpush2.bf16.msra.mxu0 0
          %7400 = vmatprep.subr.bf16.mxu0 0
          %7401 = vmatpush2.bf16.msra.mxu0 0
          %7402 = vmatprep.subr.bf16.mxu0 0
          %7403 = vmatpush2.bf16.msra.mxu0 0
          %7404 = vmatprep.mubr.bf16.mxu0 0
          %7405 = vmatmul.mubr.bf16.gmra.mxu0 %v7370
          %v7406 = vpop.f32.mrf.mxu0
          %v7407 = vadd.f32 0.0, %v7406
          %v7408 = vpop.f32.mrf.mxu0
          %v7409 = vpop.f32.mrf.mxu0
          %v7410 = vpop.f32.mrf.mxu0
          %7411 = vdwg.mxu0
          %v7413 = vrot.slane %v7407, 5
          %v7414 = vrot.slane %v7407, 6
          %v7415 = vrot.slane %v7407, 7
          %v7420 = vadd.f32 %v1791, %v7413
          %v7421 = vadd.f32 %v1807, %v7414
          %v7422 = vadd.f32 %v1823, %v7415
          %v7423 = vadd.f32 %v1839, %v7407
          %v7424 = vxor.u32 %v7420, 2147483648
          %v7425 = vxor.u32 %v7421, 2147483648
          %v7426 = vxor.u32 %v7422, 2147483648
          %v7427 = vxor.u32 %v7423, 2147483648
          %v7428 = vmul.f32 %v7424, 1.442695
          %v7429 = vpow.pop %v7428
          %v7430 = vmul.f32 %v7425, 1.442695
          %v7431 = vpow.pop %v7430
          %v7432 = vmul.f32 %v7426, 1.442695
          %v7433 = vpow.pop %v7432
          %v7434 = vmul.f32 %v7427, 1.442695
          %v7435 = vpow.pop %v7434
          %v7436 = vadd.f32 %v7429, 1.0
          %v7437 = vadd.f32 %v7431, 1.0
          %v7438 = vadd.f32 %v7433, 1.0
          %v7439 = vadd.f32 %v7435, 1.0
          %v7440 = vrcp.pop %v7436
          %v7441 = vmul.f32 1.0, %v7440
          %v7442 = vrcp.pop %v7437
          %v7443 = vmul.f32 1.0, %v7442
          %v7444 = vrcp.pop %v7438
          %v7445 = vmul.f32 1.0, %v7444
          %v7446 = vrcp.pop %v7439
          %v7447 = vmul.f32 1.0, %v7446
          %v7448 = vtanh.pop %v7420
          %v7449 = vtanh.pop %v7421
          %v7450 = vtanh.pop %v7422
          %v7451 = vtanh.pop %v7423
          %v7453 = vrot.slane %v7367, 5
          %v7454 = vrot.slane %v7367, 6
          %v7455 = vrot.slane %v7367, 7
          %7456 = vrot.lane.b32.xlu0 %v7453, 32
          %v7457 = vpop.permute.xlu0 %7456
          %7458 = vrot.lane.b32.xlu0 %v7454, 32
          %v7459 = vpop.permute.xlu0 %7458
          %7460 = vrot.lane.b32.xlu0 %v7455, 32
          %v7461 = vpop.permute.xlu0 %7460
          %7462 = vrot.lane.b32.xlu0 %v7367, 32
          %v7463 = vpop.permute.xlu0 %7462
          %v7468 = vmul.f32 %v7441, %v7457
          %v7469 = vmul.f32 %v7443, %v7459
          %v7470 = vmul.f32 %v7445, %v7461
          %v7471 = vmul.f32 %v7447, %v7463
          %7476 = vrot.lane.b32.xlu0 %v7448, 64
          %v7477 = vpop.permute.xlu0 %7476
          %7478 = vrot.lane.b32.xlu0 %v7449, 64
          %v7479 = vpop.permute.xlu0 %7478
          %7480 = vrot.lane.b32.xlu0 %v7450, 64
          %v7481 = vpop.permute.xlu0 %7480
          %7482 = vrot.lane.b32.xlu0 %v7451, 64
          %v7483 = vpop.permute.xlu0 %7482
          %v7488 = vmul.f32 %v7441, %v7477
          %v7489 = vmul.f32 %v7443, %v7479
          %v7490 = vmul.f32 %v7445, %v7481
          %v7491 = vmul.f32 %v7447, %v7483
          %7496 = vrot.lane.b32.xlu0 %v7488, 32
          %v7497 = vpop.permute.xlu0 %7496
          %7498 = vrot.lane.b32.xlu0 %v7489, 32
          %v7499 = vpop.permute.xlu0 %7498
          %7500 = vrot.lane.b32.xlu0 %v7490, 32
          %v7501 = vpop.permute.xlu0 %7500
          %7502 = vrot.lane.b32.xlu0 %v7491, 32
          %v7503 = vpop.permute.xlu0 %7502
          %v7508 = vadd.f32 %v7468, %v7497
          %v7509 = vadd.f32 %v7469, %v7499
          %v7510 = vadd.f32 %v7470, %v7501
          %v7511 = vadd.f32 %v7471, %v7503
          %v7512 = vtanh.pop %v7508
          %v7513 = vtanh.pop %v7509
          %v7514 = vtanh.pop %v7510
          %v7515 = vtanh.pop %v7511
          %7520 = vrot.lane.b32.xlu0 %v7512, 64
          %v7521 = vpop.permute.xlu0 %7520
          %7522 = vrot.lane.b32.xlu0 %v7513, 64
          %v7523 = vpop.permute.xlu0 %7522
          %7524 = vrot.lane.b32.xlu0 %v7514, 64
          %v7525 = vpop.permute.xlu0 %7524
          %7526 = vrot.lane.b32.xlu0 %v7515, 64
          %v7527 = vpop.permute.xlu0 %7526
          %v7532 = vmul.f32 %v7441, %v7521
          %v7533 = vmul.f32 %v7443, %v7523
          %v7534 = vmul.f32 %v7445, %v7525
          %v7535 = vmul.f32 %v7447, %v7527
          %vm7536 = vcmp.gt.s32.totalorder %v1844, 27
          %v7537 = vsel %vm7536, 1, 0
          %7538 = vset.pattern.permute.xlu0 0
          %7539 = vperm.xlu0 %7538, %v7537
          %v7540 = vpop.permute.xlu0 %7539
          %vm7541 = vcmp.eq.s32.totalorder %v7540, 1
          %v7546 = vrot.slane %v7532, 3
          %v7547 = vrot.slane %v7533, 2
          %v7548 = vsel %vm2042, %v7547, %v7546
          %v7549 = vrot.slane %v7534, 1
          %v7550 = vsel %vm2045, %v7549, %v7548
          %v7551 = vsel %vm2048, %v7535, %v7550
          %7552 = vrot.lane.b32.xlu0 %v7551, 32
          %v7553 = vpop.permute.xlu0 %7552
          %v7555 = vsel %vm7541, %v7553, %v7353
          %v7560 = vrot.slane %v7508, 3
          %v7561 = vrot.slane %v7509, 2
          %v7562 = vsel %vm2042, %v7561, %v7560
          %v7563 = vrot.slane %v7510, 1
          %v7564 = vsel %vm2045, %v7563, %v7562
          %v7565 = vsel %vm2048, %v7511, %v7564
          %7566 = vrot.lane.b32.xlu0 %v7565, 96
          %v7567 = vpop.permute.xlu0 %7566
          %v7569 = vsel %vm7541, %v7567, %v7367
          %v7570 = vpack.c.bf16 %v7555, %v7555
          %v7572 = vsel %vm1166, %v7570, 0
          %7574 = vmatprep.subr.bf16.mxu0 0
          %7575 = vmatpush1.bf16.msra.mxu0 0
          %7576 = vmatprep.subr.bf16.mxu0 0
          %7577 = vmatpush1.bf16.msra.mxu0 0
          %7578 = vmatprep.subr.bf16.mxu0 0
          %7579 = vmatpush1.bf16.msra.mxu0 0
          %7580 = vmatprep.subr.bf16.mxu0 0
          %7581 = vmatpush1.bf16.msra.mxu0 0
          %7582 = vmatprep.subr.bf16.mxu0 0
          %7583 = vmatpush1.bf16.msra.mxu0 0
          %7584 = vmatprep.subr.bf16.mxu0 0
          %7585 = vmatpush1.bf16.msra.mxu0 0
          %7586 = vmatprep.subr.bf16.mxu0 0
          %7587 = vmatpush1.bf16.msra.mxu0 %v1861
          %7588 = vmatprep.subr.bf16.mxu0 0
          %7589 = vmatpush1.bf16.msra.mxu0 %v1860
          %7590 = vmatprep.subr.bf16.mxu0 0
          %7591 = vmatpush2.bf16.msra.mxu0 0
          %7592 = vmatprep.subr.bf16.mxu0 0
          %7593 = vmatpush2.bf16.msra.mxu0 0
          %7594 = vmatprep.subr.bf16.mxu0 0
          %7595 = vmatpush2.bf16.msra.mxu0 0
          %7596 = vmatprep.subr.bf16.mxu0 0
          %7597 = vmatpush2.bf16.msra.mxu0 0
          %7598 = vmatprep.subr.bf16.mxu0 0
          %7599 = vmatpush2.bf16.msra.mxu0 0
          %7600 = vmatprep.subr.bf16.mxu0 0
          %7601 = vmatpush2.bf16.msra.mxu0 0
          %7602 = vmatprep.subr.bf16.mxu0 0
          %7603 = vmatpush2.bf16.msra.mxu0 0
          %7604 = vmatprep.subr.bf16.mxu0 0
          %7605 = vmatpush2.bf16.msra.mxu0 0
          %7606 = vmatprep.mubr.bf16.mxu0 0
          %7607 = vmatmul.mubr.bf16.gmra.mxu0 %v7572
          %v7608 = vpop.f32.mrf.mxu0
          %v7609 = vadd.f32 0.0, %v7608
          %v7610 = vpop.f32.mrf.mxu0
          %v7611 = vpop.f32.mrf.mxu0
          %v7612 = vpop.f32.mrf.mxu0
          %7613 = vdwg.mxu0
          %v7615 = vrot.slane %v7609, 4
          %v7616 = vrot.slane %v7609, 5
          %v7617 = vrot.slane %v7609, 6
          %v7618 = vrot.slane %v7609, 7
          %v7623 = vadd.f32 %v1791, %v7615
          %v7624 = vadd.f32 %v1807, %v7616
          %v7625 = vadd.f32 %v1823, %v7617
          %v7626 = vadd.f32 %v1839, %v7618
          %v7627 = vxor.u32 %v7623, 2147483648
          %v7628 = vxor.u32 %v7624, 2147483648
          %v7629 = vxor.u32 %v7625, 2147483648
          %v7630 = vxor.u32 %v7626, 2147483648
          %v7631 = vmul.f32 %v7627, 1.442695
          %v7632 = vpow.pop %v7631
          %v7633 = vmul.f32 %v7628, 1.442695
          %v7634 = vpow.pop %v7633
          %v7635 = vmul.f32 %v7629, 1.442695
          %v7636 = vpow.pop %v7635
          %v7637 = vmul.f32 %v7630, 1.442695
          %v7638 = vpow.pop %v7637
          %v7639 = vadd.f32 %v7632, 1.0
          %v7640 = vadd.f32 %v7634, 1.0
          %v7641 = vadd.f32 %v7636, 1.0
          %v7642 = vadd.f32 %v7638, 1.0
          %v7643 = vrcp.pop %v7639
          %v7644 = vmul.f32 1.0, %v7643
          %v7645 = vrcp.pop %v7640
          %v7646 = vmul.f32 1.0, %v7645
          %v7647 = vrcp.pop %v7641
          %v7648 = vmul.f32 1.0, %v7647
          %v7649 = vrcp.pop %v7642
          %v7650 = vmul.f32 1.0, %v7649
          %v7651 = vtanh.pop %v7623
          %v7652 = vtanh.pop %v7624
          %v7653 = vtanh.pop %v7625
          %v7654 = vtanh.pop %v7626
          %v7656 = vrot.slane %v7569, 4
          %v7657 = vrot.slane %v7569, 5
          %v7658 = vrot.slane %v7569, 6
          %v7659 = vrot.slane %v7569, 7
          %7660 = vrot.lane.b32.xlu0 %v7656, 32
          %v7661 = vpop.permute.xlu0 %7660
          %7662 = vrot.lane.b32.xlu0 %v7657, 32
          %v7663 = vpop.permute.xlu0 %7662
          %7664 = vrot.lane.b32.xlu0 %v7658, 32
          %v7665 = vpop.permute.xlu0 %7664
          %7666 = vrot.lane.b32.xlu0 %v7659, 32
          %v7667 = vpop.permute.xlu0 %7666
          %v7672 = vmul.f32 %v7644, %v7661
          %v7673 = vmul.f32 %v7646, %v7663
          %v7674 = vmul.f32 %v7648, %v7665
          %v7675 = vmul.f32 %v7650, %v7667
          %7680 = vrot.lane.b32.xlu0 %v7651, 64
          %v7681 = vpop.permute.xlu0 %7680
          %7682 = vrot.lane.b32.xlu0 %v7652, 64
          %v7683 = vpop.permute.xlu0 %7682
          %7684 = vrot.lane.b32.xlu0 %v7653, 64
          %v7685 = vpop.permute.xlu0 %7684
          %7686 = vrot.lane.b32.xlu0 %v7654, 64
          %v7687 = vpop.permute.xlu0 %7686
          %v7692 = vmul.f32 %v7644, %v7681
          %v7693 = vmul.f32 %v7646, %v7683
          %v7694 = vmul.f32 %v7648, %v7685
          %v7695 = vmul.f32 %v7650, %v7687
          %7700 = vrot.lane.b32.xlu0 %v7692, 32
          %v7701 = vpop.permute.xlu0 %7700
          %7702 = vrot.lane.b32.xlu0 %v7693, 32
          %v7703 = vpop.permute.xlu0 %7702
          %7704 = vrot.lane.b32.xlu0 %v7694, 32
          %v7705 = vpop.permute.xlu0 %7704
          %7706 = vrot.lane.b32.xlu0 %v7695, 32
          %v7707 = vpop.permute.xlu0 %7706
          %v7712 = vadd.f32 %v7672, %v7701
          %v7713 = vadd.f32 %v7673, %v7703
          %v7714 = vadd.f32 %v7674, %v7705
          %v7715 = vadd.f32 %v7675, %v7707
          %v7716 = vtanh.pop %v7712
          %v7717 = vtanh.pop %v7713
          %v7718 = vtanh.pop %v7714
          %v7719 = vtanh.pop %v7715
          %7724 = vrot.lane.b32.xlu0 %v7716, 64
          %v7725 = vpop.permute.xlu0 %7724
          %7726 = vrot.lane.b32.xlu0 %v7717, 64
          %v7727 = vpop.permute.xlu0 %7726
          %7728 = vrot.lane.b32.xlu0 %v7718, 64
          %v7729 = vpop.permute.xlu0 %7728
          %7730 = vrot.lane.b32.xlu0 %v7719, 64
          %v7731 = vpop.permute.xlu0 %7730
          %v7736 = vmul.f32 %v7644, %v7725
          %v7737 = vmul.f32 %v7646, %v7727
          %v7738 = vmul.f32 %v7648, %v7729
          %v7739 = vmul.f32 %v7650, %v7731
          %vm7740 = vcmp.gt.s32.totalorder %v1844, 28
          %v7741 = vsel %vm7740, 1, 0
          %7742 = vset.pattern.permute.xlu0 0
          %7743 = vperm.xlu0 %7742, %v7741
          %v7744 = vpop.permute.xlu0 %7743
          %vm7745 = vcmp.eq.s32.totalorder %v7744, 1
          %v7750 = vrot.slane %v7736, 4
          %v7751 = vrot.slane %v7737, 3
          %v7752 = vsel %vm2042, %v7751, %v7750
          %v7753 = vrot.slane %v7738, 2
          %v7754 = vsel %vm2045, %v7753, %v7752
          %v7755 = vrot.slane %v7739, 1
          %v7756 = vsel %vm2048, %v7755, %v7754
          %7757 = vrot.lane.b32.xlu0 %v7756, 32
          %v7758 = vpop.permute.xlu0 %7757
          %v7760 = vsel %vm7745, %v7758, %v7555
          %v7765 = vrot.slane %v7712, 4
          %v7766 = vrot.slane %v7713, 3
          %v7767 = vsel %vm2042, %v7766, %v7765
          %v7768 = vrot.slane %v7714, 2
          %v7769 = vsel %vm2045, %v7768, %v7767
          %v7770 = vrot.slane %v7715, 1
          %v7771 = vsel %vm2048, %v7770, %v7769
          %7772 = vrot.lane.b32.xlu0 %v7771, 96
          %v7773 = vpop.permute.xlu0 %7772
          %v7775 = vsel %vm7745, %v7773, %v7569
          %v7776 = vpack.c.bf16 %v7760, %v7760
          %v7778 = vsel %vm1166, %v7776, 0
          %7780 = vmatprep.subr.bf16.mxu0 0
          %7781 = vmatpush1.bf16.msra.mxu0 0
          %7782 = vmatprep.subr.bf16.mxu0 0
          %7783 = vmatpush1.bf16.msra.mxu0 0
          %7784 = vmatprep.subr.bf16.mxu0 0
          %7785 = vmatpush1.bf16.msra.mxu0 0
          %7786 = vmatprep.subr.bf16.mxu0 0
          %7787 = vmatpush1.bf16.msra.mxu0 0
          %7788 = vmatprep.subr.bf16.mxu0 0
          %7789 = vmatpush1.bf16.msra.mxu0 0
          %7790 = vmatprep.subr.bf16.mxu0 0
          %7791 = vmatpush1.bf16.msra.mxu0 0
          %7792 = vmatprep.subr.bf16.mxu0 0
          %7793 = vmatpush1.bf16.msra.mxu0 %v1861
          %7794 = vmatprep.subr.bf16.mxu0 0
          %7795 = vmatpush1.bf16.msra.mxu0 %v1860
          %7796 = vmatprep.subr.bf16.mxu0 0
          %7797 = vmatpush2.bf16.msra.mxu0 0
          %7798 = vmatprep.subr.bf16.mxu0 0
          %7799 = vmatpush2.bf16.msra.mxu0 0
          %7800 = vmatprep.subr.bf16.mxu0 0
          %7801 = vmatpush2.bf16.msra.mxu0 0
          %7802 = vmatprep.subr.bf16.mxu0 0
          %7803 = vmatpush2.bf16.msra.mxu0 0
          %7804 = vmatprep.subr.bf16.mxu0 0
          %7805 = vmatpush2.bf16.msra.mxu0 0
          %7806 = vmatprep.subr.bf16.mxu0 0
          %7807 = vmatpush2.bf16.msra.mxu0 0
          %7808 = vmatprep.subr.bf16.mxu0 0
          %7809 = vmatpush2.bf16.msra.mxu0 0
          %7810 = vmatprep.subr.bf16.mxu0 0
          %7811 = vmatpush2.bf16.msra.mxu0 0
          %7812 = vmatprep.mubr.bf16.mxu0 0
          %7813 = vmatmul.mubr.bf16.gmra.mxu0 %v7778
          %v7814 = vpop.f32.mrf.mxu0
          %v7815 = vadd.f32 0.0, %v7814
          %v7816 = vpop.f32.mrf.mxu0
          %v7817 = vpop.f32.mrf.mxu0
          %v7818 = vpop.f32.mrf.mxu0
          %7819 = vdwg.mxu0
          %v7821 = vrot.slane %v7815, 3
          %v7822 = vrot.slane %v7815, 4
          %v7823 = vrot.slane %v7815, 5
          %v7824 = vrot.slane %v7815, 6
          %v7829 = vadd.f32 %v1791, %v7821
          %v7830 = vadd.f32 %v1807, %v7822
          %v7831 = vadd.f32 %v1823, %v7823
          %v7832 = vadd.f32 %v1839, %v7824
          %v7833 = vxor.u32 %v7829, 2147483648
          %v7834 = vxor.u32 %v7830, 2147483648
          %v7835 = vxor.u32 %v7831, 2147483648
          %v7836 = vxor.u32 %v7832, 2147483648
          %v7837 = vmul.f32 %v7833, 1.442695
          %v7838 = vpow.pop %v7837
          %v7839 = vmul.f32 %v7834, 1.442695
          %v7840 = vpow.pop %v7839
          %v7841 = vmul.f32 %v7835, 1.442695
          %v7842 = vpow.pop %v7841
          %v7843 = vmul.f32 %v7836, 1.442695
          %v7844 = vpow.pop %v7843
          %v7845 = vadd.f32 %v7838, 1.0
          %v7846 = vadd.f32 %v7840, 1.0
          %v7847 = vadd.f32 %v7842, 1.0
          %v7848 = vadd.f32 %v7844, 1.0
          %v7849 = vrcp.pop %v7845
          %v7850 = vmul.f32 1.0, %v7849
          %v7851 = vrcp.pop %v7846
          %v7852 = vmul.f32 1.0, %v7851
          %v7853 = vrcp.pop %v7847
          %v7854 = vmul.f32 1.0, %v7853
          %v7855 = vrcp.pop %v7848
          %v7856 = vmul.f32 1.0, %v7855
          %v7857 = vtanh.pop %v7829
          %v7858 = vtanh.pop %v7830
          %v7859 = vtanh.pop %v7831
          %v7860 = vtanh.pop %v7832
          %v7862 = vrot.slane %v7775, 3
          %v7863 = vrot.slane %v7775, 4
          %v7864 = vrot.slane %v7775, 5
          %v7865 = vrot.slane %v7775, 6
          %7866 = vrot.lane.b32.xlu0 %v7862, 32
          %v7867 = vpop.permute.xlu0 %7866
          %7868 = vrot.lane.b32.xlu0 %v7863, 32
          %v7869 = vpop.permute.xlu0 %7868
          %7870 = vrot.lane.b32.xlu0 %v7864, 32
          %v7871 = vpop.permute.xlu0 %7870
          %7872 = vrot.lane.b32.xlu0 %v7865, 32
          %v7873 = vpop.permute.xlu0 %7872
          %v7878 = vmul.f32 %v7850, %v7867
          %v7879 = vmul.f32 %v7852, %v7869
          %v7880 = vmul.f32 %v7854, %v7871
          %v7881 = vmul.f32 %v7856, %v7873
          %7886 = vrot.lane.b32.xlu0 %v7857, 64
          %v7887 = vpop.permute.xlu0 %7886
          %7888 = vrot.lane.b32.xlu0 %v7858, 64
          %v7889 = vpop.permute.xlu0 %7888
          %7890 = vrot.lane.b32.xlu0 %v7859, 64
          %v7891 = vpop.permute.xlu0 %7890
          %7892 = vrot.lane.b32.xlu0 %v7860, 64
          %v7893 = vpop.permute.xlu0 %7892
          %v7898 = vmul.f32 %v7850, %v7887
          %v7899 = vmul.f32 %v7852, %v7889
          %v7900 = vmul.f32 %v7854, %v7891
          %v7901 = vmul.f32 %v7856, %v7893
          %7906 = vrot.lane.b32.xlu0 %v7898, 32
          %v7907 = vpop.permute.xlu0 %7906
          %7908 = vrot.lane.b32.xlu0 %v7899, 32
          %v7909 = vpop.permute.xlu0 %7908
          %7910 = vrot.lane.b32.xlu0 %v7900, 32
          %v7911 = vpop.permute.xlu0 %7910
          %7912 = vrot.lane.b32.xlu0 %v7901, 32
          %v7913 = vpop.permute.xlu0 %7912
          %v7918 = vadd.f32 %v7878, %v7907
          %v7919 = vadd.f32 %v7879, %v7909
          %v7920 = vadd.f32 %v7880, %v7911
          %v7921 = vadd.f32 %v7881, %v7913
          %v7922 = vtanh.pop %v7918
          %v7923 = vtanh.pop %v7919
          %v7924 = vtanh.pop %v7920
          %v7925 = vtanh.pop %v7921
          %7930 = vrot.lane.b32.xlu0 %v7922, 64
          %v7931 = vpop.permute.xlu0 %7930
          %7932 = vrot.lane.b32.xlu0 %v7923, 64
          %v7933 = vpop.permute.xlu0 %7932
          %7934 = vrot.lane.b32.xlu0 %v7924, 64
          %v7935 = vpop.permute.xlu0 %7934
          %7936 = vrot.lane.b32.xlu0 %v7925, 64
          %v7937 = vpop.permute.xlu0 %7936
          %v7942 = vmul.f32 %v7850, %v7931
          %v7943 = vmul.f32 %v7852, %v7933
          %v7944 = vmul.f32 %v7854, %v7935
          %v7945 = vmul.f32 %v7856, %v7937
          %vm7946 = vcmp.gt.s32.totalorder %v1844, 29
          %v7947 = vsel %vm7946, 1, 0
          %7948 = vset.pattern.permute.xlu0 0
          %7949 = vperm.xlu0 %7948, %v7947
          %v7950 = vpop.permute.xlu0 %7949
          %vm7951 = vcmp.eq.s32.totalorder %v7950, 1
          %v7956 = vrot.slane %v7942, 5
          %v7957 = vrot.slane %v7943, 4
          %v7958 = vsel %vm2042, %v7957, %v7956
          %v7959 = vrot.slane %v7944, 3
          %v7960 = vsel %vm2045, %v7959, %v7958
          %v7961 = vrot.slane %v7945, 2
          %v7962 = vsel %vm2048, %v7961, %v7960
          %7963 = vrot.lane.b32.xlu0 %v7962, 32
          %v7964 = vpop.permute.xlu0 %7963
          %v7966 = vsel %vm7951, %v7964, %v7760
          %v7971 = vrot.slane %v7918, 5
          %v7972 = vrot.slane %v7919, 4
          %v7973 = vsel %vm2042, %v7972, %v7971
          %v7974 = vrot.slane %v7920, 3
          %v7975 = vsel %vm2045, %v7974, %v7973
          %v7976 = vrot.slane %v7921, 2
          %v7977 = vsel %vm2048, %v7976, %v7975
          %7978 = vrot.lane.b32.xlu0 %v7977, 96
          %v7979 = vpop.permute.xlu0 %7978
          %v7981 = vsel %vm7951, %v7979, %v7775
          %v7982 = vpack.c.bf16 %v7966, %v7966
          %v7984 = vsel %vm1166, %v7982, 0
          %7986 = vmatprep.subr.bf16.mxu0 0
          %7987 = vmatpush1.bf16.msra.mxu0 0
          %7988 = vmatprep.subr.bf16.mxu0 0
          %7989 = vmatpush1.bf16.msra.mxu0 0
          %7990 = vmatprep.subr.bf16.mxu0 0
          %7991 = vmatpush1.bf16.msra.mxu0 0
          %7992 = vmatprep.subr.bf16.mxu0 0
          %7993 = vmatpush1.bf16.msra.mxu0 0
          %7994 = vmatprep.subr.bf16.mxu0 0
          %7995 = vmatpush1.bf16.msra.mxu0 0
          %7996 = vmatprep.subr.bf16.mxu0 0
          %7997 = vmatpush1.bf16.msra.mxu0 0
          %7998 = vmatprep.subr.bf16.mxu0 0
          %7999 = vmatpush1.bf16.msra.mxu0 %v1861
          %8000 = vmatprep.subr.bf16.mxu0 0
          %8001 = vmatpush1.bf16.msra.mxu0 %v1860
          %8002 = vmatprep.subr.bf16.mxu0 0
          %8003 = vmatpush2.bf16.msra.mxu0 0
          %8004 = vmatprep.subr.bf16.mxu0 0
          %8005 = vmatpush2.bf16.msra.mxu0 0
          %8006 = vmatprep.subr.bf16.mxu0 0
          %8007 = vmatpush2.bf16.msra.mxu0 0
          %8008 = vmatprep.subr.bf16.mxu0 0
          %8009 = vmatpush2.bf16.msra.mxu0 0
          %8010 = vmatprep.subr.bf16.mxu0 0
          %8011 = vmatpush2.bf16.msra.mxu0 0
          %8012 = vmatprep.subr.bf16.mxu0 0
          %8013 = vmatpush2.bf16.msra.mxu0 0
          %8014 = vmatprep.subr.bf16.mxu0 0
          %8015 = vmatpush2.bf16.msra.mxu0 0
          %8016 = vmatprep.subr.bf16.mxu0 0
          %8017 = vmatpush2.bf16.msra.mxu0 0
          %8018 = vmatprep.mubr.bf16.mxu0 0
          %8019 = vmatmul.mubr.bf16.gmra.mxu0 %v7984
          %v8020 = vpop.f32.mrf.mxu0
          %v8021 = vadd.f32 0.0, %v8020
          %v8022 = vpop.f32.mrf.mxu0
          %v8023 = vpop.f32.mrf.mxu0
          %v8024 = vpop.f32.mrf.mxu0
          %8025 = vdwg.mxu0
          %v8027 = vrot.slane %v8021, 2
          %v8028 = vrot.slane %v8021, 3
          %v8029 = vrot.slane %v8021, 4
          %v8030 = vrot.slane %v8021, 5
          %v8035 = vadd.f32 %v1791, %v8027
          %v8036 = vadd.f32 %v1807, %v8028
          %v8037 = vadd.f32 %v1823, %v8029
          %v8038 = vadd.f32 %v1839, %v8030
          %v8039 = vxor.u32 %v8035, 2147483648
          %v8040 = vxor.u32 %v8036, 2147483648
          %v8041 = vxor.u32 %v8037, 2147483648
          %v8042 = vxor.u32 %v8038, 2147483648
          %v8043 = vmul.f32 %v8039, 1.442695
          %v8044 = vpow.pop %v8043
          %v8045 = vmul.f32 %v8040, 1.442695
          %v8046 = vpow.pop %v8045
          %v8047 = vmul.f32 %v8041, 1.442695
          %v8048 = vpow.pop %v8047
          %v8049 = vmul.f32 %v8042, 1.442695
          %v8050 = vpow.pop %v8049
          %v8051 = vadd.f32 %v8044, 1.0
          %v8052 = vadd.f32 %v8046, 1.0
          %v8053 = vadd.f32 %v8048, 1.0
          %v8054 = vadd.f32 %v8050, 1.0
          %v8055 = vrcp.pop %v8051
          %v8056 = vmul.f32 1.0, %v8055
          %v8057 = vrcp.pop %v8052
          %v8058 = vmul.f32 1.0, %v8057
          %v8059 = vrcp.pop %v8053
          %v8060 = vmul.f32 1.0, %v8059
          %v8061 = vrcp.pop %v8054
          %v8062 = vmul.f32 1.0, %v8061
          %v8063 = vtanh.pop %v8035
          %v8064 = vtanh.pop %v8036
          %v8065 = vtanh.pop %v8037
          %v8066 = vtanh.pop %v8038
          %v8068 = vrot.slane %v7981, 2
          %v8069 = vrot.slane %v7981, 3
          %v8070 = vrot.slane %v7981, 4
          %v8071 = vrot.slane %v7981, 5
          %8072 = vrot.lane.b32.xlu0 %v8068, 32
          %v8073 = vpop.permute.xlu0 %8072
          %8074 = vrot.lane.b32.xlu0 %v8069, 32
          %v8075 = vpop.permute.xlu0 %8074
          %8076 = vrot.lane.b32.xlu0 %v8070, 32
          %v8077 = vpop.permute.xlu0 %8076
          %8078 = vrot.lane.b32.xlu0 %v8071, 32
          %v8079 = vpop.permute.xlu0 %8078
          %v8084 = vmul.f32 %v8056, %v8073
          %v8085 = vmul.f32 %v8058, %v8075
          %v8086 = vmul.f32 %v8060, %v8077
          %v8087 = vmul.f32 %v8062, %v8079
          %8092 = vrot.lane.b32.xlu0 %v8063, 64
          %v8093 = vpop.permute.xlu0 %8092
          %8094 = vrot.lane.b32.xlu0 %v8064, 64
          %v8095 = vpop.permute.xlu0 %8094
          %8096 = vrot.lane.b32.xlu0 %v8065, 64
          %v8097 = vpop.permute.xlu0 %8096
          %8098 = vrot.lane.b32.xlu0 %v8066, 64
          %v8099 = vpop.permute.xlu0 %8098
          %v8104 = vmul.f32 %v8056, %v8093
          %v8105 = vmul.f32 %v8058, %v8095
          %v8106 = vmul.f32 %v8060, %v8097
          %v8107 = vmul.f32 %v8062, %v8099
          %8112 = vrot.lane.b32.xlu0 %v8104, 32
          %v8113 = vpop.permute.xlu0 %8112
          %8114 = vrot.lane.b32.xlu0 %v8105, 32
          %v8115 = vpop.permute.xlu0 %8114
          %8116 = vrot.lane.b32.xlu0 %v8106, 32
          %v8117 = vpop.permute.xlu0 %8116
          %8118 = vrot.lane.b32.xlu0 %v8107, 32
          %v8119 = vpop.permute.xlu0 %8118
          %v8124 = vadd.f32 %v8084, %v8113
          %v8125 = vadd.f32 %v8085, %v8115
          %v8126 = vadd.f32 %v8086, %v8117
          %v8127 = vadd.f32 %v8087, %v8119
          %v8128 = vtanh.pop %v8124
          %v8129 = vtanh.pop %v8125
          %v8130 = vtanh.pop %v8126
          %v8131 = vtanh.pop %v8127
          %8136 = vrot.lane.b32.xlu0 %v8128, 64
          %v8137 = vpop.permute.xlu0 %8136
          %8138 = vrot.lane.b32.xlu0 %v8129, 64
          %v8139 = vpop.permute.xlu0 %8138
          %8140 = vrot.lane.b32.xlu0 %v8130, 64
          %v8141 = vpop.permute.xlu0 %8140
          %8142 = vrot.lane.b32.xlu0 %v8131, 64
          %v8143 = vpop.permute.xlu0 %8142
          %v8148 = vmul.f32 %v8056, %v8137
          %v8149 = vmul.f32 %v8058, %v8139
          %v8150 = vmul.f32 %v8060, %v8141
          %v8151 = vmul.f32 %v8062, %v8143
          %vm8152 = vcmp.gt.s32.totalorder %v1844, 30
          %v8153 = vsel %vm8152, 1, 0
          %8154 = vset.pattern.permute.xlu0 0
          %8155 = vperm.xlu0 %8154, %v8153
          %v8156 = vpop.permute.xlu0 %8155
          %vm8157 = vcmp.eq.s32.totalorder %v8156, 1
          %v8162 = vrot.slane %v8148, 6
          %v8163 = vrot.slane %v8149, 5
          %v8164 = vsel %vm2042, %v8163, %v8162
          %v8165 = vrot.slane %v8150, 4
          %v8166 = vsel %vm2045, %v8165, %v8164
          %v8167 = vrot.slane %v8151, 3
          %v8168 = vsel %vm2048, %v8167, %v8166
          %8169 = vrot.lane.b32.xlu0 %v8168, 32
          %v8170 = vpop.permute.xlu0 %8169
          %v8172 = vsel %vm8157, %v8170, %v7966
          %v8177 = vrot.slane %v8124, 6
          %v8178 = vrot.slane %v8125, 5
          %v8179 = vsel %vm2042, %v8178, %v8177
          %v8180 = vrot.slane %v8126, 4
          %v8181 = vsel %vm2045, %v8180, %v8179
          %v8182 = vrot.slane %v8127, 3
          %v8183 = vsel %vm2048, %v8182, %v8181
          %8184 = vrot.lane.b32.xlu0 %v8183, 96
          %v8185 = vpop.permute.xlu0 %8184
          %v8187 = vsel %vm8157, %v8185, %v7981
          %v8188 = vpack.c.bf16 %v8172, %v8172
          %v8190 = vsel %vm1166, %v8188, 0
          %8192 = vmatprep.subr.bf16.mxu0 0
          %8193 = vmatpush1.bf16.msra.mxu0 0
          %8194 = vmatprep.subr.bf16.mxu0 0
          %8195 = vmatpush1.bf16.msra.mxu0 0
          %8196 = vmatprep.subr.bf16.mxu0 0
          %8197 = vmatpush1.bf16.msra.mxu0 0
          %8198 = vmatprep.subr.bf16.mxu0 0
          %8199 = vmatpush1.bf16.msra.mxu0 0
          %8200 = vmatprep.subr.bf16.mxu0 0
          %8201 = vmatpush1.bf16.msra.mxu0 0
          %8202 = vmatprep.subr.bf16.mxu0 0
          %8203 = vmatpush1.bf16.msra.mxu0 0
          %8204 = vmatprep.subr.bf16.mxu0 0
          %8205 = vmatpush1.bf16.msra.mxu0 %v1861
          %8206 = vmatprep.subr.bf16.mxu0 0
          %8207 = vmatpush1.bf16.msra.mxu0 %v1860
          %8208 = vmatprep.subr.bf16.mxu0 0
          %8209 = vmatpush2.bf16.msra.mxu0 0
          %8210 = vmatprep.subr.bf16.mxu0 0
          %8211 = vmatpush2.bf16.msra.mxu0 0
          %8212 = vmatprep.subr.bf16.mxu0 0
          %8213 = vmatpush2.bf16.msra.mxu0 0
          %8214 = vmatprep.subr.bf16.mxu0 0
          %8215 = vmatpush2.bf16.msra.mxu0 0
          %8216 = vmatprep.subr.bf16.mxu0 0
          %8217 = vmatpush2.bf16.msra.mxu0 0
          %8218 = vmatprep.subr.bf16.mxu0 0
          %8219 = vmatpush2.bf16.msra.mxu0 0
          %8220 = vmatprep.subr.bf16.mxu0 0
          %8221 = vmatpush2.bf16.msra.mxu0 0
          %8222 = vmatprep.subr.bf16.mxu0 0
          %8223 = vmatpush2.bf16.msra.mxu0 0
          %8224 = vmatprep.mubr.bf16.mxu0 0
          %8225 = vmatmul.mubr.bf16.gmra.mxu0 %v8190
          %v8226 = vpop.f32.mrf.mxu0
          %v8227 = vadd.f32 0.0, %v8226
          %v8228 = vpop.f32.mrf.mxu0
          %v8229 = vpop.f32.mrf.mxu0
          %v8230 = vpop.f32.mrf.mxu0
          %8231 = vdwg.mxu0
          %v8233 = vrot.slane %v8227, 1
          %v8234 = vrot.slane %v8227, 2
          %v8235 = vrot.slane %v8227, 3
          %v8236 = vrot.slane %v8227, 4
          %v8241 = vadd.f32 %v1791, %v8233
          %v8242 = vadd.f32 %v1807, %v8234
          %v8243 = vadd.f32 %v1823, %v8235
          %v8244 = vadd.f32 %v1839, %v8236
          %v8245 = vxor.u32 %v8241, 2147483648
          %v8246 = vxor.u32 %v8242, 2147483648
          %v8247 = vxor.u32 %v8243, 2147483648
          %v8248 = vxor.u32 %v8244, 2147483648
          %v8249 = vmul.f32 %v8245, 1.442695
          %v8250 = vpow.pop %v8249
          %v8251 = vmul.f32 %v8246, 1.442695
          %v8252 = vpow.pop %v8251
          %v8253 = vmul.f32 %v8247, 1.442695
          %v8254 = vpow.pop %v8253
          %v8255 = vmul.f32 %v8248, 1.442695
          %v8256 = vpow.pop %v8255
          %v8257 = vadd.f32 %v8250, 1.0
          %v8258 = vadd.f32 %v8252, 1.0
          %v8259 = vadd.f32 %v8254, 1.0
          %v8260 = vadd.f32 %v8256, 1.0
          %v8261 = vrcp.pop %v8257
          %v8262 = vmul.f32 1.0, %v8261
          %v8263 = vrcp.pop %v8258
          %v8264 = vmul.f32 1.0, %v8263
          %v8265 = vrcp.pop %v8259
          %v8266 = vmul.f32 1.0, %v8265
          %v8267 = vrcp.pop %v8260
          %v8268 = vmul.f32 1.0, %v8267
          %v8269 = vtanh.pop %v8241
          %v8270 = vtanh.pop %v8242
          %v8271 = vtanh.pop %v8243
          %v8272 = vtanh.pop %v8244
          %v8274 = vrot.slane %v8187, 1
          %v8275 = vrot.slane %v8187, 2
          %v8276 = vrot.slane %v8187, 3
          %v8277 = vrot.slane %v8187, 4
          %8278 = vrot.lane.b32.xlu0 %v8274, 32
          %v8279 = vpop.permute.xlu0 %8278
          %8280 = vrot.lane.b32.xlu0 %v8275, 32
          %v8281 = vpop.permute.xlu0 %8280
          %8282 = vrot.lane.b32.xlu0 %v8276, 32
          %v8283 = vpop.permute.xlu0 %8282
          %8284 = vrot.lane.b32.xlu0 %v8277, 32
          %v8285 = vpop.permute.xlu0 %8284
          %v8290 = vmul.f32 %v8262, %v8279
          %v8291 = vmul.f32 %v8264, %v8281
          %v8292 = vmul.f32 %v8266, %v8283
          %v8293 = vmul.f32 %v8268, %v8285
          %8298 = vrot.lane.b32.xlu0 %v8269, 64
          %v8299 = vpop.permute.xlu0 %8298
          %8300 = vrot.lane.b32.xlu0 %v8270, 64
          %v8301 = vpop.permute.xlu0 %8300
          %8302 = vrot.lane.b32.xlu0 %v8271, 64
          %v8303 = vpop.permute.xlu0 %8302
          %8304 = vrot.lane.b32.xlu0 %v8272, 64
          %v8305 = vpop.permute.xlu0 %8304
          %v8310 = vmul.f32 %v8262, %v8299
          %v8311 = vmul.f32 %v8264, %v8301
          %v8312 = vmul.f32 %v8266, %v8303
          %v8313 = vmul.f32 %v8268, %v8305
          %8318 = vrot.lane.b32.xlu0 %v8310, 32
          %v8319 = vpop.permute.xlu0 %8318
          %8320 = vrot.lane.b32.xlu0 %v8311, 32
          %v8321 = vpop.permute.xlu0 %8320
          %8322 = vrot.lane.b32.xlu0 %v8312, 32
          %v8323 = vpop.permute.xlu0 %8322
          %8324 = vrot.lane.b32.xlu0 %v8313, 32
          %v8325 = vpop.permute.xlu0 %8324
          %v8330 = vadd.f32 %v8290, %v8319
          %v8331 = vadd.f32 %v8291, %v8321
          %v8332 = vadd.f32 %v8292, %v8323
          %v8333 = vadd.f32 %v8293, %v8325
          %v8334 = vtanh.pop %v8330
          %v8335 = vtanh.pop %v8331
          %v8336 = vtanh.pop %v8332
          %v8337 = vtanh.pop %v8333
          %8342 = vrot.lane.b32.xlu0 %v8334, 64
          %v8343 = vpop.permute.xlu0 %8342
          %8344 = vrot.lane.b32.xlu0 %v8335, 64
          %v8345 = vpop.permute.xlu0 %8344
          %8346 = vrot.lane.b32.xlu0 %v8336, 64
          %v8347 = vpop.permute.xlu0 %8346
          %8348 = vrot.lane.b32.xlu0 %v8337, 64
          %v8349 = vpop.permute.xlu0 %8348
          %v8354 = vmul.f32 %v8262, %v8343
          %v8355 = vmul.f32 %v8264, %v8345
          %v8356 = vmul.f32 %v8266, %v8347
          %v8357 = vmul.f32 %v8268, %v8349
          %vm8358 = vcmp.gt.s32.totalorder %v1844, 31
          %v8359 = vsel %vm8358, 1, 0
          %8360 = vset.pattern.permute.xlu0 0
          %8361 = vperm.xlu0 %8360, %v8359
          %v8362 = vpop.permute.xlu0 %8361
          %vm8363 = vcmp.eq.s32.totalorder %v8362, 1
          %v8368 = vrot.slane %v8354, 7
          %v8369 = vrot.slane %v8355, 6
          %v8370 = vsel %vm2042, %v8369, %v8368
          %v8371 = vrot.slane %v8356, 5
          %v8372 = vsel %vm2045, %v8371, %v8370
          %v8373 = vrot.slane %v8357, 4
          %v8374 = vsel %vm2048, %v8373, %v8372
          %8375 = vrot.lane.b32.xlu0 %v8374, 32
          %v8376 = vpop.permute.xlu0 %8375
          %v8378 = vsel %vm8363, %v8376, %v8172
          %v8383 = vrot.slane %v8330, 7
          %v8384 = vrot.slane %v8331, 6
          %v8385 = vsel %vm2042, %v8384, %v8383
          %v8386 = vrot.slane %v8332, 5
          %v8387 = vsel %vm2045, %v8386, %v8385
          %v8388 = vrot.slane %v8333, 4
          %v8389 = vsel %vm2048, %v8388, %v8387
          %8390 = vrot.lane.b32.xlu0 %v8389, 96
          %v8391 = vpop.permute.xlu0 %8390
          %v8393 = vsel %vm8363, %v8391, %v8187
          %vm8394 = vcmask 257024
          %8395 = vst.msk [vmem:[#allocation2] sm:$0xf] %vm8394, %v8378
          %8396 = vst.msk [vmem:[#allocation3] sm:$0xf] %vm8394, %v8393
        $region252: #{tpu_custom_call.1} parent=227 // pred_fallthru
          _
        %p8397 = scmp.eq.s32.totalorder %s34, 2
        // Predicated region
        $region253: #{tpu_custom_call.1} parent=227 // pred_check
          %p8398 = pneg %p8397
        $region254: #{tpu_custom_call.1} parent=227 // pred_check_branch
          %8400 = sbr.rel (%p8398) target = $region256
        $region255: #{tpu_custom_call.1} parent=227 // pred_region
          %v8401 = vld [vmem:[#allocation2] sm:$0xf]
          %v8402 = vpack.c.bf16 %v8401, %v8401
          %v8403 = vld [vmem:[%s14] sm:$0xf]
          %v8404 = vld [vmem:[%s14 + $0x4] sm:$0xf]
          %v8405 = vld [vmem:[%s14 + $0x8] sm:$0xf]
          %v8406 = vld [vmem:[%s14 + $0xc] sm:$0xf]
          %v8407 = vld [vmem:[%s15] sm:$0x1]
          %v8409 = vlaneseq
          %v8410 = vshrl.u32 %v8409, 7
          %v8411 = vsub.s32 0, %v8410
          %v8412 = vrot.slane %v8407, %v8411
          %v8418 = vunpack.c.l.b16 %v8403
          %v8419 = vunpack.c.l.b16 %v8404
          %v8420 = vunpack.c.l.b16 %v8405
          %v8421 = vunpack.c.l.b16 %v8406
          %v8422 = vpack.c.b16 %v8419, %v8418
          %v8423 = vpack.c.b16 %v8421, %v8420
          %v8427 = vsel %vm1166, %v8402, 0
          %8429 = vmatprep.subr.bf16.mxu0 0
          %8430 = vmatpush1.bf16.msra.mxu0 0
          %8431 = vmatprep.subr.bf16.mxu0 0
          %8432 = vmatpush1.bf16.msra.mxu0 0
          %8433 = vmatprep.subr.bf16.mxu0 0
          %8434 = vmatpush1.bf16.msra.mxu0 0
          %8435 = vmatprep.subr.bf16.mxu0 0
          %8436 = vmatpush1.bf16.msra.mxu0 0
          %8437 = vmatprep.subr.bf16.mxu0 0
          %8438 = vmatpush1.bf16.msra.mxu0 0
          %8439 = vmatprep.subr.bf16.mxu0 0
          %8440 = vmatpush1.bf16.msra.mxu0 0
          %8441 = vmatprep.subr.bf16.mxu0 0
          %8442 = vmatpush1.bf16.msra.mxu0 %v8423
          %8443 = vmatprep.subr.bf16.mxu0 0
          %8444 = vmatpush1.bf16.msra.mxu0 %v8422
          %8445 = vmatprep.subr.bf16.mxu0 0
          %8446 = vmatpush2.bf16.msra.mxu0 0
          %8447 = vmatprep.subr.bf16.mxu0 0
          %8448 = vmatpush2.bf16.msra.mxu0 0
          %8449 = vmatprep.subr.bf16.mxu0 0
          %8450 = vmatpush2.bf16.msra.mxu0 0
          %8451 = vmatprep.subr.bf16.mxu0 0
          %8452 = vmatpush2.bf16.msra.mxu0 0
          %8453 = vmatprep.subr.bf16.mxu0 0
          %8454 = vmatpush2.bf16.msra.mxu0 0
          %8455 = vmatprep.subr.bf16.mxu0 0
          %8456 = vmatpush2.bf16.msra.mxu0 0
          %8457 = vmatprep.subr.bf16.mxu0 0
          %8458 = vmatpush2.bf16.msra.mxu0 0
          %8459 = vmatprep.subr.bf16.mxu0 0
          %8460 = vmatpush2.bf16.msra.mxu0 0
          %8461 = vmatprep.mubr.bf16.mxu0 0
          %8462 = vmatmul.mubr.bf16.gmra.mxu0 %v8427
          %v8463 = vpop.f32.mrf.mxu0
          %v8464 = vadd.f32 %v8412, %v8463
          %v8465 = vpop.f32.mrf.mxu0
          %v8466 = vpop.f32.mrf.mxu0
          %v8467 = vpop.f32.mrf.mxu0
          %8468 = vdwg.mxu0
          %8469 = vst [vmem:[#allocation12] sm:$0xf] %v8464
        $region256: #{tpu_custom_call.1} parent=227 // pred_fallthru
          _
        %s8470 = sand.u32 %s377, 1
        %s8471 = scalar_lea.sflag [#allocation11], %s8470
        %s8472 = sand.u32 %s377, 1
        %s8473 = smul.addr %s8472, 64
        %s8474 = scalar_lea.vmem [#allocation10], %s8473
        // Predicated region
        $region257: #{tpu_custom_call.1} parent=227 // pred_check
          %p8475 = pneg %p387
        $region258: #{tpu_custom_call.1} parent=227 // pred_check_branch
          %8477 = sbr.rel (%p8475) target = $region260
        $region259: #{tpu_custom_call.1} parent=227 // pred_region
          #allocation15 [shape = 'u32[6]{0}', space=smem, size = 0x18, scoped, tag = 'DMA stride descriptor']
          %s8478 = smul.u32 4, %s34
          %s8480 = ssub.s32 1024, 1024
          %8481 = vsyncadd %s8471, %s8480
          %s8482 = smul.addr %s8478, 64
          %s8483 = scalar_lea.hbm %s16, %s8482
          %s8485 = sshll.u32 1, 14
          %s8486 = sxor.u32 4294967295, %s8485
          %s8489 = sshll.u32 7, 18
          %s8490 = sxor.u32 4294967295, %s8489
          %s8491 = sand.u32 0, %s8490
          %s8493 = sor.u32 %s8491, 0
          %s8494 = sshll.u32 %s8474, 4
          %s8495 = int_to_ptr.vmem [resolvable:$true] %s8494
          %8501 = sst [smem:[#allocation15]] 256
          %s8502 = scalar_lea.smem [#allocation15], 1
          %8503 = sst [smem:[%s8502]] 768
          %s8504 = scalar_lea.smem [#allocation15], 2
          %8505 = sst [smem:[%s8504]] 4
          %s8506 = scalar_lea.smem [#allocation15], 3
          %8507 = sst [smem:[%s8506]] 64
          %s8508 = scalar_lea.smem [#allocation15], 4
          %8509 = sst [smem:[%s8508]] 64
          %s8510 = scalar_lea.smem [#allocation15], 5
          %8511 = sst [smem:[%s8510]] 4
          %8513 = dma.general %s8495, 1024, %s8483, %s8471, 131072, [#allocation15], %s8493, 0
        $region260: #{tpu_custom_call.1} parent=227 // pred_fallthru
          _
        // Predicated region
        $region261: #{tpu_custom_call.1} parent=227 // pred_check
          %p8514 = pneg %p408
        $region262: #{tpu_custom_call.1} parent=227 // pred_check_branch
          %8516 = sbr.rel (%p8514) target = $region264
        $region263: #{tpu_custom_call.1} parent=227 // pred_region
          %s8518 = ssub.s32 64, 64
          %8519 = vsyncadd [#allocation13], %s8518
          %s8521 = sshll.u32 [#allocation12], 4
          %s8522 = int_to_ptr.vmem [resolvable:$true] %s8521
          %8524 = dma.vmem_to_hbm [thread:$0]  %s8522, 64, %s17, [#allocation13]
        $region264: #{tpu_custom_call.1} parent=227 // pred_fallthru
          _
        // Predicated region
        $region265: #{tpu_custom_call.1} parent=227 // pred_check
          %p8525 = pneg %p408
        $region266: #{tpu_custom_call.1} parent=227 // pred_check_branch
          %8527 = sbr.rel (%p8525) target = $region268
        $region267: #{tpu_custom_call.1} parent=227 // pred_region
          %8528 = dma.done [#allocation13], 64
        $region268: #{tpu_custom_call.1} parent=227 // pred_fallthru
          _
      $region228: #{tpu_custom_call.1} parent=5 // pred_fallthru
        _
      %p8529 = scmp.le.s32.totalorder 2, %s29
      // Predicated region
      $region269: #{tpu_custom_call.1} parent=5 // pred_check
        %p8530 = pneg %p8529
      $region270: #{tpu_custom_call.1} parent=5 // pred_check_branch
        %8532 = sbr.rel (%p8530) target = $region272
      $region271: #{tpu_custom_call.1} parent=5 // pred_region
        %s8533 = ssub.s32 %s29, 2
        // Predicated region
        $region273: #{tpu_custom_call.1} parent=271 // pred_check
          %p8534 = pneg %p393
        $region274: #{tpu_custom_call.1} parent=271 // pred_check_branch
          %8536 = sbr.rel (%p8534) target = $region276
        $region275: #{tpu_custom_call.1} parent=271 // pred_region
          %s8537 = sand.u32 %s378, 1
          %s8538 = scalar_lea.sflag [#allocation11], %s8537
          %s8539 = sand.u32 %s378, 1
          %s8540 = smul.addr %s8539, 64
          %s8541 = scalar_lea.vmem [#allocation10], %s8540
          %8542 = dma.done %s8538, 1024
        $region276: #{tpu_custom_call.1} parent=271 // pred_fallthru
          _
      $region272: #{tpu_custom_call.1} parent=5 // pred_fallthru
        _
    $region6: #{tpu_custom_call.1} parent=1 // loop_footer
      %s33 = sadd.s32 1, %s29
    $region7: #{tpu_custom_call.1} parent=1 // loop_footer_branch
      %28 = sbr.rel target = $region3
    $region8: #{tpu_custom_call.1} parent=1 // loop_exit
      _
    %8543 = vsyncpa [#allocation11], 1
    %s8544 = scalar_lea.sflag [#allocation11], 1
    %8545 = vsyncpa %s8544, 1
    %8546 = vsyncpa [#allocation13], 1

</llo_original>
